<compile_context>
chip_gen: v5e
topology: v5e:2x2
jax: 0.10.0
libtpu: 0.0.40
codegen_flags: <defaults>
</compile_context>

<pallas_src>
import jax
import jax.numpy as jnp
from jax import lax
from jax.experimental import pallas as pl
from jax.experimental.pallas import tpu as pltpu

LANE = 128


def _round_up(x, m):
    return ((x + m - 1) // m) * m


def _pad_axis(a, target, axis):
    amt = target - a.shape[axis]
    if amt == 0:
        return a
    widths = [(0, 0)] * a.ndim
    widths[axis] = (0, amt)
    return jnp.pad(a, widths)


def bottleneck_kernel(x_ref, w1_ref, s1_ref, b1_ref,
                      w2_ref, s2_ref, b2_ref,
                      w3_ref, s3_ref, b3_ref,
                      o_ref, pad_ref):
    Nb, H, W, Cin = x_ref.shape
    Cm = w2_ref.shape[1]          # padded inner channels
    Cout = w3_ref.shape[1]        # padded output channels (== Cin here)

    # Zero only the 1-pixel halo of the persistent pad scratch.  The interior
    # is fully overwritten for every image below.  Done every grid step (cheap:
    # 2 rows + 2 columns) so it is correct even if the batch grid axis is
    # sharded across TensorCores and this core never sees program_id == 0.
    zrow = jnp.zeros((1, W + 2, Cm), jnp.bfloat16)
    zcol = jnp.zeros((H + 2, 1, Cm), jnp.bfloat16)
    pad_ref[0:1, :, :] = zrow
    pad_ref[H + 1:H + 2, :, :] = zrow
    pad_ref[:, 0:1, :] = zcol
    pad_ref[:, W + 1:W + 2, :] = zcol

    for b in range(Nb):                       # static unroll over images in the block
        x_f32 = x_ref[b].reshape(H * W, Cin)  # f32, kept for the skip add
        x_bf = x_f32.astype(jnp.bfloat16)

        # ---- conv1: 1x1, folded BN, ReLU  (bf16 matmul, f32 accumulate/BN) ----
        h1 = jnp.dot(x_bf, w1_ref[...], preferred_element_type=jnp.float32)
        h1 = jnp.maximum(h1 * s1_ref[...] + b1_ref[...], 0.0)          # (H*W, Cm) f32

        # write interior of the padded activation buffer (bf16)
        pad_ref[1:H + 1, 1:W + 1, :] = h1.reshape(H, W, Cm).astype(jnp.bfloat16)

        # ---- conv2: 3x3 grouped (block-diag weights stacked along K) as ONE
        #      im2col matmul.  Hoist the 3 sublane-offset dx windows; the dy
        #      shifts are free leading-dim slices. ----
        shifted = [pad_ref[:, dx:dx + W, :] for dx in range(3)]        # (H+2, W, Cm) bf16
        patches = [shifted[dx][dy:dy + H].reshape(H * W, Cm)
                   for dy in range(3) for dx in range(3)]              # tap order t = dy*3+dx
        col = jnp.concatenate(patches, axis=1)                         # (H*W, 9*Cm) bf16
        h2 = jnp.dot(col, w2_ref[...], preferred_element_type=jnp.float32)
        h2 = jnp.maximum(h2 * s2_ref[...] + b2_ref[...], 0.0)          # (H*W, Cm) f32

        # ---- conv3: 1x1 -> expansion*Cm, folded BN ----
        h3 = jnp.dot(h2.astype(jnp.bfloat16), w3_ref[...],
                     preferred_element_type=jnp.float32)
        h3 = h3 * s3_ref[...] + b3_ref[...]                            # (H*W, Cout) f32

        # ---- skip connection (projection=None) + ReLU, all f32 ----
        out = jnp.maximum(h3 + x_f32, 0.0)
        o_ref[b] = out.reshape(H, W, Cout).astype(o_ref.dtype)


def bottleneck_pallas(x_nhwc, w1, s1, b1, w2, s2, b2, w3, s3, b3,
                      *, images_per_block=1):
    N, H, W, Cin = x_nhwc.shape
    Cm = w2.shape[1]
    Cout = w3.shape[1]
    # projection=None path: skip add requires matching channel counts.
    assert Cin == Cout, "projection=None requires in_channels == out_channels * 1"
    assert N % images_per_block == 0
    Nb = images_per_block

    full = lambda shape: pl.BlockSpec(shape, lambda n: (0,) * len(shape))

    return pl.pallas_call(
        bottleneck_kernel,
        out_shape=jax.ShapeDtypeStruct((N, H, W, Cout), jnp.float32),
        grid_spec=pltpu.PrefetchScalarGridSpec(
            num_scalar_prefetch=0,
            grid=(N // Nb,),
            in_specs=[
                pl.BlockSpec((Nb, H, W, Cin), lambda n: (n, 0, 0, 0)),
                full(w1.shape), full(s1.shape), full(b1.shape),
                full(w2.shape), full(s2.shape), full(b2.shape),
                full(w3.shape), full(s3.shape), full(b3.shape),
            ],
            out_specs=pl.BlockSpec((Nb, H, W, Cout), lambda n: (n, 0, 0, 0)),
            scratch_shapes=[pltpu.VMEM((H + 2, W + 2, Cm), jnp.bfloat16)],
        ),
        compiler_params=pltpu.CompilerParams(
            dimension_semantics=("parallel",),
            vmem_limit_bytes=32 * 1024 * 1024,
        ),
    )(x_nhwc, w1, s1, b1, w2, s2, b2, w3, s3, b3)


def prepare_params(w1_oihw, bn1, w2_oihw, bn2, w3_oihw, bn3, cardinality, eps=1e-5):
    """Fold BN, block-diagonalize the grouped conv, pad channels to 128, cast
    matmul weights to bf16 (scales/biases stay f32)."""
    Cm, Cin = w1_oihw.shape[0], w1_oihw.shape[1]
    Cout = w3_oihw.shape[0]
    gc = Cm // cardinality
    Cin_p, Cm_p, Cout_p = (_round_up(c, LANE) for c in (Cin, Cm, Cout))

    # 1x1 convs -> (Cin, Cout) matmul weights, padded, bf16
    w1 = _pad_axis(_pad_axis(jnp.transpose(w1_oihw[:, :, 0, 0]), Cin_p, 0), Cm_p, 1)
    w3 = _pad_axis(_pad_axis(jnp.transpose(w3_oihw[:, :, 0, 0]), Cm_p, 0), Cout_p, 1)

    # grouped 3x3 -> per-tap block-diagonal (Cm_p, Cm_p) weights stacked along K
    # (im2col layout, tap order t = ky*3 + kx), rows = input ch, cols = output ch.
    w2 = jnp.zeros((9, Cm_p, Cm_p), jnp.float32)
    for ky in range(3):
        for kx in range(3):
            t = ky * 3 + kx
            for g in range(cardinality):
                blk = w2_oihw[g * gc:(g + 1) * gc, :, ky, kx]      # (out_gc, in_gc)
                w2 = w2.at[t, g * gc:(g + 1) * gc, g * gc:(g + 1) * gc].set(blk.T)
    w2 = w2.reshape(9 * Cm_p, Cm_p)

    def fold(p, cp):
        g_, b_, m_, v_ = p
        s = g_ / jnp.sqrt(v_ + eps)
        b = b_ - m_ * s
        return (_pad_axis(s.reshape(1, -1), cp, 1),
                _pad_axis(b.reshape(1, -1), cp, 1))

    s1, b1 = fold(bn1, Cm_p)
    s2, b2 = fold(bn2, Cm_p)
    s3, b3 = fold(bn3, Cout_p)

    bf = jnp.bfloat16
    params = (w1.astype(bf), s1, b1, w2.astype(bf), s2, b2, w3.astype(bf), s3, b3)
    return params, (Cin_p, Cm_p, Cout_p)


def torch_style_reference(x_nchw, w1_oihw, bn1, w2_oihw, bn2, w3_oihw, bn3,
                          cardinality, eps=1e-5):
    """Pure-JAX NCHW reference mirroring the PyTorch module (eval-mode BN), f32."""
    dn = ("NCHW", "OIHW", "NCHW")

    def bn(y, p):
        g, b, m, v = p
        return (g[None, :, None, None] * (y - m[None, :, None, None])
                / jnp.sqrt(v[None, :, None, None] + eps)
                + b[None, :, None, None])

    y = lax.conv_general_dilated(x_nchw, w1_oihw, (1, 1), "VALID",
                                 dimension_numbers=dn)
    y = jax.nn.relu(bn(y, bn1))
    y = lax.conv_general_dilated(y, w2_oihw, (1, 1), ((1, 1), (1, 1)),
                                 dimension_numbers=dn,
                                 feature_group_count=cardinality)
    y = jax.nn.relu(bn(y, bn2))
    y = lax.conv_general_dilated(y, w3_oihw, (1, 1), "VALID",
                                 dimension_numbers=dn)
    y = bn(y, bn3)
    return jax.nn.relu(y + x_nchw)


if __name__ == "__main__":
    # Small deterministic configuration: projection=None requires
    # in_channels == inner_channels * expansion and stride == 1.
    N, H, W = 4, 16, 16
    inner_channels = 4
    cardinality = 2
    expansion = 2
    in_channels = inner_channels * expansion          # 8
    out_channels = inner_channels * expansion         # 8
    gc = inner_channels // cardinality                # per-group channels

    key = jax.random.PRNGKey(0)
    ks = jax.random.split(key, 16)

    x_nchw = jax.random.normal(ks[0], (N, in_channels, H, W), jnp.float32)

    # PyTorch-shaped conv weights (OIHW)
    w1_oihw = 0.2 * jax.random.normal(ks[1], (inner_channels, in_channels, 1, 1), jnp.float32)
    w2_oihw = 0.2 * jax.random.normal(ks[2], (inner_channels, gc, 3, 3), jnp.float32)
    w3_oihw = 0.2 * jax.random.normal(ks[3], (out_channels, inner_channels, 1, 1), jnp.float32)

    def bn_params(k, c):
        k1, k2, k3, k4 = jax.random.split(k, 4)
        gamma = 1.0 + 0.1 * jax.random.normal(k1, (c,), jnp.float32)
        beta = 0.1 * jax.random.normal(k2, (c,), jnp.float32)
        mean = 0.1 * jax.random.normal(k3, (c,), jnp.float32)
        var = jnp.abs(jax.random.normal(k4, (c,), jnp.float32)) + 0.5
        return gamma, beta, mean, var

    bn1 = bn_params(ks[4], inner_channels)
    bn2 = bn_params(ks[5], inner_channels)
    bn3 = bn_params(ks[6], out_channels)

    # ---- prep: BN folding, block-diagonalization, channel padding, bf16 cast ----
    params, (Cin_p, Cm_p, Cout_p) = prepare_params(
        w1_oihw, bn1, w2_oihw, bn2, w3_oihw, bn3, cardinality)

    # ---- run the Pallas kernel (NHWC layout, channels padded to 128) ----
    x_nhwc = _pad_axis(jnp.transpose(x_nchw, (0, 2, 3, 1)), Cin_p, 3)
    out_nhwc_p = bottleneck_pallas(x_nhwc, *params, images_per_block=2)
    out_nhwc_p = jax.block_until_ready(out_nhwc_p)
    out_nchw = jnp.transpose(out_nhwc_p[..., :out_channels], (0, 3, 1, 2))

    # ---- verify against pure-JAX f32 NCHW reference of the PyTorch module ----
    ref = torch_style_reference(x_nchw, w1_oihw, bn1, w2_oihw, bn2, w3_oihw, bn3,
                                cardinality)
    assert out_nchw.shape == ref.shape == (N, out_channels, H, W)
    # bf16 matmul inputs (f32 accumulation) -> tolerance looser than pure-f32.
    assert jnp.allclose(out_nchw, ref, atol=3e-2, rtol=3e-2), (
        float(jnp.max(jnp.abs(out_nchw - ref))))

    print("KERNEL_OK")
</pallas_src>

<mosaic_0001>
module attributes {stable_mosaic.version = 11 : i64} {
  func.func @bottleneck_kernel(%arg0: i32, %arg1: memref<2x16x16x128xf32, #tpu.memory_space<vmem>>, %arg2: memref<128x128xbf16, #tpu.memory_space<vmem>>, %arg3: memref<1x128xf32, #tpu.memory_space<vmem>>, %arg4: memref<1x128xf32, #tpu.memory_space<vmem>>, %arg5: memref<1152x128xbf16, #tpu.memory_space<vmem>>, %arg6: memref<1x128xf32, #tpu.memory_space<vmem>>, %arg7: memref<1x128xf32, #tpu.memory_space<vmem>>, %arg8: memref<128x128xbf16, #tpu.memory_space<vmem>>, %arg9: memref<1x128xf32, #tpu.memory_space<vmem>>, %arg10: memref<1x128xf32, #tpu.memory_space<vmem>>, %arg11: memref<2x16x16x128xf32, #tpu.memory_space<vmem>>, %arg12: memref<18x18x128xbf16, #tpu.memory_space<vmem>>) attributes {dimension_semantics = [#tpu.dimension_semantics<parallel>], iteration_bounds = array<i64: 2>, scalar_prefetch = 0 : i64, scratch_operands = 1 : i64, tpu.core_type = #tpu.core_type<tc>, window_params = [{transform_indices = @transform_0, window_bounds = array<i64: 2, 16, 16, 128>}, {pipeline_mode = #tpu.pipeline_mode<synchronous>, transform_indices = @transform_1, window_bounds = array<i64: 128, 128>}, {pipeline_mode = #tpu.pipeline_mode<synchronous>, transform_indices = @transform_2, window_bounds = array<i64: 1, 128>}, {pipeline_mode = #tpu.pipeline_mode<synchronous>, transform_indices = @transform_3, window_bounds = array<i64: 1, 128>}, {pipeline_mode = #tpu.pipeline_mode<synchronous>, transform_indices = @transform_4, window_bounds = array<i64: 1152, 128>}, {pipeline_mode = #tpu.pipeline_mode<synchronous>, transform_indices = @transform_5, window_bounds = array<i64: 1, 128>}, {pipeline_mode = #tpu.pipeline_mode<synchronous>, transform_indices = @transform_6, window_bounds = array<i64: 1, 128>}, {pipeline_mode = #tpu.pipeline_mode<synchronous>, transform_indices = @transform_7, window_bounds = array<i64: 128, 128>}, {pipeline_mode = #tpu.pipeline_mode<synchronous>, transform_indices = @transform_8, window_bounds = array<i64: 1, 128>}, {pipeline_mode = #tpu.pipeline_mode<synchronous>, transform_indices = @transform_9, window_bounds = array<i64: 1, 128>}, {transform_indices = @transform_10, window_bounds = array<i64: 2, 16, 16, 128>}]} {
    %cst = arith.constant 0.000000e+00 : bf16
    %0 = vector.broadcast %cst : bf16 to vector<1x18x128xbf16>
    %cst_0 = arith.constant 0.000000e+00 : bf16
    %1 = vector.broadcast %cst_0 : bf16 to vector<18x1x128xbf16>
    %c0 = arith.constant 0 : index
    %c0_1 = arith.constant 0 : index
    %c0_2 = arith.constant 0 : index
    %2 = vector.load %arg12[%c0, %c0_1, %c0_2] : memref<18x18x128xbf16, #tpu.memory_space<vmem>>, vector<1x18x128xbf16>
    tpu.vector_store %arg12[%c0, %c0_1, %c0_2], %0 {strides = array<i32>} : memref<18x18x128xbf16, #tpu.memory_space<vmem>>, vector<1x18x128xbf16>,
    %c17 = arith.constant 17 : index
    %c0_3 = arith.constant 0 : index
    %c0_4 = arith.constant 0 : index
    %3 = vector.load %arg12[%c17, %c0_3, %c0_4] : memref<18x18x128xbf16, #tpu.memory_space<vmem>>, vector<1x18x128xbf16>
    tpu.vector_store %arg12[%c17, %c0_3, %c0_4], %0 {strides = array<i32>} : memref<18x18x128xbf16, #tpu.memory_space<vmem>>, vector<1x18x128xbf16>,
    %c0_5 = arith.constant 0 : index
    %c0_6 = arith.constant 0 : index
    %c0_7 = arith.constant 0 : index
    %4 = vector.load %arg12[%c0_5, %c0_6, %c0_7] : memref<18x18x128xbf16, #tpu.memory_space<vmem>>, vector<18x1x128xbf16>
    tpu.vector_store %arg12[%c0_5, %c0_6, %c0_7], %1 {strides = array<i32>} : memref<18x18x128xbf16, #tpu.memory_space<vmem>>, vector<18x1x128xbf16>,
    %c0_8 = arith.constant 0 : index
    %c17_9 = arith.constant 17 : index
    %c0_10 = arith.constant 0 : index
    %5 = vector.load %arg12[%c0_8, %c17_9, %c0_10] : memref<18x18x128xbf16, #tpu.memory_space<vmem>>, vector<18x1x128xbf16>
    tpu.vector_store %arg12[%c0_8, %c17_9, %c0_10], %1 {strides = array<i32>} : memref<18x18x128xbf16, #tpu.memory_space<vmem>>, vector<18x1x128xbf16>,
    %c0_11 = arith.constant 0 : index
    %c0_12 = arith.constant 0 : index
    %c0_13 = arith.constant 0 : index
    %c0_14 = arith.constant 0 : index
    %6 = vector.load %arg1[%c0_11, %c0_12, %c0_13, %c0_14] : memref<2x16x16x128xf32, #tpu.memory_space<vmem>>, vector<1x16x16x128xf32>
    %7 = vector.shape_cast %6 : vector<1x16x16x128xf32> to vector<16x16x128xf32>
    %8 = vector.shape_cast %7 : vector<16x16x128xf32> to vector<256x128xf32>
    %9 = arith.truncf %8 : vector<256x128xf32> to vector<256x128xbf16>
    %c0_15 = arith.constant 0 : index
    %c0_16 = arith.constant 0 : index
    %10 = vector.load %arg2[%c0_15, %c0_16] : memref<128x128xbf16, #tpu.memory_space<vmem>>, vector<128x128xbf16>
    %cst_17 = arith.constant dense<0.000000e+00> : vector<256x128xf32>
    %11 = tpu.matmul %9, %10, %cst_17 {dimension_numbers = #tpu.dot_dimension_numbers<[1], [0], [0], [1], [0, 0, 1, 1], [], []>} : vector<256x128xbf16>, vector<128x128xbf16>, vector<256x128xf32> -> vector<256x128xf32>
    %c0_18 = arith.constant 0 : index
    %c0_19 = arith.constant 0 : index
    %12 = vector.load %arg3[%c0_18, %c0_19] : memref<1x128xf32, #tpu.memory_space<vmem>>, vector<1x128xf32>
    %13 = vector.broadcast %12 : vector<1x128xf32> to vector<256x128xf32>
    %14 = arith.mulf %11, %13 : vector<256x128xf32>
    %c0_20 = arith.constant 0 : index
    %c0_21 = arith.constant 0 : index
    %15 = vector.load %arg4[%c0_20, %c0_21] : memref<1x128xf32, #tpu.memory_space<vmem>>, vector<1x128xf32>
    %16 = vector.broadcast %15 : vector<1x128xf32> to vector<256x128xf32>
    %17 = arith.addf %14, %16 : vector<256x128xf32>
    %cst_22 = arith.constant 0.000000e+00 : f32
    %18 = vector.broadcast %cst_22 : f32 to vector<256x128xf32>
    %19 = arith.maximumf %17, %18 : vector<256x128xf32>
    %20 = vector.shape_cast %19 : vector<256x128xf32> to vector<16x16x128xf32>
    %21 = arith.truncf %20 : vector<16x16x128xf32> to vector<16x16x128xbf16>
    %c1 = arith.constant 1 : index
    %c1_23 = arith.constant 1 : index
    %c0_24 = arith.constant 0 : index
    %22 = vector.load %arg12[%c1, %c1_23, %c0_24] : memref<18x18x128xbf16, #tpu.memory_space<vmem>>, vector<16x16x128xbf16>
    tpu.vector_store %arg12[%c1, %c1_23, %c0_24], %21 {strides = array<i32>} : memref<18x18x128xbf16, #tpu.memory_space<vmem>>, vector<16x16x128xbf16>,
    %c0_25 = arith.constant 0 : index
    %c0_26 = arith.constant 0 : index
    %c0_27 = arith.constant 0 : index
    %23 = vector.load %arg12[%c0_25, %c0_26, %c0_27] : memref<18x18x128xbf16, #tpu.memory_space<vmem>>, vector<18x16x128xbf16>
    %c0_28 = arith.constant 0 : index
    %c1_29 = arith.constant 1 : index
    %c0_30 = arith.constant 0 : index
    %24 = vector.load %arg12[%c0_28, %c1_29, %c0_30] : memref<18x18x128xbf16, #tpu.memory_space<vmem>>, vector<18x16x128xbf16>
    %c0_31 = arith.constant 0 : index
    %c2 = arith.constant 2 : index
    %c0_32 = arith.constant 0 : index
    %25 = vector.load %arg12[%c0_31, %c2, %c0_32] : memref<18x18x128xbf16, #tpu.memory_space<vmem>>, vector<18x16x128xbf16>
    %26 = vector.extract_strided_slice %23 {offsets = [0, 0, 0], sizes = [16, 16, 128], strides = [1, 1, 1]} : vector<18x16x128xbf16> to vector<16x16x128xbf16>
    %27 = vector.shape_cast %26 : vector<16x16x128xbf16> to vector<256x128xbf16>
    %28 = vector.extract_strided_slice %24 {offsets = [0, 0, 0], sizes = [16, 16, 128], strides = [1, 1, 1]} : vector<18x16x128xbf16> to vector<16x16x128xbf16>
    %29 = vector.shape_cast %28 : vector<16x16x128xbf16> to vector<256x128xbf16>
    %30 = vector.extract_strided_slice %25 {offsets = [0, 0, 0], sizes = [16, 16, 128], strides = [1, 1, 1]} : vector<18x16x128xbf16> to vector<16x16x128xbf16>
    %31 = vector.shape_cast %30 : vector<16x16x128xbf16> to vector<256x128xbf16>
    %32 = vector.extract_strided_slice %23 {offsets = [1, 0, 0], sizes = [16, 16, 128], strides = [1, 1, 1]} : vector<18x16x128xbf16> to vector<16x16x128xbf16>
    %33 = vector.shape_cast %32 : vector<16x16x128xbf16> to vector<256x128xbf16>
    %34 = vector.extract_strided_slice %24 {offsets = [1, 0, 0], sizes = [16, 16, 128], strides = [1, 1, 1]} : vector<18x16x128xbf16> to vector<16x16x128xbf16>
    %35 = vector.shape_cast %34 : vector<16x16x128xbf16> to vector<256x128xbf16>
    %36 = vector.extract_strided_slice %25 {offsets = [1, 0, 0], sizes = [16, 16, 128], strides = [1, 1, 1]} : vector<18x16x128xbf16> to vector<16x16x128xbf16>
    %37 = vector.shape_cast %36 : vector<16x16x128xbf16> to vector<256x128xbf16>
    %38 = vector.extract_strided_slice %23 {offsets = [2, 0, 0], sizes = [16, 16, 128], strides = [1, 1, 1]} : vector<18x16x128xbf16> to vector<16x16x128xbf16>
    %39 = vector.shape_cast %38 : vector<16x16x128xbf16> to vector<256x128xbf16>
    %40 = vector.extract_strided_slice %24 {offsets = [2, 0, 0], sizes = [16, 16, 128], strides = [1, 1, 1]} : vector<18x16x128xbf16> to vector<16x16x128xbf16>
    %41 = vector.shape_cast %40 : vector<16x16x128xbf16> to vector<256x128xbf16>
    %42 = vector.extract_strided_slice %25 {offsets = [2, 0, 0], sizes = [16, 16, 128], strides = [1, 1, 1]} : vector<18x16x128xbf16> to vector<16x16x128xbf16>
    %43 = vector.shape_cast %42 : vector<16x16x128xbf16> to vector<256x128xbf16>
    %44 = tpu.concatenate %27, %29, %31, %33, %35, %37, %39, %41, %43 in 1 : vector<256x128xbf16>, vector<256x128xbf16>, vector<256x128xbf16>, vector<256x128xbf16>, vector<256x128xbf16>, vector<256x128xbf16>, vector<256x128xbf16>, vector<256x128xbf16>, vector<256x128xbf16> -> vector<256x1152xbf16>
    %c0_33 = arith.constant 0 : index
    %c0_34 = arith.constant 0 : index
    %45 = vector.load %arg5[%c0_33, %c0_34] : memref<1152x128xbf16, #tpu.memory_space<vmem>>, vector<1152x128xbf16>
    %cst_35 = arith.constant dense<0.000000e+00> : vector<256x128xf32>
    %46 = tpu.matmul %44, %45, %cst_35 {dimension_numbers = #tpu.dot_dimension_numbers<[1], [0], [0], [1], [0, 0, 1, 1], [], []>} : vector<256x1152xbf16>, vector<1152x128xbf16>, vector<256x128xf32> -> vector<256x128xf32>
    %c0_36 = arith.constant 0 : index
    %c0_37 = arith.constant 0 : index
    %47 = vector.load %arg6[%c0_36, %c0_37] : memref<1x128xf32, #tpu.memory_space<vmem>>, vector<1x128xf32>
    %48 = vector.broadcast %47 : vector<1x128xf32> to vector<256x128xf32>
    %49 = arith.mulf %46, %48 : vector<256x128xf32>
    %c0_38 = arith.constant 0 : index
    %c0_39 = arith.constant 0 : index
    %50 = vector.load %arg7[%c0_38, %c0_39] : memref<1x128xf32, #tpu.memory_space<vmem>>, vector<1x128xf32>
    %51 = vector.broadcast %50 : vector<1x128xf32> to vector<256x128xf32>
    %52 = arith.addf %49, %51 : vector<256x128xf32>
    %cst_40 = arith.constant 0.000000e+00 : f32
    %53 = vector.broadcast %cst_40 : f32 to vector<256x128xf32>
    %54 = arith.maximumf %52, %53 : vector<256x128xf32>
    %55 = arith.truncf %54 : vector<256x128xf32> to vector<256x128xbf16>
    %c0_41 = arith.constant 0 : index
    %c0_42 = arith.constant 0 : index
    %56 = vector.load %arg8[%c0_41, %c0_42] : memref<128x128xbf16, #tpu.memory_space<vmem>>, vector<128x128xbf16>
    %cst_43 = arith.constant dense<0.000000e+00> : vector<256x128xf32>
    %57 = tpu.matmul %55, %56, %cst_43 {dimension_numbers = #tpu.dot_dimension_numbers<[1], [0], [0], [1], [0, 0, 1, 1], [], []>} : vector<256x128xbf16>, vector<128x128xbf16>, vector<256x128xf32> -> vector<256x128xf32>
    %c0_44 = arith.constant 0 : index
    %c0_45 = arith.constant 0 : index
    %58 = vector.load %arg9[%c0_44, %c0_45] : memref<1x128xf32, #tpu.memory_space<vmem>>, vector<1x128xf32>
    %59 = vector.broadcast %58 : vector<1x128xf32> to vector<256x128xf32>
    %60 = arith.mulf %57, %59 : vector<256x128xf32>
    %c0_46 = arith.constant 0 : index
    %c0_47 = arith.constant 0 : index
    %61 = vector.load %arg10[%c0_46, %c0_47] : memref<1x128xf32, #tpu.memory_space<vmem>>, vector<1x128xf32>
    %62 = vector.broadcast %61 : vector<1x128xf32> to vector<256x128xf32>
    %63 = arith.addf %60, %62 : vector<256x128xf32>
    %64 = arith.addf %63, %8 : vector<256x128xf32>
    %cst_48 = arith.constant 0.000000e+00 : f32
    %65 = vector.broadcast %cst_48 : f32 to vector<256x128xf32>
    %66 = arith.maximumf %64, %65 : vector<256x128xf32>
    %67 = vector.shape_cast %66 : vector<256x128xf32> to vector<16x16x128xf32>
    %c0_49 = arith.constant 0 : index
    %c0_50 = arith.constant 0 : index
    %c0_51 = arith.constant 0 : index
    %c0_52 = arith.constant 0 : index
    %68 = vector.load %arg11[%c0_49, %c0_50, %c0_51, %c0_52] : memref<2x16x16x128xf32, #tpu.memory_space<vmem>>, vector<1x16x16x128xf32>
    %69 = vector.shape_cast %68 : vector<1x16x16x128xf32> to vector<16x16x128xf32>
    %70 = vector.shape_cast %67 : vector<16x16x128xf32> to vector<1x16x16x128xf32>
    tpu.vector_store %arg11[%c0_49, %c0_50, %c0_51, %c0_52], %70 {strides = array<i32>} : memref<2x16x16x128xf32, #tpu.memory_space<vmem>>, vector<1x16x16x128xf32>,
    %c1_53 = arith.constant 1 : index
    %c0_54 = arith.constant 0 : index
    %c0_55 = arith.constant 0 : index
    %c0_56 = arith.constant 0 : index
    %71 = vector.load %arg1[%c1_53, %c0_54, %c0_55, %c0_56] : memref<2x16x16x128xf32, #tpu.memory_space<vmem>>, vector<1x16x16x128xf32>
    %72 = vector.shape_cast %71 : vector<1x16x16x128xf32> to vector<16x16x128xf32>
    %73 = vector.shape_cast %72 : vector<16x16x128xf32> to vector<256x128xf32>
    %74 = arith.truncf %73 : vector<256x128xf32> to vector<256x128xbf16>
    %c0_57 = arith.constant 0 : index
    %c0_58 = arith.constant 0 : index
    %75 = vector.load %arg2[%c0_57, %c0_58] : memref<128x128xbf16, #tpu.memory_space<vmem>>, vector<128x128xbf16>
    %cst_59 = arith.constant dense<0.000000e+00> : vector<256x128xf32>
    %76 = tpu.matmul %74, %75, %cst_59 {dimension_numbers = #tpu.dot_dimension_numbers<[1], [0], [0], [1], [0, 0, 1, 1], [], []>} : vector<256x128xbf16>, vector<128x128xbf16>, vector<256x128xf32> -> vector<256x128xf32>
    %c0_60 = arith.constant 0 : index
    %c0_61 = arith.constant 0 : index
    %77 = vector.load %arg3[%c0_60, %c0_61] : memref<1x128xf32, #tpu.memory_space<vmem>>, vector<1x128xf32>
    %78 = vector.broadcast %77 : vector<1x128xf32> to vector<256x128xf32>
    %79 = arith.mulf %76, %78 : vector<256x128xf32>
    %c0_62 = arith.constant 0 : index
    %c0_63 = arith.constant 0 : index
    %80 = vector.load %arg4[%c0_62, %c0_63] : memref<1x128xf32, #tpu.memory_space<vmem>>, vector<1x128xf32>
    %81 = vector.broadcast %80 : vector<1x128xf32> to vector<256x128xf32>
    %82 = arith.addf %79, %81 : vector<256x128xf32>
    %cst_64 = arith.constant 0.000000e+00 : f32
    %83 = vector.broadcast %cst_64 : f32 to vector<256x128xf32>
    %84 = arith.maximumf %82, %83 : vector<256x128xf32>
    %85 = vector.shape_cast %84 : vector<256x128xf32> to vector<16x16x128xf32>
    %86 = arith.truncf %85 : vector<16x16x128xf32> to vector<16x16x128xbf16>
    %c1_65 = arith.constant 1 : index
    %c1_66 = arith.constant 1 : index
    %c0_67 = arith.constant 0 : index
    %87 = vector.load %arg12[%c1_65, %c1_66, %c0_67] : memref<18x18x128xbf16, #tpu.memory_space<vmem>>, vector<16x16x128xbf16>
    tpu.vector_store %arg12[%c1_65, %c1_66, %c0_67], %86 {strides = array<i32>} : memref<18x18x128xbf16, #tpu.memory_space<vmem>>, vector<16x16x128xbf16>,
    %c0_68 = arith.constant 0 : index
    %c0_69 = arith.constant 0 : index
    %c0_70 = arith.constant 0 : index
    %88 = vector.load %arg12[%c0_68, %c0_69, %c0_70] : memref<18x18x128xbf16, #tpu.memory_space<vmem>>, vector<18x16x128xbf16>
    %c0_71 = arith.constant 0 : index
    %c1_72 = arith.constant 1 : index
    %c0_73 = arith.constant 0 : index
    %89 = vector.load %arg12[%c0_71, %c1_72, %c0_73] : memref<18x18x128xbf16, #tpu.memory_space<vmem>>, vector<18x16x128xbf16>
    %c0_74 = arith.constant 0 : index
    %c2_75 = arith.constant 2 : index
    %c0_76 = arith.constant 0 : index
    %90 = vector.load %arg12[%c0_74, %c2_75, %c0_76] : memref<18x18x128xbf16, #tpu.memory_space<vmem>>, vector<18x16x128xbf16>
    %91 = vector.extract_strided_slice %88 {offsets = [0, 0, 0], sizes = [16, 16, 128], strides = [1, 1, 1]} : vector<18x16x128xbf16> to vector<16x16x128xbf16>
    %92 = vector.shape_cast %91 : vector<16x16x128xbf16> to vector<256x128xbf16>
    %93 = vector.extract_strided_slice %89 {offsets = [0, 0, 0], sizes = [16, 16, 128], strides = [1, 1, 1]} : vector<18x16x128xbf16> to vector<16x16x128xbf16>
    %94 = vector.shape_cast %93 : vector<16x16x128xbf16> to vector<256x128xbf16>
    %95 = vector.extract_strided_slice %90 {offsets = [0, 0, 0], sizes = [16, 16, 128], strides = [1, 1, 1]} : vector<18x16x128xbf16> to vector<16x16x128xbf16>
    %96 = vector.shape_cast %95 : vector<16x16x128xbf16> to vector<256x128xbf16>
    %97 = vector.extract_strided_slice %88 {offsets = [1, 0, 0], sizes = [16, 16, 128], strides = [1, 1, 1]} : vector<18x16x128xbf16> to vector<16x16x128xbf16>
    %98 = vector.shape_cast %97 : vector<16x16x128xbf16> to vector<256x128xbf16>
    %99 = vector.extract_strided_slice %89 {offsets = [1, 0, 0], sizes = [16, 16, 128], strides = [1, 1, 1]} : vector<18x16x128xbf16> to vector<16x16x128xbf16>
    %100 = vector.shape_cast %99 : vector<16x16x128xbf16> to vector<256x128xbf16>
    %101 = vector.extract_strided_slice %90 {offsets = [1, 0, 0], sizes = [16, 16, 128], strides = [1, 1, 1]} : vector<18x16x128xbf16> to vector<16x16x128xbf16>
    %102 = vector.shape_cast %101 : vector<16x16x128xbf16> to vector<256x128xbf16>
    %103 = vector.extract_strided_slice %88 {offsets = [2, 0, 0], sizes = [16, 16, 128], strides = [1, 1, 1]} : vector<18x16x128xbf16> to vector<16x16x128xbf16>
    %104 = vector.shape_cast %103 : vector<16x16x128xbf16> to vector<256x128xbf16>
    %105 = vector.extract_strided_slice %89 {offsets = [2, 0, 0], sizes = [16, 16, 128], strides = [1, 1, 1]} : vector<18x16x128xbf16> to vector<16x16x128xbf16>
    %106 = vector.shape_cast %105 : vector<16x16x128xbf16> to vector<256x128xbf16>
    %107 = vector.extract_strided_slice %90 {offsets = [2, 0, 0], sizes = [16, 16, 128], strides = [1, 1, 1]} : vector<18x16x128xbf16> to vector<16x16x128xbf16>
    %108 = vector.shape_cast %107 : vector<16x16x128xbf16> to vector<256x128xbf16>
    %109 = tpu.concatenate %92, %94, %96, %98, %100, %102, %104, %106, %108 in 1 : vector<256x128xbf16>, vector<256x128xbf16>, vector<256x128xbf16>, vector<256x128xbf16>, vector<256x128xbf16>, vector<256x128xbf16>, vector<256x128xbf16>, vector<256x128xbf16>, vector<256x128xbf16> -> vector<256x1152xbf16>
    %c0_77 = arith.constant 0 : index
    %c0_78 = arith.constant 0 : index
    %110 = vector.load %arg5[%c0_77, %c0_78] : memref<1152x128xbf16, #tpu.memory_space<vmem>>, vector<1152x128xbf16>
    %cst_79 = arith.constant dense<0.000000e+00> : vector<256x128xf32>
    %111 = tpu.matmul %109, %110, %cst_79 {dimension_numbers = #tpu.dot_dimension_numbers<[1], [0], [0], [1], [0, 0, 1, 1], [], []>} : vector<256x1152xbf16>, vector<1152x128xbf16>, vector<256x128xf32> -> vector<256x128xf32>
    %c0_80 = arith.constant 0 : index
    %c0_81 = arith.constant 0 : index
    %112 = vector.load %arg6[%c0_80, %c0_81] : memref<1x128xf32, #tpu.memory_space<vmem>>, vector<1x128xf32>
    %113 = vector.broadcast %112 : vector<1x128xf32> to vector<256x128xf32>
    %114 = arith.mulf %111, %113 : vector<256x128xf32>
    %c0_82 = arith.constant 0 : index
    %c0_83 = arith.constant 0 : index
    %115 = vector.load %arg7[%c0_82, %c0_83] : memref<1x128xf32, #tpu.memory_space<vmem>>, vector<1x128xf32>
    %116 = vector.broadcast %115 : vector<1x128xf32> to vector<256x128xf32>
    %117 = arith.addf %114, %116 : vector<256x128xf32>
    %cst_84 = arith.constant 0.000000e+00 : f32
    %118 = vector.broadcast %cst_84 : f32 to vector<256x128xf32>
    %119 = arith.maximumf %117, %118 : vector<256x128xf32>
    %120 = arith.truncf %119 : vector<256x128xf32> to vector<256x128xbf16>
    %c0_85 = arith.constant 0 : index
    %c0_86 = arith.constant 0 : index
    %121 = vector.load %arg8[%c0_85, %c0_86] : memref<128x128xbf16, #tpu.memory_space<vmem>>, vector<128x128xbf16>
    %cst_87 = arith.constant dense<0.000000e+00> : vector<256x128xf32>
    %122 = tpu.matmul %120, %121, %cst_87 {dimension_numbers = #tpu.dot_dimension_numbers<[1], [0], [0], [1], [0, 0, 1, 1], [], []>} : vector<256x128xbf16>, vector<128x128xbf16>, vector<256x128xf32> -> vector<256x128xf32>
    %c0_88 = arith.constant 0 : index
    %c0_89 = arith.constant 0 : index
    %123 = vector.load %arg9[%c0_88, %c0_89] : memref<1x128xf32, #tpu.memory_space<vmem>>, vector<1x128xf32>
    %124 = vector.broadcast %123 : vector<1x128xf32> to vector<256x128xf32>
    %125 = arith.mulf %122, %124 : vector<256x128xf32>
    %c0_90 = arith.constant 0 : index
    %c0_91 = arith.constant 0 : index
    %126 = vector.load %arg10[%c0_90, %c0_91] : memref<1x128xf32, #tpu.memory_space<vmem>>, vector<1x128xf32>
    %127 = vector.broadcast %126 : vector<1x128xf32> to vector<256x128xf32>
    %128 = arith.addf %125, %127 : vector<256x128xf32>
    %129 = arith.addf %128, %73 : vector<256x128xf32>
    %cst_92 = arith.constant 0.000000e+00 : f32
    %130 = vector.broadcast %cst_92 : f32 to vector<256x128xf32>
    %131 = arith.maximumf %129, %130 : vector<256x128xf32>
    %132 = vector.shape_cast %131 : vector<256x128xf32> to vector<16x16x128xf32>
    %c1_93 = arith.constant 1 : index
    %c0_94 = arith.constant 0 : index
    %c0_95 = arith.constant 0 : index
    %c0_96 = arith.constant 0 : index
    %133 = vector.load %arg11[%c1_93, %c0_94, %c0_95, %c0_96] : memref<2x16x16x128xf32, #tpu.memory_space<vmem>>, vector<1x16x16x128xf32>
    %134 = vector.shape_cast %133 : vector<1x16x16x128xf32> to vector<16x16x128xf32>
    %135 = vector.shape_cast %132 : vector<16x16x128xf32> to vector<1x16x16x128xf32>
    tpu.vector_store %arg11[%c1_93, %c0_94, %c0_95, %c0_96], %135 {strides = array<i32>} : memref<2x16x16x128xf32, #tpu.memory_space<vmem>>, vector<1x16x16x128xf32>,
    return
  }
  func.func @transform_0(%arg0: i32) -> (i32, i32, i32, i32) {
    %c0_i32 = arith.constant 0 : i32
    %c0_i32_0 = arith.constant 0 : i32
    %c0_i32_1 = arith.constant 0 : i32
    %c0_i32_2 = arith.constant 0 : i32
    return %arg0, %c0_i32, %c0_i32_0, %c0_i32_1 : i32, i32, i32, i32
  }
  func.func @transform_1(%arg0: i32) -> (i32, i32) {
    %c0_i32 = arith.constant 0 : i32
    %c0_i32_0 = arith.constant 0 : i32
    %c0_i32_1 = arith.constant 0 : i32
    return %c0_i32, %c0_i32_0 : i32, i32
  }
  func.func @transform_2(%arg0: i32) -> (i32, i32) {
    %c0_i32 = arith.constant 0 : i32
    %c0_i32_0 = arith.constant 0 : i32
    %c0_i32_1 = arith.constant 0 : i32
    return %c0_i32, %c0_i32_0 : i32, i32
  }
  func.func @transform_3(%arg0: i32) -> (i32, i32) {
    %c0_i32 = arith.constant 0 : i32
    %c0_i32_0 = arith.constant 0 : i32
    %c0_i32_1 = arith.constant 0 : i32
    return %c0_i32, %c0_i32_0 : i32, i32
  }
  func.func @transform_4(%arg0: i32) -> (i32, i32) {
    %c0_i32 = arith.constant 0 : i32
    %c0_i32_0 = arith.constant 0 : i32
    %c0_i32_1 = arith.constant 0 : i32
    return %c0_i32, %c0_i32_0 : i32, i32
  }
  func.func @transform_5(%arg0: i32) -> (i32, i32) {
    %c0_i32 = arith.constant 0 : i32
    %c0_i32_0 = arith.constant 0 : i32
    %c0_i32_1 = arith.constant 0 : i32
    return %c0_i32, %c0_i32_0 : i32, i32
  }
  func.func @transform_6(%arg0: i32) -> (i32, i32) {
    %c0_i32 = arith.constant 0 : i32
    %c0_i32_0 = arith.constant 0 : i32
    %c0_i32_1 = arith.constant 0 : i32
    return %c0_i32, %c0_i32_0 : i32, i32
  }
  func.func @transform_7(%arg0: i32) -> (i32, i32) {
    %c0_i32 = arith.constant 0 : i32
    %c0_i32_0 = arith.constant 0 : i32
    %c0_i32_1 = arith.constant 0 : i32
    return %c0_i32, %c0_i32_0 : i32, i32
  }
  func.func @transform_8(%arg0: i32) -> (i32, i32) {
    %c0_i32 = arith.constant 0 : i32
    %c0_i32_0 = arith.constant 0 : i32
    %c0_i32_1 = arith.constant 0 : i32
    return %c0_i32, %c0_i32_0 : i32, i32
  }
  func.func @transform_9(%arg0: i32) -> (i32, i32) {
    %c0_i32 = arith.constant 0 : i32
    %c0_i32_0 = arith.constant 0 : i32
    %c0_i32_1 = arith.constant 0 : i32
    return %c0_i32, %c0_i32_0 : i32, i32
  }
  func.func @transform_10(%arg0: i32) -> (i32, i32, i32, i32) {
    %c0_i32 = arith.constant 0 : i32
    %c0_i32_0 = arith.constant 0 : i32
    %c0_i32_1 = arith.constant 0 : i32
    %c0_i32_2 = arith.constant 0 : i32
    return %arg0, %c0_i32, %c0_i32_0, %c0_i32_1 : i32, i32, i32, i32
  }
}

</mosaic_0001>

<llo_original>
// kernel: tpu_custom_call.1
$region0: #{tpu_custom_call.1}
  #allocation0 [shape = 'u32[]', space=smem, size = 0x4, offset = 0x4, fixed_abs, tag = 'smem constant byte address 0x4 - core index']
  #allocation1 [shape = 'u32[72,128]{1,0:T(1,128)}', space=vmem, size = 0x9000, scoped, tag = 'internal scratch']
  #allocation2 [shape = 'bf16[18,18,128]{2,1,0:T(8,128)(2,1)}', space=vmem, size = 0x1b000, scoped, tag = 'scratch operand']
  %s0 = inlined_call_operand.hbm [shape: f32[4,16,16,128], index: 0, kind: input, shape index: {}]
  %s1 = inlined_call_operand.hbm [shape: bf16[128,128], index: 1, kind: input, shape index: {}]
  %s2 = inlined_call_operand.vmem [shape: f32[1,128], index: 2, kind: input, shape index: {}]
  %s3 = inlined_call_operand.vmem [shape: f32[1,128], index: 3, kind: input, shape index: {}]
  %s4 = inlined_call_operand.hbm [shape: bf16[1152,128], index: 4, kind: input, shape index: {}]
  %s5 = inlined_call_operand.vmem [shape: f32[1,128], index: 5, kind: input, shape index: {}]
  %s6 = inlined_call_operand.vmem [shape: f32[1,128], index: 6, kind: input, shape index: {}]
  %s7 = inlined_call_operand.hbm [shape: bf16[128,128], index: 7, kind: input, shape index: {}]
  %s8 = inlined_call_operand.vmem [shape: f32[1,128], index: 8, kind: input, shape index: {}]
  %s9 = inlined_call_operand.vmem [shape: f32[1,128], index: 9, kind: input, shape index: {}]
  %s10 = inlined_call_operand.hbm [shape: f32[4,16,16,128], index: 10, kind: output, shape index: {}]
  %s11 = sld [smem:[#allocation0]]
  $region89: #{tpu_custom_call.1} parent=0
    _
  %s13 = ssub.s32 1, %s11
  %s14 = scalar_select 0, %s13, %s11
  $region1: #{tpu_custom_call.1} parent=0
    #allocation3 [shape = 'u8[524288]{0}', space=vmem, size = 0x80000, scoped, tag = 'input window, operand 0']
    #allocation4 [shape = 's32[2]{0}', space=sflag, size = 0x8, scoped, tag = 'scoped memory for tpu_custom_call.1']
    #allocation5 [shape = 's32[2]{0}', space=sflag, size = 0x8, scoped, tag = 'scoped memory for tpu_custom_call.1']
    #allocation6 [shape = 'u8[32768]{0}', space=vmem, size = 0x8000, scoped, tag = 'input window, operand 1, single buffered']
    #allocation7 [shape = 's32[1]{0}', space=sflag, size = 0x4, scoped, tag = 'scoped memory for tpu_custom_call.1']
    #allocation8 [shape = 'u8[294912]{0}', space=vmem, size = 0x48000, scoped, tag = 'input window, operand 4, single buffered']
    #allocation9 [shape = 'u8[32768]{0}', space=vmem, size = 0x8000, scoped, tag = 'input window, operand 7, single buffered']
    #allocation10 [shape = 's32[1]{0}', space=sflag, size = 0x4, scoped, tag = 'scoped memory for tpu_custom_call.1']
    #allocation11 [shape = 'u8[524288]{0}', space=vmem, size = 0x80000, scoped, tag = 'output window, operand 0']
    %15 = vsyncpa [#allocation4], 0
    %s16 = scalar_lea.sflag [#allocation4], 1
    %17 = vsyncpa %s16, 0
    %18 = vsyncpa [#allocation7], 0
    %19 = vsyncpa [#allocation10], 0
    %20 = vsyncpa [#allocation5], 0
    %s21 = scalar_lea.sflag [#allocation5], 1
    %22 = vsyncpa %s21, 0
    loop: start=0, step=1, limit=4
    $region2: #{tpu_custom_call.1} parent=1 // loop_pre_header
      _
    $region3: #{tpu_custom_call.1} parent=1 // loop_header
      %s24 = sphi 0, %s28
      %p25 = scmp.ge.s32.totalorder %s24, 4
      %s34 = sphi 0, %s36
      %s37 = sphi 0, %s34
      %s38 = sphi 0, %s37
      %s54 = sphi 0, %s38
      %s58 = sphi 0, %s58
      %s60 = sphi 0, %s58
      %s61 = sphi 0, %s60
      %s75 = sphi 0, %s61
      %s79 = sphi 0, %s79
      %s81 = sphi 0, %s79
      %s82 = sphi 0, %s81
      %s96 = sphi 0, %s82
      %s100 = sphi 0, %s100
      %s102 = sphi 0, %s100
      %s103 = sphi 0, %s102
      %s117 = sphi 0, %s103
      %s121 = sphi 0, %s121
      %s123 = sphi 0, %s121
      %s124 = sphi 0, %s123
      %s138 = sphi 0, %s124
      %s142 = sphi 0, %s142
      %s144 = sphi 0, %s142
      %s145 = sphi 0, %s144
      %s159 = sphi 0, %s145
      %s163 = sphi 0, %s163
      %s165 = sphi 0, %s163
      %s166 = sphi 0, %s165
      %s180 = sphi 0, %s166
      %s184 = sphi 0, %s184
      %s186 = sphi 0, %s184
      %s187 = sphi 0, %s186
      %s201 = sphi 0, %s187
      %s205 = sphi 0, %s205
      %s207 = sphi 0, %s205
      %s208 = sphi 0, %s207
      %s222 = sphi 0, %s208
      %s226 = sphi 0, %s226
      %s228 = sphi 0, %s226
      %s229 = sphi 0, %s228
      %s243 = sphi 0, %s229
      %s249 = sphi 0, %s251
      %s252 = sphi 0, %s249
      %s253 = sphi 0, %s252
      %s269 = sphi 0, %s253
    $region4: #{tpu_custom_call.1} parent=1 // loop_header_branch
      %27 = sbr.rel (%p25) target = $region8
    $region5: #{tpu_custom_call.1} parent=1 // loop_body
      %s29 = ssub.s32 %s24, 1
      %s30 = ssub.s32 %s24, 2
      %s31 = sadd.s32 %s24, 1
      %s32 = ssub.s32 %s24, %s31
      %p33 = scmp.eq.s32.totalorder %s32, 0
      %s35 = sadd.s32 %s34, 1
      %s36 = scalar_select %p33, %s34, %s35
      %p39 = pneg %p33
      %p40 = scmp.eq.s32.totalorder %s24, 1
      %p41 = por %p39, %p40
      %p42 = scmp.ne.s32.totalorder %s34, %s37
      %p43 = scmp.eq.s32.totalorder %s24, 0
      %p44 = por %p42, %p43
      %p45 = scmp.ne.s32.totalorder %s34, %s37
      %p46 = scmp.eq.s32.totalorder %s29, 1
      %p47 = por %p45, %p46
      %p48 = scmp.ne.s32.totalorder %s37, %s38
      %p49 = scmp.eq.s32.totalorder %s29, 0
      %p50 = por %p48, %p49
      %p51 = scmp.ne.s32.totalorder %s37, %s38
      %p52 = scmp.eq.s32.totalorder %s30, 1
      %p53 = por %p51, %p52
      %p55 = scmp.ne.s32.totalorder %s38, %s54
      %p56 = scmp.eq.s32.totalorder %s30, 0
      %p57 = por %p55, %p56
      %s59 = sadd.s32 %s58, 1
      %p62 = scmp.eq.s32.totalorder %s24, 1
      %p63 = scmp.ne.s32.totalorder %s58, %s60
      %p64 = scmp.eq.s32.totalorder %s24, 0
      %p65 = por %p63, %p64
      %p66 = scmp.ne.s32.totalorder %s58, %s60
      %p67 = scmp.eq.s32.totalorder %s29, 1
      %p68 = por %p66, %p67
      %p69 = scmp.ne.s32.totalorder %s60, %s61
      %p70 = scmp.eq.s32.totalorder %s29, 0
      %p71 = por %p69, %p70
      %p72 = scmp.ne.s32.totalorder %s60, %s61
      %p73 = scmp.eq.s32.totalorder %s30, 1
      %p74 = por %p72, %p73
      %p76 = scmp.ne.s32.totalorder %s61, %s75
      %p77 = scmp.eq.s32.totalorder %s30, 0
      %p78 = por %p76, %p77
      %s80 = sadd.s32 %s79, 1
      %p83 = scmp.eq.s32.totalorder %s24, 1
      %p84 = scmp.ne.s32.totalorder %s79, %s81
      %p85 = scmp.eq.s32.totalorder %s24, 0
      %p86 = por %p84, %p85
      %p87 = scmp.ne.s32.totalorder %s79, %s81
      %p88 = scmp.eq.s32.totalorder %s29, 1
      %p89 = por %p87, %p88
      %p90 = scmp.ne.s32.totalorder %s81, %s82
      %p91 = scmp.eq.s32.totalorder %s29, 0
      %p92 = por %p90, %p91
      %p93 = scmp.ne.s32.totalorder %s81, %s82
      %p94 = scmp.eq.s32.totalorder %s30, 1
      %p95 = por %p93, %p94
      %p97 = scmp.ne.s32.totalorder %s82, %s96
      %p98 = scmp.eq.s32.totalorder %s30, 0
      %p99 = por %p97, %p98
      %s101 = sadd.s32 %s100, 1
      %p104 = scmp.eq.s32.totalorder %s24, 1
      %p105 = scmp.ne.s32.totalorder %s100, %s102
      %p106 = scmp.eq.s32.totalorder %s24, 0
      %p107 = por %p105, %p106
      %p108 = scmp.ne.s32.totalorder %s100, %s102
      %p109 = scmp.eq.s32.totalorder %s29, 1
      %p110 = por %p108, %p109
      %p111 = scmp.ne.s32.totalorder %s102, %s103
      %p112 = scmp.eq.s32.totalorder %s29, 0
      %p113 = por %p111, %p112
      %p114 = scmp.ne.s32.totalorder %s102, %s103
      %p115 = scmp.eq.s32.totalorder %s30, 1
      %p116 = por %p114, %p115
      %p118 = scmp.ne.s32.totalorder %s103, %s117
      %p119 = scmp.eq.s32.totalorder %s30, 0
      %p120 = por %p118, %p119
      %s122 = sadd.s32 %s121, 1
      %p125 = scmp.eq.s32.totalorder %s24, 1
      %p126 = scmp.ne.s32.totalorder %s121, %s123
      %p127 = scmp.eq.s32.totalorder %s24, 0
      %p128 = por %p126, %p127
      %p129 = scmp.ne.s32.totalorder %s121, %s123
      %p130 = scmp.eq.s32.totalorder %s29, 1
      %p131 = por %p129, %p130
      %p132 = scmp.ne.s32.totalorder %s123, %s124
      %p133 = scmp.eq.s32.totalorder %s29, 0
      %p134 = por %p132, %p133
      %p135 = scmp.ne.s32.totalorder %s123, %s124
      %p136 = scmp.eq.s32.totalorder %s30, 1
      %p137 = por %p135, %p136
      %p139 = scmp.ne.s32.totalorder %s124, %s138
      %p140 = scmp.eq.s32.totalorder %s30, 0
      %p141 = por %p139, %p140
      %s143 = sadd.s32 %s142, 1
      %p146 = scmp.eq.s32.totalorder %s24, 1
      %p147 = scmp.ne.s32.totalorder %s142, %s144
      %p148 = scmp.eq.s32.totalorder %s24, 0
      %p149 = por %p147, %p148
      %p150 = scmp.ne.s32.totalorder %s142, %s144
      %p151 = scmp.eq.s32.totalorder %s29, 1
      %p152 = por %p150, %p151
      %p153 = scmp.ne.s32.totalorder %s144, %s145
      %p154 = scmp.eq.s32.totalorder %s29, 0
      %p155 = por %p153, %p154
      %p156 = scmp.ne.s32.totalorder %s144, %s145
      %p157 = scmp.eq.s32.totalorder %s30, 1
      %p158 = por %p156, %p157
      %p160 = scmp.ne.s32.totalorder %s145, %s159
      %p161 = scmp.eq.s32.totalorder %s30, 0
      %p162 = por %p160, %p161
      %s164 = sadd.s32 %s163, 1
      %p167 = scmp.eq.s32.totalorder %s24, 1
      %p168 = scmp.ne.s32.totalorder %s163, %s165
      %p169 = scmp.eq.s32.totalorder %s24, 0
      %p170 = por %p168, %p169
      %p171 = scmp.ne.s32.totalorder %s163, %s165
      %p172 = scmp.eq.s32.totalorder %s29, 1
      %p173 = por %p171, %p172
      %p174 = scmp.ne.s32.totalorder %s165, %s166
      %p175 = scmp.eq.s32.totalorder %s29, 0
      %p176 = por %p174, %p175
      %p177 = scmp.ne.s32.totalorder %s165, %s166
      %p178 = scmp.eq.s32.totalorder %s30, 1
      %p179 = por %p177, %p178
      %p181 = scmp.ne.s32.totalorder %s166, %s180
      %p182 = scmp.eq.s32.totalorder %s30, 0
      %p183 = por %p181, %p182
      %s185 = sadd.s32 %s184, 1
      %p188 = scmp.eq.s32.totalorder %s24, 1
      %p189 = scmp.ne.s32.totalorder %s184, %s186
      %p190 = scmp.eq.s32.totalorder %s24, 0
      %p191 = por %p189, %p190
      %p192 = scmp.ne.s32.totalorder %s184, %s186
      %p193 = scmp.eq.s32.totalorder %s29, 1
      %p194 = por %p192, %p193
      %p195 = scmp.ne.s32.totalorder %s186, %s187
      %p196 = scmp.eq.s32.totalorder %s29, 0
      %p197 = por %p195, %p196
      %p198 = scmp.ne.s32.totalorder %s186, %s187
      %p199 = scmp.eq.s32.totalorder %s30, 1
      %p200 = por %p198, %p199
      %p202 = scmp.ne.s32.totalorder %s187, %s201
      %p203 = scmp.eq.s32.totalorder %s30, 0
      %p204 = por %p202, %p203
      %s206 = sadd.s32 %s205, 1
      %p209 = scmp.eq.s32.totalorder %s24, 1
      %p210 = scmp.ne.s32.totalorder %s205, %s207
      %p211 = scmp.eq.s32.totalorder %s24, 0
      %p212 = por %p210, %p211
      %p213 = scmp.ne.s32.totalorder %s205, %s207
      %p214 = scmp.eq.s32.totalorder %s29, 1
      %p215 = por %p213, %p214
      %p216 = scmp.ne.s32.totalorder %s207, %s208
      %p217 = scmp.eq.s32.totalorder %s29, 0
      %p218 = por %p216, %p217
      %p219 = scmp.ne.s32.totalorder %s207, %s208
      %p220 = scmp.eq.s32.totalorder %s30, 1
      %p221 = por %p219, %p220
      %p223 = scmp.ne.s32.totalorder %s208, %s222
      %p224 = scmp.eq.s32.totalorder %s30, 0
      %p225 = por %p223, %p224
      %s227 = sadd.s32 %s226, 1
      %p230 = scmp.eq.s32.totalorder %s24, 1
      %p231 = scmp.ne.s32.totalorder %s226, %s228
      %p232 = scmp.eq.s32.totalorder %s24, 0
      %p233 = por %p231, %p232
      %p234 = scmp.ne.s32.totalorder %s226, %s228
      %p235 = scmp.eq.s32.totalorder %s29, 1
      %p236 = por %p234, %p235
      %p237 = scmp.ne.s32.totalorder %s228, %s229
      %p238 = scmp.eq.s32.totalorder %s29, 0
      %p239 = por %p237, %p238
      %p240 = scmp.ne.s32.totalorder %s228, %s229
      %p241 = scmp.eq.s32.totalorder %s30, 1
      %p242 = por %p240, %p241
      %p244 = scmp.ne.s32.totalorder %s229, %s243
      %p245 = scmp.eq.s32.totalorder %s30, 0
      %p246 = por %p244, %p245
      %s247 = ssub.s32 %s24, %s31
      %p248 = scmp.eq.s32.totalorder %s247, 0
      %s250 = sadd.s32 %s249, 1
      %s251 = scalar_select %p248, %s249, %s250
      %p254 = pneg %p248
      %p255 = scmp.eq.s32.totalorder %s24, 1
      %p256 = por %p254, %p255
      %p257 = scmp.ne.s32.totalorder %s249, %s252
      %p258 = scmp.eq.s32.totalorder %s24, 0
      %p259 = por %p257, %p258
      %p260 = scmp.ne.s32.totalorder %s249, %s252
      %p261 = scmp.eq.s32.totalorder %s29, 1
      %p262 = por %p260, %p261
      %p263 = scmp.ne.s32.totalorder %s252, %s253
      %p264 = scmp.eq.s32.totalorder %s29, 0
      %p265 = por %p263, %p264
      %p266 = scmp.ne.s32.totalorder %s252, %s253
      %p267 = scmp.eq.s32.totalorder %s30, 1
      %p268 = por %p266, %p267
      %p270 = scmp.ne.s32.totalorder %s253, %s269
      %p271 = scmp.eq.s32.totalorder %s30, 0
      %p272 = por %p270, %p271
      %p273 = scmp.le.s32.totalorder 1, %s24
      %p274 = scmp.lt.s32.totalorder %s24, 3
      %p275 = pnand %p273, %p274
      %p276 = pneg %p275
      // Predicated region
      $region9: #{tpu_custom_call.1} parent=5 // pred_check
        _
      $region10: #{tpu_custom_call.1} parent=5 // pred_check_branch
        %278 = sbr.rel (%p275) target = $region12
      $region11: #{tpu_custom_call.1} parent=5 // pred_region
        %s279 = ssub.s32 %s24, 1
        // Predicated region
        $region13: #{tpu_custom_call.1} parent=11 // pred_check
          %p280 = pneg %p71
        $region14: #{tpu_custom_call.1} parent=11 // pred_check_branch
          %282 = sbr.rel (%p280) target = $region16
        $region15: #{tpu_custom_call.1} parent=11 // pred_region
          %284 = vsyncadd [#allocation7], 0
          %s285 = sshll.u32 %s1, 4
          %s286 = int_to_ptr.hbm [resolvable:$true] %s285
          %s287 = sshll.u32 [#allocation6], 4
          %s288 = int_to_ptr.vmem [resolvable:$true] %s287
          %293 = dma.hbm_to_vmem [thread:$0]  %s286, 1024, %s288, [#allocation7], 64, 64, 4
        $region16: #{tpu_custom_call.1} parent=11 // pred_fallthru
          _
        // Predicated region
        $region17: #{tpu_custom_call.1} parent=11 // pred_check
          %p294 = pneg %p92
        $region18: #{tpu_custom_call.1} parent=11 // pred_check_branch
          %296 = sbr.rel (%p294) target = $region20
        $region19: #{tpu_custom_call.1} parent=11 // pred_region
          _
        $region20: #{tpu_custom_call.1} parent=11 // pred_fallthru
          _
        // Predicated region
        $region21: #{tpu_custom_call.1} parent=11 // pred_check
          %p297 = pneg %p113
        $region22: #{tpu_custom_call.1} parent=11 // pred_check_branch
          %299 = sbr.rel (%p297) target = $region24
        $region23: #{tpu_custom_call.1} parent=11 // pred_region
          _
        $region24: #{tpu_custom_call.1} parent=11 // pred_fallthru
          _
        // Predicated region
        $region25: #{tpu_custom_call.1} parent=11 // pred_check
          %p300 = pneg %p134
        $region26: #{tpu_custom_call.1} parent=11 // pred_check_branch
          %302 = sbr.rel (%p300) target = $region28
        $region27: #{tpu_custom_call.1} parent=11 // pred_region
          %304 = vsyncadd [#allocation7], 0
          %s305 = sshll.u32 %s4, 4
          %s306 = int_to_ptr.hbm [resolvable:$true] %s305
          %s307 = sshll.u32 [#allocation8], 4
          %s308 = int_to_ptr.vmem [resolvable:$true] %s307
          %313 = dma.hbm_to_vmem [thread:$0]  %s306, 9216, %s308, [#allocation7], 64, 64, 4
        $region28: #{tpu_custom_call.1} parent=11 // pred_fallthru
          _
        // Predicated region
        $region29: #{tpu_custom_call.1} parent=11 // pred_check
          %p314 = pneg %p155
        $region30: #{tpu_custom_call.1} parent=11 // pred_check_branch
          %316 = sbr.rel (%p314) target = $region32
        $region31: #{tpu_custom_call.1} parent=11 // pred_region
          _
        $region32: #{tpu_custom_call.1} parent=11 // pred_fallthru
          _
        // Predicated region
        $region33: #{tpu_custom_call.1} parent=11 // pred_check
          %p317 = pneg %p176
        $region34: #{tpu_custom_call.1} parent=11 // pred_check_branch
          %319 = sbr.rel (%p317) target = $region36
        $region35: #{tpu_custom_call.1} parent=11 // pred_region
          _
        $region36: #{tpu_custom_call.1} parent=11 // pred_fallthru
          _
        // Predicated region
        $region37: #{tpu_custom_call.1} parent=11 // pred_check
          %p320 = pneg %p197
        $region38: #{tpu_custom_call.1} parent=11 // pred_check_branch
          %322 = sbr.rel (%p320) target = $region40
        $region39: #{tpu_custom_call.1} parent=11 // pred_region
          %324 = vsyncadd [#allocation10], 0
          %s325 = sshll.u32 %s7, 4
          %s326 = int_to_ptr.hbm [resolvable:$true] %s325
          %s327 = sshll.u32 [#allocation9], 4
          %s328 = int_to_ptr.vmem [resolvable:$true] %s327
          %333 = dma.hbm_to_vmem [thread:$0]  %s326, 1024, %s328, [#allocation10], 64, 64, 4
        $region40: #{tpu_custom_call.1} parent=11 // pred_fallthru
          _
        // Predicated region
        $region41: #{tpu_custom_call.1} parent=11 // pred_check
          %p334 = pneg %p218
        $region42: #{tpu_custom_call.1} parent=11 // pred_check_branch
          %336 = sbr.rel (%p334) target = $region44
        $region43: #{tpu_custom_call.1} parent=11 // pred_region
          _
        $region44: #{tpu_custom_call.1} parent=11 // pred_fallthru
          _
        // Predicated region
        $region45: #{tpu_custom_call.1} parent=11 // pred_check
          %p337 = pneg %p239
        $region46: #{tpu_custom_call.1} parent=11 // pred_check_branch
          %339 = sbr.rel (%p337) target = $region48
        $region47: #{tpu_custom_call.1} parent=11 // pred_region
          _
        $region48: #{tpu_custom_call.1} parent=11 // pred_fallthru
          _
      $region12: #{tpu_custom_call.1} parent=5 // pred_fallthru
        _
      %p340 = scmp.lt.s32.totalorder %s24, 2
      // Predicated region
      $region49: #{tpu_custom_call.1} parent=5 // pred_check
        %p341 = pneg %p340
      $region50: #{tpu_custom_call.1} parent=5 // pred_check_branch
        %343 = sbr.rel (%p341) target = $region52
      $region51: #{tpu_custom_call.1} parent=5 // pred_region
        // Predicated region
        $region53: #{tpu_custom_call.1} parent=51 // pred_check
          %p344 = pneg %p44
        $region54: #{tpu_custom_call.1} parent=51 // pred_check_branch
          %346 = sbr.rel (%p344) target = $region56
        $region55: #{tpu_custom_call.1} parent=51 // pred_region
          %s347 = sand.u32 %s34, 1
          %s348 = scalar_lea.sflag [#allocation4], %s347
          %s349 = sand.u32 %s34, 1
          %s350 = smul.addr %s349, 512
          %s351 = scalar_lea.vmem [#allocation3], %s350
          %s352 = smul.u32 2, %s24
          %354 = vsyncadd %s348, 0
          %s355 = smul.addr %s352, 32
          %s356 = smul.addr %s355, 8
          %s357 = scalar_lea.hbm %s0, %s356
          %s358 = sshll.u32 %s357, 4
          %s359 = int_to_ptr.hbm [resolvable:$true] %s358
          %s360 = sshll.u32 %s351, 4
          %s361 = int_to_ptr.vmem [resolvable:$true] %s360
          %366 = dma.hbm_to_vmem [thread:$0]  %s359, 8192, %s361, %s348, 128, 128, 8
        $region56: #{tpu_custom_call.1} parent=51 // pred_fallthru
          _
      $region52: #{tpu_custom_call.1} parent=5 // pred_fallthru
        _
      %p367 = scmp.le.s32.totalorder 1, %s24
      %p368 = scmp.lt.s32.totalorder %s24, 3
      %p369 = pnand %p367, %p368
      %p370 = pneg %p369
      // Predicated region
      $region57: #{tpu_custom_call.1} parent=5 // pred_check
        _
      $region58: #{tpu_custom_call.1} parent=5 // pred_check_branch
        %372 = sbr.rel (%p369) target = $region60
      $region59: #{tpu_custom_call.1} parent=5 // pred_region
        %s373 = ssub.s32 %s24, 1
        %s374 = sand.u32 %s37, 1
        %s375 = scalar_lea.sflag [#allocation4], %s374
        %s376 = sand.u32 %s37, 1
        %s377 = smul.addr %s376, 512
        %s378 = scalar_lea.vmem [#allocation3], %s377
        // Predicated region
        $region61: #{tpu_custom_call.1} parent=59 // pred_check
          %p379 = pneg %p50
        $region62: #{tpu_custom_call.1} parent=59 // pred_check_branch
          %381 = sbr.rel (%p379) target = $region64
        $region63: #{tpu_custom_call.1} parent=59 // pred_region
          %383 = dma.done %s375, 8192
        $region64: #{tpu_custom_call.1} parent=59 // pred_fallthru
          _
        // Predicated region
        $region65: #{tpu_custom_call.1} parent=59 // pred_check
          %p384 = pneg %p71
        $region66: #{tpu_custom_call.1} parent=59 // pred_check_branch
          %386 = sbr.rel (%p384) target = $region68
        $region67: #{tpu_custom_call.1} parent=59 // pred_region
          %388 = dma.done [#allocation7], 1024
        $region68: #{tpu_custom_call.1} parent=59 // pred_fallthru
          _
        // Predicated region
        $region69: #{tpu_custom_call.1} parent=59 // pred_check
          %p389 = pneg %p134
        $region70: #{tpu_custom_call.1} parent=59 // pred_check_branch
          %391 = sbr.rel (%p389) target = $region72
        $region71: #{tpu_custom_call.1} parent=59 // pred_region
          %393 = dma.done [#allocation7], 9216
        $region72: #{tpu_custom_call.1} parent=59 // pred_fallthru
          _
        // Predicated region
        $region73: #{tpu_custom_call.1} parent=59 // pred_check
          %p394 = pneg %p197
        $region74: #{tpu_custom_call.1} parent=59 // pred_check_branch
          %396 = sbr.rel (%p394) target = $region76
        $region75: #{tpu_custom_call.1} parent=59 // pred_region
          %398 = dma.done [#allocation10], 1024
        $region76: #{tpu_custom_call.1} parent=59 // pred_fallthru
          _
        %s399 = sand.u32 %s37, 1
        %s400 = scalar_lea.sflag [#allocation4], %s399
        %s401 = sand.u32 %s37, 1
        %s402 = smul.addr %s401, 512
        %s403 = scalar_lea.vmem [#allocation3], %s402
        %p404 = pneg %p50
        %p405 = pneg %p47
        %p406 = pneg %p71
        %p407 = pneg %p68
        %p408 = pneg %p92
        %p409 = pneg %p89
        %p410 = pneg %p113
        %p411 = pneg %p110
        %p412 = pneg %p134
        %p413 = pneg %p131
        %p414 = pneg %p155
        %p415 = pneg %p152
        %p416 = pneg %p176
        %p417 = pneg %p173
        %p418 = pneg %p197
        %p419 = pneg %p194
        %p420 = pneg %p218
        %p421 = pneg %p215
        %p422 = pneg %p239
        %p423 = pneg %p236
        %p424 = pneg %p265
        %p425 = pneg %p262
        %s426 = sand.u32 %s252, 1
        %s427 = scalar_lea.sflag [#allocation5], %s426
        %s428 = sand.u32 %s252, 1
        %s429 = smul.addr %s428, 512
        %s430 = scalar_lea.vmem [#allocation11], %s429
        %s431 = smul.u32 2, %s29
        %s432 = smul.u32 2, %s29
        %434 = vst [vmem:[#allocation2] sm:$0xf] 0
        %435 = vst [vmem:[#allocation2 + $0x4] sm:$0xf] 0
        %436 = vst [vmem:[#allocation2 + $0x8] sm:$0x1] 0
        %s437 = scalar_lea.vmem [#allocation2], 204
        %438 = vst [vmem:[%s437] sm:$0xf] 0
        %439 = vst [vmem:[%s437 + $0x4] sm:$0xf] 0
        %440 = vst [vmem:[%s437 + $0x8] sm:$0x1] 0
        %vm441 = vcmask 1040384
        %vm442 = vsmask.f32 256
        %vm443 = vmand %vm441, %vm442
        %v444 = vld [vmem:[#allocation2] sm:$0x1]
        %v445 = vsel %vm443, 0, %v444
        %446 = vst [vmem:[#allocation2] sm:$0x1] %v445
        %v447 = vld [vmem:[#allocation2 + $0xc] sm:$0x1]
        %v448 = vsel %vm443, 0, %v447
        %449 = vst [vmem:[#allocation2 + $0xc] sm:$0x1] %v448
        %v450 = vld [vmem:[#allocation2 + $0x18] sm:$0x1]
        %v451 = vsel %vm443, 0, %v450
        %452 = vst [vmem:[#allocation2 + $0x18] sm:$0x1] %v451
        %v453 = vld [vmem:[#allocation2 + $0x24] sm:$0x1]
        %v454 = vsel %vm443, 0, %v453
        %455 = vst [vmem:[#allocation2 + $0x24] sm:$0x1] %v454
        %v456 = vld [vmem:[#allocation2 + $0x30] sm:$0x1]
        %v457 = vsel %vm443, 0, %v456
        %458 = vst [vmem:[#allocation2 + $0x30] sm:$0x1] %v457
        %v459 = vld [vmem:[#allocation2 + $0x3c] sm:$0x1]
        %v460 = vsel %vm443, 0, %v459
        %461 = vst [vmem:[#allocation2 + $0x3c] sm:$0x1] %v460
        %v462 = vld [vmem:[#allocation2 + $0x48] sm:$0x1]
        %v463 = vsel %vm443, 0, %v462
        %464 = vst [vmem:[#allocation2 + $0x48] sm:$0x1] %v463
        %v465 = vld [vmem:[#allocation2 + $0x54] sm:$0x1]
        %v466 = vsel %vm443, 0, %v465
        %467 = vst [vmem:[#allocation2 + $0x54] sm:$0x1] %v466
        %v468 = vld [vmem:[#allocation2 + $0x60] sm:$0x1]
        %v469 = vsel %vm443, 0, %v468
        %470 = vst [vmem:[#allocation2 + $0x60] sm:$0x1] %v469
        %v471 = vld [vmem:[#allocation2 + $0x6c] sm:$0x1]
        %v472 = vsel %vm443, 0, %v471
        %473 = vst [vmem:[#allocation2 + $0x6c] sm:$0x1] %v472
        %v474 = vld [vmem:[#allocation2 + $0x78] sm:$0x1]
        %v475 = vsel %vm443, 0, %v474
        %476 = vst [vmem:[#allocation2 + $0x78] sm:$0x1] %v475
        %v477 = vld [vmem:[#allocation2 + $0x84] sm:$0x1]
        %v478 = vsel %vm443, 0, %v477
        %479 = vst [vmem:[#allocation2 + $0x84] sm:$0x1] %v478
        %v480 = vld [vmem:[#allocation2 + $0x90] sm:$0x1]
        %v481 = vsel %vm443, 0, %v480
        %482 = vst [vmem:[#allocation2 + $0x90] sm:$0x1] %v481
        %v483 = vld [vmem:[#allocation2 + $0x9c] sm:$0x1]
        %v484 = vsel %vm443, 0, %v483
        %485 = vst [vmem:[#allocation2 + $0x9c] sm:$0x1] %v484
        %v486 = vld [vmem:[#allocation2 + $0xa8] sm:$0x1]
        %v487 = vsel %vm443, 0, %v486
        %488 = vst [vmem:[#allocation2 + $0xa8] sm:$0x1] %v487
        %v489 = vld [vmem:[#allocation2 + $0xb4] sm:$0x1]
        %v490 = vsel %vm443, 0, %v489
        %491 = vst [vmem:[#allocation2 + $0xb4] sm:$0x1] %v490
        %v492 = vld [vmem:[#allocation2 + $0xc0] sm:$0x1]
        %v493 = vsel %vm443, 0, %v492
        %494 = vst [vmem:[#allocation2 + $0xc0] sm:$0x1] %v493
        %v495 = vld [vmem:[#allocation2 + $0xcc] sm:$0x1]
        %v496 = vsel %vm443, 0, %v495
        %497 = vst [vmem:[#allocation2 + $0xcc] sm:$0x1] %v496
        %vm498 = vsmask.f32 7938
        %vm499 = vmand %vm441, %vm498
        %v500 = vld [vmem:[#allocation2 + $0x8] sm:$0x1]
        %v501 = vsel %vm499, 0, %v500
        %502 = vst [vmem:[#allocation2 + $0x8] sm:$0x1] %v501
        %v503 = vld [vmem:[#allocation2 + $0x14] sm:$0x1]
        %v504 = vsel %vm499, 0, %v503
        %505 = vst [vmem:[#allocation2 + $0x14] sm:$0x1] %v504
        %v506 = vld [vmem:[#allocation2 + $0x20] sm:$0x1]
        %v507 = vsel %vm499, 0, %v506
        %508 = vst [vmem:[#allocation2 + $0x20] sm:$0x1] %v507
        %v509 = vld [vmem:[#allocation2 + $0x2c] sm:$0x1]
        %v510 = vsel %vm499, 0, %v509
        %511 = vst [vmem:[#allocation2 + $0x2c] sm:$0x1] %v510
        %v512 = vld [vmem:[#allocation2 + $0x38] sm:$0x1]
        %v513 = vsel %vm499, 0, %v512
        %514 = vst [vmem:[#allocation2 + $0x38] sm:$0x1] %v513
        %v515 = vld [vmem:[#allocation2 + $0x44] sm:$0x1]
        %v516 = vsel %vm499, 0, %v515
        %517 = vst [vmem:[#allocation2 + $0x44] sm:$0x1] %v516
        %v518 = vld [vmem:[#allocation2 + $0x50] sm:$0x1]
        %v519 = vsel %vm499, 0, %v518
        %520 = vst [vmem:[#allocation2 + $0x50] sm:$0x1] %v519
        %v521 = vld [vmem:[#allocation2 + $0x5c] sm:$0x1]
        %v522 = vsel %vm499, 0, %v521
        %523 = vst [vmem:[#allocation2 + $0x5c] sm:$0x1] %v522
        %v524 = vld [vmem:[#allocation2 + $0x68] sm:$0x1]
        %v525 = vsel %vm499, 0, %v524
        %526 = vst [vmem:[#allocation2 + $0x68] sm:$0x1] %v525
        %v527 = vld [vmem:[#allocation2 + $0x74] sm:$0x1]
        %v528 = vsel %vm499, 0, %v527
        %529 = vst [vmem:[#allocation2 + $0x74] sm:$0x1] %v528
        %v530 = vld [vmem:[#allocation2 + $0x80] sm:$0x1]
        %v531 = vsel %vm499, 0, %v530
        %532 = vst [vmem:[#allocation2 + $0x80] sm:$0x1] %v531
        %v533 = vld [vmem:[#allocation2 + $0x8c] sm:$0x1]
        %v534 = vsel %vm499, 0, %v533
        %535 = vst [vmem:[#allocation2 + $0x8c] sm:$0x1] %v534
        %v536 = vld [vmem:[#allocation2 + $0x98] sm:$0x1]
        %v537 = vsel %vm499, 0, %v536
        %538 = vst [vmem:[#allocation2 + $0x98] sm:$0x1] %v537
        %v539 = vld [vmem:[#allocation2 + $0xa4] sm:$0x1]
        %v540 = vsel %vm499, 0, %v539
        %541 = vst [vmem:[#allocation2 + $0xa4] sm:$0x1] %v540
        %v542 = vld [vmem:[#allocation2 + $0xb0] sm:$0x1]
        %v543 = vsel %vm499, 0, %v542
        %544 = vst [vmem:[#allocation2 + $0xb0] sm:$0x1] %v543
        %v545 = vld [vmem:[#allocation2 + $0xbc] sm:$0x1]
        %v546 = vsel %vm499, 0, %v545
        %547 = vst [vmem:[#allocation2 + $0xbc] sm:$0x1] %v546
        %v548 = vld [vmem:[#allocation2 + $0xc8] sm:$0x1]
        %v549 = vsel %vm499, 0, %v548
        %550 = vst [vmem:[#allocation2 + $0xc8] sm:$0x1] %v549
        %v551 = vld [vmem:[#allocation2 + $0xd4] sm:$0x1]
        %v552 = vsel %vm499, 0, %v551
        %553 = vst [vmem:[#allocation2 + $0xd4] sm:$0x1] %v552
        %v554 = vld [vmem:[%s378] sm:$0xff]
        %v555 = vld [vmem:[%s378 + $0x8] sm:$0xff]
        %v556 = vld [vmem:[%s378 + $0x10] sm:$0xff]
        %v557 = vld [vmem:[%s378 + $0x18] sm:$0xff]
        %v558 = vld [vmem:[%s378 + $0x20] sm:$0xff]
        %v559 = vld [vmem:[%s378 + $0x28] sm:$0xff]
        %v560 = vld [vmem:[%s378 + $0x30] sm:$0xff]
        %v561 = vld [vmem:[%s378 + $0x38] sm:$0xff]
        %v562 = vld [vmem:[%s378 + $0x40] sm:$0xff]
        %v563 = vld [vmem:[%s378 + $0x48] sm:$0xff]
        %v564 = vld [vmem:[%s378 + $0x50] sm:$0xff]
        %v565 = vld [vmem:[%s378 + $0x58] sm:$0xff]
        %v566 = vld [vmem:[%s378 + $0x60] sm:$0xff]
        %v567 = vld [vmem:[%s378 + $0x68] sm:$0xff]
        %v568 = vld [vmem:[%s378 + $0x70] sm:$0xff]
        %v569 = vld [vmem:[%s378 + $0x78] sm:$0xff]
        %v570 = vld [vmem:[%s378 + $0x80] sm:$0xff]
        %v571 = vld [vmem:[%s378 + $0x88] sm:$0xff]
        %v572 = vld [vmem:[%s378 + $0x90] sm:$0xff]
        %v573 = vld [vmem:[%s378 + $0x98] sm:$0xff]
        %v574 = vld [vmem:[%s378 + $0xa0] sm:$0xff]
        %v575 = vld [vmem:[%s378 + $0xa8] sm:$0xff]
        %v576 = vld [vmem:[%s378 + $0xb0] sm:$0xff]
        %v577 = vld [vmem:[%s378 + $0xb8] sm:$0xff]
        %v578 = vld [vmem:[%s378 + $0xc0] sm:$0xff]
        %v579 = vld [vmem:[%s378 + $0xc8] sm:$0xff]
        %v580 = vld [vmem:[%s378 + $0xd0] sm:$0xff]
        %v581 = vld [vmem:[%s378 + $0xd8] sm:$0xff]
        %v582 = vld [vmem:[%s378 + $0xe0] sm:$0xff]
        %v583 = vld [vmem:[%s378 + $0xe8] sm:$0xff]
        %v584 = vld [vmem:[%s378 + $0xf0] sm:$0xff]
        %v585 = vld [vmem:[%s378 + $0xf8] sm:$0xff]
        %v586 = vpack.c.bf16 %v555, %v554
        %v587 = vpack.c.bf16 %v557, %v556
        %v588 = vpack.c.bf16 %v559, %v558
        %v589 = vpack.c.bf16 %v561, %v560
        %v590 = vpack.c.bf16 %v563, %v562
        %v591 = vpack.c.bf16 %v565, %v564
        %v592 = vpack.c.bf16 %v567, %v566
        %v593 = vpack.c.bf16 %v569, %v568
        %v594 = vpack.c.bf16 %v571, %v570
        %v595 = vpack.c.bf16 %v573, %v572
        %v596 = vpack.c.bf16 %v575, %v574
        %v597 = vpack.c.bf16 %v577, %v576
        %v598 = vpack.c.bf16 %v579, %v578
        %v599 = vpack.c.bf16 %v581, %v580
        %v600 = vpack.c.bf16 %v583, %v582
        %v601 = vpack.c.bf16 %v585, %v584
        %v602 = vld [vmem:[#allocation6] sm:$0xf]
        %v603 = vld [vmem:[#allocation6 + $0x4] sm:$0xf]
        %v604 = vld [vmem:[#allocation6 + $0x8] sm:$0xf]
        %v605 = vld [vmem:[#allocation6 + $0xc] sm:$0xf]
        %v606 = vld [vmem:[#allocation6 + $0x10] sm:$0xf]
        %v607 = vld [vmem:[#allocation6 + $0x14] sm:$0xf]
        %v608 = vld [vmem:[#allocation6 + $0x18] sm:$0xf]
        %v609 = vld [vmem:[#allocation6 + $0x1c] sm:$0xf]
        %v610 = vld [vmem:[#allocation6 + $0x20] sm:$0xf]
        %v611 = vld [vmem:[#allocation6 + $0x24] sm:$0xf]
        %v612 = vld [vmem:[#allocation6 + $0x28] sm:$0xf]
        %v613 = vld [vmem:[#allocation6 + $0x2c] sm:$0xf]
        %v614 = vld [vmem:[#allocation6 + $0x30] sm:$0xf]
        %v615 = vld [vmem:[#allocation6 + $0x34] sm:$0xf]
        %v616 = vld [vmem:[#allocation6 + $0x38] sm:$0xf]
        %v617 = vld [vmem:[#allocation6 + $0x3c] sm:$0xf]
        %v634 = vunpack.c.l.b16 %v602
        %v635 = vunpack.c.l.b16 %v603
        %v636 = vunpack.c.l.b16 %v604
        %v637 = vunpack.c.l.b16 %v605
        %v638 = vunpack.c.l.b16 %v606
        %v639 = vunpack.c.l.b16 %v607
        %v640 = vunpack.c.l.b16 %v608
        %v641 = vunpack.c.l.b16 %v609
        %v642 = vunpack.c.l.b16 %v610
        %v643 = vunpack.c.l.b16 %v611
        %v644 = vunpack.c.l.b16 %v612
        %v645 = vunpack.c.l.b16 %v613
        %v646 = vunpack.c.l.b16 %v614
        %v647 = vunpack.c.l.b16 %v615
        %v648 = vunpack.c.l.b16 %v616
        %v649 = vunpack.c.l.b16 %v617
        %v650 = vpack.c.b16 %v635, %v634
        %v651 = vpack.c.b16 %v637, %v636
        %v652 = vpack.c.b16 %v639, %v638
        %v653 = vpack.c.b16 %v641, %v640
        %v654 = vpack.c.b16 %v643, %v642
        %v655 = vpack.c.b16 %v645, %v644
        %v656 = vpack.c.b16 %v647, %v646
        %v657 = vpack.c.b16 %v649, %v648
        %666 = vmatpush.bf16.msra.mxu0 %v657
        %667 = vmatpush.bf16.msra.mxu0 %v656
        %668 = vmatpush.bf16.msra.mxu0 %v655
        %669 = vmatpush.bf16.msra.mxu0 %v654
        %670 = vmatpush.bf16.msra.mxu0 %v653
        %671 = vmatpush.bf16.msra.mxu0 %v652
        %672 = vmatpush.bf16.msra.mxu0 %v651
        %673 = vmatpush.bf16.msra.mxu0 %v650
        %674 = vmatmul.bf16.gmra.mxu0 %v586
        %v675 = vpop.f32.mrf.mxu0
        %v676 = vadd.f32 0.0, %v675
        %v677 = vpop.f32.mrf.mxu0
        %v678 = vadd.f32 0.0, %v677
        %679 = vmatmul.bf16.gmra.mxu0 %v587
        %v680 = vpop.f32.mrf.mxu0
        %v681 = vadd.f32 0.0, %v680
        %v682 = vpop.f32.mrf.mxu0
        %v683 = vadd.f32 0.0, %v682
        %684 = vmatmul.bf16.gmra.mxu0 %v588
        %v685 = vpop.f32.mrf.mxu0
        %v686 = vadd.f32 0.0, %v685
        %v687 = vpop.f32.mrf.mxu0
        %v688 = vadd.f32 0.0, %v687
        %689 = vmatmul.bf16.gmra.mxu0 %v589
        %v690 = vpop.f32.mrf.mxu0
        %v691 = vadd.f32 0.0, %v690
        %v692 = vpop.f32.mrf.mxu0
        %v693 = vadd.f32 0.0, %v692
        %694 = vmatmul.bf16.gmra.mxu0 %v590
        %v695 = vpop.f32.mrf.mxu0
        %v696 = vadd.f32 0.0, %v695
        %v697 = vpop.f32.mrf.mxu0
        %v698 = vadd.f32 0.0, %v697
        %699 = vmatmul.bf16.gmra.mxu0 %v591
        %v700 = vpop.f32.mrf.mxu0
        %v701 = vadd.f32 0.0, %v700
        %v702 = vpop.f32.mrf.mxu0
        %v703 = vadd.f32 0.0, %v702
        %704 = vmatmul.bf16.gmra.mxu0 %v592
        %v705 = vpop.f32.mrf.mxu0
        %v706 = vadd.f32 0.0, %v705
        %v707 = vpop.f32.mrf.mxu0
        %v708 = vadd.f32 0.0, %v707
        %709 = vmatmul.bf16.gmra.mxu0 %v593
        %v710 = vpop.f32.mrf.mxu0
        %v711 = vadd.f32 0.0, %v710
        %v712 = vpop.f32.mrf.mxu0
        %v713 = vadd.f32 0.0, %v712
        %714 = vmatmul.bf16.gmra.mxu0 %v594
        %v715 = vpop.f32.mrf.mxu0
        %v716 = vadd.f32 0.0, %v715
        %v717 = vpop.f32.mrf.mxu0
        %v718 = vadd.f32 0.0, %v717
        %719 = vmatmul.bf16.gmra.mxu0 %v595
        %v720 = vpop.f32.mrf.mxu0
        %v721 = vadd.f32 0.0, %v720
        %v722 = vpop.f32.mrf.mxu0
        %v723 = vadd.f32 0.0, %v722
        %724 = vmatmul.bf16.gmra.mxu0 %v596
        %v725 = vpop.f32.mrf.mxu0
        %v726 = vadd.f32 0.0, %v725
        %v727 = vpop.f32.mrf.mxu0
        %v728 = vadd.f32 0.0, %v727
        %729 = vmatmul.bf16.gmra.mxu0 %v597
        %v730 = vpop.f32.mrf.mxu0
        %v731 = vadd.f32 0.0, %v730
        %v732 = vpop.f32.mrf.mxu0
        %v733 = vadd.f32 0.0, %v732
        %734 = vmatmul.bf16.gmra.mxu0 %v598
        %v735 = vpop.f32.mrf.mxu0
        %v736 = vadd.f32 0.0, %v735
        %v737 = vpop.f32.mrf.mxu0
        %v738 = vadd.f32 0.0, %v737
        %739 = vmatmul.bf16.gmra.mxu0 %v599
        %v740 = vpop.f32.mrf.mxu0
        %v741 = vadd.f32 0.0, %v740
        %v742 = vpop.f32.mrf.mxu0
        %v743 = vadd.f32 0.0, %v742
        %744 = vmatmul.bf16.gmra.mxu0 %v600
        %v745 = vpop.f32.mrf.mxu0
        %v746 = vadd.f32 0.0, %v745
        %v747 = vpop.f32.mrf.mxu0
        %v748 = vadd.f32 0.0, %v747
        %749 = vmatmul.bf16.gmra.mxu0 %v601
        %v750 = vpop.f32.mrf.mxu0
        %v751 = vadd.f32 0.0, %v750
        %v752 = vpop.f32.mrf.mxu0
        %v753 = vadd.f32 0.0, %v752
        %754 = vdwg.mxu0
        %v755 = vld [vmem:[%s2] sm:$0x1]
        %v757 = vperm.slane %v755, 0
        %v759 = vmul.f32 %v676, %v757
        %v760 = vmul.f32 %v678, %v757
        %v761 = vmul.f32 %v681, %v757
        %v762 = vmul.f32 %v683, %v757
        %v763 = vmul.f32 %v686, %v757
        %v764 = vmul.f32 %v688, %v757
        %v765 = vmul.f32 %v691, %v757
        %v766 = vmul.f32 %v693, %v757
        %v767 = vmul.f32 %v696, %v757
        %v768 = vmul.f32 %v698, %v757
        %v769 = vmul.f32 %v701, %v757
        %v770 = vmul.f32 %v703, %v757
        %v771 = vmul.f32 %v706, %v757
        %v772 = vmul.f32 %v708, %v757
        %v773 = vmul.f32 %v711, %v757
        %v774 = vmul.f32 %v713, %v757
        %v775 = vmul.f32 %v716, %v757
        %v776 = vmul.f32 %v718, %v757
        %v777 = vmul.f32 %v721, %v757
        %v778 = vmul.f32 %v723, %v757
        %v779 = vmul.f32 %v726, %v757
        %v780 = vmul.f32 %v728, %v757
        %v781 = vmul.f32 %v731, %v757
        %v782 = vmul.f32 %v733, %v757
        %v783 = vmul.f32 %v736, %v757
        %v784 = vmul.f32 %v738, %v757
        %v785 = vmul.f32 %v741, %v757
        %v786 = vmul.f32 %v743, %v757
        %v787 = vmul.f32 %v746, %v757
        %v788 = vmul.f32 %v748, %v757
        %v789 = vmul.f32 %v751, %v757
        %v790 = vmul.f32 %v753, %v757
        %v791 = vld [vmem:[%s3] sm:$0x1]
        %v793 = vperm.slane %v791, 0
        %v795 = vadd.f32 %v759, %v793
        %v796 = vadd.f32 %v760, %v793
        %v797 = vadd.f32 %v761, %v793
        %v798 = vadd.f32 %v762, %v793
        %v799 = vadd.f32 %v763, %v793
        %v800 = vadd.f32 %v764, %v793
        %v801 = vadd.f32 %v765, %v793
        %v802 = vadd.f32 %v766, %v793
        %v803 = vadd.f32 %v767, %v793
        %v804 = vadd.f32 %v768, %v793
        %v805 = vadd.f32 %v769, %v793
        %v806 = vadd.f32 %v770, %v793
        %v807 = vadd.f32 %v771, %v793
        %v808 = vadd.f32 %v772, %v793
        %v809 = vadd.f32 %v773, %v793
        %v810 = vadd.f32 %v774, %v793
        %v811 = vadd.f32 %v775, %v793
        %v812 = vadd.f32 %v776, %v793
        %v813 = vadd.f32 %v777, %v793
        %v814 = vadd.f32 %v778, %v793
        %v815 = vadd.f32 %v779, %v793
        %v816 = vadd.f32 %v780, %v793
        %v817 = vadd.f32 %v781, %v793
        %v818 = vadd.f32 %v782, %v793
        %v819 = vadd.f32 %v783, %v793
        %v820 = vadd.f32 %v784, %v793
        %v821 = vadd.f32 %v785, %v793
        %v822 = vadd.f32 %v786, %v793
        %v823 = vadd.f32 %v787, %v793
        %v824 = vadd.f32 %v788, %v793
        %v825 = vadd.f32 %v789, %v793
        %v826 = vadd.f32 %v790, %v793
        %v827 = vmax.f32 %v795, 0.0
        %v828 = vmax.f32 %v796, 0.0
        %v829 = vmax.f32 %v797, 0.0
        %v830 = vmax.f32 %v798, 0.0
        %v831 = vmax.f32 %v799, 0.0
        %v832 = vmax.f32 %v800, 0.0
        %v833 = vmax.f32 %v801, 0.0
        %v834 = vmax.f32 %v802, 0.0
        %v835 = vmax.f32 %v803, 0.0
        %v836 = vmax.f32 %v804, 0.0
        %v837 = vmax.f32 %v805, 0.0
        %v838 = vmax.f32 %v806, 0.0
        %v839 = vmax.f32 %v807, 0.0
        %v840 = vmax.f32 %v808, 0.0
        %v841 = vmax.f32 %v809, 0.0
        %v842 = vmax.f32 %v810, 0.0
        %v843 = vmax.f32 %v811, 0.0
        %v844 = vmax.f32 %v812, 0.0
        %v845 = vmax.f32 %v813, 0.0
        %v846 = vmax.f32 %v814, 0.0
        %v847 = vmax.f32 %v815, 0.0
        %v848 = vmax.f32 %v816, 0.0
        %v849 = vmax.f32 %v817, 0.0
        %v850 = vmax.f32 %v818, 0.0
        %v851 = vmax.f32 %v819, 0.0
        %v852 = vmax.f32 %v820, 0.0
        %v853 = vmax.f32 %v821, 0.0
        %v854 = vmax.f32 %v822, 0.0
        %v855 = vmax.f32 %v823, 0.0
        %v856 = vmax.f32 %v824, 0.0
        %v857 = vmax.f32 %v825, 0.0
        %v858 = vmax.f32 %v826, 0.0
        %v859 = vpack.c.bf16 %v827, %v827
        %v860 = vpack.c.bf16 %v828, %v828
        %v861 = vpack.c.bf16 %v829, %v829
        %v862 = vpack.c.bf16 %v830, %v830
        %v863 = vpack.c.bf16 %v831, %v831
        %v864 = vpack.c.bf16 %v832, %v832
        %v865 = vpack.c.bf16 %v833, %v833
        %v866 = vpack.c.bf16 %v834, %v834
        %v867 = vpack.c.bf16 %v835, %v835
        %v868 = vpack.c.bf16 %v836, %v836
        %v869 = vpack.c.bf16 %v837, %v837
        %v870 = vpack.c.bf16 %v838, %v838
        %v871 = vpack.c.bf16 %v839, %v839
        %v872 = vpack.c.bf16 %v840, %v840
        %v873 = vpack.c.bf16 %v841, %v841
        %v874 = vpack.c.bf16 %v842, %v842
        %v875 = vpack.c.bf16 %v843, %v843
        %v876 = vpack.c.bf16 %v844, %v844
        %v877 = vpack.c.bf16 %v845, %v845
        %v878 = vpack.c.bf16 %v846, %v846
        %v879 = vpack.c.bf16 %v847, %v847
        %v880 = vpack.c.bf16 %v848, %v848
        %v881 = vpack.c.bf16 %v849, %v849
        %v882 = vpack.c.bf16 %v850, %v850
        %v883 = vpack.c.bf16 %v851, %v851
        %v884 = vpack.c.bf16 %v852, %v852
        %v885 = vpack.c.bf16 %v853, %v853
        %v886 = vpack.c.bf16 %v854, %v854
        %v887 = vpack.c.bf16 %v855, %v855
        %v888 = vpack.c.bf16 %v856, %v856
        %v889 = vpack.c.bf16 %v857, %v857
        %v890 = vpack.c.bf16 %v858, %v858
        %vm891 = vsmask.f32 4368
        %vm892 = vmor %vm442, %vm891
        %v894 = vshrl.u32 %v859, 16
        %v896 = vrot.slane %v894, 7
        %v897 = vshll.u32 %v859, 16
        %v899 = vor.u32 %v896, %v897
        %v900 = vrot.slane %v896, 4
        %v902 = vshrl.u32 %v860, 16
        %v904 = vrot.slane %v902, 7
        %v905 = vshll.u32 %v860, 16
        %v907 = vor.u32 %v904, %v905
        %v908 = vsel %vm892, %v900, %v907
        %v909 = vrot.slane %v904, 4
        %v911 = vshrl.u32 %v861, 16
        %v913 = vrot.slane %v911, 7
        %v914 = vshll.u32 %v861, 16
        %v916 = vor.u32 %v913, %v914
        %v917 = vrot.slane %v913, 4
        %v919 = vshrl.u32 %v862, 16
        %v921 = vrot.slane %v919, 7
        %v922 = vshll.u32 %v862, 16
        %v924 = vor.u32 %v921, %v922
        %v925 = vsel %vm892, %v917, %v924
        %v926 = vrot.slane %v921, 4
        %v928 = vshrl.u32 %v863, 16
        %v930 = vrot.slane %v928, 7
        %v931 = vshll.u32 %v863, 16
        %v933 = vor.u32 %v930, %v931
        %v934 = vrot.slane %v930, 4
        %v936 = vshrl.u32 %v864, 16
        %v938 = vrot.slane %v936, 7
        %v939 = vshll.u32 %v864, 16
        %v941 = vor.u32 %v938, %v939
        %v942 = vsel %vm892, %v934, %v941
        %v943 = vrot.slane %v938, 4
        %v945 = vshrl.u32 %v865, 16
        %v947 = vrot.slane %v945, 7
        %v948 = vshll.u32 %v865, 16
        %v950 = vor.u32 %v947, %v948
        %v951 = vrot.slane %v947, 4
        %v953 = vshrl.u32 %v866, 16
        %v955 = vrot.slane %v953, 7
        %v956 = vshll.u32 %v866, 16
        %v958 = vor.u32 %v955, %v956
        %v959 = vsel %vm892, %v951, %v958
        %v960 = vrot.slane %v955, 4
        %v962 = vshrl.u32 %v867, 16
        %v964 = vrot.slane %v962, 7
        %v965 = vshll.u32 %v867, 16
        %v967 = vor.u32 %v964, %v965
        %v968 = vrot.slane %v964, 4
        %v970 = vshrl.u32 %v868, 16
        %v972 = vrot.slane %v970, 7
        %v973 = vshll.u32 %v868, 16
        %v975 = vor.u32 %v972, %v973
        %v976 = vsel %vm892, %v968, %v975
        %v977 = vrot.slane %v972, 4
        %v979 = vshrl.u32 %v869, 16
        %v981 = vrot.slane %v979, 7
        %v982 = vshll.u32 %v869, 16
        %v984 = vor.u32 %v981, %v982
        %v985 = vrot.slane %v981, 4
        %v987 = vshrl.u32 %v870, 16
        %v989 = vrot.slane %v987, 7
        %v990 = vshll.u32 %v870, 16
        %v992 = vor.u32 %v989, %v990
        %v993 = vsel %vm892, %v985, %v992
        %v994 = vrot.slane %v989, 4
        %v996 = vshrl.u32 %v871, 16
        %v998 = vrot.slane %v996, 7
        %v999 = vshll.u32 %v871, 16
        %v1001 = vor.u32 %v998, %v999
        %v1002 = vrot.slane %v998, 4
        %v1004 = vshrl.u32 %v872, 16
        %v1006 = vrot.slane %v1004, 7
        %v1007 = vshll.u32 %v872, 16
        %v1009 = vor.u32 %v1006, %v1007
        %v1010 = vsel %vm892, %v1002, %v1009
        %v1011 = vrot.slane %v1006, 4
        %v1013 = vshrl.u32 %v873, 16
        %v1015 = vrot.slane %v1013, 7
        %v1016 = vshll.u32 %v873, 16
        %v1018 = vor.u32 %v1015, %v1016
        %v1019 = vrot.slane %v1015, 4
        %v1021 = vshrl.u32 %v874, 16
        %v1023 = vrot.slane %v1021, 7
        %v1024 = vshll.u32 %v874, 16
        %v1026 = vor.u32 %v1023, %v1024
        %v1027 = vsel %vm892, %v1019, %v1026
        %v1028 = vrot.slane %v1023, 4
        %v1030 = vshrl.u32 %v875, 16
        %v1032 = vrot.slane %v1030, 7
        %v1033 = vshll.u32 %v875, 16
        %v1035 = vor.u32 %v1032, %v1033
        %v1036 = vrot.slane %v1032, 4
        %v1038 = vshrl.u32 %v876, 16
        %v1040 = vrot.slane %v1038, 7
        %v1041 = vshll.u32 %v876, 16
        %v1043 = vor.u32 %v1040, %v1041
        %v1044 = vsel %vm892, %v1036, %v1043
        %v1045 = vrot.slane %v1040, 4
        %v1047 = vshrl.u32 %v877, 16
        %v1049 = vrot.slane %v1047, 7
        %v1050 = vshll.u32 %v877, 16
        %v1052 = vor.u32 %v1049, %v1050
        %v1053 = vrot.slane %v1049, 4
        %v1055 = vshrl.u32 %v878, 16
        %v1057 = vrot.slane %v1055, 7
        %v1058 = vshll.u32 %v878, 16
        %v1060 = vor.u32 %v1057, %v1058
        %v1061 = vsel %vm892, %v1053, %v1060
        %v1062 = vrot.slane %v1057, 4
        %v1064 = vshrl.u32 %v879, 16
        %v1066 = vrot.slane %v1064, 7
        %v1067 = vshll.u32 %v879, 16
        %v1069 = vor.u32 %v1066, %v1067
        %v1070 = vrot.slane %v1066, 4
        %v1072 = vshrl.u32 %v880, 16
        %v1074 = vrot.slane %v1072, 7
        %v1075 = vshll.u32 %v880, 16
        %v1077 = vor.u32 %v1074, %v1075
        %v1078 = vsel %vm892, %v1070, %v1077
        %v1079 = vrot.slane %v1074, 4
        %v1081 = vshrl.u32 %v881, 16
        %v1083 = vrot.slane %v1081, 7
        %v1084 = vshll.u32 %v881, 16
        %v1086 = vor.u32 %v1083, %v1084
        %v1087 = vrot.slane %v1083, 4
        %v1089 = vshrl.u32 %v882, 16
        %v1091 = vrot.slane %v1089, 7
        %v1092 = vshll.u32 %v882, 16
        %v1094 = vor.u32 %v1091, %v1092
        %v1095 = vsel %vm892, %v1087, %v1094
        %v1096 = vrot.slane %v1091, 4
        %v1098 = vshrl.u32 %v883, 16
        %v1100 = vrot.slane %v1098, 7
        %v1101 = vshll.u32 %v883, 16
        %v1103 = vor.u32 %v1100, %v1101
        %v1104 = vrot.slane %v1100, 4
        %v1106 = vshrl.u32 %v884, 16
        %v1108 = vrot.slane %v1106, 7
        %v1109 = vshll.u32 %v884, 16
        %v1111 = vor.u32 %v1108, %v1109
        %v1112 = vsel %vm892, %v1104, %v1111
        %v1113 = vrot.slane %v1108, 4
        %v1115 = vshrl.u32 %v885, 16
        %v1117 = vrot.slane %v1115, 7
        %v1118 = vshll.u32 %v885, 16
        %v1120 = vor.u32 %v1117, %v1118
        %v1121 = vrot.slane %v1117, 4
        %v1123 = vshrl.u32 %v886, 16
        %v1125 = vrot.slane %v1123, 7
        %v1126 = vshll.u32 %v886, 16
        %v1128 = vor.u32 %v1125, %v1126
        %v1129 = vsel %vm892, %v1121, %v1128
        %v1130 = vrot.slane %v1125, 4
        %v1132 = vshrl.u32 %v887, 16
        %v1134 = vrot.slane %v1132, 7
        %v1135 = vshll.u32 %v887, 16
        %v1137 = vor.u32 %v1134, %v1135
        %v1138 = vrot.slane %v1134, 4
        %v1140 = vshrl.u32 %v888, 16
        %v1142 = vrot.slane %v1140, 7
        %v1143 = vshll.u32 %v888, 16
        %v1145 = vor.u32 %v1142, %v1143
        %v1146 = vsel %vm892, %v1138, %v1145
        %v1147 = vrot.slane %v1142, 4
        %v1149 = vshrl.u32 %v889, 16
        %v1151 = vrot.slane %v1149, 7
        %v1152 = vshll.u32 %v889, 16
        %v1154 = vor.u32 %v1151, %v1152
        %v1155 = vrot.slane %v1151, 4
        %v1157 = vshrl.u32 %v890, 16
        %v1159 = vrot.slane %v1157, 7
        %v1160 = vshll.u32 %v890, 16
        %v1162 = vor.u32 %v1159, %v1160
        %v1163 = vsel %vm892, %v1155, %v1162
        %v1164 = vrot.slane %v1159, 4
        %s1213 = scalar_lea.vmem [#allocation2], 12
        %vm1214 = vcmask 1043456
        %vm1215 = vmand %vm1214, %vm498
        %v1216 = vld [vmem:[%s1213] sm:$0xf]
        %v1217 = vsel %vm1215, %v899, %v1216
        %1218 = vst [vmem:[%s1213] sm:$0xf] %v1217
        %1219 = vst [vmem:[%s1213 + $0x4] sm:$0xf] %v908
        %v1220 = vld [vmem:[%s1213 + $0x8] sm:$0x1]
        %v1221 = vsel %vm443, %v909, %v1220
        %1222 = vst [vmem:[%s1213 + $0x8] sm:$0x1] %v1221
        %v1223 = vld [vmem:[%s1213 + $0xc] sm:$0xf]
        %v1224 = vsel %vm1215, %v916, %v1223
        %1225 = vst [vmem:[%s1213 + $0xc] sm:$0xf] %v1224
        %1226 = vst [vmem:[%s1213 + $0x10] sm:$0xf] %v925
        %v1227 = vld [vmem:[%s1213 + $0x14] sm:$0x1]
        %v1228 = vsel %vm443, %v926, %v1227
        %1229 = vst [vmem:[%s1213 + $0x14] sm:$0x1] %v1228
        %v1230 = vld [vmem:[%s1213 + $0x18] sm:$0xf]
        %v1231 = vsel %vm1215, %v933, %v1230
        %1232 = vst [vmem:[%s1213 + $0x18] sm:$0xf] %v1231
        %1233 = vst [vmem:[%s1213 + $0x1c] sm:$0xf] %v942
        %v1234 = vld [vmem:[%s1213 + $0x20] sm:$0x1]
        %v1235 = vsel %vm443, %v943, %v1234
        %1236 = vst [vmem:[%s1213 + $0x20] sm:$0x1] %v1235
        %v1237 = vld [vmem:[%s1213 + $0x24] sm:$0xf]
        %v1238 = vsel %vm1215, %v950, %v1237
        %1239 = vst [vmem:[%s1213 + $0x24] sm:$0xf] %v1238
        %1240 = vst [vmem:[%s1213 + $0x28] sm:$0xf] %v959
        %v1241 = vld [vmem:[%s1213 + $0x2c] sm:$0x1]
        %v1242 = vsel %vm443, %v960, %v1241
        %1243 = vst [vmem:[%s1213 + $0x2c] sm:$0x1] %v1242
        %v1244 = vld [vmem:[%s1213 + $0x30] sm:$0xf]
        %v1245 = vsel %vm1215, %v967, %v1244
        %1246 = vst [vmem:[%s1213 + $0x30] sm:$0xf] %v1245
        %1247 = vst [vmem:[%s1213 + $0x34] sm:$0xf] %v976
        %v1248 = vld [vmem:[%s1213 + $0x38] sm:$0x1]
        %v1249 = vsel %vm443, %v977, %v1248
        %1250 = vst [vmem:[%s1213 + $0x38] sm:$0x1] %v1249
        %v1251 = vld [vmem:[%s1213 + $0x3c] sm:$0xf]
        %v1252 = vsel %vm1215, %v984, %v1251
        %1253 = vst [vmem:[%s1213 + $0x3c] sm:$0xf] %v1252
        %1254 = vst [vmem:[%s1213 + $0x40] sm:$0xf] %v993
        %v1255 = vld [vmem:[%s1213 + $0x44] sm:$0x1]
        %v1256 = vsel %vm443, %v994, %v1255
        %1257 = vst [vmem:[%s1213 + $0x44] sm:$0x1] %v1256
        %v1258 = vld [vmem:[%s1213 + $0x48] sm:$0xf]
        %v1259 = vsel %vm1215, %v1001, %v1258
        %1260 = vst [vmem:[%s1213 + $0x48] sm:$0xf] %v1259
        %1261 = vst [vmem:[%s1213 + $0x4c] sm:$0xf] %v1010
        %v1262 = vld [vmem:[%s1213 + $0x50] sm:$0x1]
        %v1263 = vsel %vm443, %v1011, %v1262
        %1264 = vst [vmem:[%s1213 + $0x50] sm:$0x1] %v1263
        %v1265 = vld [vmem:[%s1213 + $0x54] sm:$0xf]
        %v1266 = vsel %vm1215, %v1018, %v1265
        %1267 = vst [vmem:[%s1213 + $0x54] sm:$0xf] %v1266
        %1268 = vst [vmem:[%s1213 + $0x58] sm:$0xf] %v1027
        %v1269 = vld [vmem:[%s1213 + $0x5c] sm:$0x1]
        %v1270 = vsel %vm443, %v1028, %v1269
        %1271 = vst [vmem:[%s1213 + $0x5c] sm:$0x1] %v1270
        %v1272 = vld [vmem:[%s1213 + $0x60] sm:$0xf]
        %v1273 = vsel %vm1215, %v1035, %v1272
        %1274 = vst [vmem:[%s1213 + $0x60] sm:$0xf] %v1273
        %1275 = vst [vmem:[%s1213 + $0x64] sm:$0xf] %v1044
        %v1276 = vld [vmem:[%s1213 + $0x68] sm:$0x1]
        %v1277 = vsel %vm443, %v1045, %v1276
        %1278 = vst [vmem:[%s1213 + $0x68] sm:$0x1] %v1277
        %v1279 = vld [vmem:[%s1213 + $0x6c] sm:$0xf]
        %v1280 = vsel %vm1215, %v1052, %v1279
        %1281 = vst [vmem:[%s1213 + $0x6c] sm:$0xf] %v1280
        %1282 = vst [vmem:[%s1213 + $0x70] sm:$0xf] %v1061
        %v1283 = vld [vmem:[%s1213 + $0x74] sm:$0x1]
        %v1284 = vsel %vm443, %v1062, %v1283
        %1285 = vst [vmem:[%s1213 + $0x74] sm:$0x1] %v1284
        %v1286 = vld [vmem:[%s1213 + $0x78] sm:$0xf]
        %v1287 = vsel %vm1215, %v1069, %v1286
        %1288 = vst [vmem:[%s1213 + $0x78] sm:$0xf] %v1287
        %1289 = vst [vmem:[%s1213 + $0x7c] sm:$0xf] %v1078
        %v1290 = vld [vmem:[%s1213 + $0x80] sm:$0x1]
        %v1291 = vsel %vm443, %v1079, %v1290
        %1292 = vst [vmem:[%s1213 + $0x80] sm:$0x1] %v1291
        %v1293 = vld [vmem:[%s1213 + $0x84] sm:$0xf]
        %v1294 = vsel %vm1215, %v1086, %v1293
        %1295 = vst [vmem:[%s1213 + $0x84] sm:$0xf] %v1294
        %1296 = vst [vmem:[%s1213 + $0x88] sm:$0xf] %v1095
        %v1297 = vld [vmem:[%s1213 + $0x8c] sm:$0x1]
        %v1298 = vsel %vm443, %v1096, %v1297
        %1299 = vst [vmem:[%s1213 + $0x8c] sm:$0x1] %v1298
        %v1300 = vld [vmem:[%s1213 + $0x90] sm:$0xf]
        %v1301 = vsel %vm1215, %v1103, %v1300
        %1302 = vst [vmem:[%s1213 + $0x90] sm:$0xf] %v1301
        %1303 = vst [vmem:[%s1213 + $0x94] sm:$0xf] %v1112
        %v1304 = vld [vmem:[%s1213 + $0x98] sm:$0x1]
        %v1305 = vsel %vm443, %v1113, %v1304
        %1306 = vst [vmem:[%s1213 + $0x98] sm:$0x1] %v1305
        %v1307 = vld [vmem:[%s1213 + $0x9c] sm:$0xf]
        %v1308 = vsel %vm1215, %v1120, %v1307
        %1309 = vst [vmem:[%s1213 + $0x9c] sm:$0xf] %v1308
        %1310 = vst [vmem:[%s1213 + $0xa0] sm:$0xf] %v1129
        %v1311 = vld [vmem:[%s1213 + $0xa4] sm:$0x1]
        %v1312 = vsel %vm443, %v1130, %v1311
        %1313 = vst [vmem:[%s1213 + $0xa4] sm:$0x1] %v1312
        %v1314 = vld [vmem:[%s1213 + $0xa8] sm:$0xf]
        %v1315 = vsel %vm1215, %v1137, %v1314
        %1316 = vst [vmem:[%s1213 + $0xa8] sm:$0xf] %v1315
        %1317 = vst [vmem:[%s1213 + $0xac] sm:$0xf] %v1146
        %v1318 = vld [vmem:[%s1213 + $0xb0] sm:$0x1]
        %v1319 = vsel %vm443, %v1147, %v1318
        %1320 = vst [vmem:[%s1213 + $0xb0] sm:$0x1] %v1319
        %v1321 = vld [vmem:[%s1213 + $0xb4] sm:$0xf]
        %v1322 = vsel %vm1215, %v1154, %v1321
        %1323 = vst [vmem:[%s1213 + $0xb4] sm:$0xf] %v1322
        %1324 = vst [vmem:[%s1213 + $0xb8] sm:$0xf] %v1163
        %v1325 = vld [vmem:[%s1213 + $0xbc] sm:$0x1]
        %v1326 = vsel %vm443, %v1164, %v1325
        %1327 = vst [vmem:[%s1213 + $0xbc] sm:$0x1] %v1326
        %v1328 = vld [vmem:[#allocation2] sm:$0xf]
        %v1329 = vld [vmem:[#allocation2 + $0x4] sm:$0xf]
        %v1330 = vld [vmem:[#allocation2 + $0xc] sm:$0xf]
        %v1331 = vld [vmem:[#allocation2 + $0x10] sm:$0xf]
        %v1332 = vld [vmem:[#allocation2 + $0x18] sm:$0xf]
        %v1333 = vld [vmem:[#allocation2 + $0x1c] sm:$0xf]
        %v1334 = vld [vmem:[#allocation2 + $0x24] sm:$0xf]
        %v1335 = vld [vmem:[#allocation2 + $0x28] sm:$0xf]
        %v1336 = vld [vmem:[#allocation2 + $0x30] sm:$0xf]
        %v1337 = vld [vmem:[#allocation2 + $0x34] sm:$0xf]
        %v1338 = vld [vmem:[#allocation2 + $0x3c] sm:$0xf]
        %v1339 = vld [vmem:[#allocation2 + $0x40] sm:$0xf]
        %v1340 = vld [vmem:[#allocation2 + $0x48] sm:$0xf]
        %v1341 = vld [vmem:[#allocation2 + $0x4c] sm:$0xf]
        %v1342 = vld [vmem:[#allocation2 + $0x54] sm:$0xf]
        %v1343 = vld [vmem:[#allocation2 + $0x58] sm:$0xf]
        %v1344 = vld [vmem:[#allocation2 + $0x60] sm:$0xf]
        %v1345 = vld [vmem:[#allocation2 + $0x64] sm:$0xf]
        %v1346 = vld [vmem:[#allocation2 + $0x6c] sm:$0xf]
        %v1347 = vld [vmem:[#allocation2 + $0x70] sm:$0xf]
        %v1348 = vld [vmem:[#allocation2 + $0x78] sm:$0xf]
        %v1349 = vld [vmem:[#allocation2 + $0x7c] sm:$0xf]
        %v1350 = vld [vmem:[#allocation2 + $0x84] sm:$0xf]
        %v1351 = vld [vmem:[#allocation2 + $0x88] sm:$0xf]
        %v1352 = vld [vmem:[#allocation2 + $0x90] sm:$0xf]
        %v1353 = vld [vmem:[#allocation2 + $0x94] sm:$0xf]
        %v1354 = vld [vmem:[#allocation2 + $0x9c] sm:$0xf]
        %v1355 = vld [vmem:[#allocation2 + $0xa0] sm:$0xf]
        %v1356 = vld [vmem:[#allocation2 + $0xa8] sm:$0xf]
        %v1357 = vld [vmem:[#allocation2 + $0xac] sm:$0xf]
        %v1358 = vld [vmem:[#allocation2 + $0xb4] sm:$0xf]
        %v1359 = vld [vmem:[#allocation2 + $0xb8] sm:$0xf]
        %v1360 = vld [vmem:[#allocation2 + $0xc0] sm:$0xf]
        %v1361 = vld [vmem:[#allocation2 + $0xc4] sm:$0xf]
        %v1362 = vld [vmem:[#allocation2 + $0xcc] sm:$0xf]
        %v1363 = vld [vmem:[#allocation2 + $0xd0] sm:$0xf]
        %v1364 = vld [vmem:[#allocation2 + $0x8] sm:$0x1]
        %v1365 = vld [vmem:[#allocation2 + $0x14] sm:$0x1]
        %v1366 = vld [vmem:[#allocation2 + $0x20] sm:$0x1]
        %v1367 = vld [vmem:[#allocation2 + $0x2c] sm:$0x1]
        %v1368 = vld [vmem:[#allocation2 + $0x38] sm:$0x1]
        %v1369 = vld [vmem:[#allocation2 + $0x44] sm:$0x1]
        %v1370 = vld [vmem:[#allocation2 + $0x50] sm:$0x1]
        %v1371 = vld [vmem:[#allocation2 + $0x5c] sm:$0x1]
        %v1372 = vld [vmem:[#allocation2 + $0x68] sm:$0x1]
        %v1373 = vld [vmem:[#allocation2 + $0x74] sm:$0x1]
        %v1374 = vld [vmem:[#allocation2 + $0x80] sm:$0x1]
        %v1375 = vld [vmem:[#allocation2 + $0x8c] sm:$0x1]
        %v1376 = vld [vmem:[#allocation2 + $0x98] sm:$0x1]
        %v1377 = vld [vmem:[#allocation2 + $0xa4] sm:$0x1]
        %v1378 = vld [vmem:[#allocation2 + $0xb0] sm:$0x1]
        %v1379 = vld [vmem:[#allocation2 + $0xbc] sm:$0x1]
        %v1380 = vld [vmem:[#allocation2 + $0xc8] sm:$0x1]
        %v1381 = vld [vmem:[#allocation2 + $0xd4] sm:$0x1]
        %v1382 = vld [vmem:[#allocation2] sm:$0xe]
        %v1383 = vld [vmem:[#allocation2 + $0xc] sm:$0xe]
        %v1384 = vld [vmem:[#allocation2 + $0x18] sm:$0xe]
        %v1385 = vld [vmem:[#allocation2 + $0x24] sm:$0xe]
        %v1386 = vld [vmem:[#allocation2 + $0x30] sm:$0xe]
        %v1387 = vld [vmem:[#allocation2 + $0x3c] sm:$0xe]
        %v1388 = vld [vmem:[#allocation2 + $0x48] sm:$0xe]
        %v1389 = vld [vmem:[#allocation2 + $0x54] sm:$0xe]
        %v1390 = vld [vmem:[#allocation2 + $0x60] sm:$0xe]
        %v1391 = vld [vmem:[#allocation2 + $0x6c] sm:$0xe]
        %v1392 = vld [vmem:[#allocation2 + $0x78] sm:$0xe]
        %v1393 = vld [vmem:[#allocation2 + $0x84] sm:$0xe]
        %v1394 = vld [vmem:[#allocation2 + $0x90] sm:$0xe]
        %v1395 = vld [vmem:[#allocation2 + $0x9c] sm:$0xe]
        %v1396 = vld [vmem:[#allocation2 + $0xa8] sm:$0xe]
        %v1397 = vld [vmem:[#allocation2 + $0xb4] sm:$0xe]
        %v1398 = vld [vmem:[#allocation2 + $0xc0] sm:$0xe]
        %v1399 = vld [vmem:[#allocation2 + $0xcc] sm:$0xe]
        %vm1400 = vsmask.f32 3328
        %vm1401 = vsmask.f32 7440
        %vm1402 = vmor %vm1400, %vm1401
        %v1404 = vshrl.u32 %v1328, 16
        %v1406 = vrot.slane %v1404, 4
        %v1407 = vshll.u32 %v1328, 16
        %v1409 = vrot.slane %v1407, 5
        %v1410 = vor.u32 %v1406, %v1409
        %v1411 = vrot.slane %v1410, 4
        %v1413 = vshll.u32 %v1329, 16
        %v1415 = vrot.slane %v1413, 5
        %v1416 = vsel %vm1402, %v1411, %v1415
        %v1417 = vshrl.u32 %v1329, 16
        %v1419 = vrot.slane %v1417, 4
        %v1420 = vor.u32 %v1419, %v1415
        %v1421 = vrot.slane %v1420, 4
        %v1423 = vshll.u32 %v1364, 16
        %v1425 = vrot.slane %v1423, 5
        %v1426 = vsel %vm1402, %v1421, %v1425
        %v1428 = vshrl.u32 %v1330, 16
        %v1430 = vrot.slane %v1428, 4
        %v1431 = vshll.u32 %v1330, 16
        %v1433 = vrot.slane %v1431, 5
        %v1434 = vor.u32 %v1430, %v1433
        %v1435 = vrot.slane %v1434, 4
        %v1437 = vshll.u32 %v1331, 16
        %v1439 = vrot.slane %v1437, 5
        %v1440 = vsel %vm1402, %v1435, %v1439
        %v1441 = vshrl.u32 %v1331, 16
        %v1443 = vrot.slane %v1441, 4
        %v1444 = vor.u32 %v1443, %v1439
        %v1445 = vrot.slane %v1444, 4
        %v1447 = vshll.u32 %v1365, 16
        %v1449 = vrot.slane %v1447, 5
        %v1450 = vsel %vm1402, %v1445, %v1449
        %v1452 = vshrl.u32 %v1332, 16
        %v1454 = vrot.slane %v1452, 4
        %v1455 = vshll.u32 %v1332, 16
        %v1457 = vrot.slane %v1455, 5
        %v1458 = vor.u32 %v1454, %v1457
        %v1459 = vrot.slane %v1458, 4
        %v1461 = vshll.u32 %v1333, 16
        %v1463 = vrot.slane %v1461, 5
        %v1464 = vsel %vm1402, %v1459, %v1463
        %v1465 = vshrl.u32 %v1333, 16
        %v1467 = vrot.slane %v1465, 4
        %v1468 = vor.u32 %v1467, %v1463
        %v1469 = vrot.slane %v1468, 4
        %v1471 = vshll.u32 %v1366, 16
        %v1473 = vrot.slane %v1471, 5
        %v1474 = vsel %vm1402, %v1469, %v1473
        %v1476 = vshrl.u32 %v1334, 16
        %v1478 = vrot.slane %v1476, 4
        %v1479 = vshll.u32 %v1334, 16
        %v1481 = vrot.slane %v1479, 5
        %v1482 = vor.u32 %v1478, %v1481
        %v1483 = vrot.slane %v1482, 4
        %v1485 = vshll.u32 %v1335, 16
        %v1487 = vrot.slane %v1485, 5
        %v1488 = vsel %vm1402, %v1483, %v1487
        %v1489 = vshrl.u32 %v1335, 16
        %v1491 = vrot.slane %v1489, 4
        %v1492 = vor.u32 %v1491, %v1487
        %v1493 = vrot.slane %v1492, 4
        %v1495 = vshll.u32 %v1367, 16
        %v1497 = vrot.slane %v1495, 5
        %v1498 = vsel %vm1402, %v1493, %v1497
        %v1500 = vshrl.u32 %v1336, 16
        %v1502 = vrot.slane %v1500, 4
        %v1503 = vshll.u32 %v1336, 16
        %v1505 = vrot.slane %v1503, 5
        %v1506 = vor.u32 %v1502, %v1505
        %v1507 = vrot.slane %v1506, 4
        %v1509 = vshll.u32 %v1337, 16
        %v1511 = vrot.slane %v1509, 5
        %v1512 = vsel %vm1402, %v1507, %v1511
        %v1513 = vshrl.u32 %v1337, 16
        %v1515 = vrot.slane %v1513, 4
        %v1516 = vor.u32 %v1515, %v1511
        %v1517 = vrot.slane %v1516, 4
        %v1519 = vshll.u32 %v1368, 16
        %v1521 = vrot.slane %v1519, 5
        %v1522 = vsel %vm1402, %v1517, %v1521
        %v1524 = vshrl.u32 %v1338, 16
        %v1526 = vrot.slane %v1524, 4
        %v1527 = vshll.u32 %v1338, 16
        %v1529 = vrot.slane %v1527, 5
        %v1530 = vor.u32 %v1526, %v1529
        %v1531 = vrot.slane %v1530, 4
        %v1533 = vshll.u32 %v1339, 16
        %v1535 = vrot.slane %v1533, 5
        %v1536 = vsel %vm1402, %v1531, %v1535
        %v1537 = vshrl.u32 %v1339, 16
        %v1539 = vrot.slane %v1537, 4
        %v1540 = vor.u32 %v1539, %v1535
        %v1541 = vrot.slane %v1540, 4
        %v1543 = vshll.u32 %v1369, 16
        %v1545 = vrot.slane %v1543, 5
        %v1546 = vsel %vm1402, %v1541, %v1545
        %v1548 = vshrl.u32 %v1340, 16
        %v1550 = vrot.slane %v1548, 4
        %v1551 = vshll.u32 %v1340, 16
        %v1553 = vrot.slane %v1551, 5
        %v1554 = vor.u32 %v1550, %v1553
        %v1555 = vrot.slane %v1554, 4
        %v1557 = vshll.u32 %v1341, 16
        %v1559 = vrot.slane %v1557, 5
        %v1560 = vsel %vm1402, %v1555, %v1559
        %v1561 = vshrl.u32 %v1341, 16
        %v1563 = vrot.slane %v1561, 4
        %v1564 = vor.u32 %v1563, %v1559
        %v1565 = vrot.slane %v1564, 4
        %v1567 = vshll.u32 %v1370, 16
        %v1569 = vrot.slane %v1567, 5
        %v1570 = vsel %vm1402, %v1565, %v1569
        %v1572 = vshrl.u32 %v1342, 16
        %v1574 = vrot.slane %v1572, 4
        %v1575 = vshll.u32 %v1342, 16
        %v1577 = vrot.slane %v1575, 5
        %v1578 = vor.u32 %v1574, %v1577
        %v1579 = vrot.slane %v1578, 4
        %v1581 = vshll.u32 %v1343, 16
        %v1583 = vrot.slane %v1581, 5
        %v1584 = vsel %vm1402, %v1579, %v1583
        %v1585 = vshrl.u32 %v1343, 16
        %v1587 = vrot.slane %v1585, 4
        %v1588 = vor.u32 %v1587, %v1583
        %v1589 = vrot.slane %v1588, 4
        %v1591 = vshll.u32 %v1371, 16
        %v1593 = vrot.slane %v1591, 5
        %v1594 = vsel %vm1402, %v1589, %v1593
        %v1596 = vshrl.u32 %v1344, 16
        %v1598 = vrot.slane %v1596, 4
        %v1599 = vshll.u32 %v1344, 16
        %v1601 = vrot.slane %v1599, 5
        %v1602 = vor.u32 %v1598, %v1601
        %v1603 = vrot.slane %v1602, 4
        %v1605 = vshll.u32 %v1345, 16
        %v1607 = vrot.slane %v1605, 5
        %v1608 = vsel %vm1402, %v1603, %v1607
        %v1609 = vshrl.u32 %v1345, 16
        %v1611 = vrot.slane %v1609, 4
        %v1612 = vor.u32 %v1611, %v1607
        %v1613 = vrot.slane %v1612, 4
        %v1615 = vshll.u32 %v1372, 16
        %v1617 = vrot.slane %v1615, 5
        %v1618 = vsel %vm1402, %v1613, %v1617
        %v1620 = vshrl.u32 %v1346, 16
        %v1622 = vrot.slane %v1620, 4
        %v1623 = vshll.u32 %v1346, 16
        %v1625 = vrot.slane %v1623, 5
        %v1626 = vor.u32 %v1622, %v1625
        %v1627 = vrot.slane %v1626, 4
        %v1629 = vshll.u32 %v1347, 16
        %v1631 = vrot.slane %v1629, 5
        %v1632 = vsel %vm1402, %v1627, %v1631
        %v1633 = vshrl.u32 %v1347, 16
        %v1635 = vrot.slane %v1633, 4
        %v1636 = vor.u32 %v1635, %v1631
        %v1637 = vrot.slane %v1636, 4
        %v1639 = vshll.u32 %v1373, 16
        %v1641 = vrot.slane %v1639, 5
        %v1642 = vsel %vm1402, %v1637, %v1641
        %v1644 = vshrl.u32 %v1348, 16
        %v1646 = vrot.slane %v1644, 4
        %v1647 = vshll.u32 %v1348, 16
        %v1649 = vrot.slane %v1647, 5
        %v1650 = vor.u32 %v1646, %v1649
        %v1651 = vrot.slane %v1650, 4
        %v1653 = vshll.u32 %v1349, 16
        %v1655 = vrot.slane %v1653, 5
        %v1656 = vsel %vm1402, %v1651, %v1655
        %v1657 = vshrl.u32 %v1349, 16
        %v1659 = vrot.slane %v1657, 4
        %v1660 = vor.u32 %v1659, %v1655
        %v1661 = vrot.slane %v1660, 4
        %v1663 = vshll.u32 %v1374, 16
        %v1665 = vrot.slane %v1663, 5
        %v1666 = vsel %vm1402, %v1661, %v1665
        %v1668 = vshrl.u32 %v1350, 16
        %v1670 = vrot.slane %v1668, 4
        %v1671 = vshll.u32 %v1350, 16
        %v1673 = vrot.slane %v1671, 5
        %v1674 = vor.u32 %v1670, %v1673
        %v1675 = vrot.slane %v1674, 4
        %v1677 = vshll.u32 %v1351, 16
        %v1679 = vrot.slane %v1677, 5
        %v1680 = vsel %vm1402, %v1675, %v1679
        %v1681 = vshrl.u32 %v1351, 16
        %v1683 = vrot.slane %v1681, 4
        %v1684 = vor.u32 %v1683, %v1679
        %v1685 = vrot.slane %v1684, 4
        %v1687 = vshll.u32 %v1375, 16
        %v1689 = vrot.slane %v1687, 5
        %v1690 = vsel %vm1402, %v1685, %v1689
        %v1692 = vshrl.u32 %v1352, 16
        %v1694 = vrot.slane %v1692, 4
        %v1695 = vshll.u32 %v1352, 16
        %v1697 = vrot.slane %v1695, 5
        %v1698 = vor.u32 %v1694, %v1697
        %v1699 = vrot.slane %v1698, 4
        %v1701 = vshll.u32 %v1353, 16
        %v1703 = vrot.slane %v1701, 5
        %v1704 = vsel %vm1402, %v1699, %v1703
        %v1705 = vshrl.u32 %v1353, 16
        %v1707 = vrot.slane %v1705, 4
        %v1708 = vor.u32 %v1707, %v1703
        %v1709 = vrot.slane %v1708, 4
        %v1711 = vshll.u32 %v1376, 16
        %v1713 = vrot.slane %v1711, 5
        %v1714 = vsel %vm1402, %v1709, %v1713
        %v1716 = vshrl.u32 %v1354, 16
        %v1718 = vrot.slane %v1716, 4
        %v1719 = vshll.u32 %v1354, 16
        %v1721 = vrot.slane %v1719, 5
        %v1722 = vor.u32 %v1718, %v1721
        %v1723 = vrot.slane %v1722, 4
        %v1725 = vshll.u32 %v1355, 16
        %v1727 = vrot.slane %v1725, 5
        %v1728 = vsel %vm1402, %v1723, %v1727
        %v1729 = vshrl.u32 %v1355, 16
        %v1731 = vrot.slane %v1729, 4
        %v1732 = vor.u32 %v1731, %v1727
        %v1733 = vrot.slane %v1732, 4
        %v1735 = vshll.u32 %v1377, 16
        %v1737 = vrot.slane %v1735, 5
        %v1738 = vsel %vm1402, %v1733, %v1737
        %v1740 = vshrl.u32 %v1356, 16
        %v1742 = vrot.slane %v1740, 4
        %v1743 = vshll.u32 %v1356, 16
        %v1745 = vrot.slane %v1743, 5
        %v1746 = vor.u32 %v1742, %v1745
        %v1747 = vrot.slane %v1746, 4
        %v1749 = vshll.u32 %v1357, 16
        %v1751 = vrot.slane %v1749, 5
        %v1752 = vsel %vm1402, %v1747, %v1751
        %v1753 = vshrl.u32 %v1357, 16
        %v1755 = vrot.slane %v1753, 4
        %v1756 = vor.u32 %v1755, %v1751
        %v1757 = vrot.slane %v1756, 4
        %v1759 = vshll.u32 %v1378, 16
        %v1761 = vrot.slane %v1759, 5
        %v1762 = vsel %vm1402, %v1757, %v1761
        %v1764 = vshrl.u32 %v1358, 16
        %v1766 = vrot.slane %v1764, 4
        %v1767 = vshll.u32 %v1358, 16
        %v1769 = vrot.slane %v1767, 5
        %v1770 = vor.u32 %v1766, %v1769
        %v1771 = vrot.slane %v1770, 4
        %v1773 = vshll.u32 %v1359, 16
        %v1775 = vrot.slane %v1773, 5
        %v1776 = vsel %vm1402, %v1771, %v1775
        %v1777 = vshrl.u32 %v1359, 16
        %v1779 = vrot.slane %v1777, 4
        %v1780 = vor.u32 %v1779, %v1775
        %v1781 = vrot.slane %v1780, 4
        %v1783 = vshll.u32 %v1379, 16
        %v1785 = vrot.slane %v1783, 5
        %v1786 = vsel %vm1402, %v1781, %v1785
        %vm1835 = vcmask 1042432
        %vm1836 = vcmask 1046532
        %vm1837 = vmor %vm1835, %vm1836
        %v1838 = vrot.slane %v1382, 5
        %v1839 = vrot.slane %v1838, 4
        %v1840 = vrot.slane %v1329, 5
        %v1841 = vsel %vm1837, %v1839, %v1840
        %v1842 = vrot.slane %v1840, 4
        %v1843 = vrot.slane %v1364, 5
        %v1844 = vsel %vm1837, %v1842, %v1843
        %v1845 = vrot.slane %v1383, 5
        %v1846 = vrot.slane %v1845, 4
        %v1847 = vrot.slane %v1331, 5
        %v1848 = vsel %vm1837, %v1846, %v1847
        %v1849 = vrot.slane %v1847, 4
        %v1850 = vrot.slane %v1365, 5
        %v1851 = vsel %vm1837, %v1849, %v1850
        %v1852 = vrot.slane %v1384, 5
        %v1853 = vrot.slane %v1852, 4
        %v1854 = vrot.slane %v1333, 5
        %v1855 = vsel %vm1837, %v1853, %v1854
        %v1856 = vrot.slane %v1854, 4
        %v1857 = vrot.slane %v1366, 5
        %v1858 = vsel %vm1837, %v1856, %v1857
        %v1859 = vrot.slane %v1385, 5
        %v1860 = vrot.slane %v1859, 4
        %v1861 = vrot.slane %v1335, 5
        %v1862 = vsel %vm1837, %v1860, %v1861
        %v1863 = vrot.slane %v1861, 4
        %v1864 = vrot.slane %v1367, 5
        %v1865 = vsel %vm1837, %v1863, %v1864
        %v1866 = vrot.slane %v1386, 5
        %v1867 = vrot.slane %v1866, 4
        %v1868 = vrot.slane %v1337, 5
        %v1869 = vsel %vm1837, %v1867, %v1868
        %v1870 = vrot.slane %v1868, 4
        %v1871 = vrot.slane %v1368, 5
        %v1872 = vsel %vm1837, %v1870, %v1871
        %v1873 = vrot.slane %v1387, 5
        %v1874 = vrot.slane %v1873, 4
        %v1875 = vrot.slane %v1339, 5
        %v1876 = vsel %vm1837, %v1874, %v1875
        %v1877 = vrot.slane %v1875, 4
        %v1878 = vrot.slane %v1369, 5
        %v1879 = vsel %vm1837, %v1877, %v1878
        %v1880 = vrot.slane %v1388, 5
        %v1881 = vrot.slane %v1880, 4
        %v1882 = vrot.slane %v1341, 5
        %v1883 = vsel %vm1837, %v1881, %v1882
        %v1884 = vrot.slane %v1882, 4
        %v1885 = vrot.slane %v1370, 5
        %v1886 = vsel %vm1837, %v1884, %v1885
        %v1887 = vrot.slane %v1389, 5
        %v1888 = vrot.slane %v1887, 4
        %v1889 = vrot.slane %v1343, 5
        %v1890 = vsel %vm1837, %v1888, %v1889
        %v1891 = vrot.slane %v1889, 4
        %v1892 = vrot.slane %v1371, 5
        %v1893 = vsel %vm1837, %v1891, %v1892
        %v1894 = vrot.slane %v1390, 5
        %v1895 = vrot.slane %v1894, 4
        %v1896 = vrot.slane %v1345, 5
        %v1897 = vsel %vm1837, %v1895, %v1896
        %v1898 = vrot.slane %v1896, 4
        %v1899 = vrot.slane %v1372, 5
        %v1900 = vsel %vm1837, %v1898, %v1899
        %v1901 = vrot.slane %v1391, 5
        %v1902 = vrot.slane %v1901, 4
        %v1903 = vrot.slane %v1347, 5
        %v1904 = vsel %vm1837, %v1902, %v1903
        %v1905 = vrot.slane %v1903, 4
        %v1906 = vrot.slane %v1373, 5
        %v1907 = vsel %vm1837, %v1905, %v1906
        %v1908 = vrot.slane %v1392, 5
        %v1909 = vrot.slane %v1908, 4
        %v1910 = vrot.slane %v1349, 5
        %v1911 = vsel %vm1837, %v1909, %v1910
        %v1912 = vrot.slane %v1910, 4
        %v1913 = vrot.slane %v1374, 5
        %v1914 = vsel %vm1837, %v1912, %v1913
        %v1915 = vrot.slane %v1393, 5
        %v1916 = vrot.slane %v1915, 4
        %v1917 = vrot.slane %v1351, 5
        %v1918 = vsel %vm1837, %v1916, %v1917
        %v1919 = vrot.slane %v1917, 4
        %v1920 = vrot.slane %v1375, 5
        %v1921 = vsel %vm1837, %v1919, %v1920
        %v1922 = vrot.slane %v1394, 5
        %v1923 = vrot.slane %v1922, 4
        %v1924 = vrot.slane %v1353, 5
        %v1925 = vsel %vm1837, %v1923, %v1924
        %v1926 = vrot.slane %v1924, 4
        %v1927 = vrot.slane %v1376, 5
        %v1928 = vsel %vm1837, %v1926, %v1927
        %v1929 = vrot.slane %v1395, 5
        %v1930 = vrot.slane %v1929, 4
        %v1931 = vrot.slane %v1355, 5
        %v1932 = vsel %vm1837, %v1930, %v1931
        %v1933 = vrot.slane %v1931, 4
        %v1934 = vrot.slane %v1377, 5
        %v1935 = vsel %vm1837, %v1933, %v1934
        %v1936 = vrot.slane %v1396, 5
        %v1937 = vrot.slane %v1936, 4
        %v1938 = vrot.slane %v1357, 5
        %v1939 = vsel %vm1837, %v1937, %v1938
        %v1940 = vrot.slane %v1938, 4
        %v1941 = vrot.slane %v1378, 5
        %v1942 = vsel %vm1837, %v1940, %v1941
        %v1943 = vrot.slane %v1397, 5
        %v1944 = vrot.slane %v1943, 4
        %v1945 = vrot.slane %v1359, 5
        %v1946 = vsel %vm1837, %v1944, %v1945
        %v1947 = vrot.slane %v1945, 4
        %v1948 = vrot.slane %v1379, 5
        %v1949 = vsel %vm1837, %v1947, %v1948
        %v1951 = vshrl.u32 %v1360, 16
        %v1953 = vrot.slane %v1951, 4
        %v1954 = vshll.u32 %v1360, 16
        %v1956 = vrot.slane %v1954, 5
        %v1957 = vor.u32 %v1953, %v1956
        %v1958 = vrot.slane %v1957, 4
        %v1960 = vshll.u32 %v1361, 16
        %v1962 = vrot.slane %v1960, 5
        %v1963 = vsel %vm1402, %v1958, %v1962
        %v1964 = vshrl.u32 %v1361, 16
        %v1966 = vrot.slane %v1964, 4
        %v1967 = vor.u32 %v1966, %v1962
        %v1968 = vrot.slane %v1967, 4
        %v1970 = vshll.u32 %v1380, 16
        %v1972 = vrot.slane %v1970, 5
        %v1973 = vsel %vm1402, %v1968, %v1972
        %v1977 = vrot.slane %v1398, 5
        %v1978 = vrot.slane %v1977, 4
        %v1979 = vrot.slane %v1361, 5
        %v1980 = vsel %vm1837, %v1978, %v1979
        %v1981 = vrot.slane %v1979, 4
        %v1982 = vrot.slane %v1380, 5
        %v1983 = vsel %vm1837, %v1981, %v1982
        %v1985 = vshrl.u32 %v1362, 16
        %v1987 = vrot.slane %v1985, 4
        %v1988 = vshll.u32 %v1362, 16
        %v1990 = vrot.slane %v1988, 5
        %v1991 = vor.u32 %v1987, %v1990
        %v1992 = vrot.slane %v1991, 4
        %v1994 = vshll.u32 %v1363, 16
        %v1996 = vrot.slane %v1994, 5
        %v1997 = vsel %vm1402, %v1992, %v1996
        %v1998 = vshrl.u32 %v1363, 16
        %v2000 = vrot.slane %v1998, 4
        %v2001 = vor.u32 %v2000, %v1996
        %v2002 = vrot.slane %v2001, 4
        %v2004 = vshll.u32 %v1381, 16
        %v2006 = vrot.slane %v2004, 5
        %v2007 = vsel %vm1402, %v2002, %v2006
        %v2011 = vrot.slane %v1399, 5
        %v2012 = vrot.slane %v2011, 4
        %v2013 = vrot.slane %v1363, 5
        %v2014 = vsel %vm1837, %v2012, %v2013
        %v2015 = vrot.slane %v2013, 4
        %v2016 = vrot.slane %v1381, 5
        %v2017 = vsel %vm1837, %v2015, %v2016
        %v2034 = vunpack.c.l.b16 %v1328
        %v2035 = vunpack.c.l.b16 %v1329
        %v2036 = vunpack.c.l.b16 %v1330
        %v2037 = vunpack.c.l.b16 %v1331
        %v2038 = vunpack.c.l.b16 %v1332
        %v2039 = vunpack.c.l.b16 %v1333
        %v2040 = vunpack.c.l.b16 %v1334
        %v2041 = vunpack.c.l.b16 %v1335
        %v2042 = vunpack.c.l.b16 %v1336
        %v2043 = vunpack.c.l.b16 %v1337
        %v2044 = vunpack.c.l.b16 %v1338
        %v2045 = vunpack.c.l.b16 %v1339
        %v2046 = vunpack.c.l.b16 %v1340
        %v2047 = vunpack.c.l.b16 %v1341
        %v2048 = vunpack.c.l.b16 %v1342
        %v2049 = vunpack.c.l.b16 %v1343
        %v2050 = vunpack.c.l.b16 %v1344
        %v2051 = vunpack.c.l.b16 %v1345
        %v2052 = vunpack.c.l.b16 %v1346
        %v2053 = vunpack.c.l.b16 %v1347
        %v2054 = vunpack.c.l.b16 %v1348
        %v2055 = vunpack.c.l.b16 %v1349
        %v2056 = vunpack.c.l.b16 %v1350
        %v2057 = vunpack.c.l.b16 %v1351
        %v2058 = vunpack.c.l.b16 %v1352
        %v2059 = vunpack.c.l.b16 %v1353
        %v2060 = vunpack.c.l.b16 %v1354
        %v2061 = vunpack.c.l.b16 %v1355
        %v2062 = vunpack.c.l.b16 %v1356
        %v2063 = vunpack.c.l.b16 %v1357
        %v2064 = vunpack.c.l.b16 %v1358
        %v2065 = vunpack.c.l.b16 %v1359
        %v2066 = vpack.c.b16 %v2035, %v2034
        %v2067 = vpack.c.b16 %v2037, %v2036
        %v2068 = vpack.c.b16 %v2039, %v2038
        %v2069 = vpack.c.b16 %v2041, %v2040
        %v2070 = vpack.c.b16 %v2043, %v2042
        %v2071 = vpack.c.b16 %v2045, %v2044
        %v2072 = vpack.c.b16 %v2047, %v2046
        %v2073 = vpack.c.b16 %v2049, %v2048
        %v2074 = vpack.c.b16 %v2051, %v2050
        %v2075 = vpack.c.b16 %v2053, %v2052
        %v2076 = vpack.c.b16 %v2055, %v2054
        %v2077 = vpack.c.b16 %v2057, %v2056
        %v2078 = vpack.c.b16 %v2059, %v2058
        %v2079 = vpack.c.b16 %v2061, %v2060
        %v2080 = vpack.c.b16 %v2063, %v2062
        %v2081 = vpack.c.b16 %v2065, %v2064
        %v2098 = vunpack.c.l.b16 %v1416
        %v2099 = vunpack.c.l.b16 %v1426
        %v2100 = vunpack.c.l.b16 %v1440
        %v2101 = vunpack.c.l.b16 %v1450
        %v2102 = vunpack.c.l.b16 %v1464
        %v2103 = vunpack.c.l.b16 %v1474
        %v2104 = vunpack.c.l.b16 %v1488
        %v2105 = vunpack.c.l.b16 %v1498
        %v2106 = vunpack.c.l.b16 %v1512
        %v2107 = vunpack.c.l.b16 %v1522
        %v2108 = vunpack.c.l.b16 %v1536
        %v2109 = vunpack.c.l.b16 %v1546
        %v2110 = vunpack.c.l.b16 %v1560
        %v2111 = vunpack.c.l.b16 %v1570
        %v2112 = vunpack.c.l.b16 %v1584
        %v2113 = vunpack.c.l.b16 %v1594
        %v2114 = vunpack.c.l.b16 %v1608
        %v2115 = vunpack.c.l.b16 %v1618
        %v2116 = vunpack.c.l.b16 %v1632
        %v2117 = vunpack.c.l.b16 %v1642
        %v2118 = vunpack.c.l.b16 %v1656
        %v2119 = vunpack.c.l.b16 %v1666
        %v2120 = vunpack.c.l.b16 %v1680
        %v2121 = vunpack.c.l.b16 %v1690
        %v2122 = vunpack.c.l.b16 %v1704
        %v2123 = vunpack.c.l.b16 %v1714
        %v2124 = vunpack.c.l.b16 %v1728
        %v2125 = vunpack.c.l.b16 %v1738
        %v2126 = vunpack.c.l.b16 %v1752
        %v2127 = vunpack.c.l.b16 %v1762
        %v2128 = vunpack.c.l.b16 %v1776
        %v2129 = vunpack.c.l.b16 %v1786
        %v2130 = vpack.c.b16 %v2099, %v2098
        %v2131 = vpack.c.b16 %v2101, %v2100
        %v2132 = vpack.c.b16 %v2103, %v2102
        %v2133 = vpack.c.b16 %v2105, %v2104
        %v2134 = vpack.c.b16 %v2107, %v2106
        %v2135 = vpack.c.b16 %v2109, %v2108
        %v2136 = vpack.c.b16 %v2111, %v2110
        %v2137 = vpack.c.b16 %v2113, %v2112
        %v2138 = vpack.c.b16 %v2115, %v2114
        %v2139 = vpack.c.b16 %v2117, %v2116
        %v2140 = vpack.c.b16 %v2119, %v2118
        %v2141 = vpack.c.b16 %v2121, %v2120
        %v2142 = vpack.c.b16 %v2123, %v2122
        %v2143 = vpack.c.b16 %v2125, %v2124
        %v2144 = vpack.c.b16 %v2127, %v2126
        %v2145 = vpack.c.b16 %v2129, %v2128
        %v2162 = vunpack.c.l.b16 %v1841
        %v2163 = vunpack.c.l.b16 %v1844
        %v2164 = vunpack.c.l.b16 %v1848
        %v2165 = vunpack.c.l.b16 %v1851
        %v2166 = vunpack.c.l.b16 %v1855
        %v2167 = vunpack.c.l.b16 %v1858
        %v2168 = vunpack.c.l.b16 %v1862
        %v2169 = vunpack.c.l.b16 %v1865
        %v2170 = vunpack.c.l.b16 %v1869
        %v2171 = vunpack.c.l.b16 %v1872
        %v2172 = vunpack.c.l.b16 %v1876
        %v2173 = vunpack.c.l.b16 %v1879
        %v2174 = vunpack.c.l.b16 %v1883
        %v2175 = vunpack.c.l.b16 %v1886
        %v2176 = vunpack.c.l.b16 %v1890
        %v2177 = vunpack.c.l.b16 %v1893
        %v2178 = vunpack.c.l.b16 %v1897
        %v2179 = vunpack.c.l.b16 %v1900
        %v2180 = vunpack.c.l.b16 %v1904
        %v2181 = vunpack.c.l.b16 %v1907
        %v2182 = vunpack.c.l.b16 %v1911
        %v2183 = vunpack.c.l.b16 %v1914
        %v2184 = vunpack.c.l.b16 %v1918
        %v2185 = vunpack.c.l.b16 %v1921
        %v2186 = vunpack.c.l.b16 %v1925
        %v2187 = vunpack.c.l.b16 %v1928
        %v2188 = vunpack.c.l.b16 %v1932
        %v2189 = vunpack.c.l.b16 %v1935
        %v2190 = vunpack.c.l.b16 %v1939
        %v2191 = vunpack.c.l.b16 %v1942
        %v2192 = vunpack.c.l.b16 %v1946
        %v2193 = vunpack.c.l.b16 %v1949
        %v2194 = vpack.c.b16 %v2163, %v2162
        %v2195 = vpack.c.b16 %v2165, %v2164
        %v2196 = vpack.c.b16 %v2167, %v2166
        %v2197 = vpack.c.b16 %v2169, %v2168
        %v2198 = vpack.c.b16 %v2171, %v2170
        %v2199 = vpack.c.b16 %v2173, %v2172
        %v2200 = vpack.c.b16 %v2175, %v2174
        %v2201 = vpack.c.b16 %v2177, %v2176
        %v2202 = vpack.c.b16 %v2179, %v2178
        %v2203 = vpack.c.b16 %v2181, %v2180
        %v2204 = vpack.c.b16 %v2183, %v2182
        %v2205 = vpack.c.b16 %v2185, %v2184
        %v2206 = vpack.c.b16 %v2187, %v2186
        %v2207 = vpack.c.b16 %v2189, %v2188
        %v2208 = vpack.c.b16 %v2191, %v2190
        %v2209 = vpack.c.b16 %v2193, %v2192
        %v2227 = vunpack.c.l.b16 %v1360
        %v2228 = vunpack.c.l.b16 %v1361
        %v2229 = vpack.c.b16 %v2228, %v2227
        %v2231 = vunpack.c.l.b16 %v1963
        %v2232 = vunpack.c.l.b16 %v1973
        %v2233 = vpack.c.b16 %v2232, %v2231
        %v2235 = vunpack.c.l.b16 %v1980
        %v2236 = vunpack.c.l.b16 %v1983
        %v2237 = vpack.c.b16 %v2236, %v2235
        %v2240 = vunpack.c.l.b16 %v1362
        %v2241 = vunpack.c.l.b16 %v1363
        %v2242 = vpack.c.b16 %v2241, %v2240
        %v2244 = vunpack.c.l.b16 %v1997
        %v2245 = vunpack.c.l.b16 %v2007
        %v2246 = vpack.c.b16 %v2245, %v2244
        %v2248 = vunpack.c.l.b16 %v2014
        %v2249 = vunpack.c.l.b16 %v2017
        %v2250 = vpack.c.b16 %v2249, %v2248
        %v2252 = vld [vmem:[#allocation8] sm:$0xf]
        %v2253 = vld [vmem:[#allocation8 + $0x4] sm:$0xf]
        %v2254 = vld [vmem:[#allocation8 + $0x8] sm:$0xf]
        %v2255 = vld [vmem:[#allocation8 + $0xc] sm:$0xf]
        %v2256 = vld [vmem:[#allocation8 + $0x10] sm:$0xf]
        %v2257 = vld [vmem:[#allocation8 + $0x14] sm:$0xf]
        %v2258 = vld [vmem:[#allocation8 + $0x18] sm:$0xf]
        %v2259 = vld [vmem:[#allocation8 + $0x1c] sm:$0xf]
        %v2260 = vld [vmem:[#allocation8 + $0x20] sm:$0xf]
        %v2261 = vld [vmem:[#allocation8 + $0x24] sm:$0xf]
        %v2262 = vld [vmem:[#allocation8 + $0x28] sm:$0xf]
        %v2263 = vld [vmem:[#allocation8 + $0x2c] sm:$0xf]
        %v2264 = vld [vmem:[#allocation8 + $0x30] sm:$0xf]
        %v2265 = vld [vmem:[#allocation8 + $0x34] sm:$0xf]
        %v2266 = vld [vmem:[#allocation8 + $0x38] sm:$0xf]
        %v2267 = vld [vmem:[#allocation8 + $0x3c] sm:$0xf]
        %v2268 = vld [vmem:[#allocation8 + $0x40] sm:$0xf]
        %v2269 = vld [vmem:[#allocation8 + $0x44] sm:$0xf]
        %v2270 = vld [vmem:[#allocation8 + $0x48] sm:$0xf]
        %v2271 = vld [vmem:[#allocation8 + $0x4c] sm:$0xf]
        %v2272 = vld [vmem:[#allocation8 + $0x50] sm:$0xf]
        %v2273 = vld [vmem:[#allocation8 + $0x54] sm:$0xf]
        %v2274 = vld [vmem:[#allocation8 + $0x58] sm:$0xf]
        %v2275 = vld [vmem:[#allocation8 + $0x5c] sm:$0xf]
        %v2276 = vld [vmem:[#allocation8 + $0x60] sm:$0xf]
        %v2277 = vld [vmem:[#allocation8 + $0x64] sm:$0xf]
        %v2278 = vld [vmem:[#allocation8 + $0x68] sm:$0xf]
        %v2279 = vld [vmem:[#allocation8 + $0x6c] sm:$0xf]
        %v2280 = vld [vmem:[#allocation8 + $0x70] sm:$0xf]
        %v2281 = vld [vmem:[#allocation8 + $0x74] sm:$0xf]
        %v2282 = vld [vmem:[#allocation8 + $0x78] sm:$0xf]
        %v2283 = vld [vmem:[#allocation8 + $0x7c] sm:$0xf]
        %v2284 = vld [vmem:[#allocation8 + $0x80] sm:$0xf]
        %v2285 = vld [vmem:[#allocation8 + $0x84] sm:$0xf]
        %v2286 = vld [vmem:[#allocation8 + $0x88] sm:$0xf]
        %v2287 = vld [vmem:[#allocation8 + $0x8c] sm:$0xf]
        %v2288 = vld [vmem:[#allocation8 + $0x90] sm:$0xf]
        %v2289 = vld [vmem:[#allocation8 + $0x94] sm:$0xf]
        %v2290 = vld [vmem:[#allocation8 + $0x98] sm:$0xf]
        %v2291 = vld [vmem:[#allocation8 + $0x9c] sm:$0xf]
        %v2292 = vld [vmem:[#allocation8 + $0xa0] sm:$0xf]
        %v2293 = vld [vmem:[#allocation8 + $0xa4] sm:$0xf]
        %v2294 = vld [vmem:[#allocation8 + $0xa8] sm:$0xf]
        %v2295 = vld [vmem:[#allocation8 + $0xac] sm:$0xf]
        %v2296 = vld [vmem:[#allocation8 + $0xb0] sm:$0xf]
        %v2297 = vld [vmem:[#allocation8 + $0xb4] sm:$0xf]
        %v2298 = vld [vmem:[#allocation8 + $0xb8] sm:$0xf]
        %v2299 = vld [vmem:[#allocation8 + $0xbc] sm:$0xf]
        %v2300 = vld [vmem:[#allocation8 + $0xc0] sm:$0xf]
        %v2301 = vld [vmem:[#allocation8 + $0xc4] sm:$0xf]
        %v2302 = vld [vmem:[#allocation8 + $0xc8] sm:$0xf]
        %v2303 = vld [vmem:[#allocation8 + $0xcc] sm:$0xf]
        %v2304 = vld [vmem:[#allocation8 + $0xd0] sm:$0xf]
        %v2305 = vld [vmem:[#allocation8 + $0xd4] sm:$0xf]
        %v2306 = vld [vmem:[#allocation8 + $0xd8] sm:$0xf]
        %v2307 = vld [vmem:[#allocation8 + $0xdc] sm:$0xf]
        %v2308 = vld [vmem:[#allocation8 + $0xe0] sm:$0xf]
        %v2309 = vld [vmem:[#allocation8 + $0xe4] sm:$0xf]
        %v2310 = vld [vmem:[#allocation8 + $0xe8] sm:$0xf]
        %v2311 = vld [vmem:[#allocation8 + $0xec] sm:$0xf]
        %v2312 = vld [vmem:[#allocation8 + $0xf0] sm:$0xf]
        %v2313 = vld [vmem:[#allocation8 + $0xf4] sm:$0xf]
        %v2314 = vld [vmem:[#allocation8 + $0xf8] sm:$0xf]
        %v2315 = vld [vmem:[#allocation8 + $0xfc] sm:$0xf]
        %v2316 = vld [vmem:[#allocation8 + $0x100] sm:$0xf]
        %v2317 = vld [vmem:[#allocation8 + $0x104] sm:$0xf]
        %v2318 = vld [vmem:[#allocation8 + $0x108] sm:$0xf]
        %v2319 = vld [vmem:[#allocation8 + $0x10c] sm:$0xf]
        %v2320 = vld [vmem:[#allocation8 + $0x110] sm:$0xf]
        %v2321 = vld [vmem:[#allocation8 + $0x114] sm:$0xf]
        %v2322 = vld [vmem:[#allocation8 + $0x118] sm:$0xf]
        %v2323 = vld [vmem:[#allocation8 + $0x11c] sm:$0xf]
        %v2324 = vld [vmem:[#allocation8 + $0x120] sm:$0xf]
        %v2325 = vld [vmem:[#allocation8 + $0x124] sm:$0xf]
        %v2326 = vld [vmem:[#allocation8 + $0x128] sm:$0xf]
        %v2327 = vld [vmem:[#allocation8 + $0x12c] sm:$0xf]
        %v2328 = vld [vmem:[#allocation8 + $0x130] sm:$0xf]
        %v2329 = vld [vmem:[#allocation8 + $0x134] sm:$0xf]
        %v2330 = vld [vmem:[#allocation8 + $0x138] sm:$0xf]
        %v2331 = vld [vmem:[#allocation8 + $0x13c] sm:$0xf]
        %v2332 = vld [vmem:[#allocation8 + $0x140] sm:$0xf]
        %v2333 = vld [vmem:[#allocation8 + $0x144] sm:$0xf]
        %v2334 = vld [vmem:[#allocation8 + $0x148] sm:$0xf]
        %v2335 = vld [vmem:[#allocation8 + $0x14c] sm:$0xf]
        %v2336 = vld [vmem:[#allocation8 + $0x150] sm:$0xf]
        %v2337 = vld [vmem:[#allocation8 + $0x154] sm:$0xf]
        %v2338 = vld [vmem:[#allocation8 + $0x158] sm:$0xf]
        %v2339 = vld [vmem:[#allocation8 + $0x15c] sm:$0xf]
        %v2340 = vld [vmem:[#allocation8 + $0x160] sm:$0xf]
        %v2341 = vld [vmem:[#allocation8 + $0x164] sm:$0xf]
        %v2342 = vld [vmem:[#allocation8 + $0x168] sm:$0xf]
        %v2343 = vld [vmem:[#allocation8 + $0x16c] sm:$0xf]
        %v2344 = vld [vmem:[#allocation8 + $0x170] sm:$0xf]
        %v2345 = vld [vmem:[#allocation8 + $0x174] sm:$0xf]
        %v2346 = vld [vmem:[#allocation8 + $0x178] sm:$0xf]
        %v2347 = vld [vmem:[#allocation8 + $0x17c] sm:$0xf]
        %v2348 = vld [vmem:[#allocation8 + $0x180] sm:$0xf]
        %v2349 = vld [vmem:[#allocation8 + $0x184] sm:$0xf]
        %v2350 = vld [vmem:[#allocation8 + $0x188] sm:$0xf]
        %v2351 = vld [vmem:[#allocation8 + $0x18c] sm:$0xf]
        %v2352 = vld [vmem:[#allocation8 + $0x190] sm:$0xf]
        %v2353 = vld [vmem:[#allocation8 + $0x194] sm:$0xf]
        %v2354 = vld [vmem:[#allocation8 + $0x198] sm:$0xf]
        %v2355 = vld [vmem:[#allocation8 + $0x19c] sm:$0xf]
        %v2356 = vld [vmem:[#allocation8 + $0x1a0] sm:$0xf]
        %v2357 = vld [vmem:[#allocation8 + $0x1a4] sm:$0xf]
        %v2358 = vld [vmem:[#allocation8 + $0x1a8] sm:$0xf]
        %v2359 = vld [vmem:[#allocation8 + $0x1ac] sm:$0xf]
        %v2360 = vld [vmem:[#allocation8 + $0x1b0] sm:$0xf]
        %v2361 = vld [vmem:[#allocation8 + $0x1b4] sm:$0xf]
        %v2362 = vld [vmem:[#allocation8 + $0x1b8] sm:$0xf]
        %v2363 = vld [vmem:[#allocation8 + $0x1bc] sm:$0xf]
        %v2364 = vld [vmem:[#allocation8 + $0x1c0] sm:$0xf]
        %v2365 = vld [vmem:[#allocation8 + $0x1c4] sm:$0xf]
        %v2366 = vld [vmem:[#allocation8 + $0x1c8] sm:$0xf]
        %v2367 = vld [vmem:[#allocation8 + $0x1cc] sm:$0xf]
        %v2368 = vld [vmem:[#allocation8 + $0x1d0] sm:$0xf]
        %v2369 = vld [vmem:[#allocation8 + $0x1d4] sm:$0xf]
        %v2370 = vld [vmem:[#allocation8 + $0x1d8] sm:$0xf]
        %v2371 = vld [vmem:[#allocation8 + $0x1dc] sm:$0xf]
        %v2372 = vld [vmem:[#allocation8 + $0x1e0] sm:$0xf]
        %v2373 = vld [vmem:[#allocation8 + $0x1e4] sm:$0xf]
        %v2374 = vld [vmem:[#allocation8 + $0x1e8] sm:$0xf]
        %v2375 = vld [vmem:[#allocation8 + $0x1ec] sm:$0xf]
        %v2376 = vld [vmem:[#allocation8 + $0x1f0] sm:$0xf]
        %v2377 = vld [vmem:[#allocation8 + $0x1f4] sm:$0xf]
        %v2378 = vld [vmem:[#allocation8 + $0x1f8] sm:$0xf]
        %v2379 = vld [vmem:[#allocation8 + $0x1fc] sm:$0xf]
        %v2380 = vld [vmem:[#allocation8 + $0x200] sm:$0xf]
        %v2381 = vld [vmem:[#allocation8 + $0x204] sm:$0xf]
        %v2382 = vld [vmem:[#allocation8 + $0x208] sm:$0xf]
        %v2383 = vld [vmem:[#allocation8 + $0x20c] sm:$0xf]
        %v2384 = vld [vmem:[#allocation8 + $0x210] sm:$0xf]
        %v2385 = vld [vmem:[#allocation8 + $0x214] sm:$0xf]
        %v2386 = vld [vmem:[#allocation8 + $0x218] sm:$0xf]
        %v2387 = vld [vmem:[#allocation8 + $0x21c] sm:$0xf]
        %v2388 = vld [vmem:[#allocation8 + $0x220] sm:$0xf]
        %v2389 = vld [vmem:[#allocation8 + $0x224] sm:$0xf]
        %v2390 = vld [vmem:[#allocation8 + $0x228] sm:$0xf]
        %v2391 = vld [vmem:[#allocation8 + $0x22c] sm:$0xf]
        %v2392 = vld [vmem:[#allocation8 + $0x230] sm:$0xf]
        %v2393 = vld [vmem:[#allocation8 + $0x234] sm:$0xf]
        %v2394 = vld [vmem:[#allocation8 + $0x238] sm:$0xf]
        %v2395 = vld [vmem:[#allocation8 + $0x23c] sm:$0xf]
        %v2540 = vunpack.c.l.b16 %v2252
        %v2541 = vunpack.c.l.b16 %v2253
        %v2542 = vunpack.c.l.b16 %v2254
        %v2543 = vunpack.c.l.b16 %v2255
        %v2544 = vunpack.c.l.b16 %v2256
        %v2545 = vunpack.c.l.b16 %v2257
        %v2546 = vunpack.c.l.b16 %v2258
        %v2547 = vunpack.c.l.b16 %v2259
        %v2548 = vunpack.c.l.b16 %v2260
        %v2549 = vunpack.c.l.b16 %v2261
        %v2550 = vunpack.c.l.b16 %v2262
        %v2551 = vunpack.c.l.b16 %v2263
        %v2552 = vunpack.c.l.b16 %v2264
        %v2553 = vunpack.c.l.b16 %v2265
        %v2554 = vunpack.c.l.b16 %v2266
        %v2555 = vunpack.c.l.b16 %v2267
        %v2556 = vunpack.c.l.b16 %v2268
        %v2557 = vunpack.c.l.b16 %v2269
        %v2558 = vunpack.c.l.b16 %v2270
        %v2559 = vunpack.c.l.b16 %v2271
        %v2560 = vunpack.c.l.b16 %v2272
        %v2561 = vunpack.c.l.b16 %v2273
        %v2562 = vunpack.c.l.b16 %v2274
        %v2563 = vunpack.c.l.b16 %v2275
        %v2564 = vunpack.c.l.b16 %v2276
        %v2565 = vunpack.c.l.b16 %v2277
        %v2566 = vunpack.c.l.b16 %v2278
        %v2567 = vunpack.c.l.b16 %v2279
        %v2568 = vunpack.c.l.b16 %v2280
        %v2569 = vunpack.c.l.b16 %v2281
        %v2570 = vunpack.c.l.b16 %v2282
        %v2571 = vunpack.c.l.b16 %v2283
        %v2572 = vunpack.c.l.b16 %v2284
        %v2573 = vunpack.c.l.b16 %v2285
        %v2574 = vunpack.c.l.b16 %v2286
        %v2575 = vunpack.c.l.b16 %v2287
        %v2576 = vunpack.c.l.b16 %v2288
        %v2577 = vunpack.c.l.b16 %v2289
        %v2578 = vunpack.c.l.b16 %v2290
        %v2579 = vunpack.c.l.b16 %v2291
        %v2580 = vunpack.c.l.b16 %v2292
        %v2581 = vunpack.c.l.b16 %v2293
        %v2582 = vunpack.c.l.b16 %v2294
        %v2583 = vunpack.c.l.b16 %v2295
        %v2584 = vunpack.c.l.b16 %v2296
        %v2585 = vunpack.c.l.b16 %v2297
        %v2586 = vunpack.c.l.b16 %v2298
        %v2587 = vunpack.c.l.b16 %v2299
        %v2588 = vunpack.c.l.b16 %v2300
        %v2589 = vunpack.c.l.b16 %v2301
        %v2590 = vunpack.c.l.b16 %v2302
        %v2591 = vunpack.c.l.b16 %v2303
        %v2592 = vunpack.c.l.b16 %v2304
        %v2593 = vunpack.c.l.b16 %v2305
        %v2594 = vunpack.c.l.b16 %v2306
        %v2595 = vunpack.c.l.b16 %v2307
        %v2596 = vunpack.c.l.b16 %v2308
        %v2597 = vunpack.c.l.b16 %v2309
        %v2598 = vunpack.c.l.b16 %v2310
        %v2599 = vunpack.c.l.b16 %v2311
        %v2600 = vunpack.c.l.b16 %v2312
        %v2601 = vunpack.c.l.b16 %v2313
        %v2602 = vunpack.c.l.b16 %v2314
        %v2603 = vunpack.c.l.b16 %v2315
        %v2604 = vunpack.c.l.b16 %v2316
        %v2605 = vunpack.c.l.b16 %v2317
        %v2606 = vunpack.c.l.b16 %v2318
        %v2607 = vunpack.c.l.b16 %v2319
        %v2608 = vunpack.c.l.b16 %v2320
        %v2609 = vunpack.c.l.b16 %v2321
        %v2610 = vunpack.c.l.b16 %v2322
        %v2611 = vunpack.c.l.b16 %v2323
        %v2612 = vunpack.c.l.b16 %v2324
        %v2613 = vunpack.c.l.b16 %v2325
        %v2614 = vunpack.c.l.b16 %v2326
        %v2615 = vunpack.c.l.b16 %v2327
        %v2616 = vunpack.c.l.b16 %v2328
        %v2617 = vunpack.c.l.b16 %v2329
        %v2618 = vunpack.c.l.b16 %v2330
        %v2619 = vunpack.c.l.b16 %v2331
        %v2620 = vunpack.c.l.b16 %v2332
        %v2621 = vunpack.c.l.b16 %v2333
        %v2622 = vunpack.c.l.b16 %v2334
        %v2623 = vunpack.c.l.b16 %v2335
        %v2624 = vunpack.c.l.b16 %v2336
        %v2625 = vunpack.c.l.b16 %v2337
        %v2626 = vunpack.c.l.b16 %v2338
        %v2627 = vunpack.c.l.b16 %v2339
        %v2628 = vunpack.c.l.b16 %v2340
        %v2629 = vunpack.c.l.b16 %v2341
        %v2630 = vunpack.c.l.b16 %v2342
        %v2631 = vunpack.c.l.b16 %v2343
        %v2632 = vunpack.c.l.b16 %v2344
        %v2633 = vunpack.c.l.b16 %v2345
        %v2634 = vunpack.c.l.b16 %v2346
        %v2635 = vunpack.c.l.b16 %v2347
        %v2636 = vunpack.c.l.b16 %v2348
        %v2637 = vunpack.c.l.b16 %v2349
        %v2638 = vunpack.c.l.b16 %v2350
        %v2639 = vunpack.c.l.b16 %v2351
        %v2640 = vunpack.c.l.b16 %v2352
        %v2641 = vunpack.c.l.b16 %v2353
        %v2642 = vunpack.c.l.b16 %v2354
        %v2643 = vunpack.c.l.b16 %v2355
        %v2644 = vunpack.c.l.b16 %v2356
        %v2645 = vunpack.c.l.b16 %v2357
        %v2646 = vunpack.c.l.b16 %v2358
        %v2647 = vunpack.c.l.b16 %v2359
        %v2648 = vunpack.c.l.b16 %v2360
        %v2649 = vunpack.c.l.b16 %v2361
        %v2650 = vunpack.c.l.b16 %v2362
        %v2651 = vunpack.c.l.b16 %v2363
        %v2652 = vunpack.c.l.b16 %v2364
        %v2653 = vunpack.c.l.b16 %v2365
        %v2654 = vunpack.c.l.b16 %v2366
        %v2655 = vunpack.c.l.b16 %v2367
        %v2656 = vunpack.c.l.b16 %v2368
        %v2657 = vunpack.c.l.b16 %v2369
        %v2658 = vunpack.c.l.b16 %v2370
        %v2659 = vunpack.c.l.b16 %v2371
        %v2660 = vunpack.c.l.b16 %v2372
        %v2661 = vunpack.c.l.b16 %v2373
        %v2662 = vunpack.c.l.b16 %v2374
        %v2663 = vunpack.c.l.b16 %v2375
        %v2664 = vunpack.c.l.b16 %v2376
        %v2665 = vunpack.c.l.b16 %v2377
        %v2666 = vunpack.c.l.b16 %v2378
        %v2667 = vunpack.c.l.b16 %v2379
        %v2668 = vunpack.c.l.b16 %v2380
        %v2669 = vunpack.c.l.b16 %v2381
        %v2670 = vunpack.c.l.b16 %v2382
        %v2671 = vunpack.c.l.b16 %v2383
        %v2672 = vunpack.c.l.b16 %v2384
        %v2673 = vunpack.c.l.b16 %v2385
        %v2674 = vunpack.c.l.b16 %v2386
        %v2675 = vunpack.c.l.b16 %v2387
        %v2676 = vunpack.c.l.b16 %v2388
        %v2677 = vunpack.c.l.b16 %v2389
        %v2678 = vunpack.c.l.b16 %v2390
        %v2679 = vunpack.c.l.b16 %v2391
        %v2680 = vunpack.c.l.b16 %v2392
        %v2681 = vunpack.c.l.b16 %v2393
        %v2682 = vunpack.c.l.b16 %v2394
        %v2683 = vunpack.c.l.b16 %v2395
        %v2684 = vpack.c.b16 %v2541, %v2540
        %v2685 = vpack.c.b16 %v2543, %v2542
        %v2686 = vpack.c.b16 %v2545, %v2544
        %v2687 = vpack.c.b16 %v2547, %v2546
        %v2688 = vpack.c.b16 %v2549, %v2548
        %v2689 = vpack.c.b16 %v2551, %v2550
        %v2690 = vpack.c.b16 %v2553, %v2552
        %v2691 = vpack.c.b16 %v2555, %v2554
        %v2692 = vpack.c.b16 %v2557, %v2556
        %v2693 = vpack.c.b16 %v2559, %v2558
        %v2694 = vpack.c.b16 %v2561, %v2560
        %v2695 = vpack.c.b16 %v2563, %v2562
        %v2696 = vpack.c.b16 %v2565, %v2564
        %v2697 = vpack.c.b16 %v2567, %v2566
        %v2698 = vpack.c.b16 %v2569, %v2568
        %v2699 = vpack.c.b16 %v2571, %v2570
        %v2700 = vpack.c.b16 %v2573, %v2572
        %v2701 = vpack.c.b16 %v2575, %v2574
        %v2702 = vpack.c.b16 %v2577, %v2576
        %v2703 = vpack.c.b16 %v2579, %v2578
        %v2704 = vpack.c.b16 %v2581, %v2580
        %v2705 = vpack.c.b16 %v2583, %v2582
        %v2706 = vpack.c.b16 %v2585, %v2584
        %v2707 = vpack.c.b16 %v2587, %v2586
        %v2708 = vpack.c.b16 %v2589, %v2588
        %v2709 = vpack.c.b16 %v2591, %v2590
        %v2710 = vpack.c.b16 %v2593, %v2592
        %v2711 = vpack.c.b16 %v2595, %v2594
        %v2712 = vpack.c.b16 %v2597, %v2596
        %v2713 = vpack.c.b16 %v2599, %v2598
        %v2714 = vpack.c.b16 %v2601, %v2600
        %v2715 = vpack.c.b16 %v2603, %v2602
        %v2716 = vpack.c.b16 %v2605, %v2604
        %v2717 = vpack.c.b16 %v2607, %v2606
        %v2718 = vpack.c.b16 %v2609, %v2608
        %v2719 = vpack.c.b16 %v2611, %v2610
        %v2720 = vpack.c.b16 %v2613, %v2612
        %v2721 = vpack.c.b16 %v2615, %v2614
        %v2722 = vpack.c.b16 %v2617, %v2616
        %v2723 = vpack.c.b16 %v2619, %v2618
        %v2724 = vpack.c.b16 %v2621, %v2620
        %v2725 = vpack.c.b16 %v2623, %v2622
        %v2726 = vpack.c.b16 %v2625, %v2624
        %v2727 = vpack.c.b16 %v2627, %v2626
        %v2728 = vpack.c.b16 %v2629, %v2628
        %v2729 = vpack.c.b16 %v2631, %v2630
        %v2730 = vpack.c.b16 %v2633, %v2632
        %v2731 = vpack.c.b16 %v2635, %v2634
        %v2732 = vpack.c.b16 %v2637, %v2636
        %v2733 = vpack.c.b16 %v2639, %v2638
        %v2734 = vpack.c.b16 %v2641, %v2640
        %v2735 = vpack.c.b16 %v2643, %v2642
        %v2736 = vpack.c.b16 %v2645, %v2644
        %v2737 = vpack.c.b16 %v2647, %v2646
        %v2738 = vpack.c.b16 %v2649, %v2648
        %v2739 = vpack.c.b16 %v2651, %v2650
        %v2740 = vpack.c.b16 %v2653, %v2652
        %v2741 = vpack.c.b16 %v2655, %v2654
        %v2742 = vpack.c.b16 %v2657, %v2656
        %v2743 = vpack.c.b16 %v2659, %v2658
        %v2744 = vpack.c.b16 %v2661, %v2660
        %v2745 = vpack.c.b16 %v2663, %v2662
        %v2746 = vpack.c.b16 %v2665, %v2664
        %v2747 = vpack.c.b16 %v2667, %v2666
        %v2748 = vpack.c.b16 %v2669, %v2668
        %v2749 = vpack.c.b16 %v2671, %v2670
        %v2750 = vpack.c.b16 %v2673, %v2672
        %v2751 = vpack.c.b16 %v2675, %v2674
        %v2752 = vpack.c.b16 %v2677, %v2676
        %v2753 = vpack.c.b16 %v2679, %v2678
        %v2754 = vpack.c.b16 %v2681, %v2680
        %v2755 = vpack.c.b16 %v2683, %v2682
        %2828 = vmatpush.bf16.msra.mxu0 %v2691
        %2829 = vmatpush.bf16.msra.mxu0 %v2690
        %2830 = vmatpush.bf16.msra.mxu0 %v2689
        %2831 = vmatpush.bf16.msra.mxu0 %v2688
        %2832 = vmatpush.bf16.msra.mxu0 %v2687
        %2833 = vmatpush.bf16.msra.mxu0 %v2686
        %2834 = vmatpush.bf16.msra.mxu0 %v2685
        %2835 = vmatpush.bf16.msra.mxu0 %v2684
        %2836 = vmatmul.bf16.gmra.mxu0 %v2066
        %v2837 = vpop.f32.mrf.mxu0
        %v2838 = vadd.f32 0.0, %v2837
        %v2839 = vpop.f32.mrf.mxu0
        %v2840 = vadd.f32 0.0, %v2839
        %2841 = vmatmul.bf16.gmra.mxu0 %v2067
        %v2842 = vpop.f32.mrf.mxu0
        %v2843 = vadd.f32 0.0, %v2842
        %v2844 = vpop.f32.mrf.mxu0
        %v2845 = vadd.f32 0.0, %v2844
        %2846 = vmatmul.bf16.gmra.mxu0 %v2068
        %v2847 = vpop.f32.mrf.mxu0
        %v2848 = vadd.f32 0.0, %v2847
        %v2849 = vpop.f32.mrf.mxu0
        %v2850 = vadd.f32 0.0, %v2849
        %2851 = vmatmul.bf16.gmra.mxu0 %v2069
        %v2852 = vpop.f32.mrf.mxu0
        %v2853 = vadd.f32 0.0, %v2852
        %v2854 = vpop.f32.mrf.mxu0
        %v2855 = vadd.f32 0.0, %v2854
        %2856 = vmatmul.bf16.gmra.mxu0 %v2070
        %v2857 = vpop.f32.mrf.mxu0
        %v2858 = vadd.f32 0.0, %v2857
        %v2859 = vpop.f32.mrf.mxu0
        %v2860 = vadd.f32 0.0, %v2859
        %2861 = vmatmul.bf16.gmra.mxu0 %v2071
        %v2862 = vpop.f32.mrf.mxu0
        %v2863 = vadd.f32 0.0, %v2862
        %v2864 = vpop.f32.mrf.mxu0
        %v2865 = vadd.f32 0.0, %v2864
        %2866 = vmatmul.bf16.gmra.mxu0 %v2072
        %v2867 = vpop.f32.mrf.mxu0
        %v2868 = vadd.f32 0.0, %v2867
        %v2869 = vpop.f32.mrf.mxu0
        %v2870 = vadd.f32 0.0, %v2869
        %2871 = vmatmul.bf16.gmra.mxu0 %v2073
        %v2872 = vpop.f32.mrf.mxu0
        %v2873 = vadd.f32 0.0, %v2872
        %v2874 = vpop.f32.mrf.mxu0
        %v2875 = vadd.f32 0.0, %v2874
        %2876 = vmatmul.bf16.gmra.mxu0 %v2074
        %v2877 = vpop.f32.mrf.mxu0
        %v2878 = vadd.f32 0.0, %v2877
        %v2879 = vpop.f32.mrf.mxu0
        %v2880 = vadd.f32 0.0, %v2879
        %2881 = vmatmul.bf16.gmra.mxu0 %v2075
        %v2882 = vpop.f32.mrf.mxu0
        %v2883 = vadd.f32 0.0, %v2882
        %v2884 = vpop.f32.mrf.mxu0
        %v2885 = vadd.f32 0.0, %v2884
        %2886 = vmatmul.bf16.gmra.mxu0 %v2076
        %v2887 = vpop.f32.mrf.mxu0
        %v2888 = vadd.f32 0.0, %v2887
        %v2889 = vpop.f32.mrf.mxu0
        %v2890 = vadd.f32 0.0, %v2889
        %2891 = vmatmul.bf16.gmra.mxu0 %v2077
        %v2892 = vpop.f32.mrf.mxu0
        %v2893 = vadd.f32 0.0, %v2892
        %v2894 = vpop.f32.mrf.mxu0
        %v2895 = vadd.f32 0.0, %v2894
        %2896 = vmatmul.bf16.gmra.mxu0 %v2078
        %v2897 = vpop.f32.mrf.mxu0
        %v2898 = vadd.f32 0.0, %v2897
        %v2899 = vpop.f32.mrf.mxu0
        %v2900 = vadd.f32 0.0, %v2899
        %2901 = vmatmul.bf16.gmra.mxu0 %v2079
        %v2902 = vpop.f32.mrf.mxu0
        %v2903 = vadd.f32 0.0, %v2902
        %v2904 = vpop.f32.mrf.mxu0
        %v2905 = vadd.f32 0.0, %v2904
        %2906 = vmatmul.bf16.gmra.mxu0 %v2080
        %v2907 = vpop.f32.mrf.mxu0
        %v2908 = vadd.f32 0.0, %v2907
        %v2909 = vpop.f32.mrf.mxu0
        %v2910 = vadd.f32 0.0, %v2909
        %2911 = vmatmul.bf16.gmra.mxu0 %v2081
        %v2912 = vpop.f32.mrf.mxu0
        %v2913 = vadd.f32 0.0, %v2912
        %v2914 = vpop.f32.mrf.mxu0
        %v2915 = vadd.f32 0.0, %v2914
        %2916 = vdwg.mxu0
        %2917 = vmatpush.bf16.msra.mxu0 %v2699
        %2918 = vmatpush.bf16.msra.mxu0 %v2698
        %2919 = vmatpush.bf16.msra.mxu0 %v2697
        %2920 = vmatpush.bf16.msra.mxu0 %v2696
        %2921 = vmatpush.bf16.msra.mxu0 %v2695
        %2922 = vmatpush.bf16.msra.mxu0 %v2694
        %2923 = vmatpush.bf16.msra.mxu0 %v2693
        %2924 = vmatpush.bf16.msra.mxu0 %v2692
        %2925 = vmatmul.bf16.gmra.mxu0 %v2130
        %v2926 = vpop.f32.mrf.mxu0
        %v2927 = vadd.f32 %v2838, %v2926
        %v2928 = vpop.f32.mrf.mxu0
        %v2929 = vadd.f32 %v2840, %v2928
        %2930 = vmatmul.bf16.gmra.mxu0 %v2131
        %v2931 = vpop.f32.mrf.mxu0
        %v2932 = vadd.f32 %v2843, %v2931
        %v2933 = vpop.f32.mrf.mxu0
        %v2934 = vadd.f32 %v2845, %v2933
        %2935 = vmatmul.bf16.gmra.mxu0 %v2132
        %v2936 = vpop.f32.mrf.mxu0
        %v2937 = vadd.f32 %v2848, %v2936
        %v2938 = vpop.f32.mrf.mxu0
        %v2939 = vadd.f32 %v2850, %v2938
        %2940 = vmatmul.bf16.gmra.mxu0 %v2133
        %v2941 = vpop.f32.mrf.mxu0
        %v2942 = vadd.f32 %v2853, %v2941
        %v2943 = vpop.f32.mrf.mxu0
        %v2944 = vadd.f32 %v2855, %v2943
        %2945 = vmatmul.bf16.gmra.mxu0 %v2134
        %v2946 = vpop.f32.mrf.mxu0
        %v2947 = vadd.f32 %v2858, %v2946
        %v2948 = vpop.f32.mrf.mxu0
        %v2949 = vadd.f32 %v2860, %v2948
        %2950 = vmatmul.bf16.gmra.mxu0 %v2135
        %v2951 = vpop.f32.mrf.mxu0
        %v2952 = vadd.f32 %v2863, %v2951
        %v2953 = vpop.f32.mrf.mxu0
        %v2954 = vadd.f32 %v2865, %v2953
        %2955 = vmatmul.bf16.gmra.mxu0 %v2136
        %v2956 = vpop.f32.mrf.mxu0
        %v2957 = vadd.f32 %v2868, %v2956
        %v2958 = vpop.f32.mrf.mxu0
        %v2959 = vadd.f32 %v2870, %v2958
        %2960 = vmatmul.bf16.gmra.mxu0 %v2137
        %v2961 = vpop.f32.mrf.mxu0
        %v2962 = vadd.f32 %v2873, %v2961
        %v2963 = vpop.f32.mrf.mxu0
        %v2964 = vadd.f32 %v2875, %v2963
        %2965 = vmatmul.bf16.gmra.mxu0 %v2138
        %v2966 = vpop.f32.mrf.mxu0
        %v2967 = vadd.f32 %v2878, %v2966
        %v2968 = vpop.f32.mrf.mxu0
        %v2969 = vadd.f32 %v2880, %v2968
        %2970 = vmatmul.bf16.gmra.mxu0 %v2139
        %v2971 = vpop.f32.mrf.mxu0
        %v2972 = vadd.f32 %v2883, %v2971
        %v2973 = vpop.f32.mrf.mxu0
        %v2974 = vadd.f32 %v2885, %v2973
        %2975 = vmatmul.bf16.gmra.mxu0 %v2140
        %v2976 = vpop.f32.mrf.mxu0
        %v2977 = vadd.f32 %v2888, %v2976
        %v2978 = vpop.f32.mrf.mxu0
        %v2979 = vadd.f32 %v2890, %v2978
        %2980 = vmatmul.bf16.gmra.mxu0 %v2141
        %v2981 = vpop.f32.mrf.mxu0
        %v2982 = vadd.f32 %v2893, %v2981
        %v2983 = vpop.f32.mrf.mxu0
        %v2984 = vadd.f32 %v2895, %v2983
        %2985 = vmatmul.bf16.gmra.mxu0 %v2142
        %v2986 = vpop.f32.mrf.mxu0
        %v2987 = vadd.f32 %v2898, %v2986
        %v2988 = vpop.f32.mrf.mxu0
        %v2989 = vadd.f32 %v2900, %v2988
        %2990 = vmatmul.bf16.gmra.mxu0 %v2143
        %v2991 = vpop.f32.mrf.mxu0
        %v2992 = vadd.f32 %v2903, %v2991
        %v2993 = vpop.f32.mrf.mxu0
        %v2994 = vadd.f32 %v2905, %v2993
        %2995 = vmatmul.bf16.gmra.mxu0 %v2144
        %v2996 = vpop.f32.mrf.mxu0
        %v2997 = vadd.f32 %v2908, %v2996
        %v2998 = vpop.f32.mrf.mxu0
        %v2999 = vadd.f32 %v2910, %v2998
        %3000 = vmatmul.bf16.gmra.mxu0 %v2145
        %v3001 = vpop.f32.mrf.mxu0
        %v3002 = vadd.f32 %v2913, %v3001
        %v3003 = vpop.f32.mrf.mxu0
        %v3004 = vadd.f32 %v2915, %v3003
        %3005 = vdwg.mxu0
        %3006 = vmatpush.bf16.msra.mxu0 %v2707
        %3007 = vmatpush.bf16.msra.mxu0 %v2706
        %3008 = vmatpush.bf16.msra.mxu0 %v2705
        %3009 = vmatpush.bf16.msra.mxu0 %v2704
        %3010 = vmatpush.bf16.msra.mxu0 %v2703
        %3011 = vmatpush.bf16.msra.mxu0 %v2702
        %3012 = vmatpush.bf16.msra.mxu0 %v2701
        %3013 = vmatpush.bf16.msra.mxu0 %v2700
        %3014 = vmatmul.bf16.gmra.mxu0 %v2194
        %v3015 = vpop.f32.mrf.mxu0
        %v3016 = vadd.f32 %v2927, %v3015
        %v3017 = vpop.f32.mrf.mxu0
        %v3018 = vadd.f32 %v2929, %v3017
        %3019 = vmatmul.bf16.gmra.mxu0 %v2195
        %v3020 = vpop.f32.mrf.mxu0
        %v3021 = vadd.f32 %v2932, %v3020
        %v3022 = vpop.f32.mrf.mxu0
        %v3023 = vadd.f32 %v2934, %v3022
        %3024 = vmatmul.bf16.gmra.mxu0 %v2196
        %v3025 = vpop.f32.mrf.mxu0
        %v3026 = vadd.f32 %v2937, %v3025
        %v3027 = vpop.f32.mrf.mxu0
        %v3028 = vadd.f32 %v2939, %v3027
        %3029 = vmatmul.bf16.gmra.mxu0 %v2197
        %v3030 = vpop.f32.mrf.mxu0
        %v3031 = vadd.f32 %v2942, %v3030
        %v3032 = vpop.f32.mrf.mxu0
        %v3033 = vadd.f32 %v2944, %v3032
        %3034 = vmatmul.bf16.gmra.mxu0 %v2198
        %v3035 = vpop.f32.mrf.mxu0
        %v3036 = vadd.f32 %v2947, %v3035
        %v3037 = vpop.f32.mrf.mxu0
        %v3038 = vadd.f32 %v2949, %v3037
        %3039 = vmatmul.bf16.gmra.mxu0 %v2199
        %v3040 = vpop.f32.mrf.mxu0
        %v3041 = vadd.f32 %v2952, %v3040
        %v3042 = vpop.f32.mrf.mxu0
        %v3043 = vadd.f32 %v2954, %v3042
        %3044 = vmatmul.bf16.gmra.mxu0 %v2200
        %v3045 = vpop.f32.mrf.mxu0
        %v3046 = vadd.f32 %v2957, %v3045
        %v3047 = vpop.f32.mrf.mxu0
        %v3048 = vadd.f32 %v2959, %v3047
        %3049 = vmatmul.bf16.gmra.mxu0 %v2201
        %v3050 = vpop.f32.mrf.mxu0
        %v3051 = vadd.f32 %v2962, %v3050
        %v3052 = vpop.f32.mrf.mxu0
        %v3053 = vadd.f32 %v2964, %v3052
        %3054 = vmatmul.bf16.gmra.mxu0 %v2202
        %v3055 = vpop.f32.mrf.mxu0
        %v3056 = vadd.f32 %v2967, %v3055
        %v3057 = vpop.f32.mrf.mxu0
        %v3058 = vadd.f32 %v2969, %v3057
        %3059 = vmatmul.bf16.gmra.mxu0 %v2203
        %v3060 = vpop.f32.mrf.mxu0
        %v3061 = vadd.f32 %v2972, %v3060
        %v3062 = vpop.f32.mrf.mxu0
        %v3063 = vadd.f32 %v2974, %v3062
        %3064 = vmatmul.bf16.gmra.mxu0 %v2204
        %v3065 = vpop.f32.mrf.mxu0
        %v3066 = vadd.f32 %v2977, %v3065
        %v3067 = vpop.f32.mrf.mxu0
        %v3068 = vadd.f32 %v2979, %v3067
        %3069 = vmatmul.bf16.gmra.mxu0 %v2205
        %v3070 = vpop.f32.mrf.mxu0
        %v3071 = vadd.f32 %v2982, %v3070
        %v3072 = vpop.f32.mrf.mxu0
        %v3073 = vadd.f32 %v2984, %v3072
        %3074 = vmatmul.bf16.gmra.mxu0 %v2206
        %v3075 = vpop.f32.mrf.mxu0
        %v3076 = vadd.f32 %v2987, %v3075
        %v3077 = vpop.f32.mrf.mxu0
        %v3078 = vadd.f32 %v2989, %v3077
        %3079 = vmatmul.bf16.gmra.mxu0 %v2207
        %v3080 = vpop.f32.mrf.mxu0
        %v3081 = vadd.f32 %v2992, %v3080
        %v3082 = vpop.f32.mrf.mxu0
        %v3083 = vadd.f32 %v2994, %v3082
        %3084 = vmatmul.bf16.gmra.mxu0 %v2208
        %v3085 = vpop.f32.mrf.mxu0
        %v3086 = vadd.f32 %v2997, %v3085
        %v3087 = vpop.f32.mrf.mxu0
        %v3088 = vadd.f32 %v2999, %v3087
        %3089 = vmatmul.bf16.gmra.mxu0 %v2209
        %v3090 = vpop.f32.mrf.mxu0
        %v3091 = vadd.f32 %v3002, %v3090
        %v3092 = vpop.f32.mrf.mxu0
        %v3093 = vadd.f32 %v3004, %v3092
        %3094 = vdwg.mxu0
        %3095 = vmatpush.bf16.msra.mxu0 %v2715
        %3096 = vmatpush.bf16.msra.mxu0 %v2714
        %3097 = vmatpush.bf16.msra.mxu0 %v2713
        %3098 = vmatpush.bf16.msra.mxu0 %v2712
        %3099 = vmatpush.bf16.msra.mxu0 %v2711
        %3100 = vmatpush.bf16.msra.mxu0 %v2710
        %3101 = vmatpush.bf16.msra.mxu0 %v2709
        %3102 = vmatpush.bf16.msra.mxu0 %v2708
        %3103 = vmatmul.bf16.gmra.mxu0 %v2067
        %v3104 = vpop.f32.mrf.mxu0
        %v3105 = vadd.f32 %v3016, %v3104
        %v3106 = vpop.f32.mrf.mxu0
        %v3107 = vadd.f32 %v3018, %v3106
        %3108 = vmatmul.bf16.gmra.mxu0 %v2068
        %v3109 = vpop.f32.mrf.mxu0
        %v3110 = vadd.f32 %v3021, %v3109
        %v3111 = vpop.f32.mrf.mxu0
        %v3112 = vadd.f32 %v3023, %v3111
        %3113 = vmatmul.bf16.gmra.mxu0 %v2069
        %v3114 = vpop.f32.mrf.mxu0
        %v3115 = vadd.f32 %v3026, %v3114
        %v3116 = vpop.f32.mrf.mxu0
        %v3117 = vadd.f32 %v3028, %v3116
        %3118 = vmatmul.bf16.gmra.mxu0 %v2070
        %v3119 = vpop.f32.mrf.mxu0
        %v3120 = vadd.f32 %v3031, %v3119
        %v3121 = vpop.f32.mrf.mxu0
        %v3122 = vadd.f32 %v3033, %v3121
        %3123 = vmatmul.bf16.gmra.mxu0 %v2071
        %v3124 = vpop.f32.mrf.mxu0
        %v3125 = vadd.f32 %v3036, %v3124
        %v3126 = vpop.f32.mrf.mxu0
        %v3127 = vadd.f32 %v3038, %v3126
        %3128 = vmatmul.bf16.gmra.mxu0 %v2072
        %v3129 = vpop.f32.mrf.mxu0
        %v3130 = vadd.f32 %v3041, %v3129
        %v3131 = vpop.f32.mrf.mxu0
        %v3132 = vadd.f32 %v3043, %v3131
        %3133 = vmatmul.bf16.gmra.mxu0 %v2073
        %v3134 = vpop.f32.mrf.mxu0
        %v3135 = vadd.f32 %v3046, %v3134
        %v3136 = vpop.f32.mrf.mxu0
        %v3137 = vadd.f32 %v3048, %v3136
        %3138 = vmatmul.bf16.gmra.mxu0 %v2074
        %v3139 = vpop.f32.mrf.mxu0
        %v3140 = vadd.f32 %v3051, %v3139
        %v3141 = vpop.f32.mrf.mxu0
        %v3142 = vadd.f32 %v3053, %v3141
        %3143 = vmatmul.bf16.gmra.mxu0 %v2075
        %v3144 = vpop.f32.mrf.mxu0
        %v3145 = vadd.f32 %v3056, %v3144
        %v3146 = vpop.f32.mrf.mxu0
        %v3147 = vadd.f32 %v3058, %v3146
        %3148 = vmatmul.bf16.gmra.mxu0 %v2076
        %v3149 = vpop.f32.mrf.mxu0
        %v3150 = vadd.f32 %v3061, %v3149
        %v3151 = vpop.f32.mrf.mxu0
        %v3152 = vadd.f32 %v3063, %v3151
        %3153 = vmatmul.bf16.gmra.mxu0 %v2077
        %v3154 = vpop.f32.mrf.mxu0
        %v3155 = vadd.f32 %v3066, %v3154
        %v3156 = vpop.f32.mrf.mxu0
        %v3157 = vadd.f32 %v3068, %v3156
        %3158 = vmatmul.bf16.gmra.mxu0 %v2078
        %v3159 = vpop.f32.mrf.mxu0
        %v3160 = vadd.f32 %v3071, %v3159
        %v3161 = vpop.f32.mrf.mxu0
        %v3162 = vadd.f32 %v3073, %v3161
        %3163 = vmatmul.bf16.gmra.mxu0 %v2079
        %v3164 = vpop.f32.mrf.mxu0
        %v3165 = vadd.f32 %v3076, %v3164
        %v3166 = vpop.f32.mrf.mxu0
        %v3167 = vadd.f32 %v3078, %v3166
        %3168 = vmatmul.bf16.gmra.mxu0 %v2080
        %v3169 = vpop.f32.mrf.mxu0
        %v3170 = vadd.f32 %v3081, %v3169
        %v3171 = vpop.f32.mrf.mxu0
        %v3172 = vadd.f32 %v3083, %v3171
        %3173 = vmatmul.bf16.gmra.mxu0 %v2081
        %v3174 = vpop.f32.mrf.mxu0
        %v3175 = vadd.f32 %v3086, %v3174
        %v3176 = vpop.f32.mrf.mxu0
        %v3177 = vadd.f32 %v3088, %v3176
        %3178 = vmatmul.bf16.gmra.mxu0 %v2229
        %v3179 = vpop.f32.mrf.mxu0
        %v3180 = vadd.f32 %v3091, %v3179
        %v3181 = vpop.f32.mrf.mxu0
        %v3182 = vadd.f32 %v3093, %v3181
        %3183 = vdwg.mxu0
        %3184 = vmatpush.bf16.msra.mxu0 %v2723
        %3185 = vmatpush.bf16.msra.mxu0 %v2722
        %3186 = vmatpush.bf16.msra.mxu0 %v2721
        %3187 = vmatpush.bf16.msra.mxu0 %v2720
        %3188 = vmatpush.bf16.msra.mxu0 %v2719
        %3189 = vmatpush.bf16.msra.mxu0 %v2718
        %3190 = vmatpush.bf16.msra.mxu0 %v2717
        %3191 = vmatpush.bf16.msra.mxu0 %v2716
        %3192 = vmatmul.bf16.gmra.mxu0 %v2131
        %v3193 = vpop.f32.mrf.mxu0
        %v3194 = vadd.f32 %v3105, %v3193
        %v3195 = vpop.f32.mrf.mxu0
        %v3196 = vadd.f32 %v3107, %v3195
        %3197 = vmatmul.bf16.gmra.mxu0 %v2132
        %v3198 = vpop.f32.mrf.mxu0
        %v3199 = vadd.f32 %v3110, %v3198
        %v3200 = vpop.f32.mrf.mxu0
        %v3201 = vadd.f32 %v3112, %v3200
        %3202 = vmatmul.bf16.gmra.mxu0 %v2133
        %v3203 = vpop.f32.mrf.mxu0
        %v3204 = vadd.f32 %v3115, %v3203
        %v3205 = vpop.f32.mrf.mxu0
        %v3206 = vadd.f32 %v3117, %v3205
        %3207 = vmatmul.bf16.gmra.mxu0 %v2134
        %v3208 = vpop.f32.mrf.mxu0
        %v3209 = vadd.f32 %v3120, %v3208
        %v3210 = vpop.f32.mrf.mxu0
        %v3211 = vadd.f32 %v3122, %v3210
        %3212 = vmatmul.bf16.gmra.mxu0 %v2135
        %v3213 = vpop.f32.mrf.mxu0
        %v3214 = vadd.f32 %v3125, %v3213
        %v3215 = vpop.f32.mrf.mxu0
        %v3216 = vadd.f32 %v3127, %v3215
        %3217 = vmatmul.bf16.gmra.mxu0 %v2136
        %v3218 = vpop.f32.mrf.mxu0
        %v3219 = vadd.f32 %v3130, %v3218
        %v3220 = vpop.f32.mrf.mxu0
        %v3221 = vadd.f32 %v3132, %v3220
        %3222 = vmatmul.bf16.gmra.mxu0 %v2137
        %v3223 = vpop.f32.mrf.mxu0
        %v3224 = vadd.f32 %v3135, %v3223
        %v3225 = vpop.f32.mrf.mxu0
        %v3226 = vadd.f32 %v3137, %v3225
        %3227 = vmatmul.bf16.gmra.mxu0 %v2138
        %v3228 = vpop.f32.mrf.mxu0
        %v3229 = vadd.f32 %v3140, %v3228
        %v3230 = vpop.f32.mrf.mxu0
        %v3231 = vadd.f32 %v3142, %v3230
        %3232 = vmatmul.bf16.gmra.mxu0 %v2139
        %v3233 = vpop.f32.mrf.mxu0
        %v3234 = vadd.f32 %v3145, %v3233
        %v3235 = vpop.f32.mrf.mxu0
        %v3236 = vadd.f32 %v3147, %v3235
        %3237 = vmatmul.bf16.gmra.mxu0 %v2140
        %v3238 = vpop.f32.mrf.mxu0
        %v3239 = vadd.f32 %v3150, %v3238
        %v3240 = vpop.f32.mrf.mxu0
        %v3241 = vadd.f32 %v3152, %v3240
        %3242 = vmatmul.bf16.gmra.mxu0 %v2141
        %v3243 = vpop.f32.mrf.mxu0
        %v3244 = vadd.f32 %v3155, %v3243
        %v3245 = vpop.f32.mrf.mxu0
        %v3246 = vadd.f32 %v3157, %v3245
        %3247 = vmatmul.bf16.gmra.mxu0 %v2142
        %v3248 = vpop.f32.mrf.mxu0
        %v3249 = vadd.f32 %v3160, %v3248
        %v3250 = vpop.f32.mrf.mxu0
        %v3251 = vadd.f32 %v3162, %v3250
        %3252 = vmatmul.bf16.gmra.mxu0 %v2143
        %v3253 = vpop.f32.mrf.mxu0
        %v3254 = vadd.f32 %v3165, %v3253
        %v3255 = vpop.f32.mrf.mxu0
        %v3256 = vadd.f32 %v3167, %v3255
        %3257 = vmatmul.bf16.gmra.mxu0 %v2144
        %v3258 = vpop.f32.mrf.mxu0
        %v3259 = vadd.f32 %v3170, %v3258
        %v3260 = vpop.f32.mrf.mxu0
        %v3261 = vadd.f32 %v3172, %v3260
        %3262 = vmatmul.bf16.gmra.mxu0 %v2145
        %v3263 = vpop.f32.mrf.mxu0
        %v3264 = vadd.f32 %v3175, %v3263
        %v3265 = vpop.f32.mrf.mxu0
        %v3266 = vadd.f32 %v3177, %v3265
        %3267 = vmatmul.bf16.gmra.mxu0 %v2233
        %v3268 = vpop.f32.mrf.mxu0
        %v3269 = vadd.f32 %v3180, %v3268
        %v3270 = vpop.f32.mrf.mxu0
        %v3271 = vadd.f32 %v3182, %v3270
        %3272 = vdwg.mxu0
        %3273 = vmatpush.bf16.msra.mxu0 %v2731
        %3274 = vmatpush.bf16.msra.mxu0 %v2730
        %3275 = vmatpush.bf16.msra.mxu0 %v2729
        %3276 = vmatpush.bf16.msra.mxu0 %v2728
        %3277 = vmatpush.bf16.msra.mxu0 %v2727
        %3278 = vmatpush.bf16.msra.mxu0 %v2726
        %3279 = vmatpush.bf16.msra.mxu0 %v2725
        %3280 = vmatpush.bf16.msra.mxu0 %v2724
        %3281 = vmatmul.bf16.gmra.mxu0 %v2195
        %v3282 = vpop.f32.mrf.mxu0
        %v3283 = vadd.f32 %v3194, %v3282
        %v3284 = vpop.f32.mrf.mxu0
        %v3285 = vadd.f32 %v3196, %v3284
        %3286 = vmatmul.bf16.gmra.mxu0 %v2196
        %v3287 = vpop.f32.mrf.mxu0
        %v3288 = vadd.f32 %v3199, %v3287
        %v3289 = vpop.f32.mrf.mxu0
        %v3290 = vadd.f32 %v3201, %v3289
        %3291 = vmatmul.bf16.gmra.mxu0 %v2197
        %v3292 = vpop.f32.mrf.mxu0
        %v3293 = vadd.f32 %v3204, %v3292
        %v3294 = vpop.f32.mrf.mxu0
        %v3295 = vadd.f32 %v3206, %v3294
        %3296 = vmatmul.bf16.gmra.mxu0 %v2198
        %v3297 = vpop.f32.mrf.mxu0
        %v3298 = vadd.f32 %v3209, %v3297
        %v3299 = vpop.f32.mrf.mxu0
        %v3300 = vadd.f32 %v3211, %v3299
        %3301 = vmatmul.bf16.gmra.mxu0 %v2199
        %v3302 = vpop.f32.mrf.mxu0
        %v3303 = vadd.f32 %v3214, %v3302
        %v3304 = vpop.f32.mrf.mxu0
        %v3305 = vadd.f32 %v3216, %v3304
        %3306 = vmatmul.bf16.gmra.mxu0 %v2200
        %v3307 = vpop.f32.mrf.mxu0
        %v3308 = vadd.f32 %v3219, %v3307
        %v3309 = vpop.f32.mrf.mxu0
        %v3310 = vadd.f32 %v3221, %v3309
        %3311 = vmatmul.bf16.gmra.mxu0 %v2201
        %v3312 = vpop.f32.mrf.mxu0
        %v3313 = vadd.f32 %v3224, %v3312
        %v3314 = vpop.f32.mrf.mxu0
        %v3315 = vadd.f32 %v3226, %v3314
        %3316 = vmatmul.bf16.gmra.mxu0 %v2202
        %v3317 = vpop.f32.mrf.mxu0
        %v3318 = vadd.f32 %v3229, %v3317
        %v3319 = vpop.f32.mrf.mxu0
        %v3320 = vadd.f32 %v3231, %v3319
        %3321 = vmatmul.bf16.gmra.mxu0 %v2203
        %v3322 = vpop.f32.mrf.mxu0
        %v3323 = vadd.f32 %v3234, %v3322
        %v3324 = vpop.f32.mrf.mxu0
        %v3325 = vadd.f32 %v3236, %v3324
        %3326 = vmatmul.bf16.gmra.mxu0 %v2204
        %v3327 = vpop.f32.mrf.mxu0
        %v3328 = vadd.f32 %v3239, %v3327
        %v3329 = vpop.f32.mrf.mxu0
        %v3330 = vadd.f32 %v3241, %v3329
        %3331 = vmatmul.bf16.gmra.mxu0 %v2205
        %v3332 = vpop.f32.mrf.mxu0
        %v3333 = vadd.f32 %v3244, %v3332
        %v3334 = vpop.f32.mrf.mxu0
        %v3335 = vadd.f32 %v3246, %v3334
        %3336 = vmatmul.bf16.gmra.mxu0 %v2206
        %v3337 = vpop.f32.mrf.mxu0
        %v3338 = vadd.f32 %v3249, %v3337
        %v3339 = vpop.f32.mrf.mxu0
        %v3340 = vadd.f32 %v3251, %v3339
        %3341 = vmatmul.bf16.gmra.mxu0 %v2207
        %v3342 = vpop.f32.mrf.mxu0
        %v3343 = vadd.f32 %v3254, %v3342
        %v3344 = vpop.f32.mrf.mxu0
        %v3345 = vadd.f32 %v3256, %v3344
        %3346 = vmatmul.bf16.gmra.mxu0 %v2208
        %v3347 = vpop.f32.mrf.mxu0
        %v3348 = vadd.f32 %v3259, %v3347
        %v3349 = vpop.f32.mrf.mxu0
        %v3350 = vadd.f32 %v3261, %v3349
        %3351 = vmatmul.bf16.gmra.mxu0 %v2209
        %v3352 = vpop.f32.mrf.mxu0
        %v3353 = vadd.f32 %v3264, %v3352
        %v3354 = vpop.f32.mrf.mxu0
        %v3355 = vadd.f32 %v3266, %v3354
        %3356 = vmatmul.bf16.gmra.mxu0 %v2237
        %v3357 = vpop.f32.mrf.mxu0
        %v3358 = vadd.f32 %v3269, %v3357
        %v3359 = vpop.f32.mrf.mxu0
        %v3360 = vadd.f32 %v3271, %v3359
        %3361 = vdwg.mxu0
        %3362 = vmatpush.bf16.msra.mxu0 %v2739
        %3363 = vmatpush.bf16.msra.mxu0 %v2738
        %3364 = vmatpush.bf16.msra.mxu0 %v2737
        %3365 = vmatpush.bf16.msra.mxu0 %v2736
        %3366 = vmatpush.bf16.msra.mxu0 %v2735
        %3367 = vmatpush.bf16.msra.mxu0 %v2734
        %3368 = vmatpush.bf16.msra.mxu0 %v2733
        %3369 = vmatpush.bf16.msra.mxu0 %v2732
        %3370 = vmatmul.bf16.gmra.mxu0 %v2068
        %v3371 = vpop.f32.mrf.mxu0
        %v3372 = vadd.f32 %v3283, %v3371
        %v3373 = vpop.f32.mrf.mxu0
        %v3374 = vadd.f32 %v3285, %v3373
        %3375 = vmatmul.bf16.gmra.mxu0 %v2069
        %v3376 = vpop.f32.mrf.mxu0
        %v3377 = vadd.f32 %v3288, %v3376
        %v3378 = vpop.f32.mrf.mxu0
        %v3379 = vadd.f32 %v3290, %v3378
        %3380 = vmatmul.bf16.gmra.mxu0 %v2070
        %v3381 = vpop.f32.mrf.mxu0
        %v3382 = vadd.f32 %v3293, %v3381
        %v3383 = vpop.f32.mrf.mxu0
        %v3384 = vadd.f32 %v3295, %v3383
        %3385 = vmatmul.bf16.gmra.mxu0 %v2071
        %v3386 = vpop.f32.mrf.mxu0
        %v3387 = vadd.f32 %v3298, %v3386
        %v3388 = vpop.f32.mrf.mxu0
        %v3389 = vadd.f32 %v3300, %v3388
        %3390 = vmatmul.bf16.gmra.mxu0 %v2072
        %v3391 = vpop.f32.mrf.mxu0
        %v3392 = vadd.f32 %v3303, %v3391
        %v3393 = vpop.f32.mrf.mxu0
        %v3394 = vadd.f32 %v3305, %v3393
        %3395 = vmatmul.bf16.gmra.mxu0 %v2073
        %v3396 = vpop.f32.mrf.mxu0
        %v3397 = vadd.f32 %v3308, %v3396
        %v3398 = vpop.f32.mrf.mxu0
        %v3399 = vadd.f32 %v3310, %v3398
        %3400 = vmatmul.bf16.gmra.mxu0 %v2074
        %v3401 = vpop.f32.mrf.mxu0
        %v3402 = vadd.f32 %v3313, %v3401
        %v3403 = vpop.f32.mrf.mxu0
        %v3404 = vadd.f32 %v3315, %v3403
        %3405 = vmatmul.bf16.gmra.mxu0 %v2075
        %v3406 = vpop.f32.mrf.mxu0
        %v3407 = vadd.f32 %v3318, %v3406
        %v3408 = vpop.f32.mrf.mxu0
        %v3409 = vadd.f32 %v3320, %v3408
        %3410 = vmatmul.bf16.gmra.mxu0 %v2076
        %v3411 = vpop.f32.mrf.mxu0
        %v3412 = vadd.f32 %v3323, %v3411
        %v3413 = vpop.f32.mrf.mxu0
        %v3414 = vadd.f32 %v3325, %v3413
        %3415 = vmatmul.bf16.gmra.mxu0 %v2077
        %v3416 = vpop.f32.mrf.mxu0
        %v3417 = vadd.f32 %v3328, %v3416
        %v3418 = vpop.f32.mrf.mxu0
        %v3419 = vadd.f32 %v3330, %v3418
        %3420 = vmatmul.bf16.gmra.mxu0 %v2078
        %v3421 = vpop.f32.mrf.mxu0
        %v3422 = vadd.f32 %v3333, %v3421
        %v3423 = vpop.f32.mrf.mxu0
        %v3424 = vadd.f32 %v3335, %v3423
        %3425 = vmatmul.bf16.gmra.mxu0 %v2079
        %v3426 = vpop.f32.mrf.mxu0
        %v3427 = vadd.f32 %v3338, %v3426
        %v3428 = vpop.f32.mrf.mxu0
        %v3429 = vadd.f32 %v3340, %v3428
        %3430 = vmatmul.bf16.gmra.mxu0 %v2080
        %v3431 = vpop.f32.mrf.mxu0
        %v3432 = vadd.f32 %v3343, %v3431
        %v3433 = vpop.f32.mrf.mxu0
        %v3434 = vadd.f32 %v3345, %v3433
        %3435 = vmatmul.bf16.gmra.mxu0 %v2081
        %v3436 = vpop.f32.mrf.mxu0
        %v3437 = vadd.f32 %v3348, %v3436
        %v3438 = vpop.f32.mrf.mxu0
        %v3439 = vadd.f32 %v3350, %v3438
        %3440 = vmatmul.bf16.gmra.mxu0 %v2229
        %v3441 = vpop.f32.mrf.mxu0
        %v3442 = vadd.f32 %v3353, %v3441
        %v3443 = vpop.f32.mrf.mxu0
        %v3444 = vadd.f32 %v3355, %v3443
        %3445 = vmatmul.bf16.gmra.mxu0 %v2242
        %v3446 = vpop.f32.mrf.mxu0
        %v3447 = vadd.f32 %v3358, %v3446
        %v3448 = vpop.f32.mrf.mxu0
        %v3449 = vadd.f32 %v3360, %v3448
        %3450 = vdwg.mxu0
        %3451 = vmatpush.bf16.msra.mxu0 %v2747
        %3452 = vmatpush.bf16.msra.mxu0 %v2746
        %3453 = vmatpush.bf16.msra.mxu0 %v2745
        %3454 = vmatpush.bf16.msra.mxu0 %v2744
        %3455 = vmatpush.bf16.msra.mxu0 %v2743
        %3456 = vmatpush.bf16.msra.mxu0 %v2742
        %3457 = vmatpush.bf16.msra.mxu0 %v2741
        %3458 = vmatpush.bf16.msra.mxu0 %v2740
        %3459 = vmatmul.bf16.gmra.mxu0 %v2132
        %v3460 = vpop.f32.mrf.mxu0
        %v3461 = vadd.f32 %v3372, %v3460
        %v3462 = vpop.f32.mrf.mxu0
        %v3463 = vadd.f32 %v3374, %v3462
        %3464 = vmatmul.bf16.gmra.mxu0 %v2133
        %v3465 = vpop.f32.mrf.mxu0
        %v3466 = vadd.f32 %v3377, %v3465
        %v3467 = vpop.f32.mrf.mxu0
        %v3468 = vadd.f32 %v3379, %v3467
        %3469 = vmatmul.bf16.gmra.mxu0 %v2134
        %v3470 = vpop.f32.mrf.mxu0
        %v3471 = vadd.f32 %v3382, %v3470
        %v3472 = vpop.f32.mrf.mxu0
        %v3473 = vadd.f32 %v3384, %v3472
        %3474 = vmatmul.bf16.gmra.mxu0 %v2135
        %v3475 = vpop.f32.mrf.mxu0
        %v3476 = vadd.f32 %v3387, %v3475
        %v3477 = vpop.f32.mrf.mxu0
        %v3478 = vadd.f32 %v3389, %v3477
        %3479 = vmatmul.bf16.gmra.mxu0 %v2136
        %v3480 = vpop.f32.mrf.mxu0
        %v3481 = vadd.f32 %v3392, %v3480
        %v3482 = vpop.f32.mrf.mxu0
        %v3483 = vadd.f32 %v3394, %v3482
        %3484 = vmatmul.bf16.gmra.mxu0 %v2137
        %v3485 = vpop.f32.mrf.mxu0
        %v3486 = vadd.f32 %v3397, %v3485
        %v3487 = vpop.f32.mrf.mxu0
        %v3488 = vadd.f32 %v3399, %v3487
        %3489 = vmatmul.bf16.gmra.mxu0 %v2138
        %v3490 = vpop.f32.mrf.mxu0
        %v3491 = vadd.f32 %v3402, %v3490
        %v3492 = vpop.f32.mrf.mxu0
        %v3493 = vadd.f32 %v3404, %v3492
        %3494 = vmatmul.bf16.gmra.mxu0 %v2139
        %v3495 = vpop.f32.mrf.mxu0
        %v3496 = vadd.f32 %v3407, %v3495
        %v3497 = vpop.f32.mrf.mxu0
        %v3498 = vadd.f32 %v3409, %v3497
        %3499 = vmatmul.bf16.gmra.mxu0 %v2140
        %v3500 = vpop.f32.mrf.mxu0
        %v3501 = vadd.f32 %v3412, %v3500
        %v3502 = vpop.f32.mrf.mxu0
        %v3503 = vadd.f32 %v3414, %v3502
        %3504 = vmatmul.bf16.gmra.mxu0 %v2141
        %v3505 = vpop.f32.mrf.mxu0
        %v3506 = vadd.f32 %v3417, %v3505
        %v3507 = vpop.f32.mrf.mxu0
        %v3508 = vadd.f32 %v3419, %v3507
        %3509 = vmatmul.bf16.gmra.mxu0 %v2142
        %v3510 = vpop.f32.mrf.mxu0
        %v3511 = vadd.f32 %v3422, %v3510
        %v3512 = vpop.f32.mrf.mxu0
        %v3513 = vadd.f32 %v3424, %v3512
        %3514 = vmatmul.bf16.gmra.mxu0 %v2143
        %v3515 = vpop.f32.mrf.mxu0
        %v3516 = vadd.f32 %v3427, %v3515
        %v3517 = vpop.f32.mrf.mxu0
        %v3518 = vadd.f32 %v3429, %v3517
        %3519 = vmatmul.bf16.gmra.mxu0 %v2144
        %v3520 = vpop.f32.mrf.mxu0
        %v3521 = vadd.f32 %v3432, %v3520
        %v3522 = vpop.f32.mrf.mxu0
        %v3523 = vadd.f32 %v3434, %v3522
        %3524 = vmatmul.bf16.gmra.mxu0 %v2145
        %v3525 = vpop.f32.mrf.mxu0
        %v3526 = vadd.f32 %v3437, %v3525
        %v3527 = vpop.f32.mrf.mxu0
        %v3528 = vadd.f32 %v3439, %v3527
        %3529 = vmatmul.bf16.gmra.mxu0 %v2233
        %v3530 = vpop.f32.mrf.mxu0
        %v3531 = vadd.f32 %v3442, %v3530
        %v3532 = vpop.f32.mrf.mxu0
        %v3533 = vadd.f32 %v3444, %v3532
        %3534 = vmatmul.bf16.gmra.mxu0 %v2246
        %v3535 = vpop.f32.mrf.mxu0
        %v3536 = vadd.f32 %v3447, %v3535
        %v3537 = vpop.f32.mrf.mxu0
        %v3538 = vadd.f32 %v3449, %v3537
        %3539 = vdwg.mxu0
        %3540 = vmatpush.bf16.msra.mxu0 %v2755
        %3541 = vmatpush.bf16.msra.mxu0 %v2754
        %3542 = vmatpush.bf16.msra.mxu0 %v2753
        %3543 = vmatpush.bf16.msra.mxu0 %v2752
        %3544 = vmatpush.bf16.msra.mxu0 %v2751
        %3545 = vmatpush.bf16.msra.mxu0 %v2750
        %3546 = vmatpush.bf16.msra.mxu0 %v2749
        %3547 = vmatpush.bf16.msra.mxu0 %v2748
        %3548 = vmatmul.bf16.gmra.mxu0 %v2196
        %v3549 = vpop.f32.mrf.mxu0
        %v3550 = vadd.f32 %v3461, %v3549
        %v3551 = vpop.f32.mrf.mxu0
        %v3552 = vadd.f32 %v3463, %v3551
        %3553 = vmatmul.bf16.gmra.mxu0 %v2197
        %v3554 = vpop.f32.mrf.mxu0
        %v3555 = vadd.f32 %v3466, %v3554
        %v3556 = vpop.f32.mrf.mxu0
        %v3557 = vadd.f32 %v3468, %v3556
        %3558 = vmatmul.bf16.gmra.mxu0 %v2198
        %v3559 = vpop.f32.mrf.mxu0
        %v3560 = vadd.f32 %v3471, %v3559
        %v3561 = vpop.f32.mrf.mxu0
        %v3562 = vadd.f32 %v3473, %v3561
        %3563 = vmatmul.bf16.gmra.mxu0 %v2199
        %v3564 = vpop.f32.mrf.mxu0
        %v3565 = vadd.f32 %v3476, %v3564
        %v3566 = vpop.f32.mrf.mxu0
        %v3567 = vadd.f32 %v3478, %v3566
        %3568 = vmatmul.bf16.gmra.mxu0 %v2200
        %v3569 = vpop.f32.mrf.mxu0
        %v3570 = vadd.f32 %v3481, %v3569
        %v3571 = vpop.f32.mrf.mxu0
        %v3572 = vadd.f32 %v3483, %v3571
        %3573 = vmatmul.bf16.gmra.mxu0 %v2201
        %v3574 = vpop.f32.mrf.mxu0
        %v3575 = vadd.f32 %v3486, %v3574
        %v3576 = vpop.f32.mrf.mxu0
        %v3577 = vadd.f32 %v3488, %v3576
        %3578 = vmatmul.bf16.gmra.mxu0 %v2202
        %v3579 = vpop.f32.mrf.mxu0
        %v3580 = vadd.f32 %v3491, %v3579
        %v3581 = vpop.f32.mrf.mxu0
        %v3582 = vadd.f32 %v3493, %v3581
        %3583 = vmatmul.bf16.gmra.mxu0 %v2203
        %v3584 = vpop.f32.mrf.mxu0
        %v3585 = vadd.f32 %v3496, %v3584
        %v3586 = vpop.f32.mrf.mxu0
        %v3587 = vadd.f32 %v3498, %v3586
        %3588 = vmatmul.bf16.gmra.mxu0 %v2204
        %v3589 = vpop.f32.mrf.mxu0
        %v3590 = vadd.f32 %v3501, %v3589
        %v3591 = vpop.f32.mrf.mxu0
        %v3592 = vadd.f32 %v3503, %v3591
        %3593 = vmatmul.bf16.gmra.mxu0 %v2205
        %v3594 = vpop.f32.mrf.mxu0
        %v3595 = vadd.f32 %v3506, %v3594
        %v3596 = vpop.f32.mrf.mxu0
        %v3597 = vadd.f32 %v3508, %v3596
        %3598 = vmatmul.bf16.gmra.mxu0 %v2206
        %v3599 = vpop.f32.mrf.mxu0
        %v3600 = vadd.f32 %v3511, %v3599
        %v3601 = vpop.f32.mrf.mxu0
        %v3602 = vadd.f32 %v3513, %v3601
        %3603 = vmatmul.bf16.gmra.mxu0 %v2207
        %v3604 = vpop.f32.mrf.mxu0
        %v3605 = vadd.f32 %v3516, %v3604
        %v3606 = vpop.f32.mrf.mxu0
        %v3607 = vadd.f32 %v3518, %v3606
        %3608 = vmatmul.bf16.gmra.mxu0 %v2208
        %v3609 = vpop.f32.mrf.mxu0
        %v3610 = vadd.f32 %v3521, %v3609
        %v3611 = vpop.f32.mrf.mxu0
        %v3612 = vadd.f32 %v3523, %v3611
        %3613 = vmatmul.bf16.gmra.mxu0 %v2209
        %v3614 = vpop.f32.mrf.mxu0
        %v3615 = vadd.f32 %v3526, %v3614
        %v3616 = vpop.f32.mrf.mxu0
        %v3617 = vadd.f32 %v3528, %v3616
        %3618 = vmatmul.bf16.gmra.mxu0 %v2237
        %v3619 = vpop.f32.mrf.mxu0
        %v3620 = vadd.f32 %v3531, %v3619
        %v3621 = vpop.f32.mrf.mxu0
        %v3622 = vadd.f32 %v3533, %v3621
        %3623 = vmatmul.bf16.gmra.mxu0 %v2250
        %v3624 = vpop.f32.mrf.mxu0
        %v3625 = vadd.f32 %v3536, %v3624
        %v3626 = vpop.f32.mrf.mxu0
        %v3627 = vadd.f32 %v3538, %v3626
        %3628 = vdwg.mxu0
        %v3629 = vld [vmem:[%s5] sm:$0x1]
        %v3631 = vperm.slane %v3629, 0
        %v3633 = vmul.f32 %v3550, %v3631
        %v3634 = vmul.f32 %v3552, %v3631
        %v3635 = vmul.f32 %v3555, %v3631
        %v3636 = vmul.f32 %v3557, %v3631
        %v3637 = vmul.f32 %v3560, %v3631
        %v3638 = vmul.f32 %v3562, %v3631
        %v3639 = vmul.f32 %v3565, %v3631
        %v3640 = vmul.f32 %v3567, %v3631
        %v3641 = vmul.f32 %v3570, %v3631
        %v3642 = vmul.f32 %v3572, %v3631
        %v3643 = vmul.f32 %v3575, %v3631
        %v3644 = vmul.f32 %v3577, %v3631
        %v3645 = vmul.f32 %v3580, %v3631
        %v3646 = vmul.f32 %v3582, %v3631
        %v3647 = vmul.f32 %v3585, %v3631
        %v3648 = vmul.f32 %v3587, %v3631
        %v3649 = vmul.f32 %v3590, %v3631
        %v3650 = vmul.f32 %v3592, %v3631
        %v3651 = vmul.f32 %v3595, %v3631
        %v3652 = vmul.f32 %v3597, %v3631
        %v3653 = vmul.f32 %v3600, %v3631
        %v3654 = vmul.f32 %v3602, %v3631
        %v3655 = vmul.f32 %v3605, %v3631
        %v3656 = vmul.f32 %v3607, %v3631
        %v3657 = vmul.f32 %v3610, %v3631
        %v3658 = vmul.f32 %v3612, %v3631
        %v3659 = vmul.f32 %v3615, %v3631
        %v3660 = vmul.f32 %v3617, %v3631
        %v3661 = vmul.f32 %v3620, %v3631
        %v3662 = vmul.f32 %v3622, %v3631
        %v3663 = vmul.f32 %v3625, %v3631
        %v3664 = vmul.f32 %v3627, %v3631
        %v3665 = vld [vmem:[%s6] sm:$0x1]
        %v3667 = vperm.slane %v3665, 0
        %v3669 = vadd.f32 %v3633, %v3667
        %v3670 = vadd.f32 %v3634, %v3667
        %v3671 = vadd.f32 %v3635, %v3667
        %v3672 = vadd.f32 %v3636, %v3667
        %v3673 = vadd.f32 %v3637, %v3667
        %v3674 = vadd.f32 %v3638, %v3667
        %v3675 = vadd.f32 %v3639, %v3667
        %v3676 = vadd.f32 %v3640, %v3667
        %v3677 = vadd.f32 %v3641, %v3667
        %v3678 = vadd.f32 %v3642, %v3667
        %v3679 = vadd.f32 %v3643, %v3667
        %v3680 = vadd.f32 %v3644, %v3667
        %v3681 = vadd.f32 %v3645, %v3667
        %v3682 = vadd.f32 %v3646, %v3667
        %v3683 = vadd.f32 %v3647, %v3667
        %v3684 = vadd.f32 %v3648, %v3667
        %v3685 = vadd.f32 %v3649, %v3667
        %v3686 = vadd.f32 %v3650, %v3667
        %v3687 = vadd.f32 %v3651, %v3667
        %v3688 = vadd.f32 %v3652, %v3667
        %v3689 = vadd.f32 %v3653, %v3667
        %v3690 = vadd.f32 %v3654, %v3667
        %v3691 = vadd.f32 %v3655, %v3667
        %v3692 = vadd.f32 %v3656, %v3667
        %v3693 = vadd.f32 %v3657, %v3667
        %v3694 = vadd.f32 %v3658, %v3667
        %v3695 = vadd.f32 %v3659, %v3667
        %v3696 = vadd.f32 %v3660, %v3667
        %v3697 = vadd.f32 %v3661, %v3667
        %v3698 = vadd.f32 %v3662, %v3667
        %v3699 = vadd.f32 %v3663, %v3667
        %v3700 = vadd.f32 %v3664, %v3667
        %v3701 = vmax.f32 %v3669, 0.0
        %v3702 = vmax.f32 %v3670, 0.0
        %v3703 = vmax.f32 %v3671, 0.0
        %v3704 = vmax.f32 %v3672, 0.0
        %v3705 = vmax.f32 %v3673, 0.0
        %v3706 = vmax.f32 %v3674, 0.0
        %v3707 = vmax.f32 %v3675, 0.0
        %v3708 = vmax.f32 %v3676, 0.0
        %v3709 = vmax.f32 %v3677, 0.0
        %v3710 = vmax.f32 %v3678, 0.0
        %v3711 = vmax.f32 %v3679, 0.0
        %v3712 = vmax.f32 %v3680, 0.0
        %v3713 = vmax.f32 %v3681, 0.0
        %v3714 = vmax.f32 %v3682, 0.0
        %v3715 = vmax.f32 %v3683, 0.0
        %v3716 = vmax.f32 %v3684, 0.0
        %v3717 = vmax.f32 %v3685, 0.0
        %v3718 = vmax.f32 %v3686, 0.0
        %v3719 = vmax.f32 %v3687, 0.0
        %v3720 = vmax.f32 %v3688, 0.0
        %v3721 = vmax.f32 %v3689, 0.0
        %v3722 = vmax.f32 %v3690, 0.0
        %v3723 = vmax.f32 %v3691, 0.0
        %v3724 = vmax.f32 %v3692, 0.0
        %v3725 = vmax.f32 %v3693, 0.0
        %v3726 = vmax.f32 %v3694, 0.0
        %v3727 = vmax.f32 %v3695, 0.0
        %v3728 = vmax.f32 %v3696, 0.0
        %v3729 = vmax.f32 %v3697, 0.0
        %v3730 = vmax.f32 %v3698, 0.0
        %v3731 = vmax.f32 %v3699, 0.0
        %v3732 = vmax.f32 %v3700, 0.0
        %v3733 = vpack.c.bf16 %v3702, %v3701
        %v3734 = vpack.c.bf16 %v3704, %v3703
        %v3735 = vpack.c.bf16 %v3706, %v3705
        %v3736 = vpack.c.bf16 %v3708, %v3707
        %v3737 = vpack.c.bf16 %v3710, %v3709
        %v3738 = vpack.c.bf16 %v3712, %v3711
        %v3739 = vpack.c.bf16 %v3714, %v3713
        %v3740 = vpack.c.bf16 %v3716, %v3715
        %v3741 = vpack.c.bf16 %v3718, %v3717
        %v3742 = vpack.c.bf16 %v3720, %v3719
        %v3743 = vpack.c.bf16 %v3722, %v3721
        %v3744 = vpack.c.bf16 %v3724, %v3723
        %v3745 = vpack.c.bf16 %v3726, %v3725
        %v3746 = vpack.c.bf16 %v3728, %v3727
        %v3747 = vpack.c.bf16 %v3730, %v3729
        %v3748 = vpack.c.bf16 %v3732, %v3731
        %v3749 = vld [vmem:[#allocation9] sm:$0xf]
        %v3750 = vld [vmem:[#allocation9 + $0x4] sm:$0xf]
        %v3751 = vld [vmem:[#allocation9 + $0x8] sm:$0xf]
        %v3752 = vld [vmem:[#allocation9 + $0xc] sm:$0xf]
        %v3753 = vld [vmem:[#allocation9 + $0x10] sm:$0xf]
        %v3754 = vld [vmem:[#allocation9 + $0x14] sm:$0xf]
        %v3755 = vld [vmem:[#allocation9 + $0x18] sm:$0xf]
        %v3756 = vld [vmem:[#allocation9 + $0x1c] sm:$0xf]
        %v3757 = vld [vmem:[#allocation9 + $0x20] sm:$0xf]
        %v3758 = vld [vmem:[#allocation9 + $0x24] sm:$0xf]
        %v3759 = vld [vmem:[#allocation9 + $0x28] sm:$0xf]
        %v3760 = vld [vmem:[#allocation9 + $0x2c] sm:$0xf]
        %v3761 = vld [vmem:[#allocation9 + $0x30] sm:$0xf]
        %v3762 = vld [vmem:[#allocation9 + $0x34] sm:$0xf]
        %v3763 = vld [vmem:[#allocation9 + $0x38] sm:$0xf]
        %v3764 = vld [vmem:[#allocation9 + $0x3c] sm:$0xf]
        %v3781 = vunpack.c.l.b16 %v3749
        %v3782 = vunpack.c.l.b16 %v3750
        %v3783 = vunpack.c.l.b16 %v3751
        %v3784 = vunpack.c.l.b16 %v3752
        %v3785 = vunpack.c.l.b16 %v3753
        %v3786 = vunpack.c.l.b16 %v3754
        %v3787 = vunpack.c.l.b16 %v3755
        %v3788 = vunpack.c.l.b16 %v3756
        %v3789 = vunpack.c.l.b16 %v3757
        %v3790 = vunpack.c.l.b16 %v3758
        %v3791 = vunpack.c.l.b16 %v3759
        %v3792 = vunpack.c.l.b16 %v3760
        %v3793 = vunpack.c.l.b16 %v3761
        %v3794 = vunpack.c.l.b16 %v3762
        %v3795 = vunpack.c.l.b16 %v3763
        %v3796 = vunpack.c.l.b16 %v3764
        %v3797 = vpack.c.b16 %v3782, %v3781
        %v3798 = vpack.c.b16 %v3784, %v3783
        %v3799 = vpack.c.b16 %v3786, %v3785
        %v3800 = vpack.c.b16 %v3788, %v3787
        %v3801 = vpack.c.b16 %v3790, %v3789
        %v3802 = vpack.c.b16 %v3792, %v3791
        %v3803 = vpack.c.b16 %v3794, %v3793
        %v3804 = vpack.c.b16 %v3796, %v3795
        %3813 = vmatpush.bf16.msra.mxu0 %v3804
        %3814 = vmatpush.bf16.msra.mxu0 %v3803
        %3815 = vmatpush.bf16.msra.mxu0 %v3802
        %3816 = vmatpush.bf16.msra.mxu0 %v3801
        %3817 = vmatpush.bf16.msra.mxu0 %v3800
        %3818 = vmatpush.bf16.msra.mxu0 %v3799
        %3819 = vmatpush.bf16.msra.mxu0 %v3798
        %3820 = vmatpush.bf16.msra.mxu0 %v3797
        %3821 = vmatmul.bf16.gmra.mxu0 %v3733
        %v3822 = vpop.f32.mrf.mxu0
        %v3823 = vadd.f32 0.0, %v3822
        %v3824 = vpop.f32.mrf.mxu0
        %v3825 = vadd.f32 0.0, %v3824
        %3826 = vmatmul.bf16.gmra.mxu0 %v3734
        %v3827 = vpop.f32.mrf.mxu0
        %v3828 = vadd.f32 0.0, %v3827
        %v3829 = vpop.f32.mrf.mxu0
        %v3830 = vadd.f32 0.0, %v3829
        %3831 = vmatmul.bf16.gmra.mxu0 %v3735
        %v3832 = vpop.f32.mrf.mxu0
        %v3833 = vadd.f32 0.0, %v3832
        %v3834 = vpop.f32.mrf.mxu0
        %v3835 = vadd.f32 0.0, %v3834
        %3836 = vmatmul.bf16.gmra.mxu0 %v3736
        %v3837 = vpop.f32.mrf.mxu0
        %v3838 = vadd.f32 0.0, %v3837
        %v3839 = vpop.f32.mrf.mxu0
        %v3840 = vadd.f32 0.0, %v3839
        %3841 = vmatmul.bf16.gmra.mxu0 %v3737
        %v3842 = vpop.f32.mrf.mxu0
        %v3843 = vadd.f32 0.0, %v3842
        %v3844 = vpop.f32.mrf.mxu0
        %v3845 = vadd.f32 0.0, %v3844
        %3846 = vmatmul.bf16.gmra.mxu0 %v3738
        %v3847 = vpop.f32.mrf.mxu0
        %v3848 = vadd.f32 0.0, %v3847
        %v3849 = vpop.f32.mrf.mxu0
        %v3850 = vadd.f32 0.0, %v3849
        %3851 = vmatmul.bf16.gmra.mxu0 %v3739
        %v3852 = vpop.f32.mrf.mxu0
        %v3853 = vadd.f32 0.0, %v3852
        %v3854 = vpop.f32.mrf.mxu0
        %v3855 = vadd.f32 0.0, %v3854
        %3856 = vmatmul.bf16.gmra.mxu0 %v3740
        %v3857 = vpop.f32.mrf.mxu0
        %v3858 = vadd.f32 0.0, %v3857
        %v3859 = vpop.f32.mrf.mxu0
        %v3860 = vadd.f32 0.0, %v3859
        %3861 = vmatmul.bf16.gmra.mxu0 %v3741
        %v3862 = vpop.f32.mrf.mxu0
        %v3863 = vadd.f32 0.0, %v3862
        %v3864 = vpop.f32.mrf.mxu0
        %v3865 = vadd.f32 0.0, %v3864
        %3866 = vmatmul.bf16.gmra.mxu0 %v3742
        %v3867 = vpop.f32.mrf.mxu0
        %v3868 = vadd.f32 0.0, %v3867
        %v3869 = vpop.f32.mrf.mxu0
        %v3870 = vadd.f32 0.0, %v3869
        %3871 = vmatmul.bf16.gmra.mxu0 %v3743
        %v3872 = vpop.f32.mrf.mxu0
        %v3873 = vadd.f32 0.0, %v3872
        %v3874 = vpop.f32.mrf.mxu0
        %v3875 = vadd.f32 0.0, %v3874
        %3876 = vmatmul.bf16.gmra.mxu0 %v3744
        %v3877 = vpop.f32.mrf.mxu0
        %v3878 = vadd.f32 0.0, %v3877
        %v3879 = vpop.f32.mrf.mxu0
        %v3880 = vadd.f32 0.0, %v3879
        %3881 = vmatmul.bf16.gmra.mxu0 %v3745
        %v3882 = vpop.f32.mrf.mxu0
        %v3883 = vadd.f32 0.0, %v3882
        %v3884 = vpop.f32.mrf.mxu0
        %v3885 = vadd.f32 0.0, %v3884
        %3886 = vmatmul.bf16.gmra.mxu0 %v3746
        %v3887 = vpop.f32.mrf.mxu0
        %v3888 = vadd.f32 0.0, %v3887
        %v3889 = vpop.f32.mrf.mxu0
        %v3890 = vadd.f32 0.0, %v3889
        %3891 = vmatmul.bf16.gmra.mxu0 %v3747
        %v3892 = vpop.f32.mrf.mxu0
        %v3893 = vadd.f32 0.0, %v3892
        %v3894 = vpop.f32.mrf.mxu0
        %v3895 = vadd.f32 0.0, %v3894
        %3896 = vmatmul.bf16.gmra.mxu0 %v3748
        %v3897 = vpop.f32.mrf.mxu0
        %v3898 = vadd.f32 0.0, %v3897
        %v3899 = vpop.f32.mrf.mxu0
        %v3900 = vadd.f32 0.0, %v3899
        %3901 = vdwg.mxu0
        %v3902 = vld [vmem:[%s8] sm:$0x1]
        %v3904 = vperm.slane %v3902, 0
        %v3906 = vmul.f32 %v3823, %v3904
        %v3907 = vmul.f32 %v3825, %v3904
        %v3908 = vmul.f32 %v3828, %v3904
        %v3909 = vmul.f32 %v3830, %v3904
        %v3910 = vmul.f32 %v3833, %v3904
        %v3911 = vmul.f32 %v3835, %v3904
        %v3912 = vmul.f32 %v3838, %v3904
        %v3913 = vmul.f32 %v3840, %v3904
        %v3914 = vmul.f32 %v3843, %v3904
        %v3915 = vmul.f32 %v3845, %v3904
        %v3916 = vmul.f32 %v3848, %v3904
        %v3917 = vmul.f32 %v3850, %v3904
        %v3918 = vmul.f32 %v3853, %v3904
        %v3919 = vmul.f32 %v3855, %v3904
        %v3920 = vmul.f32 %v3858, %v3904
        %v3921 = vmul.f32 %v3860, %v3904
        %v3922 = vmul.f32 %v3863, %v3904
        %v3923 = vmul.f32 %v3865, %v3904
        %v3924 = vmul.f32 %v3868, %v3904
        %v3925 = vmul.f32 %v3870, %v3904
        %v3926 = vmul.f32 %v3873, %v3904
        %v3927 = vmul.f32 %v3875, %v3904
        %v3928 = vmul.f32 %v3878, %v3904
        %v3929 = vmul.f32 %v3880, %v3904
        %v3930 = vmul.f32 %v3883, %v3904
        %v3931 = vmul.f32 %v3885, %v3904
        %v3932 = vmul.f32 %v3888, %v3904
        %v3933 = vmul.f32 %v3890, %v3904
        %v3934 = vmul.f32 %v3893, %v3904
        %v3935 = vmul.f32 %v3895, %v3904
        %v3936 = vmul.f32 %v3898, %v3904
        %v3937 = vmul.f32 %v3900, %v3904
        %v3938 = vld [vmem:[%s9] sm:$0x1]
        %v3940 = vperm.slane %v3938, 0
        %v3942 = vadd.f32 %v3906, %v3940
        %v3943 = vadd.f32 %v3907, %v3940
        %v3944 = vadd.f32 %v3908, %v3940
        %v3945 = vadd.f32 %v3909, %v3940
        %v3946 = vadd.f32 %v3910, %v3940
        %v3947 = vadd.f32 %v3911, %v3940
        %v3948 = vadd.f32 %v3912, %v3940
        %v3949 = vadd.f32 %v3913, %v3940
        %v3950 = vadd.f32 %v3914, %v3940
        %v3951 = vadd.f32 %v3915, %v3940
        %v3952 = vadd.f32 %v3916, %v3940
        %v3953 = vadd.f32 %v3917, %v3940
        %v3954 = vadd.f32 %v3918, %v3940
        %v3955 = vadd.f32 %v3919, %v3940
        %v3956 = vadd.f32 %v3920, %v3940
        %v3957 = vadd.f32 %v3921, %v3940
        %v3958 = vadd.f32 %v3922, %v3940
        %v3959 = vadd.f32 %v3923, %v3940
        %v3960 = vadd.f32 %v3924, %v3940
        %v3961 = vadd.f32 %v3925, %v3940
        %v3962 = vadd.f32 %v3926, %v3940
        %v3963 = vadd.f32 %v3927, %v3940
        %v3964 = vadd.f32 %v3928, %v3940
        %v3965 = vadd.f32 %v3929, %v3940
        %v3966 = vadd.f32 %v3930, %v3940
        %v3967 = vadd.f32 %v3931, %v3940
        %v3968 = vadd.f32 %v3932, %v3940
        %v3969 = vadd.f32 %v3933, %v3940
        %v3970 = vadd.f32 %v3934, %v3940
        %v3971 = vadd.f32 %v3935, %v3940
        %v3972 = vadd.f32 %v3936, %v3940
        %v3973 = vadd.f32 %v3937, %v3940
        %v3974 = vadd.f32 %v3942, %v554
        %v3975 = vadd.f32 %v3943, %v555
        %v3976 = vadd.f32 %v3944, %v556
        %v3977 = vadd.f32 %v3945, %v557
        %v3978 = vadd.f32 %v3946, %v558
        %v3979 = vadd.f32 %v3947, %v559
        %v3980 = vadd.f32 %v3948, %v560
        %v3981 = vadd.f32 %v3949, %v561
        %v3982 = vadd.f32 %v3950, %v562
        %v3983 = vadd.f32 %v3951, %v563
        %v3984 = vadd.f32 %v3952, %v564
        %v3985 = vadd.f32 %v3953, %v565
        %v3986 = vadd.f32 %v3954, %v566
        %v3987 = vadd.f32 %v3955, %v567
        %v3988 = vadd.f32 %v3956, %v568
        %v3989 = vadd.f32 %v3957, %v569
        %v3990 = vadd.f32 %v3958, %v570
        %v3991 = vadd.f32 %v3959, %v571
        %v3992 = vadd.f32 %v3960, %v572
        %v3993 = vadd.f32 %v3961, %v573
        %v3994 = vadd.f32 %v3962, %v574
        %v3995 = vadd.f32 %v3963, %v575
        %v3996 = vadd.f32 %v3964, %v576
        %v3997 = vadd.f32 %v3965, %v577
        %v3998 = vadd.f32 %v3966, %v578
        %v3999 = vadd.f32 %v3967, %v579
        %v4000 = vadd.f32 %v3968, %v580
        %v4001 = vadd.f32 %v3969, %v581
        %v4002 = vadd.f32 %v3970, %v582
        %v4003 = vadd.f32 %v3971, %v583
        %v4004 = vadd.f32 %v3972, %v584
        %v4005 = vadd.f32 %v3973, %v585
        %v4006 = vmax.f32 %v3974, 0.0
        %v4007 = vmax.f32 %v3975, 0.0
        %v4008 = vmax.f32 %v3976, 0.0
        %v4009 = vmax.f32 %v3977, 0.0
        %v4010 = vmax.f32 %v3978, 0.0
        %v4011 = vmax.f32 %v3979, 0.0
        %v4012 = vmax.f32 %v3980, 0.0
        %v4013 = vmax.f32 %v3981, 0.0
        %v4014 = vmax.f32 %v3982, 0.0
        %v4015 = vmax.f32 %v3983, 0.0
        %v4016 = vmax.f32 %v3984, 0.0
        %v4017 = vmax.f32 %v3985, 0.0
        %v4018 = vmax.f32 %v3986, 0.0
        %v4019 = vmax.f32 %v3987, 0.0
        %v4020 = vmax.f32 %v3988, 0.0
        %v4021 = vmax.f32 %v3989, 0.0
        %v4022 = vmax.f32 %v3990, 0.0
        %v4023 = vmax.f32 %v3991, 0.0
        %v4024 = vmax.f32 %v3992, 0.0
        %v4025 = vmax.f32 %v3993, 0.0
        %v4026 = vmax.f32 %v3994, 0.0
        %v4027 = vmax.f32 %v3995, 0.0
        %v4028 = vmax.f32 %v3996, 0.0
        %v4029 = vmax.f32 %v3997, 0.0
        %v4030 = vmax.f32 %v3998, 0.0
        %v4031 = vmax.f32 %v3999, 0.0
        %v4032 = vmax.f32 %v4000, 0.0
        %v4033 = vmax.f32 %v4001, 0.0
        %v4034 = vmax.f32 %v4002, 0.0
        %v4035 = vmax.f32 %v4003, 0.0
        %v4036 = vmax.f32 %v4004, 0.0
        %v4037 = vmax.f32 %v4005, 0.0
        %4038 = vst [vmem:[%s430] sm:$0xff] %v4006
        %4039 = vst [vmem:[%s430 + $0x8] sm:$0xff] %v4007
        %4040 = vst [vmem:[%s430 + $0x10] sm:$0xff] %v4008
        %4041 = vst [vmem:[%s430 + $0x18] sm:$0xff] %v4009
        %4042 = vst [vmem:[%s430 + $0x20] sm:$0xff] %v4010
        %4043 = vst [vmem:[%s430 + $0x28] sm:$0xff] %v4011
        %4044 = vst [vmem:[%s430 + $0x30] sm:$0xff] %v4012
        %4045 = vst [vmem:[%s430 + $0x38] sm:$0xff] %v4013
        %4046 = vst [vmem:[%s430 + $0x40] sm:$0xff] %v4014
        %4047 = vst [vmem:[%s430 + $0x48] sm:$0xff] %v4015
        %4048 = vst [vmem:[%s430 + $0x50] sm:$0xff] %v4016
        %4049 = vst [vmem:[%s430 + $0x58] sm:$0xff] %v4017
        %4050 = vst [vmem:[%s430 + $0x60] sm:$0xff] %v4018
        %4051 = vst [vmem:[%s430 + $0x68] sm:$0xff] %v4019
        %4052 = vst [vmem:[%s430 + $0x70] sm:$0xff] %v4020
        %4053 = vst [vmem:[%s430 + $0x78] sm:$0xff] %v4021
        %4054 = vst [vmem:[%s430 + $0x80] sm:$0xff] %v4022
        %4055 = vst [vmem:[%s430 + $0x88] sm:$0xff] %v4023
        %4056 = vst [vmem:[%s430 + $0x90] sm:$0xff] %v4024
        %4057 = vst [vmem:[%s430 + $0x98] sm:$0xff] %v4025
        %4058 = vst [vmem:[%s430 + $0xa0] sm:$0xff] %v4026
        %4059 = vst [vmem:[%s430 + $0xa8] sm:$0xff] %v4027
        %4060 = vst [vmem:[%s430 + $0xb0] sm:$0xff] %v4028
        %4061 = vst [vmem:[%s430 + $0xb8] sm:$0xff] %v4029
        %4062 = vst [vmem:[%s430 + $0xc0] sm:$0xff] %v4030
        %4063 = vst [vmem:[%s430 + $0xc8] sm:$0xff] %v4031
        %4064 = vst [vmem:[%s430 + $0xd0] sm:$0xff] %v4032
        %4065 = vst [vmem:[%s430 + $0xd8] sm:$0xff] %v4033
        %4066 = vst [vmem:[%s430 + $0xe0] sm:$0xff] %v4034
        %4067 = vst [vmem:[%s430 + $0xe8] sm:$0xff] %v4035
        %4068 = vst [vmem:[%s430 + $0xf0] sm:$0xff] %v4036
        %4069 = vst [vmem:[%s430 + $0xf8] sm:$0xff] %v4037
        %s4070 = scalar_lea.vmem %s378, 256 [#allocation3]
        %v4071 = vld [vmem:[%s4070] sm:$0xff]
        %v4072 = vld [vmem:[%s4070 + $0x8] sm:$0xff]
        %v4073 = vld [vmem:[%s4070 + $0x10] sm:$0xff]
        %v4074 = vld [vmem:[%s4070 + $0x18] sm:$0xff]
        %v4075 = vld [vmem:[%s4070 + $0x20] sm:$0xff]
        %v4076 = vld [vmem:[%s4070 + $0x28] sm:$0xff]
        %v4077 = vld [vmem:[%s4070 + $0x30] sm:$0xff]
        %v4078 = vld [vmem:[%s4070 + $0x38] sm:$0xff]
        %v4079 = vld [vmem:[%s4070 + $0x40] sm:$0xff]
        %v4080 = vld [vmem:[%s4070 + $0x48] sm:$0xff]
        %v4081 = vld [vmem:[%s4070 + $0x50] sm:$0xff]
        %v4082 = vld [vmem:[%s4070 + $0x58] sm:$0xff]
        %v4083 = vld [vmem:[%s4070 + $0x60] sm:$0xff]
        %v4084 = vld [vmem:[%s4070 + $0x68] sm:$0xff]
        %v4085 = vld [vmem:[%s4070 + $0x70] sm:$0xff]
        %v4086 = vld [vmem:[%s4070 + $0x78] sm:$0xff]
        %v4087 = vld [vmem:[%s4070 + $0x80] sm:$0xff]
        %v4088 = vld [vmem:[%s4070 + $0x88] sm:$0xff]
        %v4089 = vld [vmem:[%s4070 + $0x90] sm:$0xff]
        %v4090 = vld [vmem:[%s4070 + $0x98] sm:$0xff]
        %v4091 = vld [vmem:[%s4070 + $0xa0] sm:$0xff]
        %v4092 = vld [vmem:[%s4070 + $0xa8] sm:$0xff]
        %v4093 = vld [vmem:[%s4070 + $0xb0] sm:$0xff]
        %v4094 = vld [vmem:[%s4070 + $0xb8] sm:$0xff]
        %v4095 = vld [vmem:[%s4070 + $0xc0] sm:$0xff]
        %v4096 = vld [vmem:[%s4070 + $0xc8] sm:$0xff]
        %v4097 = vld [vmem:[%s4070 + $0xd0] sm:$0xff]
        %v4098 = vld [vmem:[%s4070 + $0xd8] sm:$0xff]
        %v4099 = vld [vmem:[%s4070 + $0xe0] sm:$0xff]
        %v4100 = vld [vmem:[%s4070 + $0xe8] sm:$0xff]
        %v4101 = vld [vmem:[%s4070 + $0xf0] sm:$0xff]
        %v4102 = vld [vmem:[%s4070 + $0xf8] sm:$0xff]
        %v4103 = vpack.c.bf16 %v4072, %v4071
        %v4104 = vpack.c.bf16 %v4074, %v4073
        %v4105 = vpack.c.bf16 %v4076, %v4075
        %v4106 = vpack.c.bf16 %v4078, %v4077
        %v4107 = vpack.c.bf16 %v4080, %v4079
        %v4108 = vpack.c.bf16 %v4082, %v4081
        %v4109 = vpack.c.bf16 %v4084, %v4083
        %v4110 = vpack.c.bf16 %v4086, %v4085
        %v4111 = vpack.c.bf16 %v4088, %v4087
        %v4112 = vpack.c.bf16 %v4090, %v4089
        %v4113 = vpack.c.bf16 %v4092, %v4091
        %v4114 = vpack.c.bf16 %v4094, %v4093
        %v4115 = vpack.c.bf16 %v4096, %v4095
        %v4116 = vpack.c.bf16 %v4098, %v4097
        %v4117 = vpack.c.bf16 %v4100, %v4099
        %v4118 = vpack.c.bf16 %v4102, %v4101
        %v4119 = vld [vmem:[#allocation6] sm:$0xf]
        %v4120 = vld [vmem:[#allocation6 + $0x4] sm:$0xf]
        %v4121 = vld [vmem:[#allocation6 + $0x8] sm:$0xf]
        %v4122 = vld [vmem:[#allocation6 + $0xc] sm:$0xf]
        %v4123 = vld [vmem:[#allocation6 + $0x10] sm:$0xf]
        %v4124 = vld [vmem:[#allocation6 + $0x14] sm:$0xf]
        %v4125 = vld [vmem:[#allocation6 + $0x18] sm:$0xf]
        %v4126 = vld [vmem:[#allocation6 + $0x1c] sm:$0xf]
        %v4127 = vld [vmem:[#allocation6 + $0x20] sm:$0xf]
        %v4128 = vld [vmem:[#allocation6 + $0x24] sm:$0xf]
        %v4129 = vld [vmem:[#allocation6 + $0x28] sm:$0xf]
        %v4130 = vld [vmem:[#allocation6 + $0x2c] sm:$0xf]
        %v4131 = vld [vmem:[#allocation6 + $0x30] sm:$0xf]
        %v4132 = vld [vmem:[#allocation6 + $0x34] sm:$0xf]
        %v4133 = vld [vmem:[#allocation6 + $0x38] sm:$0xf]
        %v4134 = vld [vmem:[#allocation6 + $0x3c] sm:$0xf]
        %v4151 = vunpack.c.l.b16 %v4119
        %v4152 = vunpack.c.l.b16 %v4120
        %v4153 = vunpack.c.l.b16 %v4121
        %v4154 = vunpack.c.l.b16 %v4122
        %v4155 = vunpack.c.l.b16 %v4123
        %v4156 = vunpack.c.l.b16 %v4124
        %v4157 = vunpack.c.l.b16 %v4125
        %v4158 = vunpack.c.l.b16 %v4126
        %v4159 = vunpack.c.l.b16 %v4127
        %v4160 = vunpack.c.l.b16 %v4128
        %v4161 = vunpack.c.l.b16 %v4129
        %v4162 = vunpack.c.l.b16 %v4130
        %v4163 = vunpack.c.l.b16 %v4131
        %v4164 = vunpack.c.l.b16 %v4132
        %v4165 = vunpack.c.l.b16 %v4133
        %v4166 = vunpack.c.l.b16 %v4134
        %v4167 = vpack.c.b16 %v4152, %v4151
        %v4168 = vpack.c.b16 %v4154, %v4153
        %v4169 = vpack.c.b16 %v4156, %v4155
        %v4170 = vpack.c.b16 %v4158, %v4157
        %v4171 = vpack.c.b16 %v4160, %v4159
        %v4172 = vpack.c.b16 %v4162, %v4161
        %v4173 = vpack.c.b16 %v4164, %v4163
        %v4174 = vpack.c.b16 %v4166, %v4165
        %4183 = vmatpush.bf16.msra.mxu0 %v4174
        %4184 = vmatpush.bf16.msra.mxu0 %v4173
        %4185 = vmatpush.bf16.msra.mxu0 %v4172
        %4186 = vmatpush.bf16.msra.mxu0 %v4171
        %4187 = vmatpush.bf16.msra.mxu0 %v4170
        %4188 = vmatpush.bf16.msra.mxu0 %v4169
        %4189 = vmatpush.bf16.msra.mxu0 %v4168
        %4190 = vmatpush.bf16.msra.mxu0 %v4167
        %4191 = vmatmul.bf16.gmra.mxu0 %v4103
        %v4192 = vpop.f32.mrf.mxu0
        %v4193 = vadd.f32 0.0, %v4192
        %v4194 = vpop.f32.mrf.mxu0
        %v4195 = vadd.f32 0.0, %v4194
        %4196 = vmatmul.bf16.gmra.mxu0 %v4104
        %v4197 = vpop.f32.mrf.mxu0
        %v4198 = vadd.f32 0.0, %v4197
        %v4199 = vpop.f32.mrf.mxu0
        %v4200 = vadd.f32 0.0, %v4199
        %4201 = vmatmul.bf16.gmra.mxu0 %v4105
        %v4202 = vpop.f32.mrf.mxu0
        %v4203 = vadd.f32 0.0, %v4202
        %v4204 = vpop.f32.mrf.mxu0
        %v4205 = vadd.f32 0.0, %v4204
        %4206 = vmatmul.bf16.gmra.mxu0 %v4106
        %v4207 = vpop.f32.mrf.mxu0
        %v4208 = vadd.f32 0.0, %v4207
        %v4209 = vpop.f32.mrf.mxu0
        %v4210 = vadd.f32 0.0, %v4209
        %4211 = vmatmul.bf16.gmra.mxu0 %v4107
        %v4212 = vpop.f32.mrf.mxu0
        %v4213 = vadd.f32 0.0, %v4212
        %v4214 = vpop.f32.mrf.mxu0
        %v4215 = vadd.f32 0.0, %v4214
        %4216 = vmatmul.bf16.gmra.mxu0 %v4108
        %v4217 = vpop.f32.mrf.mxu0
        %v4218 = vadd.f32 0.0, %v4217
        %v4219 = vpop.f32.mrf.mxu0
        %v4220 = vadd.f32 0.0, %v4219
        %4221 = vmatmul.bf16.gmra.mxu0 %v4109
        %v4222 = vpop.f32.mrf.mxu0
        %v4223 = vadd.f32 0.0, %v4222
        %v4224 = vpop.f32.mrf.mxu0
        %v4225 = vadd.f32 0.0, %v4224
        %4226 = vmatmul.bf16.gmra.mxu0 %v4110
        %v4227 = vpop.f32.mrf.mxu0
        %v4228 = vadd.f32 0.0, %v4227
        %v4229 = vpop.f32.mrf.mxu0
        %v4230 = vadd.f32 0.0, %v4229
        %4231 = vmatmul.bf16.gmra.mxu0 %v4111
        %v4232 = vpop.f32.mrf.mxu0
        %v4233 = vadd.f32 0.0, %v4232
        %v4234 = vpop.f32.mrf.mxu0
        %v4235 = vadd.f32 0.0, %v4234
        %4236 = vmatmul.bf16.gmra.mxu0 %v4112
        %v4237 = vpop.f32.mrf.mxu0
        %v4238 = vadd.f32 0.0, %v4237
        %v4239 = vpop.f32.mrf.mxu0
        %v4240 = vadd.f32 0.0, %v4239
        %4241 = vmatmul.bf16.gmra.mxu0 %v4113
        %v4242 = vpop.f32.mrf.mxu0
        %v4243 = vadd.f32 0.0, %v4242
        %v4244 = vpop.f32.mrf.mxu0
        %v4245 = vadd.f32 0.0, %v4244
        %4246 = vmatmul.bf16.gmra.mxu0 %v4114
        %v4247 = vpop.f32.mrf.mxu0
        %v4248 = vadd.f32 0.0, %v4247
        %v4249 = vpop.f32.mrf.mxu0
        %v4250 = vadd.f32 0.0, %v4249
        %4251 = vmatmul.bf16.gmra.mxu0 %v4115
        %v4252 = vpop.f32.mrf.mxu0
        %v4253 = vadd.f32 0.0, %v4252
        %v4254 = vpop.f32.mrf.mxu0
        %v4255 = vadd.f32 0.0, %v4254
        %4256 = vmatmul.bf16.gmra.mxu0 %v4116
        %v4257 = vpop.f32.mrf.mxu0
        %v4258 = vadd.f32 0.0, %v4257
        %v4259 = vpop.f32.mrf.mxu0
        %v4260 = vadd.f32 0.0, %v4259
        %4261 = vmatmul.bf16.gmra.mxu0 %v4117
        %v4262 = vpop.f32.mrf.mxu0
        %v4263 = vadd.f32 0.0, %v4262
        %v4264 = vpop.f32.mrf.mxu0
        %v4265 = vadd.f32 0.0, %v4264
        %4266 = vmatmul.bf16.gmra.mxu0 %v4118
        %v4267 = vpop.f32.mrf.mxu0
        %v4268 = vadd.f32 0.0, %v4267
        %v4269 = vpop.f32.mrf.mxu0
        %v4270 = vadd.f32 0.0, %v4269
        %4271 = vdwg.mxu0
        %v4272 = vld [vmem:[%s2] sm:$0x1]
        %v4274 = vperm.slane %v4272, 0
        %v4276 = vmul.f32 %v4193, %v4274
        %v4277 = vmul.f32 %v4195, %v4274
        %v4278 = vmul.f32 %v4198, %v4274
        %v4279 = vmul.f32 %v4200, %v4274
        %v4280 = vmul.f32 %v4203, %v4274
        %v4281 = vmul.f32 %v4205, %v4274
        %v4282 = vmul.f32 %v4208, %v4274
        %v4283 = vmul.f32 %v4210, %v4274
        %v4284 = vmul.f32 %v4213, %v4274
        %v4285 = vmul.f32 %v4215, %v4274
        %v4286 = vmul.f32 %v4218, %v4274
        %v4287 = vmul.f32 %v4220, %v4274
        %v4288 = vmul.f32 %v4223, %v4274
        %v4289 = vmul.f32 %v4225, %v4274
        %v4290 = vmul.f32 %v4228, %v4274
        %v4291 = vmul.f32 %v4230, %v4274
        %v4292 = vmul.f32 %v4233, %v4274
        %v4293 = vmul.f32 %v4235, %v4274
        %v4294 = vmul.f32 %v4238, %v4274
        %v4295 = vmul.f32 %v4240, %v4274
        %v4296 = vmul.f32 %v4243, %v4274
        %v4297 = vmul.f32 %v4245, %v4274
        %v4298 = vmul.f32 %v4248, %v4274
        %v4299 = vmul.f32 %v4250, %v4274
        %v4300 = vmul.f32 %v4253, %v4274
        %v4301 = vmul.f32 %v4255, %v4274
        %v4302 = vmul.f32 %v4258, %v4274
        %v4303 = vmul.f32 %v4260, %v4274
        %v4304 = vmul.f32 %v4263, %v4274
        %v4305 = vmul.f32 %v4265, %v4274
        %v4306 = vmul.f32 %v4268, %v4274
        %v4307 = vmul.f32 %v4270, %v4274
        %v4308 = vld [vmem:[%s3] sm:$0x1]
        %v4310 = vperm.slane %v4308, 0
        %v4312 = vadd.f32 %v4276, %v4310
        %v4313 = vadd.f32 %v4277, %v4310
        %v4314 = vadd.f32 %v4278, %v4310
        %v4315 = vadd.f32 %v4279, %v4310
        %v4316 = vadd.f32 %v4280, %v4310
        %v4317 = vadd.f32 %v4281, %v4310
        %v4318 = vadd.f32 %v4282, %v4310
        %v4319 = vadd.f32 %v4283, %v4310
        %v4320 = vadd.f32 %v4284, %v4310
        %v4321 = vadd.f32 %v4285, %v4310
        %v4322 = vadd.f32 %v4286, %v4310
        %v4323 = vadd.f32 %v4287, %v4310
        %v4324 = vadd.f32 %v4288, %v4310
        %v4325 = vadd.f32 %v4289, %v4310
        %v4326 = vadd.f32 %v4290, %v4310
        %v4327 = vadd.f32 %v4291, %v4310
        %v4328 = vadd.f32 %v4292, %v4310
        %v4329 = vadd.f32 %v4293, %v4310
        %v4330 = vadd.f32 %v4294, %v4310
        %v4331 = vadd.f32 %v4295, %v4310
        %v4332 = vadd.f32 %v4296, %v4310
        %v4333 = vadd.f32 %v4297, %v4310
        %v4334 = vadd.f32 %v4298, %v4310
        %v4335 = vadd.f32 %v4299, %v4310
        %v4336 = vadd.f32 %v4300, %v4310
        %v4337 = vadd.f32 %v4301, %v4310
        %v4338 = vadd.f32 %v4302, %v4310
        %v4339 = vadd.f32 %v4303, %v4310
        %v4340 = vadd.f32 %v4304, %v4310
        %v4341 = vadd.f32 %v4305, %v4310
        %v4342 = vadd.f32 %v4306, %v4310
        %v4343 = vadd.f32 %v4307, %v4310
        %v4344 = vmax.f32 %v4312, 0.0
        %v4345 = vmax.f32 %v4313, 0.0
        %v4346 = vmax.f32 %v4314, 0.0
        %v4347 = vmax.f32 %v4315, 0.0
        %v4348 = vmax.f32 %v4316, 0.0
        %v4349 = vmax.f32 %v4317, 0.0
        %v4350 = vmax.f32 %v4318, 0.0
        %v4351 = vmax.f32 %v4319, 0.0
        %v4352 = vmax.f32 %v4320, 0.0
        %v4353 = vmax.f32 %v4321, 0.0
        %v4354 = vmax.f32 %v4322, 0.0
        %v4355 = vmax.f32 %v4323, 0.0
        %v4356 = vmax.f32 %v4324, 0.0
        %v4357 = vmax.f32 %v4325, 0.0
        %v4358 = vmax.f32 %v4326, 0.0
        %v4359 = vmax.f32 %v4327, 0.0
        %v4360 = vmax.f32 %v4328, 0.0
        %v4361 = vmax.f32 %v4329, 0.0
        %v4362 = vmax.f32 %v4330, 0.0
        %v4363 = vmax.f32 %v4331, 0.0
        %v4364 = vmax.f32 %v4332, 0.0
        %v4365 = vmax.f32 %v4333, 0.0
        %v4366 = vmax.f32 %v4334, 0.0
        %v4367 = vmax.f32 %v4335, 0.0
        %v4368 = vmax.f32 %v4336, 0.0
        %v4369 = vmax.f32 %v4337, 0.0
        %v4370 = vmax.f32 %v4338, 0.0
        %v4371 = vmax.f32 %v4339, 0.0
        %v4372 = vmax.f32 %v4340, 0.0
        %v4373 = vmax.f32 %v4341, 0.0
        %v4374 = vmax.f32 %v4342, 0.0
        %v4375 = vmax.f32 %v4343, 0.0
        %v4376 = vpack.c.bf16 %v4344, %v4344
        %v4377 = vpack.c.bf16 %v4345, %v4345
        %v4378 = vpack.c.bf16 %v4346, %v4346
        %v4379 = vpack.c.bf16 %v4347, %v4347
        %v4380 = vpack.c.bf16 %v4348, %v4348
        %v4381 = vpack.c.bf16 %v4349, %v4349
        %v4382 = vpack.c.bf16 %v4350, %v4350
        %v4383 = vpack.c.bf16 %v4351, %v4351
        %v4384 = vpack.c.bf16 %v4352, %v4352
        %v4385 = vpack.c.bf16 %v4353, %v4353
        %v4386 = vpack.c.bf16 %v4354, %v4354
        %v4387 = vpack.c.bf16 %v4355, %v4355
        %v4388 = vpack.c.bf16 %v4356, %v4356
        %v4389 = vpack.c.bf16 %v4357, %v4357
        %v4390 = vpack.c.bf16 %v4358, %v4358
        %v4391 = vpack.c.bf16 %v4359, %v4359
        %v4392 = vpack.c.bf16 %v4360, %v4360
        %v4393 = vpack.c.bf16 %v4361, %v4361
        %v4394 = vpack.c.bf16 %v4362, %v4362
        %v4395 = vpack.c.bf16 %v4363, %v4363
        %v4396 = vpack.c.bf16 %v4364, %v4364
        %v4397 = vpack.c.bf16 %v4365, %v4365
        %v4398 = vpack.c.bf16 %v4366, %v4366
        %v4399 = vpack.c.bf16 %v4367, %v4367
        %v4400 = vpack.c.bf16 %v4368, %v4368
        %v4401 = vpack.c.bf16 %v4369, %v4369
        %v4402 = vpack.c.bf16 %v4370, %v4370
        %v4403 = vpack.c.bf16 %v4371, %v4371
        %v4404 = vpack.c.bf16 %v4372, %v4372
        %v4405 = vpack.c.bf16 %v4373, %v4373
        %v4406 = vpack.c.bf16 %v4374, %v4374
        %v4407 = vpack.c.bf16 %v4375, %v4375
        %v4409 = vshrl.u32 %v4376, 16
        %v4411 = vrot.slane %v4409, 7
        %v4412 = vshll.u32 %v4376, 16
        %v4414 = vor.u32 %v4411, %v4412
        %v4415 = vrot.slane %v4411, 4
        %v4417 = vshrl.u32 %v4377, 16
        %v4419 = vrot.slane %v4417, 7
        %v4420 = vshll.u32 %v4377, 16
        %v4422 = vor.u32 %v4419, %v4420
        %v4423 = vsel %vm892, %v4415, %v4422
        %v4424 = vrot.slane %v4419, 4
        %v4426 = vshrl.u32 %v4378, 16
        %v4428 = vrot.slane %v4426, 7
        %v4429 = vshll.u32 %v4378, 16
        %v4431 = vor.u32 %v4428, %v4429
        %v4432 = vrot.slane %v4428, 4
        %v4434 = vshrl.u32 %v4379, 16
        %v4436 = vrot.slane %v4434, 7
        %v4437 = vshll.u32 %v4379, 16
        %v4439 = vor.u32 %v4436, %v4437
        %v4440 = vsel %vm892, %v4432, %v4439
        %v4441 = vrot.slane %v4436, 4
        %v4443 = vshrl.u32 %v4380, 16
        %v4445 = vrot.slane %v4443, 7
        %v4446 = vshll.u32 %v4380, 16
        %v4448 = vor.u32 %v4445, %v4446
        %v4449 = vrot.slane %v4445, 4
        %v4451 = vshrl.u32 %v4381, 16
        %v4453 = vrot.slane %v4451, 7
        %v4454 = vshll.u32 %v4381, 16
        %v4456 = vor.u32 %v4453, %v4454
        %v4457 = vsel %vm892, %v4449, %v4456
        %v4458 = vrot.slane %v4453, 4
        %v4460 = vshrl.u32 %v4382, 16
        %v4462 = vrot.slane %v4460, 7
        %v4463 = vshll.u32 %v4382, 16
        %v4465 = vor.u32 %v4462, %v4463
        %v4466 = vrot.slane %v4462, 4
        %v4468 = vshrl.u32 %v4383, 16
        %v4470 = vrot.slane %v4468, 7
        %v4471 = vshll.u32 %v4383, 16
        %v4473 = vor.u32 %v4470, %v4471
        %v4474 = vsel %vm892, %v4466, %v4473
        %v4475 = vrot.slane %v4470, 4
        %v4477 = vshrl.u32 %v4384, 16
        %v4479 = vrot.slane %v4477, 7
        %v4480 = vshll.u32 %v4384, 16
        %v4482 = vor.u32 %v4479, %v4480
        %v4483 = vrot.slane %v4479, 4
        %v4485 = vshrl.u32 %v4385, 16
        %v4487 = vrot.slane %v4485, 7
        %v4488 = vshll.u32 %v4385, 16
        %v4490 = vor.u32 %v4487, %v4488
        %v4491 = vsel %vm892, %v4483, %v4490
        %v4492 = vrot.slane %v4487, 4
        %v4494 = vshrl.u32 %v4386, 16
        %v4496 = vrot.slane %v4494, 7
        %v4497 = vshll.u32 %v4386, 16
        %v4499 = vor.u32 %v4496, %v4497
        %v4500 = vrot.slane %v4496, 4
        %v4502 = vshrl.u32 %v4387, 16
        %v4504 = vrot.slane %v4502, 7
        %v4505 = vshll.u32 %v4387, 16
        %v4507 = vor.u32 %v4504, %v4505
        %v4508 = vsel %vm892, %v4500, %v4507
        %v4509 = vrot.slane %v4504, 4
        %v4511 = vshrl.u32 %v4388, 16
        %v4513 = vrot.slane %v4511, 7
        %v4514 = vshll.u32 %v4388, 16
        %v4516 = vor.u32 %v4513, %v4514
        %v4517 = vrot.slane %v4513, 4
        %v4519 = vshrl.u32 %v4389, 16
        %v4521 = vrot.slane %v4519, 7
        %v4522 = vshll.u32 %v4389, 16
        %v4524 = vor.u32 %v4521, %v4522
        %v4525 = vsel %vm892, %v4517, %v4524
        %v4526 = vrot.slane %v4521, 4
        %v4528 = vshrl.u32 %v4390, 16
        %v4530 = vrot.slane %v4528, 7
        %v4531 = vshll.u32 %v4390, 16
        %v4533 = vor.u32 %v4530, %v4531
        %v4534 = vrot.slane %v4530, 4
        %v4536 = vshrl.u32 %v4391, 16
        %v4538 = vrot.slane %v4536, 7
        %v4539 = vshll.u32 %v4391, 16
        %v4541 = vor.u32 %v4538, %v4539
        %v4542 = vsel %vm892, %v4534, %v4541
        %v4543 = vrot.slane %v4538, 4
        %v4545 = vshrl.u32 %v4392, 16
        %v4547 = vrot.slane %v4545, 7
        %v4548 = vshll.u32 %v4392, 16
        %v4550 = vor.u32 %v4547, %v4548
        %v4551 = vrot.slane %v4547, 4
        %v4553 = vshrl.u32 %v4393, 16
        %v4555 = vrot.slane %v4553, 7
        %v4556 = vshll.u32 %v4393, 16
        %v4558 = vor.u32 %v4555, %v4556
        %v4559 = vsel %vm892, %v4551, %v4558
        %v4560 = vrot.slane %v4555, 4
        %v4562 = vshrl.u32 %v4394, 16
        %v4564 = vrot.slane %v4562, 7
        %v4565 = vshll.u32 %v4394, 16
        %v4567 = vor.u32 %v4564, %v4565
        %v4568 = vrot.slane %v4564, 4
        %v4570 = vshrl.u32 %v4395, 16
        %v4572 = vrot.slane %v4570, 7
        %v4573 = vshll.u32 %v4395, 16
        %v4575 = vor.u32 %v4572, %v4573
        %v4576 = vsel %vm892, %v4568, %v4575
        %v4577 = vrot.slane %v4572, 4
        %v4579 = vshrl.u32 %v4396, 16
        %v4581 = vrot.slane %v4579, 7
        %v4582 = vshll.u32 %v4396, 16
        %v4584 = vor.u32 %v4581, %v4582
        %v4585 = vrot.slane %v4581, 4
        %v4587 = vshrl.u32 %v4397, 16
        %v4589 = vrot.slane %v4587, 7
        %v4590 = vshll.u32 %v4397, 16
        %v4592 = vor.u32 %v4589, %v4590
        %v4593 = vsel %vm892, %v4585, %v4592
        %v4594 = vrot.slane %v4589, 4
        %v4596 = vshrl.u32 %v4398, 16
        %v4598 = vrot.slane %v4596, 7
        %v4599 = vshll.u32 %v4398, 16
        %v4601 = vor.u32 %v4598, %v4599
        %v4602 = vrot.slane %v4598, 4
        %v4604 = vshrl.u32 %v4399, 16
        %v4606 = vrot.slane %v4604, 7
        %v4607 = vshll.u32 %v4399, 16
        %v4609 = vor.u32 %v4606, %v4607
        %v4610 = vsel %vm892, %v4602, %v4609
        %v4611 = vrot.slane %v4606, 4
        %v4613 = vshrl.u32 %v4400, 16
        %v4615 = vrot.slane %v4613, 7
        %v4616 = vshll.u32 %v4400, 16
        %v4618 = vor.u32 %v4615, %v4616
        %v4619 = vrot.slane %v4615, 4
        %v4621 = vshrl.u32 %v4401, 16
        %v4623 = vrot.slane %v4621, 7
        %v4624 = vshll.u32 %v4401, 16
        %v4626 = vor.u32 %v4623, %v4624
        %v4627 = vsel %vm892, %v4619, %v4626
        %v4628 = vrot.slane %v4623, 4
        %v4630 = vshrl.u32 %v4402, 16
        %v4632 = vrot.slane %v4630, 7
        %v4633 = vshll.u32 %v4402, 16
        %v4635 = vor.u32 %v4632, %v4633
        %v4636 = vrot.slane %v4632, 4
        %v4638 = vshrl.u32 %v4403, 16
        %v4640 = vrot.slane %v4638, 7
        %v4641 = vshll.u32 %v4403, 16
        %v4643 = vor.u32 %v4640, %v4641
        %v4644 = vsel %vm892, %v4636, %v4643
        %v4645 = vrot.slane %v4640, 4
        %v4647 = vshrl.u32 %v4404, 16
        %v4649 = vrot.slane %v4647, 7
        %v4650 = vshll.u32 %v4404, 16
        %v4652 = vor.u32 %v4649, %v4650
        %v4653 = vrot.slane %v4649, 4
        %v4655 = vshrl.u32 %v4405, 16
        %v4657 = vrot.slane %v4655, 7
        %v4658 = vshll.u32 %v4405, 16
        %v4660 = vor.u32 %v4657, %v4658
        %v4661 = vsel %vm892, %v4653, %v4660
        %v4662 = vrot.slane %v4657, 4
        %v4664 = vshrl.u32 %v4406, 16
        %v4666 = vrot.slane %v4664, 7
        %v4667 = vshll.u32 %v4406, 16
        %v4669 = vor.u32 %v4666, %v4667
        %v4670 = vrot.slane %v4666, 4
        %v4672 = vshrl.u32 %v4407, 16
        %v4674 = vrot.slane %v4672, 7
        %v4675 = vshll.u32 %v4407, 16
        %v4677 = vor.u32 %v4674, %v4675
        %v4678 = vsel %vm892, %v4670, %v4677
        %v4679 = vrot.slane %v4674, 4
        %v4728 = vld [vmem:[%s1213] sm:$0xf]
        %v4729 = vsel %vm1215, %v4414, %v4728
        %4730 = vst [vmem:[%s1213] sm:$0xf] %v4729
        %4731 = vst [vmem:[%s1213 + $0x4] sm:$0xf] %v4423
        %v4732 = vld [vmem:[%s1213 + $0x8] sm:$0x1]
        %v4733 = vsel %vm443, %v4424, %v4732
        %4734 = vst [vmem:[%s1213 + $0x8] sm:$0x1] %v4733
        %v4735 = vld [vmem:[%s1213 + $0xc] sm:$0xf]
        %v4736 = vsel %vm1215, %v4431, %v4735
        %4737 = vst [vmem:[%s1213 + $0xc] sm:$0xf] %v4736
        %4738 = vst [vmem:[%s1213 + $0x10] sm:$0xf] %v4440
        %v4739 = vld [vmem:[%s1213 + $0x14] sm:$0x1]
        %v4740 = vsel %vm443, %v4441, %v4739
        %4741 = vst [vmem:[%s1213 + $0x14] sm:$0x1] %v4740
        %v4742 = vld [vmem:[%s1213 + $0x18] sm:$0xf]
        %v4743 = vsel %vm1215, %v4448, %v4742
        %4744 = vst [vmem:[%s1213 + $0x18] sm:$0xf] %v4743
        %4745 = vst [vmem:[%s1213 + $0x1c] sm:$0xf] %v4457
        %v4746 = vld [vmem:[%s1213 + $0x20] sm:$0x1]
        %v4747 = vsel %vm443, %v4458, %v4746
        %4748 = vst [vmem:[%s1213 + $0x20] sm:$0x1] %v4747
        %v4749 = vld [vmem:[%s1213 + $0x24] sm:$0xf]
        %v4750 = vsel %vm1215, %v4465, %v4749
        %4751 = vst [vmem:[%s1213 + $0x24] sm:$0xf] %v4750
        %4752 = vst [vmem:[%s1213 + $0x28] sm:$0xf] %v4474
        %v4753 = vld [vmem:[%s1213 + $0x2c] sm:$0x1]
        %v4754 = vsel %vm443, %v4475, %v4753
        %4755 = vst [vmem:[%s1213 + $0x2c] sm:$0x1] %v4754
        %v4756 = vld [vmem:[%s1213 + $0x30] sm:$0xf]
        %v4757 = vsel %vm1215, %v4482, %v4756
        %4758 = vst [vmem:[%s1213 + $0x30] sm:$0xf] %v4757
        %4759 = vst [vmem:[%s1213 + $0x34] sm:$0xf] %v4491
        %v4760 = vld [vmem:[%s1213 + $0x38] sm:$0x1]
        %v4761 = vsel %vm443, %v4492, %v4760
        %4762 = vst [vmem:[%s1213 + $0x38] sm:$0x1] %v4761
        %v4763 = vld [vmem:[%s1213 + $0x3c] sm:$0xf]
        %v4764 = vsel %vm1215, %v4499, %v4763
        %4765 = vst [vmem:[%s1213 + $0x3c] sm:$0xf] %v4764
        %4766 = vst [vmem:[%s1213 + $0x40] sm:$0xf] %v4508
        %v4767 = vld [vmem:[%s1213 + $0x44] sm:$0x1]
        %v4768 = vsel %vm443, %v4509, %v4767
        %4769 = vst [vmem:[%s1213 + $0x44] sm:$0x1] %v4768
        %v4770 = vld [vmem:[%s1213 + $0x48] sm:$0xf]
        %v4771 = vsel %vm1215, %v4516, %v4770
        %4772 = vst [vmem:[%s1213 + $0x48] sm:$0xf] %v4771
        %4773 = vst [vmem:[%s1213 + $0x4c] sm:$0xf] %v4525
        %v4774 = vld [vmem:[%s1213 + $0x50] sm:$0x1]
        %v4775 = vsel %vm443, %v4526, %v4774
        %4776 = vst [vmem:[%s1213 + $0x50] sm:$0x1] %v4775
        %v4777 = vld [vmem:[%s1213 + $0x54] sm:$0xf]
        %v4778 = vsel %vm1215, %v4533, %v4777
        %4779 = vst [vmem:[%s1213 + $0x54] sm:$0xf] %v4778
        %4780 = vst [vmem:[%s1213 + $0x58] sm:$0xf] %v4542
        %v4781 = vld [vmem:[%s1213 + $0x5c] sm:$0x1]
        %v4782 = vsel %vm443, %v4543, %v4781
        %4783 = vst [vmem:[%s1213 + $0x5c] sm:$0x1] %v4782
        %v4784 = vld [vmem:[%s1213 + $0x60] sm:$0xf]
        %v4785 = vsel %vm1215, %v4550, %v4784
        %4786 = vst [vmem:[%s1213 + $0x60] sm:$0xf] %v4785
        %4787 = vst [vmem:[%s1213 + $0x64] sm:$0xf] %v4559
        %v4788 = vld [vmem:[%s1213 + $0x68] sm:$0x1]
        %v4789 = vsel %vm443, %v4560, %v4788
        %4790 = vst [vmem:[%s1213 + $0x68] sm:$0x1] %v4789
        %v4791 = vld [vmem:[%s1213 + $0x6c] sm:$0xf]
        %v4792 = vsel %vm1215, %v4567, %v4791
        %4793 = vst [vmem:[%s1213 + $0x6c] sm:$0xf] %v4792
        %4794 = vst [vmem:[%s1213 + $0x70] sm:$0xf] %v4576
        %v4795 = vld [vmem:[%s1213 + $0x74] sm:$0x1]
        %v4796 = vsel %vm443, %v4577, %v4795
        %4797 = vst [vmem:[%s1213 + $0x74] sm:$0x1] %v4796
        %v4798 = vld [vmem:[%s1213 + $0x78] sm:$0xf]
        %v4799 = vsel %vm1215, %v4584, %v4798
        %4800 = vst [vmem:[%s1213 + $0x78] sm:$0xf] %v4799
        %4801 = vst [vmem:[%s1213 + $0x7c] sm:$0xf] %v4593
        %v4802 = vld [vmem:[%s1213 + $0x80] sm:$0x1]
        %v4803 = vsel %vm443, %v4594, %v4802
        %4804 = vst [vmem:[%s1213 + $0x80] sm:$0x1] %v4803
        %v4805 = vld [vmem:[%s1213 + $0x84] sm:$0xf]
        %v4806 = vsel %vm1215, %v4601, %v4805
        %4807 = vst [vmem:[%s1213 + $0x84] sm:$0xf] %v4806
        %4808 = vst [vmem:[%s1213 + $0x88] sm:$0xf] %v4610
        %v4809 = vld [vmem:[%s1213 + $0x8c] sm:$0x1]
        %v4810 = vsel %vm443, %v4611, %v4809
        %4811 = vst [vmem:[%s1213 + $0x8c] sm:$0x1] %v4810
        %v4812 = vld [vmem:[%s1213 + $0x90] sm:$0xf]
        %v4813 = vsel %vm1215, %v4618, %v4812
        %4814 = vst [vmem:[%s1213 + $0x90] sm:$0xf] %v4813
        %4815 = vst [vmem:[%s1213 + $0x94] sm:$0xf] %v4627
        %v4816 = vld [vmem:[%s1213 + $0x98] sm:$0x1]
        %v4817 = vsel %vm443, %v4628, %v4816
        %4818 = vst [vmem:[%s1213 + $0x98] sm:$0x1] %v4817
        %v4819 = vld [vmem:[%s1213 + $0x9c] sm:$0xf]
        %v4820 = vsel %vm1215, %v4635, %v4819
        %4821 = vst [vmem:[%s1213 + $0x9c] sm:$0xf] %v4820
        %4822 = vst [vmem:[%s1213 + $0xa0] sm:$0xf] %v4644
        %v4823 = vld [vmem:[%s1213 + $0xa4] sm:$0x1]
        %v4824 = vsel %vm443, %v4645, %v4823
        %4825 = vst [vmem:[%s1213 + $0xa4] sm:$0x1] %v4824
        %v4826 = vld [vmem:[%s1213 + $0xa8] sm:$0xf]
        %v4827 = vsel %vm1215, %v4652, %v4826
        %4828 = vst [vmem:[%s1213 + $0xa8] sm:$0xf] %v4827
        %4829 = vst [vmem:[%s1213 + $0xac] sm:$0xf] %v4661
        %v4830 = vld [vmem:[%s1213 + $0xb0] sm:$0x1]
        %v4831 = vsel %vm443, %v4662, %v4830
        %4832 = vst [vmem:[%s1213 + $0xb0] sm:$0x1] %v4831
        %v4833 = vld [vmem:[%s1213 + $0xb4] sm:$0xf]
        %v4834 = vsel %vm1215, %v4669, %v4833
        %4835 = vst [vmem:[%s1213 + $0xb4] sm:$0xf] %v4834
        %4836 = vst [vmem:[%s1213 + $0xb8] sm:$0xf] %v4678
        %v4837 = vld [vmem:[%s1213 + $0xbc] sm:$0x1]
        %v4838 = vsel %vm443, %v4679, %v4837
        %4839 = vst [vmem:[%s1213 + $0xbc] sm:$0x1] %v4838
        %v4840 = vld [vmem:[#allocation2] sm:$0xf]
        %v4841 = vld [vmem:[#allocation2 + $0x4] sm:$0xf]
        %v4842 = vld [vmem:[#allocation2 + $0xc] sm:$0xf]
        %v4843 = vld [vmem:[#allocation2 + $0x10] sm:$0xf]
        %v4844 = vld [vmem:[#allocation2 + $0x18] sm:$0xf]
        %v4845 = vld [vmem:[#allocation2 + $0x1c] sm:$0xf]
        %v4846 = vld [vmem:[#allocation2 + $0x24] sm:$0xf]
        %v4847 = vld [vmem:[#allocation2 + $0x28] sm:$0xf]
        %v4848 = vld [vmem:[#allocation2 + $0x30] sm:$0xf]
        %v4849 = vld [vmem:[#allocation2 + $0x34] sm:$0xf]
        %v4850 = vld [vmem:[#allocation2 + $0x3c] sm:$0xf]
        %v4851 = vld [vmem:[#allocation2 + $0x40] sm:$0xf]
        %v4852 = vld [vmem:[#allocation2 + $0x48] sm:$0xf]
        %v4853 = vld [vmem:[#allocation2 + $0x4c] sm:$0xf]
        %v4854 = vld [vmem:[#allocation2 + $0x54] sm:$0xf]
        %v4855 = vld [vmem:[#allocation2 + $0x58] sm:$0xf]
        %v4856 = vld [vmem:[#allocation2 + $0x60] sm:$0xf]
        %v4857 = vld [vmem:[#allocation2 + $0x64] sm:$0xf]
        %v4858 = vld [vmem:[#allocation2 + $0x6c] sm:$0xf]
        %v4859 = vld [vmem:[#allocation2 + $0x70] sm:$0xf]
        %v4860 = vld [vmem:[#allocation2 + $0x78] sm:$0xf]
        %v4861 = vld [vmem:[#allocation2 + $0x7c] sm:$0xf]
        %v4862 = vld [vmem:[#allocation2 + $0x84] sm:$0xf]
        %v4863 = vld [vmem:[#allocation2 + $0x88] sm:$0xf]
        %v4864 = vld [vmem:[#allocation2 + $0x90] sm:$0xf]
        %v4865 = vld [vmem:[#allocation2 + $0x94] sm:$0xf]
        %v4866 = vld [vmem:[#allocation2 + $0x9c] sm:$0xf]
        %v4867 = vld [vmem:[#allocation2 + $0xa0] sm:$0xf]
        %v4868 = vld [vmem:[#allocation2 + $0xa8] sm:$0xf]
        %v4869 = vld [vmem:[#allocation2 + $0xac] sm:$0xf]
        %v4870 = vld [vmem:[#allocation2 + $0xb4] sm:$0xf]
        %v4871 = vld [vmem:[#allocation2 + $0xb8] sm:$0xf]
        %v4872 = vld [vmem:[#allocation2 + $0xc0] sm:$0xf]
        %v4873 = vld [vmem:[#allocation2 + $0xc4] sm:$0xf]
        %v4874 = vld [vmem:[#allocation2 + $0xcc] sm:$0xf]
        %v4875 = vld [vmem:[#allocation2 + $0xd0] sm:$0xf]
        %v4876 = vld [vmem:[#allocation2 + $0x8] sm:$0x1]
        %v4877 = vld [vmem:[#allocation2 + $0x14] sm:$0x1]
        %v4878 = vld [vmem:[#allocation2 + $0x20] sm:$0x1]
        %v4879 = vld [vmem:[#allocation2 + $0x2c] sm:$0x1]
        %v4880 = vld [vmem:[#allocation2 + $0x38] sm:$0x1]
        %v4881 = vld [vmem:[#allocation2 + $0x44] sm:$0x1]
        %v4882 = vld [vmem:[#allocation2 + $0x50] sm:$0x1]
        %v4883 = vld [vmem:[#allocation2 + $0x5c] sm:$0x1]
        %v4884 = vld [vmem:[#allocation2 + $0x68] sm:$0x1]
        %v4885 = vld [vmem:[#allocation2 + $0x74] sm:$0x1]
        %v4886 = vld [vmem:[#allocation2 + $0x80] sm:$0x1]
        %v4887 = vld [vmem:[#allocation2 + $0x8c] sm:$0x1]
        %v4888 = vld [vmem:[#allocation2 + $0x98] sm:$0x1]
        %v4889 = vld [vmem:[#allocation2 + $0xa4] sm:$0x1]
        %v4890 = vld [vmem:[#allocation2 + $0xb0] sm:$0x1]
        %v4891 = vld [vmem:[#allocation2 + $0xbc] sm:$0x1]
        %v4892 = vld [vmem:[#allocation2 + $0xc8] sm:$0x1]
        %v4893 = vld [vmem:[#allocation2 + $0xd4] sm:$0x1]
        %v4894 = vld [vmem:[#allocation2] sm:$0xe]
        %v4895 = vld [vmem:[#allocation2 + $0xc] sm:$0xe]
        %v4896 = vld [vmem:[#allocation2 + $0x18] sm:$0xe]
        %v4897 = vld [vmem:[#allocation2 + $0x24] sm:$0xe]
        %v4898 = vld [vmem:[#allocation2 + $0x30] sm:$0xe]
        %v4899 = vld [vmem:[#allocation2 + $0x3c] sm:$0xe]
        %v4900 = vld [vmem:[#allocation2 + $0x48] sm:$0xe]
        %v4901 = vld [vmem:[#allocation2 + $0x54] sm:$0xe]
        %v4902 = vld [vmem:[#allocation2 + $0x60] sm:$0xe]
        %v4903 = vld [vmem:[#allocation2 + $0x6c] sm:$0xe]
        %v4904 = vld [vmem:[#allocation2 + $0x78] sm:$0xe]
        %v4905 = vld [vmem:[#allocation2 + $0x84] sm:$0xe]
        %v4906 = vld [vmem:[#allocation2 + $0x90] sm:$0xe]
        %v4907 = vld [vmem:[#allocation2 + $0x9c] sm:$0xe]
        %v4908 = vld [vmem:[#allocation2 + $0xa8] sm:$0xe]
        %v4909 = vld [vmem:[#allocation2 + $0xb4] sm:$0xe]
        %v4910 = vld [vmem:[#allocation2 + $0xc0] sm:$0xe]
        %v4911 = vld [vmem:[#allocation2 + $0xcc] sm:$0xe]
        %v4913 = vshrl.u32 %v4840, 16
        %v4915 = vrot.slane %v4913, 4
        %v4916 = vshll.u32 %v4840, 16
        %v4918 = vrot.slane %v4916, 5
        %v4919 = vor.u32 %v4915, %v4918
        %v4920 = vrot.slane %v4919, 4
        %v4922 = vshll.u32 %v4841, 16
        %v4924 = vrot.slane %v4922, 5
        %v4925 = vsel %vm1402, %v4920, %v4924
        %v4926 = vshrl.u32 %v4841, 16
        %v4928 = vrot.slane %v4926, 4
        %v4929 = vor.u32 %v4928, %v4924
        %v4930 = vrot.slane %v4929, 4
        %v4932 = vshll.u32 %v4876, 16
        %v4934 = vrot.slane %v4932, 5
        %v4935 = vsel %vm1402, %v4930, %v4934
        %v4937 = vshrl.u32 %v4842, 16
        %v4939 = vrot.slane %v4937, 4
        %v4940 = vshll.u32 %v4842, 16
        %v4942 = vrot.slane %v4940, 5
        %v4943 = vor.u32 %v4939, %v4942
        %v4944 = vrot.slane %v4943, 4
        %v4946 = vshll.u32 %v4843, 16
        %v4948 = vrot.slane %v4946, 5
        %v4949 = vsel %vm1402, %v4944, %v4948
        %v4950 = vshrl.u32 %v4843, 16
        %v4952 = vrot.slane %v4950, 4
        %v4953 = vor.u32 %v4952, %v4948
        %v4954 = vrot.slane %v4953, 4
        %v4956 = vshll.u32 %v4877, 16
        %v4958 = vrot.slane %v4956, 5
        %v4959 = vsel %vm1402, %v4954, %v4958
        %v4961 = vshrl.u32 %v4844, 16
        %v4963 = vrot.slane %v4961, 4
        %v4964 = vshll.u32 %v4844, 16
        %v4966 = vrot.slane %v4964, 5
        %v4967 = vor.u32 %v4963, %v4966
        %v4968 = vrot.slane %v4967, 4
        %v4970 = vshll.u32 %v4845, 16
        %v4972 = vrot.slane %v4970, 5
        %v4973 = vsel %vm1402, %v4968, %v4972
        %v4974 = vshrl.u32 %v4845, 16
        %v4976 = vrot.slane %v4974, 4
        %v4977 = vor.u32 %v4976, %v4972
        %v4978 = vrot.slane %v4977, 4
        %v4980 = vshll.u32 %v4878, 16
        %v4982 = vrot.slane %v4980, 5
        %v4983 = vsel %vm1402, %v4978, %v4982
        %v4985 = vshrl.u32 %v4846, 16
        %v4987 = vrot.slane %v4985, 4
        %v4988 = vshll.u32 %v4846, 16
        %v4990 = vrot.slane %v4988, 5
        %v4991 = vor.u32 %v4987, %v4990
        %v4992 = vrot.slane %v4991, 4
        %v4994 = vshll.u32 %v4847, 16
        %v4996 = vrot.slane %v4994, 5
        %v4997 = vsel %vm1402, %v4992, %v4996
        %v4998 = vshrl.u32 %v4847, 16
        %v5000 = vrot.slane %v4998, 4
        %v5001 = vor.u32 %v5000, %v4996
        %v5002 = vrot.slane %v5001, 4
        %v5004 = vshll.u32 %v4879, 16
        %v5006 = vrot.slane %v5004, 5
        %v5007 = vsel %vm1402, %v5002, %v5006
        %v5009 = vshrl.u32 %v4848, 16
        %v5011 = vrot.slane %v5009, 4
        %v5012 = vshll.u32 %v4848, 16
        %v5014 = vrot.slane %v5012, 5
        %v5015 = vor.u32 %v5011, %v5014
        %v5016 = vrot.slane %v5015, 4
        %v5018 = vshll.u32 %v4849, 16
        %v5020 = vrot.slane %v5018, 5
        %v5021 = vsel %vm1402, %v5016, %v5020
        %v5022 = vshrl.u32 %v4849, 16
        %v5024 = vrot.slane %v5022, 4
        %v5025 = vor.u32 %v5024, %v5020
        %v5026 = vrot.slane %v5025, 4
        %v5028 = vshll.u32 %v4880, 16
        %v5030 = vrot.slane %v5028, 5
        %v5031 = vsel %vm1402, %v5026, %v5030
        %v5033 = vshrl.u32 %v4850, 16
        %v5035 = vrot.slane %v5033, 4
        %v5036 = vshll.u32 %v4850, 16
        %v5038 = vrot.slane %v5036, 5
        %v5039 = vor.u32 %v5035, %v5038
        %v5040 = vrot.slane %v5039, 4
        %v5042 = vshll.u32 %v4851, 16
        %v5044 = vrot.slane %v5042, 5
        %v5045 = vsel %vm1402, %v5040, %v5044
        %v5046 = vshrl.u32 %v4851, 16
        %v5048 = vrot.slane %v5046, 4
        %v5049 = vor.u32 %v5048, %v5044
        %v5050 = vrot.slane %v5049, 4
        %v5052 = vshll.u32 %v4881, 16
        %v5054 = vrot.slane %v5052, 5
        %v5055 = vsel %vm1402, %v5050, %v5054
        %v5057 = vshrl.u32 %v4852, 16
        %v5059 = vrot.slane %v5057, 4
        %v5060 = vshll.u32 %v4852, 16
        %v5062 = vrot.slane %v5060, 5
        %v5063 = vor.u32 %v5059, %v5062
        %v5064 = vrot.slane %v5063, 4
        %v5066 = vshll.u32 %v4853, 16
        %v5068 = vrot.slane %v5066, 5
        %v5069 = vsel %vm1402, %v5064, %v5068
        %v5070 = vshrl.u32 %v4853, 16
        %v5072 = vrot.slane %v5070, 4
        %v5073 = vor.u32 %v5072, %v5068
        %v5074 = vrot.slane %v5073, 4
        %v5076 = vshll.u32 %v4882, 16
        %v5078 = vrot.slane %v5076, 5
        %v5079 = vsel %vm1402, %v5074, %v5078
        %v5081 = vshrl.u32 %v4854, 16
        %v5083 = vrot.slane %v5081, 4
        %v5084 = vshll.u32 %v4854, 16
        %v5086 = vrot.slane %v5084, 5
        %v5087 = vor.u32 %v5083, %v5086
        %v5088 = vrot.slane %v5087, 4
        %v5090 = vshll.u32 %v4855, 16
        %v5092 = vrot.slane %v5090, 5
        %v5093 = vsel %vm1402, %v5088, %v5092
        %v5094 = vshrl.u32 %v4855, 16
        %v5096 = vrot.slane %v5094, 4
        %v5097 = vor.u32 %v5096, %v5092
        %v5098 = vrot.slane %v5097, 4
        %v5100 = vshll.u32 %v4883, 16
        %v5102 = vrot.slane %v5100, 5
        %v5103 = vsel %vm1402, %v5098, %v5102
        %v5105 = vshrl.u32 %v4856, 16
        %v5107 = vrot.slane %v5105, 4
        %v5108 = vshll.u32 %v4856, 16
        %v5110 = vrot.slane %v5108, 5
        %v5111 = vor.u32 %v5107, %v5110
        %v5112 = vrot.slane %v5111, 4
        %v5114 = vshll.u32 %v4857, 16
        %v5116 = vrot.slane %v5114, 5
        %v5117 = vsel %vm1402, %v5112, %v5116
        %v5118 = vshrl.u32 %v4857, 16
        %v5120 = vrot.slane %v5118, 4
        %v5121 = vor.u32 %v5120, %v5116
        %v5122 = vrot.slane %v5121, 4
        %v5124 = vshll.u32 %v4884, 16
        %v5126 = vrot.slane %v5124, 5
        %v5127 = vsel %vm1402, %v5122, %v5126
        %v5129 = vshrl.u32 %v4858, 16
        %v5131 = vrot.slane %v5129, 4
        %v5132 = vshll.u32 %v4858, 16
        %v5134 = vrot.slane %v5132, 5
        %v5135 = vor.u32 %v5131, %v5134
        %v5136 = vrot.slane %v5135, 4
        %v5138 = vshll.u32 %v4859, 16
        %v5140 = vrot.slane %v5138, 5
        %v5141 = vsel %vm1402, %v5136, %v5140
        %v5142 = vshrl.u32 %v4859, 16
        %v5144 = vrot.slane %v5142, 4
        %v5145 = vor.u32 %v5144, %v5140
        %v5146 = vrot.slane %v5145, 4
        %v5148 = vshll.u32 %v4885, 16
        %v5150 = vrot.slane %v5148, 5
        %v5151 = vsel %vm1402, %v5146, %v5150
        %v5153 = vshrl.u32 %v4860, 16
        %v5155 = vrot.slane %v5153, 4
        %v5156 = vshll.u32 %v4860, 16
        %v5158 = vrot.slane %v5156, 5
        %v5159 = vor.u32 %v5155, %v5158
        %v5160 = vrot.slane %v5159, 4
        %v5162 = vshll.u32 %v4861, 16
        %v5164 = vrot.slane %v5162, 5
        %v5165 = vsel %vm1402, %v5160, %v5164
        %v5166 = vshrl.u32 %v4861, 16
        %v5168 = vrot.slane %v5166, 4
        %v5169 = vor.u32 %v5168, %v5164
        %v5170 = vrot.slane %v5169, 4
        %v5172 = vshll.u32 %v4886, 16
        %v5174 = vrot.slane %v5172, 5
        %v5175 = vsel %vm1402, %v5170, %v5174
        %v5177 = vshrl.u32 %v4862, 16
        %v5179 = vrot.slane %v5177, 4
        %v5180 = vshll.u32 %v4862, 16
        %v5182 = vrot.slane %v5180, 5
        %v5183 = vor.u32 %v5179, %v5182
        %v5184 = vrot.slane %v5183, 4
        %v5186 = vshll.u32 %v4863, 16
        %v5188 = vrot.slane %v5186, 5
        %v5189 = vsel %vm1402, %v5184, %v5188
        %v5190 = vshrl.u32 %v4863, 16
        %v5192 = vrot.slane %v5190, 4
        %v5193 = vor.u32 %v5192, %v5188
        %v5194 = vrot.slane %v5193, 4
        %v5196 = vshll.u32 %v4887, 16
        %v5198 = vrot.slane %v5196, 5
        %v5199 = vsel %vm1402, %v5194, %v5198
        %v5201 = vshrl.u32 %v4864, 16
        %v5203 = vrot.slane %v5201, 4
        %v5204 = vshll.u32 %v4864, 16
        %v5206 = vrot.slane %v5204, 5
        %v5207 = vor.u32 %v5203, %v5206
        %v5208 = vrot.slane %v5207, 4
        %v5210 = vshll.u32 %v4865, 16
        %v5212 = vrot.slane %v5210, 5
        %v5213 = vsel %vm1402, %v5208, %v5212
        %v5214 = vshrl.u32 %v4865, 16
        %v5216 = vrot.slane %v5214, 4
        %v5217 = vor.u32 %v5216, %v5212
        %v5218 = vrot.slane %v5217, 4
        %v5220 = vshll.u32 %v4888, 16
        %v5222 = vrot.slane %v5220, 5
        %v5223 = vsel %vm1402, %v5218, %v5222
        %v5225 = vshrl.u32 %v4866, 16
        %v5227 = vrot.slane %v5225, 4
        %v5228 = vshll.u32 %v4866, 16
        %v5230 = vrot.slane %v5228, 5
        %v5231 = vor.u32 %v5227, %v5230
        %v5232 = vrot.slane %v5231, 4
        %v5234 = vshll.u32 %v4867, 16
        %v5236 = vrot.slane %v5234, 5
        %v5237 = vsel %vm1402, %v5232, %v5236
        %v5238 = vshrl.u32 %v4867, 16
        %v5240 = vrot.slane %v5238, 4
        %v5241 = vor.u32 %v5240, %v5236
        %v5242 = vrot.slane %v5241, 4
        %v5244 = vshll.u32 %v4889, 16
        %v5246 = vrot.slane %v5244, 5
        %v5247 = vsel %vm1402, %v5242, %v5246
        %v5249 = vshrl.u32 %v4868, 16
        %v5251 = vrot.slane %v5249, 4
        %v5252 = vshll.u32 %v4868, 16
        %v5254 = vrot.slane %v5252, 5
        %v5255 = vor.u32 %v5251, %v5254
        %v5256 = vrot.slane %v5255, 4
        %v5258 = vshll.u32 %v4869, 16
        %v5260 = vrot.slane %v5258, 5
        %v5261 = vsel %vm1402, %v5256, %v5260
        %v5262 = vshrl.u32 %v4869, 16
        %v5264 = vrot.slane %v5262, 4
        %v5265 = vor.u32 %v5264, %v5260
        %v5266 = vrot.slane %v5265, 4
        %v5268 = vshll.u32 %v4890, 16
        %v5270 = vrot.slane %v5268, 5
        %v5271 = vsel %vm1402, %v5266, %v5270
        %v5273 = vshrl.u32 %v4870, 16
        %v5275 = vrot.slane %v5273, 4
        %v5276 = vshll.u32 %v4870, 16
        %v5278 = vrot.slane %v5276, 5
        %v5279 = vor.u32 %v5275, %v5278
        %v5280 = vrot.slane %v5279, 4
        %v5282 = vshll.u32 %v4871, 16
        %v5284 = vrot.slane %v5282, 5
        %v5285 = vsel %vm1402, %v5280, %v5284
        %v5286 = vshrl.u32 %v4871, 16
        %v5288 = vrot.slane %v5286, 4
        %v5289 = vor.u32 %v5288, %v5284
        %v5290 = vrot.slane %v5289, 4
        %v5292 = vshll.u32 %v4891, 16
        %v5294 = vrot.slane %v5292, 5
        %v5295 = vsel %vm1402, %v5290, %v5294
        %v5344 = vrot.slane %v4894, 5
        %v5345 = vrot.slane %v5344, 4
        %v5346 = vrot.slane %v4841, 5
        %v5347 = vsel %vm1837, %v5345, %v5346
        %v5348 = vrot.slane %v5346, 4
        %v5349 = vrot.slane %v4876, 5
        %v5350 = vsel %vm1837, %v5348, %v5349
        %v5351 = vrot.slane %v4895, 5
        %v5352 = vrot.slane %v5351, 4
        %v5353 = vrot.slane %v4843, 5
        %v5354 = vsel %vm1837, %v5352, %v5353
        %v5355 = vrot.slane %v5353, 4
        %v5356 = vrot.slane %v4877, 5
        %v5357 = vsel %vm1837, %v5355, %v5356
        %v5358 = vrot.slane %v4896, 5
        %v5359 = vrot.slane %v5358, 4
        %v5360 = vrot.slane %v4845, 5
        %v5361 = vsel %vm1837, %v5359, %v5360
        %v5362 = vrot.slane %v5360, 4
        %v5363 = vrot.slane %v4878, 5
        %v5364 = vsel %vm1837, %v5362, %v5363
        %v5365 = vrot.slane %v4897, 5
        %v5366 = vrot.slane %v5365, 4
        %v5367 = vrot.slane %v4847, 5
        %v5368 = vsel %vm1837, %v5366, %v5367
        %v5369 = vrot.slane %v5367, 4
        %v5370 = vrot.slane %v4879, 5
        %v5371 = vsel %vm1837, %v5369, %v5370
        %v5372 = vrot.slane %v4898, 5
        %v5373 = vrot.slane %v5372, 4
        %v5374 = vrot.slane %v4849, 5
        %v5375 = vsel %vm1837, %v5373, %v5374
        %v5376 = vrot.slane %v5374, 4
        %v5377 = vrot.slane %v4880, 5
        %v5378 = vsel %vm1837, %v5376, %v5377
        %v5379 = vrot.slane %v4899, 5
        %v5380 = vrot.slane %v5379, 4
        %v5381 = vrot.slane %v4851, 5
        %v5382 = vsel %vm1837, %v5380, %v5381
        %v5383 = vrot.slane %v5381, 4
        %v5384 = vrot.slane %v4881, 5
        %v5385 = vsel %vm1837, %v5383, %v5384
        %v5386 = vrot.slane %v4900, 5
        %v5387 = vrot.slane %v5386, 4
        %v5388 = vrot.slane %v4853, 5
        %v5389 = vsel %vm1837, %v5387, %v5388
        %v5390 = vrot.slane %v5388, 4
        %v5391 = vrot.slane %v4882, 5
        %v5392 = vsel %vm1837, %v5390, %v5391
        %v5393 = vrot.slane %v4901, 5
        %v5394 = vrot.slane %v5393, 4
        %v5395 = vrot.slane %v4855, 5
        %v5396 = vsel %vm1837, %v5394, %v5395
        %v5397 = vrot.slane %v5395, 4
        %v5398 = vrot.slane %v4883, 5
        %v5399 = vsel %vm1837, %v5397, %v5398
        %v5400 = vrot.slane %v4902, 5
        %v5401 = vrot.slane %v5400, 4
        %v5402 = vrot.slane %v4857, 5
        %v5403 = vsel %vm1837, %v5401, %v5402
        %v5404 = vrot.slane %v5402, 4
        %v5405 = vrot.slane %v4884, 5
        %v5406 = vsel %vm1837, %v5404, %v5405
        %v5407 = vrot.slane %v4903, 5
        %v5408 = vrot.slane %v5407, 4
        %v5409 = vrot.slane %v4859, 5
        %v5410 = vsel %vm1837, %v5408, %v5409
        %v5411 = vrot.slane %v5409, 4
        %v5412 = vrot.slane %v4885, 5
        %v5413 = vsel %vm1837, %v5411, %v5412
        %v5414 = vrot.slane %v4904, 5
        %v5415 = vrot.slane %v5414, 4
        %v5416 = vrot.slane %v4861, 5
        %v5417 = vsel %vm1837, %v5415, %v5416
        %v5418 = vrot.slane %v5416, 4
        %v5419 = vrot.slane %v4886, 5
        %v5420 = vsel %vm1837, %v5418, %v5419
        %v5421 = vrot.slane %v4905, 5
        %v5422 = vrot.slane %v5421, 4
        %v5423 = vrot.slane %v4863, 5
        %v5424 = vsel %vm1837, %v5422, %v5423
        %v5425 = vrot.slane %v5423, 4
        %v5426 = vrot.slane %v4887, 5
        %v5427 = vsel %vm1837, %v5425, %v5426
        %v5428 = vrot.slane %v4906, 5
        %v5429 = vrot.slane %v5428, 4
        %v5430 = vrot.slane %v4865, 5
        %v5431 = vsel %vm1837, %v5429, %v5430
        %v5432 = vrot.slane %v5430, 4
        %v5433 = vrot.slane %v4888, 5
        %v5434 = vsel %vm1837, %v5432, %v5433
        %v5435 = vrot.slane %v4907, 5
        %v5436 = vrot.slane %v5435, 4
        %v5437 = vrot.slane %v4867, 5
        %v5438 = vsel %vm1837, %v5436, %v5437
        %v5439 = vrot.slane %v5437, 4
        %v5440 = vrot.slane %v4889, 5
        %v5441 = vsel %vm1837, %v5439, %v5440
        %v5442 = vrot.slane %v4908, 5
        %v5443 = vrot.slane %v5442, 4
        %v5444 = vrot.slane %v4869, 5
        %v5445 = vsel %vm1837, %v5443, %v5444
        %v5446 = vrot.slane %v5444, 4
        %v5447 = vrot.slane %v4890, 5
        %v5448 = vsel %vm1837, %v5446, %v5447
        %v5449 = vrot.slane %v4909, 5
        %v5450 = vrot.slane %v5449, 4
        %v5451 = vrot.slane %v4871, 5
        %v5452 = vsel %vm1837, %v5450, %v5451
        %v5453 = vrot.slane %v5451, 4
        %v5454 = vrot.slane %v4891, 5
        %v5455 = vsel %vm1837, %v5453, %v5454
        %v5457 = vshrl.u32 %v4872, 16
        %v5459 = vrot.slane %v5457, 4
        %v5460 = vshll.u32 %v4872, 16
        %v5462 = vrot.slane %v5460, 5
        %v5463 = vor.u32 %v5459, %v5462
        %v5464 = vrot.slane %v5463, 4
        %v5466 = vshll.u32 %v4873, 16
        %v5468 = vrot.slane %v5466, 5
        %v5469 = vsel %vm1402, %v5464, %v5468
        %v5470 = vshrl.u32 %v4873, 16
        %v5472 = vrot.slane %v5470, 4
        %v5473 = vor.u32 %v5472, %v5468
        %v5474 = vrot.slane %v5473, 4
        %v5476 = vshll.u32 %v4892, 16
        %v5478 = vrot.slane %v5476, 5
        %v5479 = vsel %vm1402, %v5474, %v5478
        %v5483 = vrot.slane %v4910, 5
        %v5484 = vrot.slane %v5483, 4
        %v5485 = vrot.slane %v4873, 5
        %v5486 = vsel %vm1837, %v5484, %v5485
        %v5487 = vrot.slane %v5485, 4
        %v5488 = vrot.slane %v4892, 5
        %v5489 = vsel %vm1837, %v5487, %v5488
        %v5491 = vshrl.u32 %v4874, 16
        %v5493 = vrot.slane %v5491, 4
        %v5494 = vshll.u32 %v4874, 16
        %v5496 = vrot.slane %v5494, 5
        %v5497 = vor.u32 %v5493, %v5496
        %v5498 = vrot.slane %v5497, 4
        %v5500 = vshll.u32 %v4875, 16
        %v5502 = vrot.slane %v5500, 5
        %v5503 = vsel %vm1402, %v5498, %v5502
        %v5504 = vshrl.u32 %v4875, 16
        %v5506 = vrot.slane %v5504, 4
        %v5507 = vor.u32 %v5506, %v5502
        %v5508 = vrot.slane %v5507, 4
        %v5510 = vshll.u32 %v4893, 16
        %v5512 = vrot.slane %v5510, 5
        %v5513 = vsel %vm1402, %v5508, %v5512
        %v5517 = vrot.slane %v4911, 5
        %v5518 = vrot.slane %v5517, 4
        %v5519 = vrot.slane %v4875, 5
        %v5520 = vsel %vm1837, %v5518, %v5519
        %v5521 = vrot.slane %v5519, 4
        %v5522 = vrot.slane %v4893, 5
        %v5523 = vsel %vm1837, %v5521, %v5522
        %v5540 = vunpack.c.l.b16 %v4840
        %v5541 = vunpack.c.l.b16 %v4841
        %v5542 = vunpack.c.l.b16 %v4842
        %v5543 = vunpack.c.l.b16 %v4843
        %v5544 = vunpack.c.l.b16 %v4844
        %v5545 = vunpack.c.l.b16 %v4845
        %v5546 = vunpack.c.l.b16 %v4846
        %v5547 = vunpack.c.l.b16 %v4847
        %v5548 = vunpack.c.l.b16 %v4848
        %v5549 = vunpack.c.l.b16 %v4849
        %v5550 = vunpack.c.l.b16 %v4850
        %v5551 = vunpack.c.l.b16 %v4851
        %v5552 = vunpack.c.l.b16 %v4852
        %v5553 = vunpack.c.l.b16 %v4853
        %v5554 = vunpack.c.l.b16 %v4854
        %v5555 = vunpack.c.l.b16 %v4855
        %v5556 = vunpack.c.l.b16 %v4856
        %v5557 = vunpack.c.l.b16 %v4857
        %v5558 = vunpack.c.l.b16 %v4858
        %v5559 = vunpack.c.l.b16 %v4859
        %v5560 = vunpack.c.l.b16 %v4860
        %v5561 = vunpack.c.l.b16 %v4861
        %v5562 = vunpack.c.l.b16 %v4862
        %v5563 = vunpack.c.l.b16 %v4863
        %v5564 = vunpack.c.l.b16 %v4864
        %v5565 = vunpack.c.l.b16 %v4865
        %v5566 = vunpack.c.l.b16 %v4866
        %v5567 = vunpack.c.l.b16 %v4867
        %v5568 = vunpack.c.l.b16 %v4868
        %v5569 = vunpack.c.l.b16 %v4869
        %v5570 = vunpack.c.l.b16 %v4870
        %v5571 = vunpack.c.l.b16 %v4871
        %v5572 = vpack.c.b16 %v5541, %v5540
        %v5573 = vpack.c.b16 %v5543, %v5542
        %v5574 = vpack.c.b16 %v5545, %v5544
        %v5575 = vpack.c.b16 %v5547, %v5546
        %v5576 = vpack.c.b16 %v5549, %v5548
        %v5577 = vpack.c.b16 %v5551, %v5550
        %v5578 = vpack.c.b16 %v5553, %v5552
        %v5579 = vpack.c.b16 %v5555, %v5554
        %v5580 = vpack.c.b16 %v5557, %v5556
        %v5581 = vpack.c.b16 %v5559, %v5558
        %v5582 = vpack.c.b16 %v5561, %v5560
        %v5583 = vpack.c.b16 %v5563, %v5562
        %v5584 = vpack.c.b16 %v5565, %v5564
        %v5585 = vpack.c.b16 %v5567, %v5566
        %v5586 = vpack.c.b16 %v5569, %v5568
        %v5587 = vpack.c.b16 %v5571, %v5570
        %v5604 = vunpack.c.l.b16 %v4925
        %v5605 = vunpack.c.l.b16 %v4935
        %v5606 = vunpack.c.l.b16 %v4949
        %v5607 = vunpack.c.l.b16 %v4959
        %v5608 = vunpack.c.l.b16 %v4973
        %v5609 = vunpack.c.l.b16 %v4983
        %v5610 = vunpack.c.l.b16 %v4997
        %v5611 = vunpack.c.l.b16 %v5007
        %v5612 = vunpack.c.l.b16 %v5021
        %v5613 = vunpack.c.l.b16 %v5031
        %v5614 = vunpack.c.l.b16 %v5045
        %v5615 = vunpack.c.l.b16 %v5055
        %v5616 = vunpack.c.l.b16 %v5069
        %v5617 = vunpack.c.l.b16 %v5079
        %v5618 = vunpack.c.l.b16 %v5093
        %v5619 = vunpack.c.l.b16 %v5103
        %v5620 = vunpack.c.l.b16 %v5117
        %v5621 = vunpack.c.l.b16 %v5127
        %v5622 = vunpack.c.l.b16 %v5141
        %v5623 = vunpack.c.l.b16 %v5151
        %v5624 = vunpack.c.l.b16 %v5165
        %v5625 = vunpack.c.l.b16 %v5175
        %v5626 = vunpack.c.l.b16 %v5189
        %v5627 = vunpack.c.l.b16 %v5199
        %v5628 = vunpack.c.l.b16 %v5213
        %v5629 = vunpack.c.l.b16 %v5223
        %v5630 = vunpack.c.l.b16 %v5237
        %v5631 = vunpack.c.l.b16 %v5247
        %v5632 = vunpack.c.l.b16 %v5261
        %v5633 = vunpack.c.l.b16 %v5271
        %v5634 = vunpack.c.l.b16 %v5285
        %v5635 = vunpack.c.l.b16 %v5295
        %v5636 = vpack.c.b16 %v5605, %v5604
        %v5637 = vpack.c.b16 %v5607, %v5606
        %v5638 = vpack.c.b16 %v5609, %v5608
        %v5639 = vpack.c.b16 %v5611, %v5610
        %v5640 = vpack.c.b16 %v5613, %v5612
        %v5641 = vpack.c.b16 %v5615, %v5614
        %v5642 = vpack.c.b16 %v5617, %v5616
        %v5643 = vpack.c.b16 %v5619, %v5618
        %v5644 = vpack.c.b16 %v5621, %v5620
        %v5645 = vpack.c.b16 %v5623, %v5622
        %v5646 = vpack.c.b16 %v5625, %v5624
        %v5647 = vpack.c.b16 %v5627, %v5626
        %v5648 = vpack.c.b16 %v5629, %v5628
        %v5649 = vpack.c.b16 %v5631, %v5630
        %v5650 = vpack.c.b16 %v5633, %v5632
        %v5651 = vpack.c.b16 %v5635, %v5634
        %v5668 = vunpack.c.l.b16 %v5347
        %v5669 = vunpack.c.l.b16 %v5350
        %v5670 = vunpack.c.l.b16 %v5354
        %v5671 = vunpack.c.l.b16 %v5357
        %v5672 = vunpack.c.l.b16 %v5361
        %v5673 = vunpack.c.l.b16 %v5364
        %v5674 = vunpack.c.l.b16 %v5368
        %v5675 = vunpack.c.l.b16 %v5371
        %v5676 = vunpack.c.l.b16 %v5375
        %v5677 = vunpack.c.l.b16 %v5378
        %v5678 = vunpack.c.l.b16 %v5382
        %v5679 = vunpack.c.l.b16 %v5385
        %v5680 = vunpack.c.l.b16 %v5389
        %v5681 = vunpack.c.l.b16 %v5392
        %v5682 = vunpack.c.l.b16 %v5396
        %v5683 = vunpack.c.l.b16 %v5399
        %v5684 = vunpack.c.l.b16 %v5403
        %v5685 = vunpack.c.l.b16 %v5406
        %v5686 = vunpack.c.l.b16 %v5410
        %v5687 = vunpack.c.l.b16 %v5413
        %v5688 = vunpack.c.l.b16 %v5417
        %v5689 = vunpack.c.l.b16 %v5420
        %v5690 = vunpack.c.l.b16 %v5424
        %v5691 = vunpack.c.l.b16 %v5427
        %v5692 = vunpack.c.l.b16 %v5431
        %v5693 = vunpack.c.l.b16 %v5434
        %v5694 = vunpack.c.l.b16 %v5438
        %v5695 = vunpack.c.l.b16 %v5441
        %v5696 = vunpack.c.l.b16 %v5445
        %v5697 = vunpack.c.l.b16 %v5448
        %v5698 = vunpack.c.l.b16 %v5452
        %v5699 = vunpack.c.l.b16 %v5455
        %v5700 = vpack.c.b16 %v5669, %v5668
        %v5701 = vpack.c.b16 %v5671, %v5670
        %v5702 = vpack.c.b16 %v5673, %v5672
        %v5703 = vpack.c.b16 %v5675, %v5674
        %v5704 = vpack.c.b16 %v5677, %v5676
        %v5705 = vpack.c.b16 %v5679, %v5678
        %v5706 = vpack.c.b16 %v5681, %v5680
        %v5707 = vpack.c.b16 %v5683, %v5682
        %v5708 = vpack.c.b16 %v5685, %v5684
        %v5709 = vpack.c.b16 %v5687, %v5686
        %v5710 = vpack.c.b16 %v5689, %v5688
        %v5711 = vpack.c.b16 %v5691, %v5690
        %v5712 = vpack.c.b16 %v5693, %v5692
        %v5713 = vpack.c.b16 %v5695, %v5694
        %v5714 = vpack.c.b16 %v5697, %v5696
        %v5715 = vpack.c.b16 %v5699, %v5698
        %v5733 = vunpack.c.l.b16 %v4872
        %v5734 = vunpack.c.l.b16 %v4873
        %v5735 = vpack.c.b16 %v5734, %v5733
        %v5737 = vunpack.c.l.b16 %v5469
        %v5738 = vunpack.c.l.b16 %v5479
        %v5739 = vpack.c.b16 %v5738, %v5737
        %v5741 = vunpack.c.l.b16 %v5486
        %v5742 = vunpack.c.l.b16 %v5489
        %v5743 = vpack.c.b16 %v5742, %v5741
        %v5746 = vunpack.c.l.b16 %v4874
        %v5747 = vunpack.c.l.b16 %v4875
        %v5748 = vpack.c.b16 %v5747, %v5746
        %v5750 = vunpack.c.l.b16 %v5503
        %v5751 = vunpack.c.l.b16 %v5513
        %v5752 = vpack.c.b16 %v5751, %v5750
        %v5754 = vunpack.c.l.b16 %v5520
        %v5755 = vunpack.c.l.b16 %v5523
        %v5756 = vpack.c.b16 %v5755, %v5754
        %v5758 = vld [vmem:[#allocation8] sm:$0xf]
        %v5759 = vld [vmem:[#allocation8 + $0x4] sm:$0xf]
        %v5760 = vld [vmem:[#allocation8 + $0x8] sm:$0xf]
        %v5761 = vld [vmem:[#allocation8 + $0xc] sm:$0xf]
        %v5762 = vld [vmem:[#allocation8 + $0x10] sm:$0xf]
        %v5763 = vld [vmem:[#allocation8 + $0x14] sm:$0xf]
        %v5764 = vld [vmem:[#allocation8 + $0x18] sm:$0xf]
        %v5765 = vld [vmem:[#allocation8 + $0x1c] sm:$0xf]
        %v5766 = vld [vmem:[#allocation8 + $0x20] sm:$0xf]
        %v5767 = vld [vmem:[#allocation8 + $0x24] sm:$0xf]
        %v5768 = vld [vmem:[#allocation8 + $0x28] sm:$0xf]
        %v5769 = vld [vmem:[#allocation8 + $0x2c] sm:$0xf]
        %v5770 = vld [vmem:[#allocation8 + $0x30] sm:$0xf]
        %v5771 = vld [vmem:[#allocation8 + $0x34] sm:$0xf]
        %v5772 = vld [vmem:[#allocation8 + $0x38] sm:$0xf]
        %v5773 = vld [vmem:[#allocation8 + $0x3c] sm:$0xf]
        %v5774 = vld [vmem:[#allocation8 + $0x40] sm:$0xf]
        %v5775 = vld [vmem:[#allocation8 + $0x44] sm:$0xf]
        %v5776 = vld [vmem:[#allocation8 + $0x48] sm:$0xf]
        %v5777 = vld [vmem:[#allocation8 + $0x4c] sm:$0xf]
        %v5778 = vld [vmem:[#allocation8 + $0x50] sm:$0xf]
        %v5779 = vld [vmem:[#allocation8 + $0x54] sm:$0xf]
        %v5780 = vld [vmem:[#allocation8 + $0x58] sm:$0xf]
        %v5781 = vld [vmem:[#allocation8 + $0x5c] sm:$0xf]
        %v5782 = vld [vmem:[#allocation8 + $0x60] sm:$0xf]
        %v5783 = vld [vmem:[#allocation8 + $0x64] sm:$0xf]
        %v5784 = vld [vmem:[#allocation8 + $0x68] sm:$0xf]
        %v5785 = vld [vmem:[#allocation8 + $0x6c] sm:$0xf]
        %v5786 = vld [vmem:[#allocation8 + $0x70] sm:$0xf]
        %v5787 = vld [vmem:[#allocation8 + $0x74] sm:$0xf]
        %v5788 = vld [vmem:[#allocation8 + $0x78] sm:$0xf]
        %v5789 = vld [vmem:[#allocation8 + $0x7c] sm:$0xf]
        %v5790 = vld [vmem:[#allocation8 + $0x80] sm:$0xf]
        %v5791 = vld [vmem:[#allocation8 + $0x84] sm:$0xf]
        %v5792 = vld [vmem:[#allocation8 + $0x88] sm:$0xf]
        %v5793 = vld [vmem:[#allocation8 + $0x8c] sm:$0xf]
        %v5794 = vld [vmem:[#allocation8 + $0x90] sm:$0xf]
        %v5795 = vld [vmem:[#allocation8 + $0x94] sm:$0xf]
        %v5796 = vld [vmem:[#allocation8 + $0x98] sm:$0xf]
        %v5797 = vld [vmem:[#allocation8 + $0x9c] sm:$0xf]
        %v5798 = vld [vmem:[#allocation8 + $0xa0] sm:$0xf]
        %v5799 = vld [vmem:[#allocation8 + $0xa4] sm:$0xf]
        %v5800 = vld [vmem:[#allocation8 + $0xa8] sm:$0xf]
        %v5801 = vld [vmem:[#allocation8 + $0xac] sm:$0xf]
        %v5802 = vld [vmem:[#allocation8 + $0xb0] sm:$0xf]
        %v5803 = vld [vmem:[#allocation8 + $0xb4] sm:$0xf]
        %v5804 = vld [vmem:[#allocation8 + $0xb8] sm:$0xf]
        %v5805 = vld [vmem:[#allocation8 + $0xbc] sm:$0xf]
        %v5806 = vld [vmem:[#allocation8 + $0xc0] sm:$0xf]
        %v5807 = vld [vmem:[#allocation8 + $0xc4] sm:$0xf]
        %v5808 = vld [vmem:[#allocation8 + $0xc8] sm:$0xf]
        %v5809 = vld [vmem:[#allocation8 + $0xcc] sm:$0xf]
        %v5810 = vld [vmem:[#allocation8 + $0xd0] sm:$0xf]
        %v5811 = vld [vmem:[#allocation8 + $0xd4] sm:$0xf]
        %v5812 = vld [vmem:[#allocation8 + $0xd8] sm:$0xf]
        %v5813 = vld [vmem:[#allocation8 + $0xdc] sm:$0xf]
        %v5814 = vld [vmem:[#allocation8 + $0xe0] sm:$0xf]
        %v5815 = vld [vmem:[#allocation8 + $0xe4] sm:$0xf]
        %v5816 = vld [vmem:[#allocation8 + $0xe8] sm:$0xf]
        %v5817 = vld [vmem:[#allocation8 + $0xec] sm:$0xf]
        %v5818 = vld [vmem:[#allocation8 + $0xf0] sm:$0xf]
        %v5819 = vld [vmem:[#allocation8 + $0xf4] sm:$0xf]
        %v5820 = vld [vmem:[#allocation8 + $0xf8] sm:$0xf]
        %v5821 = vld [vmem:[#allocation8 + $0xfc] sm:$0xf]
        %v5822 = vld [vmem:[#allocation8 + $0x100] sm:$0xf]
        %v5823 = vld [vmem:[#allocation8 + $0x104] sm:$0xf]
        %v5824 = vld [vmem:[#allocation8 + $0x108] sm:$0xf]
        %v5825 = vld [vmem:[#allocation8 + $0x10c] sm:$0xf]
        %v5826 = vld [vmem:[#allocation8 + $0x110] sm:$0xf]
        %v5827 = vld [vmem:[#allocation8 + $0x114] sm:$0xf]
        %v5828 = vld [vmem:[#allocation8 + $0x118] sm:$0xf]
        %v5829 = vld [vmem:[#allocation8 + $0x11c] sm:$0xf]
        %v5830 = vld [vmem:[#allocation8 + $0x120] sm:$0xf]
        %v5831 = vld [vmem:[#allocation8 + $0x124] sm:$0xf]
        %v5832 = vld [vmem:[#allocation8 + $0x128] sm:$0xf]
        %v5833 = vld [vmem:[#allocation8 + $0x12c] sm:$0xf]
        %v5834 = vld [vmem:[#allocation8 + $0x130] sm:$0xf]
        %v5835 = vld [vmem:[#allocation8 + $0x134] sm:$0xf]
        %v5836 = vld [vmem:[#allocation8 + $0x138] sm:$0xf]
        %v5837 = vld [vmem:[#allocation8 + $0x13c] sm:$0xf]
        %v5838 = vld [vmem:[#allocation8 + $0x140] sm:$0xf]
        %v5839 = vld [vmem:[#allocation8 + $0x144] sm:$0xf]
        %v5840 = vld [vmem:[#allocation8 + $0x148] sm:$0xf]
        %v5841 = vld [vmem:[#allocation8 + $0x14c] sm:$0xf]
        %v5842 = vld [vmem:[#allocation8 + $0x150] sm:$0xf]
        %v5843 = vld [vmem:[#allocation8 + $0x154] sm:$0xf]
        %v5844 = vld [vmem:[#allocation8 + $0x158] sm:$0xf]
        %v5845 = vld [vmem:[#allocation8 + $0x15c] sm:$0xf]
        %v5846 = vld [vmem:[#allocation8 + $0x160] sm:$0xf]
        %v5847 = vld [vmem:[#allocation8 + $0x164] sm:$0xf]
        %v5848 = vld [vmem:[#allocation8 + $0x168] sm:$0xf]
        %v5849 = vld [vmem:[#allocation8 + $0x16c] sm:$0xf]
        %v5850 = vld [vmem:[#allocation8 + $0x170] sm:$0xf]
        %v5851 = vld [vmem:[#allocation8 + $0x174] sm:$0xf]
        %v5852 = vld [vmem:[#allocation8 + $0x178] sm:$0xf]
        %v5853 = vld [vmem:[#allocation8 + $0x17c] sm:$0xf]
        %v5854 = vld [vmem:[#allocation8 + $0x180] sm:$0xf]
        %v5855 = vld [vmem:[#allocation8 + $0x184] sm:$0xf]
        %v5856 = vld [vmem:[#allocation8 + $0x188] sm:$0xf]
        %v5857 = vld [vmem:[#allocation8 + $0x18c] sm:$0xf]
        %v5858 = vld [vmem:[#allocation8 + $0x190] sm:$0xf]
        %v5859 = vld [vmem:[#allocation8 + $0x194] sm:$0xf]
        %v5860 = vld [vmem:[#allocation8 + $0x198] sm:$0xf]
        %v5861 = vld [vmem:[#allocation8 + $0x19c] sm:$0xf]
        %v5862 = vld [vmem:[#allocation8 + $0x1a0] sm:$0xf]
        %v5863 = vld [vmem:[#allocation8 + $0x1a4] sm:$0xf]
        %v5864 = vld [vmem:[#allocation8 + $0x1a8] sm:$0xf]
        %v5865 = vld [vmem:[#allocation8 + $0x1ac] sm:$0xf]
        %v5866 = vld [vmem:[#allocation8 + $0x1b0] sm:$0xf]
        %v5867 = vld [vmem:[#allocation8 + $0x1b4] sm:$0xf]
        %v5868 = vld [vmem:[#allocation8 + $0x1b8] sm:$0xf]
        %v5869 = vld [vmem:[#allocation8 + $0x1bc] sm:$0xf]
        %v5870 = vld [vmem:[#allocation8 + $0x1c0] sm:$0xf]
        %v5871 = vld [vmem:[#allocation8 + $0x1c4] sm:$0xf]
        %v5872 = vld [vmem:[#allocation8 + $0x1c8] sm:$0xf]
        %v5873 = vld [vmem:[#allocation8 + $0x1cc] sm:$0xf]
        %v5874 = vld [vmem:[#allocation8 + $0x1d0] sm:$0xf]
        %v5875 = vld [vmem:[#allocation8 + $0x1d4] sm:$0xf]
        %v5876 = vld [vmem:[#allocation8 + $0x1d8] sm:$0xf]
        %v5877 = vld [vmem:[#allocation8 + $0x1dc] sm:$0xf]
        %v5878 = vld [vmem:[#allocation8 + $0x1e0] sm:$0xf]
        %v5879 = vld [vmem:[#allocation8 + $0x1e4] sm:$0xf]
        %v5880 = vld [vmem:[#allocation8 + $0x1e8] sm:$0xf]
        %v5881 = vld [vmem:[#allocation8 + $0x1ec] sm:$0xf]
        %v5882 = vld [vmem:[#allocation8 + $0x1f0] sm:$0xf]
        %v5883 = vld [vmem:[#allocation8 + $0x1f4] sm:$0xf]
        %v5884 = vld [vmem:[#allocation8 + $0x1f8] sm:$0xf]
        %v5885 = vld [vmem:[#allocation8 + $0x1fc] sm:$0xf]
        %v5886 = vld [vmem:[#allocation8 + $0x200] sm:$0xf]
        %v5887 = vld [vmem:[#allocation8 + $0x204] sm:$0xf]
        %v5888 = vld [vmem:[#allocation8 + $0x208] sm:$0xf]
        %v5889 = vld [vmem:[#allocation8 + $0x20c] sm:$0xf]
        %v5890 = vld [vmem:[#allocation8 + $0x210] sm:$0xf]
        %v5891 = vld [vmem:[#allocation8 + $0x214] sm:$0xf]
        %v5892 = vld [vmem:[#allocation8 + $0x218] sm:$0xf]
        %v5893 = vld [vmem:[#allocation8 + $0x21c] sm:$0xf]
        %v5894 = vld [vmem:[#allocation8 + $0x220] sm:$0xf]
        %v5895 = vld [vmem:[#allocation8 + $0x224] sm:$0xf]
        %v5896 = vld [vmem:[#allocation8 + $0x228] sm:$0xf]
        %v5897 = vld [vmem:[#allocation8 + $0x22c] sm:$0xf]
        %v5898 = vld [vmem:[#allocation8 + $0x230] sm:$0xf]
        %v5899 = vld [vmem:[#allocation8 + $0x234] sm:$0xf]
        %v5900 = vld [vmem:[#allocation8 + $0x238] sm:$0xf]
        %v5901 = vld [vmem:[#allocation8 + $0x23c] sm:$0xf]
        %v6046 = vunpack.c.l.b16 %v5758
        %v6047 = vunpack.c.l.b16 %v5759
        %v6048 = vunpack.c.l.b16 %v5760
        %v6049 = vunpack.c.l.b16 %v5761
        %v6050 = vunpack.c.l.b16 %v5762
        %v6051 = vunpack.c.l.b16 %v5763
        %v6052 = vunpack.c.l.b16 %v5764
        %v6053 = vunpack.c.l.b16 %v5765
        %v6054 = vunpack.c.l.b16 %v5766
        %v6055 = vunpack.c.l.b16 %v5767
        %v6056 = vunpack.c.l.b16 %v5768
        %v6057 = vunpack.c.l.b16 %v5769
        %v6058 = vunpack.c.l.b16 %v5770
        %v6059 = vunpack.c.l.b16 %v5771
        %v6060 = vunpack.c.l.b16 %v5772
        %v6061 = vunpack.c.l.b16 %v5773
        %v6062 = vunpack.c.l.b16 %v5774
        %v6063 = vunpack.c.l.b16 %v5775
        %v6064 = vunpack.c.l.b16 %v5776
        %v6065 = vunpack.c.l.b16 %v5777
        %v6066 = vunpack.c.l.b16 %v5778
        %v6067 = vunpack.c.l.b16 %v5779
        %v6068 = vunpack.c.l.b16 %v5780
        %v6069 = vunpack.c.l.b16 %v5781
        %v6070 = vunpack.c.l.b16 %v5782
        %v6071 = vunpack.c.l.b16 %v5783
        %v6072 = vunpack.c.l.b16 %v5784
        %v6073 = vunpack.c.l.b16 %v5785
        %v6074 = vunpack.c.l.b16 %v5786
        %v6075 = vunpack.c.l.b16 %v5787
        %v6076 = vunpack.c.l.b16 %v5788
        %v6077 = vunpack.c.l.b16 %v5789
        %v6078 = vunpack.c.l.b16 %v5790
        %v6079 = vunpack.c.l.b16 %v5791
        %v6080 = vunpack.c.l.b16 %v5792
        %v6081 = vunpack.c.l.b16 %v5793
        %v6082 = vunpack.c.l.b16 %v5794
        %v6083 = vunpack.c.l.b16 %v5795
        %v6084 = vunpack.c.l.b16 %v5796
        %v6085 = vunpack.c.l.b16 %v5797
        %v6086 = vunpack.c.l.b16 %v5798
        %v6087 = vunpack.c.l.b16 %v5799
        %v6088 = vunpack.c.l.b16 %v5800
        %v6089 = vunpack.c.l.b16 %v5801
        %v6090 = vunpack.c.l.b16 %v5802
        %v6091 = vunpack.c.l.b16 %v5803
        %v6092 = vunpack.c.l.b16 %v5804
        %v6093 = vunpack.c.l.b16 %v5805
        %v6094 = vunpack.c.l.b16 %v5806
        %v6095 = vunpack.c.l.b16 %v5807
        %v6096 = vunpack.c.l.b16 %v5808
        %v6097 = vunpack.c.l.b16 %v5809
        %v6098 = vunpack.c.l.b16 %v5810
        %v6099 = vunpack.c.l.b16 %v5811
        %v6100 = vunpack.c.l.b16 %v5812
        %v6101 = vunpack.c.l.b16 %v5813
        %v6102 = vunpack.c.l.b16 %v5814
        %v6103 = vunpack.c.l.b16 %v5815
        %v6104 = vunpack.c.l.b16 %v5816
        %v6105 = vunpack.c.l.b16 %v5817
        %v6106 = vunpack.c.l.b16 %v5818
        %v6107 = vunpack.c.l.b16 %v5819
        %v6108 = vunpack.c.l.b16 %v5820
        %v6109 = vunpack.c.l.b16 %v5821
        %v6110 = vunpack.c.l.b16 %v5822
        %v6111 = vunpack.c.l.b16 %v5823
        %v6112 = vunpack.c.l.b16 %v5824
        %v6113 = vunpack.c.l.b16 %v5825
        %v6114 = vunpack.c.l.b16 %v5826
        %v6115 = vunpack.c.l.b16 %v5827
        %v6116 = vunpack.c.l.b16 %v5828
        %v6117 = vunpack.c.l.b16 %v5829
        %v6118 = vunpack.c.l.b16 %v5830
        %v6119 = vunpack.c.l.b16 %v5831
        %v6120 = vunpack.c.l.b16 %v5832
        %v6121 = vunpack.c.l.b16 %v5833
        %v6122 = vunpack.c.l.b16 %v5834
        %v6123 = vunpack.c.l.b16 %v5835
        %v6124 = vunpack.c.l.b16 %v5836
        %v6125 = vunpack.c.l.b16 %v5837
        %v6126 = vunpack.c.l.b16 %v5838
        %v6127 = vunpack.c.l.b16 %v5839
        %v6128 = vunpack.c.l.b16 %v5840
        %v6129 = vunpack.c.l.b16 %v5841
        %v6130 = vunpack.c.l.b16 %v5842
        %v6131 = vunpack.c.l.b16 %v5843
        %v6132 = vunpack.c.l.b16 %v5844
        %v6133 = vunpack.c.l.b16 %v5845
        %v6134 = vunpack.c.l.b16 %v5846
        %v6135 = vunpack.c.l.b16 %v5847
        %v6136 = vunpack.c.l.b16 %v5848
        %v6137 = vunpack.c.l.b16 %v5849
        %v6138 = vunpack.c.l.b16 %v5850
        %v6139 = vunpack.c.l.b16 %v5851
        %v6140 = vunpack.c.l.b16 %v5852
        %v6141 = vunpack.c.l.b16 %v5853
        %v6142 = vunpack.c.l.b16 %v5854
        %v6143 = vunpack.c.l.b16 %v5855
        %v6144 = vunpack.c.l.b16 %v5856
        %v6145 = vunpack.c.l.b16 %v5857
        %v6146 = vunpack.c.l.b16 %v5858
        %v6147 = vunpack.c.l.b16 %v5859
        %v6148 = vunpack.c.l.b16 %v5860
        %v6149 = vunpack.c.l.b16 %v5861
        %v6150 = vunpack.c.l.b16 %v5862
        %v6151 = vunpack.c.l.b16 %v5863
        %v6152 = vunpack.c.l.b16 %v5864
        %v6153 = vunpack.c.l.b16 %v5865
        %v6154 = vunpack.c.l.b16 %v5866
        %v6155 = vunpack.c.l.b16 %v5867
        %v6156 = vunpack.c.l.b16 %v5868
        %v6157 = vunpack.c.l.b16 %v5869
        %v6158 = vunpack.c.l.b16 %v5870
        %v6159 = vunpack.c.l.b16 %v5871
        %v6160 = vunpack.c.l.b16 %v5872
        %v6161 = vunpack.c.l.b16 %v5873
        %v6162 = vunpack.c.l.b16 %v5874
        %v6163 = vunpack.c.l.b16 %v5875
        %v6164 = vunpack.c.l.b16 %v5876
        %v6165 = vunpack.c.l.b16 %v5877
        %v6166 = vunpack.c.l.b16 %v5878
        %v6167 = vunpack.c.l.b16 %v5879
        %v6168 = vunpack.c.l.b16 %v5880
        %v6169 = vunpack.c.l.b16 %v5881
        %v6170 = vunpack.c.l.b16 %v5882
        %v6171 = vunpack.c.l.b16 %v5883
        %v6172 = vunpack.c.l.b16 %v5884
        %v6173 = vunpack.c.l.b16 %v5885
        %v6174 = vunpack.c.l.b16 %v5886
        %v6175 = vunpack.c.l.b16 %v5887
        %v6176 = vunpack.c.l.b16 %v5888
        %v6177 = vunpack.c.l.b16 %v5889
        %v6178 = vunpack.c.l.b16 %v5890
        %v6179 = vunpack.c.l.b16 %v5891
        %v6180 = vunpack.c.l.b16 %v5892
        %v6181 = vunpack.c.l.b16 %v5893
        %v6182 = vunpack.c.l.b16 %v5894
        %v6183 = vunpack.c.l.b16 %v5895
        %v6184 = vunpack.c.l.b16 %v5896
        %v6185 = vunpack.c.l.b16 %v5897
        %v6186 = vunpack.c.l.b16 %v5898
        %v6187 = vunpack.c.l.b16 %v5899
        %v6188 = vunpack.c.l.b16 %v5900
        %v6189 = vunpack.c.l.b16 %v5901
        %v6190 = vpack.c.b16 %v6047, %v6046
        %v6191 = vpack.c.b16 %v6049, %v6048
        %v6192 = vpack.c.b16 %v6051, %v6050
        %v6193 = vpack.c.b16 %v6053, %v6052
        %v6194 = vpack.c.b16 %v6055, %v6054
        %v6195 = vpack.c.b16 %v6057, %v6056
        %v6196 = vpack.c.b16 %v6059, %v6058
        %v6197 = vpack.c.b16 %v6061, %v6060
        %v6198 = vpack.c.b16 %v6063, %v6062
        %v6199 = vpack.c.b16 %v6065, %v6064
        %v6200 = vpack.c.b16 %v6067, %v6066
        %v6201 = vpack.c.b16 %v6069, %v6068
        %v6202 = vpack.c.b16 %v6071, %v6070
        %v6203 = vpack.c.b16 %v6073, %v6072
        %v6204 = vpack.c.b16 %v6075, %v6074
        %v6205 = vpack.c.b16 %v6077, %v6076
        %v6206 = vpack.c.b16 %v6079, %v6078
        %v6207 = vpack.c.b16 %v6081, %v6080
        %v6208 = vpack.c.b16 %v6083, %v6082
        %v6209 = vpack.c.b16 %v6085, %v6084
        %v6210 = vpack.c.b16 %v6087, %v6086
        %v6211 = vpack.c.b16 %v6089, %v6088
        %v6212 = vpack.c.b16 %v6091, %v6090
        %v6213 = vpack.c.b16 %v6093, %v6092
        %v6214 = vpack.c.b16 %v6095, %v6094
        %v6215 = vpack.c.b16 %v6097, %v6096
        %v6216 = vpack.c.b16 %v6099, %v6098
        %v6217 = vpack.c.b16 %v6101, %v6100
        %v6218 = vpack.c.b16 %v6103, %v6102
        %v6219 = vpack.c.b16 %v6105, %v6104
        %v6220 = vpack.c.b16 %v6107, %v6106
        %v6221 = vpack.c.b16 %v6109, %v6108
        %v6222 = vpack.c.b16 %v6111, %v6110
        %v6223 = vpack.c.b16 %v6113, %v6112
        %v6224 = vpack.c.b16 %v6115, %v6114
        %v6225 = vpack.c.b16 %v6117, %v6116
        %v6226 = vpack.c.b16 %v6119, %v6118
        %v6227 = vpack.c.b16 %v6121, %v6120
        %v6228 = vpack.c.b16 %v6123, %v6122
        %v6229 = vpack.c.b16 %v6125, %v6124
        %v6230 = vpack.c.b16 %v6127, %v6126
        %v6231 = vpack.c.b16 %v6129, %v6128
        %v6232 = vpack.c.b16 %v6131, %v6130
        %v6233 = vpack.c.b16 %v6133, %v6132
        %v6234 = vpack.c.b16 %v6135, %v6134
        %v6235 = vpack.c.b16 %v6137, %v6136
        %v6236 = vpack.c.b16 %v6139, %v6138
        %v6237 = vpack.c.b16 %v6141, %v6140
        %v6238 = vpack.c.b16 %v6143, %v6142
        %v6239 = vpack.c.b16 %v6145, %v6144
        %v6240 = vpack.c.b16 %v6147, %v6146
        %v6241 = vpack.c.b16 %v6149, %v6148
        %v6242 = vpack.c.b16 %v6151, %v6150
        %v6243 = vpack.c.b16 %v6153, %v6152
        %v6244 = vpack.c.b16 %v6155, %v6154
        %v6245 = vpack.c.b16 %v6157, %v6156
        %v6246 = vpack.c.b16 %v6159, %v6158
        %v6247 = vpack.c.b16 %v6161, %v6160
        %v6248 = vpack.c.b16 %v6163, %v6162
        %v6249 = vpack.c.b16 %v6165, %v6164
        %v6250 = vpack.c.b16 %v6167, %v6166
        %v6251 = vpack.c.b16 %v6169, %v6168
        %v6252 = vpack.c.b16 %v6171, %v6170
        %v6253 = vpack.c.b16 %v6173, %v6172
        %v6254 = vpack.c.b16 %v6175, %v6174
        %v6255 = vpack.c.b16 %v6177, %v6176
        %v6256 = vpack.c.b16 %v6179, %v6178
        %v6257 = vpack.c.b16 %v6181, %v6180
        %v6258 = vpack.c.b16 %v6183, %v6182
        %v6259 = vpack.c.b16 %v6185, %v6184
        %v6260 = vpack.c.b16 %v6187, %v6186
        %v6261 = vpack.c.b16 %v6189, %v6188
        %6334 = vmatpush.bf16.msra.mxu0 %v6197
        %6335 = vmatpush.bf16.msra.mxu0 %v6196
        %6336 = vmatpush.bf16.msra.mxu0 %v6195
        %6337 = vmatpush.bf16.msra.mxu0 %v6194
        %6338 = vmatpush.bf16.msra.mxu0 %v6193
        %6339 = vmatpush.bf16.msra.mxu0 %v6192
        %6340 = vmatpush.bf16.msra.mxu0 %v6191
        %6341 = vmatpush.bf16.msra.mxu0 %v6190
        %6342 = vmatmul.bf16.gmra.mxu0 %v5572
        %v6343 = vpop.f32.mrf.mxu0
        %v6344 = vadd.f32 0.0, %v6343
        %v6345 = vpop.f32.mrf.mxu0
        %v6346 = vadd.f32 0.0, %v6345
        %6347 = vmatmul.bf16.gmra.mxu0 %v5573
        %v6348 = vpop.f32.mrf.mxu0
        %v6349 = vadd.f32 0.0, %v6348
        %v6350 = vpop.f32.mrf.mxu0
        %v6351 = vadd.f32 0.0, %v6350
        %6352 = vmatmul.bf16.gmra.mxu0 %v5574
        %v6353 = vpop.f32.mrf.mxu0
        %v6354 = vadd.f32 0.0, %v6353
        %v6355 = vpop.f32.mrf.mxu0
        %v6356 = vadd.f32 0.0, %v6355
        %6357 = vmatmul.bf16.gmra.mxu0 %v5575
        %v6358 = vpop.f32.mrf.mxu0
        %v6359 = vadd.f32 0.0, %v6358
        %v6360 = vpop.f32.mrf.mxu0
        %v6361 = vadd.f32 0.0, %v6360
        %6362 = vmatmul.bf16.gmra.mxu0 %v5576
        %v6363 = vpop.f32.mrf.mxu0
        %v6364 = vadd.f32 0.0, %v6363
        %v6365 = vpop.f32.mrf.mxu0
        %v6366 = vadd.f32 0.0, %v6365
        %6367 = vmatmul.bf16.gmra.mxu0 %v5577
        %v6368 = vpop.f32.mrf.mxu0
        %v6369 = vadd.f32 0.0, %v6368
        %v6370 = vpop.f32.mrf.mxu0
        %v6371 = vadd.f32 0.0, %v6370
        %6372 = vmatmul.bf16.gmra.mxu0 %v5578
        %v6373 = vpop.f32.mrf.mxu0
        %v6374 = vadd.f32 0.0, %v6373
        %v6375 = vpop.f32.mrf.mxu0
        %v6376 = vadd.f32 0.0, %v6375
        %6377 = vmatmul.bf16.gmra.mxu0 %v5579
        %v6378 = vpop.f32.mrf.mxu0
        %v6379 = vadd.f32 0.0, %v6378
        %v6380 = vpop.f32.mrf.mxu0
        %v6381 = vadd.f32 0.0, %v6380
        %6382 = vmatmul.bf16.gmra.mxu0 %v5580
        %v6383 = vpop.f32.mrf.mxu0
        %v6384 = vadd.f32 0.0, %v6383
        %v6385 = vpop.f32.mrf.mxu0
        %v6386 = vadd.f32 0.0, %v6385
        %6387 = vmatmul.bf16.gmra.mxu0 %v5581
        %v6388 = vpop.f32.mrf.mxu0
        %v6389 = vadd.f32 0.0, %v6388
        %v6390 = vpop.f32.mrf.mxu0
        %v6391 = vadd.f32 0.0, %v6390
        %6392 = vmatmul.bf16.gmra.mxu0 %v5582
        %v6393 = vpop.f32.mrf.mxu0
        %v6394 = vadd.f32 0.0, %v6393
        %v6395 = vpop.f32.mrf.mxu0
        %v6396 = vadd.f32 0.0, %v6395
        %6397 = vmatmul.bf16.gmra.mxu0 %v5583
        %v6398 = vpop.f32.mrf.mxu0
        %v6399 = vadd.f32 0.0, %v6398
        %v6400 = vpop.f32.mrf.mxu0
        %v6401 = vadd.f32 0.0, %v6400
        %6402 = vmatmul.bf16.gmra.mxu0 %v5584
        %v6403 = vpop.f32.mrf.mxu0
        %v6404 = vadd.f32 0.0, %v6403
        %v6405 = vpop.f32.mrf.mxu0
        %v6406 = vadd.f32 0.0, %v6405
        %6407 = vmatmul.bf16.gmra.mxu0 %v5585
        %v6408 = vpop.f32.mrf.mxu0
        %v6409 = vadd.f32 0.0, %v6408
        %v6410 = vpop.f32.mrf.mxu0
        %v6411 = vadd.f32 0.0, %v6410
        %6412 = vmatmul.bf16.gmra.mxu0 %v5586
        %v6413 = vpop.f32.mrf.mxu0
        %v6414 = vadd.f32 0.0, %v6413
        %v6415 = vpop.f32.mrf.mxu0
        %v6416 = vadd.f32 0.0, %v6415
        %6417 = vmatmul.bf16.gmra.mxu0 %v5587
        %v6418 = vpop.f32.mrf.mxu0
        %v6419 = vadd.f32 0.0, %v6418
        %v6420 = vpop.f32.mrf.mxu0
        %v6421 = vadd.f32 0.0, %v6420
        %6422 = vdwg.mxu0
        %6423 = vmatpush.bf16.msra.mxu0 %v6205
        %6424 = vmatpush.bf16.msra.mxu0 %v6204
        %6425 = vmatpush.bf16.msra.mxu0 %v6203
        %6426 = vmatpush.bf16.msra.mxu0 %v6202
        %6427 = vmatpush.bf16.msra.mxu0 %v6201
        %6428 = vmatpush.bf16.msra.mxu0 %v6200
        %6429 = vmatpush.bf16.msra.mxu0 %v6199
        %6430 = vmatpush.bf16.msra.mxu0 %v6198
        %6431 = vmatmul.bf16.gmra.mxu0 %v5636
        %v6432 = vpop.f32.mrf.mxu0
        %v6433 = vadd.f32 %v6344, %v6432
        %v6434 = vpop.f32.mrf.mxu0
        %v6435 = vadd.f32 %v6346, %v6434
        %6436 = vmatmul.bf16.gmra.mxu0 %v5637
        %v6437 = vpop.f32.mrf.mxu0
        %v6438 = vadd.f32 %v6349, %v6437
        %v6439 = vpop.f32.mrf.mxu0
        %v6440 = vadd.f32 %v6351, %v6439
        %6441 = vmatmul.bf16.gmra.mxu0 %v5638
        %v6442 = vpop.f32.mrf.mxu0
        %v6443 = vadd.f32 %v6354, %v6442
        %v6444 = vpop.f32.mrf.mxu0
        %v6445 = vadd.f32 %v6356, %v6444
        %6446 = vmatmul.bf16.gmra.mxu0 %v5639
        %v6447 = vpop.f32.mrf.mxu0
        %v6448 = vadd.f32 %v6359, %v6447
        %v6449 = vpop.f32.mrf.mxu0
        %v6450 = vadd.f32 %v6361, %v6449
        %6451 = vmatmul.bf16.gmra.mxu0 %v5640
        %v6452 = vpop.f32.mrf.mxu0
        %v6453 = vadd.f32 %v6364, %v6452
        %v6454 = vpop.f32.mrf.mxu0
        %v6455 = vadd.f32 %v6366, %v6454
        %6456 = vmatmul.bf16.gmra.mxu0 %v5641
        %v6457 = vpop.f32.mrf.mxu0
        %v6458 = vadd.f32 %v6369, %v6457
        %v6459 = vpop.f32.mrf.mxu0
        %v6460 = vadd.f32 %v6371, %v6459
        %6461 = vmatmul.bf16.gmra.mxu0 %v5642
        %v6462 = vpop.f32.mrf.mxu0
        %v6463 = vadd.f32 %v6374, %v6462
        %v6464 = vpop.f32.mrf.mxu0
        %v6465 = vadd.f32 %v6376, %v6464
        %6466 = vmatmul.bf16.gmra.mxu0 %v5643
        %v6467 = vpop.f32.mrf.mxu0
        %v6468 = vadd.f32 %v6379, %v6467
        %v6469 = vpop.f32.mrf.mxu0
        %v6470 = vadd.f32 %v6381, %v6469
        %6471 = vmatmul.bf16.gmra.mxu0 %v5644
        %v6472 = vpop.f32.mrf.mxu0
        %v6473 = vadd.f32 %v6384, %v6472
        %v6474 = vpop.f32.mrf.mxu0
        %v6475 = vadd.f32 %v6386, %v6474
        %6476 = vmatmul.bf16.gmra.mxu0 %v5645
        %v6477 = vpop.f32.mrf.mxu0
        %v6478 = vadd.f32 %v6389, %v6477
        %v6479 = vpop.f32.mrf.mxu0
        %v6480 = vadd.f32 %v6391, %v6479
        %6481 = vmatmul.bf16.gmra.mxu0 %v5646
        %v6482 = vpop.f32.mrf.mxu0
        %v6483 = vadd.f32 %v6394, %v6482
        %v6484 = vpop.f32.mrf.mxu0
        %v6485 = vadd.f32 %v6396, %v6484
        %6486 = vmatmul.bf16.gmra.mxu0 %v5647
        %v6487 = vpop.f32.mrf.mxu0
        %v6488 = vadd.f32 %v6399, %v6487
        %v6489 = vpop.f32.mrf.mxu0
        %v6490 = vadd.f32 %v6401, %v6489
        %6491 = vmatmul.bf16.gmra.mxu0 %v5648
        %v6492 = vpop.f32.mrf.mxu0
        %v6493 = vadd.f32 %v6404, %v6492
        %v6494 = vpop.f32.mrf.mxu0
        %v6495 = vadd.f32 %v6406, %v6494
        %6496 = vmatmul.bf16.gmra.mxu0 %v5649
        %v6497 = vpop.f32.mrf.mxu0
        %v6498 = vadd.f32 %v6409, %v6497
        %v6499 = vpop.f32.mrf.mxu0
        %v6500 = vadd.f32 %v6411, %v6499
        %6501 = vmatmul.bf16.gmra.mxu0 %v5650
        %v6502 = vpop.f32.mrf.mxu0
        %v6503 = vadd.f32 %v6414, %v6502
        %v6504 = vpop.f32.mrf.mxu0
        %v6505 = vadd.f32 %v6416, %v6504
        %6506 = vmatmul.bf16.gmra.mxu0 %v5651
        %v6507 = vpop.f32.mrf.mxu0
        %v6508 = vadd.f32 %v6419, %v6507
        %v6509 = vpop.f32.mrf.mxu0
        %v6510 = vadd.f32 %v6421, %v6509
        %6511 = vdwg.mxu0
        %6512 = vmatpush.bf16.msra.mxu0 %v6213
        %6513 = vmatpush.bf16.msra.mxu0 %v6212
        %6514 = vmatpush.bf16.msra.mxu0 %v6211
        %6515 = vmatpush.bf16.msra.mxu0 %v6210
        %6516 = vmatpush.bf16.msra.mxu0 %v6209
        %6517 = vmatpush.bf16.msra.mxu0 %v6208
        %6518 = vmatpush.bf16.msra.mxu0 %v6207
        %6519 = vmatpush.bf16.msra.mxu0 %v6206
        %6520 = vmatmul.bf16.gmra.mxu0 %v5700
        %v6521 = vpop.f32.mrf.mxu0
        %v6522 = vadd.f32 %v6433, %v6521
        %v6523 = vpop.f32.mrf.mxu0
        %v6524 = vadd.f32 %v6435, %v6523
        %6525 = vmatmul.bf16.gmra.mxu0 %v5701
        %v6526 = vpop.f32.mrf.mxu0
        %v6527 = vadd.f32 %v6438, %v6526
        %v6528 = vpop.f32.mrf.mxu0
        %v6529 = vadd.f32 %v6440, %v6528
        %6530 = vmatmul.bf16.gmra.mxu0 %v5702
        %v6531 = vpop.f32.mrf.mxu0
        %v6532 = vadd.f32 %v6443, %v6531
        %v6533 = vpop.f32.mrf.mxu0
        %v6534 = vadd.f32 %v6445, %v6533
        %6535 = vmatmul.bf16.gmra.mxu0 %v5703
        %v6536 = vpop.f32.mrf.mxu0
        %v6537 = vadd.f32 %v6448, %v6536
        %v6538 = vpop.f32.mrf.mxu0
        %v6539 = vadd.f32 %v6450, %v6538
        %6540 = vmatmul.bf16.gmra.mxu0 %v5704
        %v6541 = vpop.f32.mrf.mxu0
        %v6542 = vadd.f32 %v6453, %v6541
        %v6543 = vpop.f32.mrf.mxu0
        %v6544 = vadd.f32 %v6455, %v6543
        %6545 = vmatmul.bf16.gmra.mxu0 %v5705
        %v6546 = vpop.f32.mrf.mxu0
        %v6547 = vadd.f32 %v6458, %v6546
        %v6548 = vpop.f32.mrf.mxu0
        %v6549 = vadd.f32 %v6460, %v6548
        %6550 = vmatmul.bf16.gmra.mxu0 %v5706
        %v6551 = vpop.f32.mrf.mxu0
        %v6552 = vadd.f32 %v6463, %v6551
        %v6553 = vpop.f32.mrf.mxu0
        %v6554 = vadd.f32 %v6465, %v6553
        %6555 = vmatmul.bf16.gmra.mxu0 %v5707
        %v6556 = vpop.f32.mrf.mxu0
        %v6557 = vadd.f32 %v6468, %v6556
        %v6558 = vpop.f32.mrf.mxu0
        %v6559 = vadd.f32 %v6470, %v6558
        %6560 = vmatmul.bf16.gmra.mxu0 %v5708
        %v6561 = vpop.f32.mrf.mxu0
        %v6562 = vadd.f32 %v6473, %v6561
        %v6563 = vpop.f32.mrf.mxu0
        %v6564 = vadd.f32 %v6475, %v6563
        %6565 = vmatmul.bf16.gmra.mxu0 %v5709
        %v6566 = vpop.f32.mrf.mxu0
        %v6567 = vadd.f32 %v6478, %v6566
        %v6568 = vpop.f32.mrf.mxu0
        %v6569 = vadd.f32 %v6480, %v6568
        %6570 = vmatmul.bf16.gmra.mxu0 %v5710
        %v6571 = vpop.f32.mrf.mxu0
        %v6572 = vadd.f32 %v6483, %v6571
        %v6573 = vpop.f32.mrf.mxu0
        %v6574 = vadd.f32 %v6485, %v6573
        %6575 = vmatmul.bf16.gmra.mxu0 %v5711
        %v6576 = vpop.f32.mrf.mxu0
        %v6577 = vadd.f32 %v6488, %v6576
        %v6578 = vpop.f32.mrf.mxu0
        %v6579 = vadd.f32 %v6490, %v6578
        %6580 = vmatmul.bf16.gmra.mxu0 %v5712
        %v6581 = vpop.f32.mrf.mxu0
        %v6582 = vadd.f32 %v6493, %v6581
        %v6583 = vpop.f32.mrf.mxu0
        %v6584 = vadd.f32 %v6495, %v6583
        %6585 = vmatmul.bf16.gmra.mxu0 %v5713
        %v6586 = vpop.f32.mrf.mxu0
        %v6587 = vadd.f32 %v6498, %v6586
        %v6588 = vpop.f32.mrf.mxu0
        %v6589 = vadd.f32 %v6500, %v6588
        %6590 = vmatmul.bf16.gmra.mxu0 %v5714
        %v6591 = vpop.f32.mrf.mxu0
        %v6592 = vadd.f32 %v6503, %v6591
        %v6593 = vpop.f32.mrf.mxu0
        %v6594 = vadd.f32 %v6505, %v6593
        %6595 = vmatmul.bf16.gmra.mxu0 %v5715
        %v6596 = vpop.f32.mrf.mxu0
        %v6597 = vadd.f32 %v6508, %v6596
        %v6598 = vpop.f32.mrf.mxu0
        %v6599 = vadd.f32 %v6510, %v6598
        %6600 = vdwg.mxu0
        %6601 = vmatpush.bf16.msra.mxu0 %v6221
        %6602 = vmatpush.bf16.msra.mxu0 %v6220
        %6603 = vmatpush.bf16.msra.mxu0 %v6219
        %6604 = vmatpush.bf16.msra.mxu0 %v6218
        %6605 = vmatpush.bf16.msra.mxu0 %v6217
        %6606 = vmatpush.bf16.msra.mxu0 %v6216
        %6607 = vmatpush.bf16.msra.mxu0 %v6215
        %6608 = vmatpush.bf16.msra.mxu0 %v6214
        %6609 = vmatmul.bf16.gmra.mxu0 %v5573
        %v6610 = vpop.f32.mrf.mxu0
        %v6611 = vadd.f32 %v6522, %v6610
        %v6612 = vpop.f32.mrf.mxu0
        %v6613 = vadd.f32 %v6524, %v6612
        %6614 = vmatmul.bf16.gmra.mxu0 %v5574
        %v6615 = vpop.f32.mrf.mxu0
        %v6616 = vadd.f32 %v6527, %v6615
        %v6617 = vpop.f32.mrf.mxu0
        %v6618 = vadd.f32 %v6529, %v6617
        %6619 = vmatmul.bf16.gmra.mxu0 %v5575
        %v6620 = vpop.f32.mrf.mxu0
        %v6621 = vadd.f32 %v6532, %v6620
        %v6622 = vpop.f32.mrf.mxu0
        %v6623 = vadd.f32 %v6534, %v6622
        %6624 = vmatmul.bf16.gmra.mxu0 %v5576
        %v6625 = vpop.f32.mrf.mxu0
        %v6626 = vadd.f32 %v6537, %v6625
        %v6627 = vpop.f32.mrf.mxu0
        %v6628 = vadd.f32 %v6539, %v6627
        %6629 = vmatmul.bf16.gmra.mxu0 %v5577
        %v6630 = vpop.f32.mrf.mxu0
        %v6631 = vadd.f32 %v6542, %v6630
        %v6632 = vpop.f32.mrf.mxu0
        %v6633 = vadd.f32 %v6544, %v6632
        %6634 = vmatmul.bf16.gmra.mxu0 %v5578
        %v6635 = vpop.f32.mrf.mxu0
        %v6636 = vadd.f32 %v6547, %v6635
        %v6637 = vpop.f32.mrf.mxu0
        %v6638 = vadd.f32 %v6549, %v6637
        %6639 = vmatmul.bf16.gmra.mxu0 %v5579
        %v6640 = vpop.f32.mrf.mxu0
        %v6641 = vadd.f32 %v6552, %v6640
        %v6642 = vpop.f32.mrf.mxu0
        %v6643 = vadd.f32 %v6554, %v6642
        %6644 = vmatmul.bf16.gmra.mxu0 %v5580
        %v6645 = vpop.f32.mrf.mxu0
        %v6646 = vadd.f32 %v6557, %v6645
        %v6647 = vpop.f32.mrf.mxu0
        %v6648 = vadd.f32 %v6559, %v6647
        %6649 = vmatmul.bf16.gmra.mxu0 %v5581
        %v6650 = vpop.f32.mrf.mxu0
        %v6651 = vadd.f32 %v6562, %v6650
        %v6652 = vpop.f32.mrf.mxu0
        %v6653 = vadd.f32 %v6564, %v6652
        %6654 = vmatmul.bf16.gmra.mxu0 %v5582
        %v6655 = vpop.f32.mrf.mxu0
        %v6656 = vadd.f32 %v6567, %v6655
        %v6657 = vpop.f32.mrf.mxu0
        %v6658 = vadd.f32 %v6569, %v6657
        %6659 = vmatmul.bf16.gmra.mxu0 %v5583
        %v6660 = vpop.f32.mrf.mxu0
        %v6661 = vadd.f32 %v6572, %v6660
        %v6662 = vpop.f32.mrf.mxu0
        %v6663 = vadd.f32 %v6574, %v6662
        %6664 = vmatmul.bf16.gmra.mxu0 %v5584
        %v6665 = vpop.f32.mrf.mxu0
        %v6666 = vadd.f32 %v6577, %v6665
        %v6667 = vpop.f32.mrf.mxu0
        %v6668 = vadd.f32 %v6579, %v6667
        %6669 = vmatmul.bf16.gmra.mxu0 %v5585
        %v6670 = vpop.f32.mrf.mxu0
        %v6671 = vadd.f32 %v6582, %v6670
        %v6672 = vpop.f32.mrf.mxu0
        %v6673 = vadd.f32 %v6584, %v6672
        %6674 = vmatmul.bf16.gmra.mxu0 %v5586
        %v6675 = vpop.f32.mrf.mxu0
        %v6676 = vadd.f32 %v6587, %v6675
        %v6677 = vpop.f32.mrf.mxu0
        %v6678 = vadd.f32 %v6589, %v6677
        %6679 = vmatmul.bf16.gmra.mxu0 %v5587
        %v6680 = vpop.f32.mrf.mxu0
        %v6681 = vadd.f32 %v6592, %v6680
        %v6682 = vpop.f32.mrf.mxu0
        %v6683 = vadd.f32 %v6594, %v6682
        %6684 = vmatmul.bf16.gmra.mxu0 %v5735
        %v6685 = vpop.f32.mrf.mxu0
        %v6686 = vadd.f32 %v6597, %v6685
        %v6687 = vpop.f32.mrf.mxu0
        %v6688 = vadd.f32 %v6599, %v6687
        %6689 = vdwg.mxu0
        %6690 = vmatpush.bf16.msra.mxu0 %v6229
        %6691 = vmatpush.bf16.msra.mxu0 %v6228
        %6692 = vmatpush.bf16.msra.mxu0 %v6227
        %6693 = vmatpush.bf16.msra.mxu0 %v6226
        %6694 = vmatpush.bf16.msra.mxu0 %v6225
        %6695 = vmatpush.bf16.msra.mxu0 %v6224
        %6696 = vmatpush.bf16.msra.mxu0 %v6223
        %6697 = vmatpush.bf16.msra.mxu0 %v6222
        %6698 = vmatmul.bf16.gmra.mxu0 %v5637
        %v6699 = vpop.f32.mrf.mxu0
        %v6700 = vadd.f32 %v6611, %v6699
        %v6701 = vpop.f32.mrf.mxu0
        %v6702 = vadd.f32 %v6613, %v6701
        %6703 = vmatmul.bf16.gmra.mxu0 %v5638
        %v6704 = vpop.f32.mrf.mxu0
        %v6705 = vadd.f32 %v6616, %v6704
        %v6706 = vpop.f32.mrf.mxu0
        %v6707 = vadd.f32 %v6618, %v6706
        %6708 = vmatmul.bf16.gmra.mxu0 %v5639
        %v6709 = vpop.f32.mrf.mxu0
        %v6710 = vadd.f32 %v6621, %v6709
        %v6711 = vpop.f32.mrf.mxu0
        %v6712 = vadd.f32 %v6623, %v6711
        %6713 = vmatmul.bf16.gmra.mxu0 %v5640
        %v6714 = vpop.f32.mrf.mxu0
        %v6715 = vadd.f32 %v6626, %v6714
        %v6716 = vpop.f32.mrf.mxu0
        %v6717 = vadd.f32 %v6628, %v6716
        %6718 = vmatmul.bf16.gmra.mxu0 %v5641
        %v6719 = vpop.f32.mrf.mxu0
        %v6720 = vadd.f32 %v6631, %v6719
        %v6721 = vpop.f32.mrf.mxu0
        %v6722 = vadd.f32 %v6633, %v6721
        %6723 = vmatmul.bf16.gmra.mxu0 %v5642
        %v6724 = vpop.f32.mrf.mxu0
        %v6725 = vadd.f32 %v6636, %v6724
        %v6726 = vpop.f32.mrf.mxu0
        %v6727 = vadd.f32 %v6638, %v6726
        %6728 = vmatmul.bf16.gmra.mxu0 %v5643
        %v6729 = vpop.f32.mrf.mxu0
        %v6730 = vadd.f32 %v6641, %v6729
        %v6731 = vpop.f32.mrf.mxu0
        %v6732 = vadd.f32 %v6643, %v6731
        %6733 = vmatmul.bf16.gmra.mxu0 %v5644
        %v6734 = vpop.f32.mrf.mxu0
        %v6735 = vadd.f32 %v6646, %v6734
        %v6736 = vpop.f32.mrf.mxu0
        %v6737 = vadd.f32 %v6648, %v6736
        %6738 = vmatmul.bf16.gmra.mxu0 %v5645
        %v6739 = vpop.f32.mrf.mxu0
        %v6740 = vadd.f32 %v6651, %v6739
        %v6741 = vpop.f32.mrf.mxu0
        %v6742 = vadd.f32 %v6653, %v6741
        %6743 = vmatmul.bf16.gmra.mxu0 %v5646
        %v6744 = vpop.f32.mrf.mxu0
        %v6745 = vadd.f32 %v6656, %v6744
        %v6746 = vpop.f32.mrf.mxu0
        %v6747 = vadd.f32 %v6658, %v6746
        %6748 = vmatmul.bf16.gmra.mxu0 %v5647
        %v6749 = vpop.f32.mrf.mxu0
        %v6750 = vadd.f32 %v6661, %v6749
        %v6751 = vpop.f32.mrf.mxu0
        %v6752 = vadd.f32 %v6663, %v6751
        %6753 = vmatmul.bf16.gmra.mxu0 %v5648
        %v6754 = vpop.f32.mrf.mxu0
        %v6755 = vadd.f32 %v6666, %v6754
        %v6756 = vpop.f32.mrf.mxu0
        %v6757 = vadd.f32 %v6668, %v6756
        %6758 = vmatmul.bf16.gmra.mxu0 %v5649
        %v6759 = vpop.f32.mrf.mxu0
        %v6760 = vadd.f32 %v6671, %v6759
        %v6761 = vpop.f32.mrf.mxu0
        %v6762 = vadd.f32 %v6673, %v6761
        %6763 = vmatmul.bf16.gmra.mxu0 %v5650
        %v6764 = vpop.f32.mrf.mxu0
        %v6765 = vadd.f32 %v6676, %v6764
        %v6766 = vpop.f32.mrf.mxu0
        %v6767 = vadd.f32 %v6678, %v6766
        %6768 = vmatmul.bf16.gmra.mxu0 %v5651
        %v6769 = vpop.f32.mrf.mxu0
        %v6770 = vadd.f32 %v6681, %v6769
        %v6771 = vpop.f32.mrf.mxu0
        %v6772 = vadd.f32 %v6683, %v6771
        %6773 = vmatmul.bf16.gmra.mxu0 %v5739
        %v6774 = vpop.f32.mrf.mxu0
        %v6775 = vadd.f32 %v6686, %v6774
        %v6776 = vpop.f32.mrf.mxu0
        %v6777 = vadd.f32 %v6688, %v6776
        %6778 = vdwg.mxu0
        %6779 = vmatpush.bf16.msra.mxu0 %v6237
        %6780 = vmatpush.bf16.msra.mxu0 %v6236
        %6781 = vmatpush.bf16.msra.mxu0 %v6235
        %6782 = vmatpush.bf16.msra.mxu0 %v6234
        %6783 = vmatpush.bf16.msra.mxu0 %v6233
        %6784 = vmatpush.bf16.msra.mxu0 %v6232
        %6785 = vmatpush.bf16.msra.mxu0 %v6231
        %6786 = vmatpush.bf16.msra.mxu0 %v6230
        %6787 = vmatmul.bf16.gmra.mxu0 %v5701
        %v6788 = vpop.f32.mrf.mxu0
        %v6789 = vadd.f32 %v6700, %v6788
        %v6790 = vpop.f32.mrf.mxu0
        %v6791 = vadd.f32 %v6702, %v6790
        %6792 = vmatmul.bf16.gmra.mxu0 %v5702
        %v6793 = vpop.f32.mrf.mxu0
        %v6794 = vadd.f32 %v6705, %v6793
        %v6795 = vpop.f32.mrf.mxu0
        %v6796 = vadd.f32 %v6707, %v6795
        %6797 = vmatmul.bf16.gmra.mxu0 %v5703
        %v6798 = vpop.f32.mrf.mxu0
        %v6799 = vadd.f32 %v6710, %v6798
        %v6800 = vpop.f32.mrf.mxu0
        %v6801 = vadd.f32 %v6712, %v6800
        %6802 = vmatmul.bf16.gmra.mxu0 %v5704
        %v6803 = vpop.f32.mrf.mxu0
        %v6804 = vadd.f32 %v6715, %v6803
        %v6805 = vpop.f32.mrf.mxu0
        %v6806 = vadd.f32 %v6717, %v6805
        %6807 = vmatmul.bf16.gmra.mxu0 %v5705
        %v6808 = vpop.f32.mrf.mxu0
        %v6809 = vadd.f32 %v6720, %v6808
        %v6810 = vpop.f32.mrf.mxu0
        %v6811 = vadd.f32 %v6722, %v6810
        %6812 = vmatmul.bf16.gmra.mxu0 %v5706
        %v6813 = vpop.f32.mrf.mxu0
        %v6814 = vadd.f32 %v6725, %v6813
        %v6815 = vpop.f32.mrf.mxu0
        %v6816 = vadd.f32 %v6727, %v6815
        %6817 = vmatmul.bf16.gmra.mxu0 %v5707
        %v6818 = vpop.f32.mrf.mxu0
        %v6819 = vadd.f32 %v6730, %v6818
        %v6820 = vpop.f32.mrf.mxu0
        %v6821 = vadd.f32 %v6732, %v6820
        %6822 = vmatmul.bf16.gmra.mxu0 %v5708
        %v6823 = vpop.f32.mrf.mxu0
        %v6824 = vadd.f32 %v6735, %v6823
        %v6825 = vpop.f32.mrf.mxu0
        %v6826 = vadd.f32 %v6737, %v6825
        %6827 = vmatmul.bf16.gmra.mxu0 %v5709
        %v6828 = vpop.f32.mrf.mxu0
        %v6829 = vadd.f32 %v6740, %v6828
        %v6830 = vpop.f32.mrf.mxu0
        %v6831 = vadd.f32 %v6742, %v6830
        %6832 = vmatmul.bf16.gmra.mxu0 %v5710
        %v6833 = vpop.f32.mrf.mxu0
        %v6834 = vadd.f32 %v6745, %v6833
        %v6835 = vpop.f32.mrf.mxu0
        %v6836 = vadd.f32 %v6747, %v6835
        %6837 = vmatmul.bf16.gmra.mxu0 %v5711
        %v6838 = vpop.f32.mrf.mxu0
        %v6839 = vadd.f32 %v6750, %v6838
        %v6840 = vpop.f32.mrf.mxu0
        %v6841 = vadd.f32 %v6752, %v6840
        %6842 = vmatmul.bf16.gmra.mxu0 %v5712
        %v6843 = vpop.f32.mrf.mxu0
        %v6844 = vadd.f32 %v6755, %v6843
        %v6845 = vpop.f32.mrf.mxu0
        %v6846 = vadd.f32 %v6757, %v6845
        %6847 = vmatmul.bf16.gmra.mxu0 %v5713
        %v6848 = vpop.f32.mrf.mxu0
        %v6849 = vadd.f32 %v6760, %v6848
        %v6850 = vpop.f32.mrf.mxu0
        %v6851 = vadd.f32 %v6762, %v6850
        %6852 = vmatmul.bf16.gmra.mxu0 %v5714
        %v6853 = vpop.f32.mrf.mxu0
        %v6854 = vadd.f32 %v6765, %v6853
        %v6855 = vpop.f32.mrf.mxu0
        %v6856 = vadd.f32 %v6767, %v6855
        %6857 = vmatmul.bf16.gmra.mxu0 %v5715
        %v6858 = vpop.f32.mrf.mxu0
        %v6859 = vadd.f32 %v6770, %v6858
        %v6860 = vpop.f32.mrf.mxu0
        %v6861 = vadd.f32 %v6772, %v6860
        %6862 = vmatmul.bf16.gmra.mxu0 %v5743
        %v6863 = vpop.f32.mrf.mxu0
        %v6864 = vadd.f32 %v6775, %v6863
        %v6865 = vpop.f32.mrf.mxu0
        %v6866 = vadd.f32 %v6777, %v6865
        %6867 = vdwg.mxu0
        %6868 = vmatpush.bf16.msra.mxu0 %v6245
        %6869 = vmatpush.bf16.msra.mxu0 %v6244
        %6870 = vmatpush.bf16.msra.mxu0 %v6243
        %6871 = vmatpush.bf16.msra.mxu0 %v6242
        %6872 = vmatpush.bf16.msra.mxu0 %v6241
        %6873 = vmatpush.bf16.msra.mxu0 %v6240
        %6874 = vmatpush.bf16.msra.mxu0 %v6239
        %6875 = vmatpush.bf16.msra.mxu0 %v6238
        %6876 = vmatmul.bf16.gmra.mxu0 %v5574
        %v6877 = vpop.f32.mrf.mxu0
        %v6878 = vadd.f32 %v6789, %v6877
        %v6879 = vpop.f32.mrf.mxu0
        %v6880 = vadd.f32 %v6791, %v6879
        %6881 = vmatmul.bf16.gmra.mxu0 %v5575
        %v6882 = vpop.f32.mrf.mxu0
        %v6883 = vadd.f32 %v6794, %v6882
        %v6884 = vpop.f32.mrf.mxu0
        %v6885 = vadd.f32 %v6796, %v6884
        %6886 = vmatmul.bf16.gmra.mxu0 %v5576
        %v6887 = vpop.f32.mrf.mxu0
        %v6888 = vadd.f32 %v6799, %v6887
        %v6889 = vpop.f32.mrf.mxu0
        %v6890 = vadd.f32 %v6801, %v6889
        %6891 = vmatmul.bf16.gmra.mxu0 %v5577
        %v6892 = vpop.f32.mrf.mxu0
        %v6893 = vadd.f32 %v6804, %v6892
        %v6894 = vpop.f32.mrf.mxu0
        %v6895 = vadd.f32 %v6806, %v6894
        %6896 = vmatmul.bf16.gmra.mxu0 %v5578
        %v6897 = vpop.f32.mrf.mxu0
        %v6898 = vadd.f32 %v6809, %v6897
        %v6899 = vpop.f32.mrf.mxu0
        %v6900 = vadd.f32 %v6811, %v6899
        %6901 = vmatmul.bf16.gmra.mxu0 %v5579
        %v6902 = vpop.f32.mrf.mxu0
        %v6903 = vadd.f32 %v6814, %v6902
        %v6904 = vpop.f32.mrf.mxu0
        %v6905 = vadd.f32 %v6816, %v6904
        %6906 = vmatmul.bf16.gmra.mxu0 %v5580
        %v6907 = vpop.f32.mrf.mxu0
        %v6908 = vadd.f32 %v6819, %v6907
        %v6909 = vpop.f32.mrf.mxu0
        %v6910 = vadd.f32 %v6821, %v6909
        %6911 = vmatmul.bf16.gmra.mxu0 %v5581
        %v6912 = vpop.f32.mrf.mxu0
        %v6913 = vadd.f32 %v6824, %v6912
        %v6914 = vpop.f32.mrf.mxu0
        %v6915 = vadd.f32 %v6826, %v6914
        %6916 = vmatmul.bf16.gmra.mxu0 %v5582
        %v6917 = vpop.f32.mrf.mxu0
        %v6918 = vadd.f32 %v6829, %v6917
        %v6919 = vpop.f32.mrf.mxu0
        %v6920 = vadd.f32 %v6831, %v6919
        %6921 = vmatmul.bf16.gmra.mxu0 %v5583
        %v6922 = vpop.f32.mrf.mxu0
        %v6923 = vadd.f32 %v6834, %v6922
        %v6924 = vpop.f32.mrf.mxu0
        %v6925 = vadd.f32 %v6836, %v6924
        %6926 = vmatmul.bf16.gmra.mxu0 %v5584
        %v6927 = vpop.f32.mrf.mxu0
        %v6928 = vadd.f32 %v6839, %v6927
        %v6929 = vpop.f32.mrf.mxu0
        %v6930 = vadd.f32 %v6841, %v6929
        %6931 = vmatmul.bf16.gmra.mxu0 %v5585
        %v6932 = vpop.f32.mrf.mxu0
        %v6933 = vadd.f32 %v6844, %v6932
        %v6934 = vpop.f32.mrf.mxu0
        %v6935 = vadd.f32 %v6846, %v6934
        %6936 = vmatmul.bf16.gmra.mxu0 %v5586
        %v6937 = vpop.f32.mrf.mxu0
        %v6938 = vadd.f32 %v6849, %v6937
        %v6939 = vpop.f32.mrf.mxu0
        %v6940 = vadd.f32 %v6851, %v6939
        %6941 = vmatmul.bf16.gmra.mxu0 %v5587
        %v6942 = vpop.f32.mrf.mxu0
        %v6943 = vadd.f32 %v6854, %v6942
        %v6944 = vpop.f32.mrf.mxu0
        %v6945 = vadd.f32 %v6856, %v6944
        %6946 = vmatmul.bf16.gmra.mxu0 %v5735
        %v6947 = vpop.f32.mrf.mxu0
        %v6948 = vadd.f32 %v6859, %v6947
        %v6949 = vpop.f32.mrf.mxu0
        %v6950 = vadd.f32 %v6861, %v6949
        %6951 = vmatmul.bf16.gmra.mxu0 %v5748
        %v6952 = vpop.f32.mrf.mxu0
        %v6953 = vadd.f32 %v6864, %v6952
        %v6954 = vpop.f32.mrf.mxu0
        %v6955 = vadd.f32 %v6866, %v6954
        %6956 = vdwg.mxu0
        %6957 = vmatpush.bf16.msra.mxu0 %v6253
        %6958 = vmatpush.bf16.msra.mxu0 %v6252
        %6959 = vmatpush.bf16.msra.mxu0 %v6251
        %6960 = vmatpush.bf16.msra.mxu0 %v6250
        %6961 = vmatpush.bf16.msra.mxu0 %v6249
        %6962 = vmatpush.bf16.msra.mxu0 %v6248
        %6963 = vmatpush.bf16.msra.mxu0 %v6247
        %6964 = vmatpush.bf16.msra.mxu0 %v6246
        %6965 = vmatmul.bf16.gmra.mxu0 %v5638
        %v6966 = vpop.f32.mrf.mxu0
        %v6967 = vadd.f32 %v6878, %v6966
        %v6968 = vpop.f32.mrf.mxu0
        %v6969 = vadd.f32 %v6880, %v6968
        %6970 = vmatmul.bf16.gmra.mxu0 %v5639
        %v6971 = vpop.f32.mrf.mxu0
        %v6972 = vadd.f32 %v6883, %v6971
        %v6973 = vpop.f32.mrf.mxu0
        %v6974 = vadd.f32 %v6885, %v6973
        %6975 = vmatmul.bf16.gmra.mxu0 %v5640
        %v6976 = vpop.f32.mrf.mxu0
        %v6977 = vadd.f32 %v6888, %v6976
        %v6978 = vpop.f32.mrf.mxu0
        %v6979 = vadd.f32 %v6890, %v6978
        %6980 = vmatmul.bf16.gmra.mxu0 %v5641
        %v6981 = vpop.f32.mrf.mxu0
        %v6982 = vadd.f32 %v6893, %v6981
        %v6983 = vpop.f32.mrf.mxu0
        %v6984 = vadd.f32 %v6895, %v6983
        %6985 = vmatmul.bf16.gmra.mxu0 %v5642
        %v6986 = vpop.f32.mrf.mxu0
        %v6987 = vadd.f32 %v6898, %v6986
        %v6988 = vpop.f32.mrf.mxu0
        %v6989 = vadd.f32 %v6900, %v6988
        %6990 = vmatmul.bf16.gmra.mxu0 %v5643
        %v6991 = vpop.f32.mrf.mxu0
        %v6992 = vadd.f32 %v6903, %v6991
        %v6993 = vpop.f32.mrf.mxu0
        %v6994 = vadd.f32 %v6905, %v6993
        %6995 = vmatmul.bf16.gmra.mxu0 %v5644
        %v6996 = vpop.f32.mrf.mxu0
        %v6997 = vadd.f32 %v6908, %v6996
        %v6998 = vpop.f32.mrf.mxu0
        %v6999 = vadd.f32 %v6910, %v6998
        %7000 = vmatmul.bf16.gmra.mxu0 %v5645
        %v7001 = vpop.f32.mrf.mxu0
        %v7002 = vadd.f32 %v6913, %v7001
        %v7003 = vpop.f32.mrf.mxu0
        %v7004 = vadd.f32 %v6915, %v7003
        %7005 = vmatmul.bf16.gmra.mxu0 %v5646
        %v7006 = vpop.f32.mrf.mxu0
        %v7007 = vadd.f32 %v6918, %v7006
        %v7008 = vpop.f32.mrf.mxu0
        %v7009 = vadd.f32 %v6920, %v7008
        %7010 = vmatmul.bf16.gmra.mxu0 %v5647
        %v7011 = vpop.f32.mrf.mxu0
        %v7012 = vadd.f32 %v6923, %v7011
        %v7013 = vpop.f32.mrf.mxu0
        %v7014 = vadd.f32 %v6925, %v7013
        %7015 = vmatmul.bf16.gmra.mxu0 %v5648
        %v7016 = vpop.f32.mrf.mxu0
        %v7017 = vadd.f32 %v6928, %v7016
        %v7018 = vpop.f32.mrf.mxu0
        %v7019 = vadd.f32 %v6930, %v7018
        %7020 = vmatmul.bf16.gmra.mxu0 %v5649
        %v7021 = vpop.f32.mrf.mxu0
        %v7022 = vadd.f32 %v6933, %v7021
        %v7023 = vpop.f32.mrf.mxu0
        %v7024 = vadd.f32 %v6935, %v7023
        %7025 = vmatmul.bf16.gmra.mxu0 %v5650
        %v7026 = vpop.f32.mrf.mxu0
        %v7027 = vadd.f32 %v6938, %v7026
        %v7028 = vpop.f32.mrf.mxu0
        %v7029 = vadd.f32 %v6940, %v7028
        %7030 = vmatmul.bf16.gmra.mxu0 %v5651
        %v7031 = vpop.f32.mrf.mxu0
        %v7032 = vadd.f32 %v6943, %v7031
        %v7033 = vpop.f32.mrf.mxu0
        %v7034 = vadd.f32 %v6945, %v7033
        %7035 = vmatmul.bf16.gmra.mxu0 %v5739
        %v7036 = vpop.f32.mrf.mxu0
        %v7037 = vadd.f32 %v6948, %v7036
        %v7038 = vpop.f32.mrf.mxu0
        %v7039 = vadd.f32 %v6950, %v7038
        %7040 = vmatmul.bf16.gmra.mxu0 %v5752
        %v7041 = vpop.f32.mrf.mxu0
        %v7042 = vadd.f32 %v6953, %v7041
        %v7043 = vpop.f32.mrf.mxu0
        %v7044 = vadd.f32 %v6955, %v7043
        %7045 = vdwg.mxu0
        %7046 = vmatpush.bf16.msra.mxu0 %v6261
        %7047 = vmatpush.bf16.msra.mxu0 %v6260
        %7048 = vmatpush.bf16.msra.mxu0 %v6259
        %7049 = vmatpush.bf16.msra.mxu0 %v6258
        %7050 = vmatpush.bf16.msra.mxu0 %v6257
        %7051 = vmatpush.bf16.msra.mxu0 %v6256
        %7052 = vmatpush.bf16.msra.mxu0 %v6255
        %7053 = vmatpush.bf16.msra.mxu0 %v6254
        %7054 = vmatmul.bf16.gmra.mxu0 %v5702
        %v7055 = vpop.f32.mrf.mxu0
        %v7056 = vadd.f32 %v6967, %v7055
        %v7057 = vpop.f32.mrf.mxu0
        %v7058 = vadd.f32 %v6969, %v7057
        %7059 = vmatmul.bf16.gmra.mxu0 %v5703
        %v7060 = vpop.f32.mrf.mxu0
        %v7061 = vadd.f32 %v6972, %v7060
        %v7062 = vpop.f32.mrf.mxu0
        %v7063 = vadd.f32 %v6974, %v7062
        %7064 = vmatmul.bf16.gmra.mxu0 %v5704
        %v7065 = vpop.f32.mrf.mxu0
        %v7066 = vadd.f32 %v6977, %v7065
        %v7067 = vpop.f32.mrf.mxu0
        %v7068 = vadd.f32 %v6979, %v7067
        %7069 = vmatmul.bf16.gmra.mxu0 %v5705
        %v7070 = vpop.f32.mrf.mxu0
        %v7071 = vadd.f32 %v6982, %v7070
        %v7072 = vpop.f32.mrf.mxu0
        %v7073 = vadd.f32 %v6984, %v7072
        %7074 = vmatmul.bf16.gmra.mxu0 %v5706
        %v7075 = vpop.f32.mrf.mxu0
        %v7076 = vadd.f32 %v6987, %v7075
        %v7077 = vpop.f32.mrf.mxu0
        %v7078 = vadd.f32 %v6989, %v7077
        %7079 = vmatmul.bf16.gmra.mxu0 %v5707
        %v7080 = vpop.f32.mrf.mxu0
        %v7081 = vadd.f32 %v6992, %v7080
        %v7082 = vpop.f32.mrf.mxu0
        %v7083 = vadd.f32 %v6994, %v7082
        %7084 = vmatmul.bf16.gmra.mxu0 %v5708
        %v7085 = vpop.f32.mrf.mxu0
        %v7086 = vadd.f32 %v6997, %v7085
        %v7087 = vpop.f32.mrf.mxu0
        %v7088 = vadd.f32 %v6999, %v7087
        %7089 = vmatmul.bf16.gmra.mxu0 %v5709
        %v7090 = vpop.f32.mrf.mxu0
        %v7091 = vadd.f32 %v7002, %v7090
        %v7092 = vpop.f32.mrf.mxu0
        %v7093 = vadd.f32 %v7004, %v7092
        %7094 = vmatmul.bf16.gmra.mxu0 %v5710
        %v7095 = vpop.f32.mrf.mxu0
        %v7096 = vadd.f32 %v7007, %v7095
        %v7097 = vpop.f32.mrf.mxu0
        %v7098 = vadd.f32 %v7009, %v7097
        %7099 = vmatmul.bf16.gmra.mxu0 %v5711
        %v7100 = vpop.f32.mrf.mxu0
        %v7101 = vadd.f32 %v7012, %v7100
        %v7102 = vpop.f32.mrf.mxu0
        %v7103 = vadd.f32 %v7014, %v7102
        %7104 = vmatmul.bf16.gmra.mxu0 %v5712
        %v7105 = vpop.f32.mrf.mxu0
        %v7106 = vadd.f32 %v7017, %v7105
        %v7107 = vpop.f32.mrf.mxu0
        %v7108 = vadd.f32 %v7019, %v7107
        %7109 = vmatmul.bf16.gmra.mxu0 %v5713
        %v7110 = vpop.f32.mrf.mxu0
        %v7111 = vadd.f32 %v7022, %v7110
        %v7112 = vpop.f32.mrf.mxu0
        %v7113 = vadd.f32 %v7024, %v7112
        %7114 = vmatmul.bf16.gmra.mxu0 %v5714
        %v7115 = vpop.f32.mrf.mxu0
        %v7116 = vadd.f32 %v7027, %v7115
        %v7117 = vpop.f32.mrf.mxu0
        %v7118 = vadd.f32 %v7029, %v7117
        %7119 = vmatmul.bf16.gmra.mxu0 %v5715
        %v7120 = vpop.f32.mrf.mxu0
        %v7121 = vadd.f32 %v7032, %v7120
        %v7122 = vpop.f32.mrf.mxu0
        %v7123 = vadd.f32 %v7034, %v7122
        %7124 = vmatmul.bf16.gmra.mxu0 %v5743
        %v7125 = vpop.f32.mrf.mxu0
        %v7126 = vadd.f32 %v7037, %v7125
        %v7127 = vpop.f32.mrf.mxu0
        %v7128 = vadd.f32 %v7039, %v7127
        %7129 = vmatmul.bf16.gmra.mxu0 %v5756
        %v7130 = vpop.f32.mrf.mxu0
        %v7131 = vadd.f32 %v7042, %v7130
        %v7132 = vpop.f32.mrf.mxu0
        %v7133 = vadd.f32 %v7044, %v7132
        %7134 = vdwg.mxu0
        %v7135 = vld [vmem:[%s5] sm:$0x1]
        %v7137 = vperm.slane %v7135, 0
        %v7139 = vmul.f32 %v7056, %v7137
        %v7140 = vmul.f32 %v7058, %v7137
        %v7141 = vmul.f32 %v7061, %v7137
        %v7142 = vmul.f32 %v7063, %v7137
        %v7143 = vmul.f32 %v7066, %v7137
        %v7144 = vmul.f32 %v7068, %v7137
        %v7145 = vmul.f32 %v7071, %v7137
        %v7146 = vmul.f32 %v7073, %v7137
        %v7147 = vmul.f32 %v7076, %v7137
        %v7148 = vmul.f32 %v7078, %v7137
        %v7149 = vmul.f32 %v7081, %v7137
        %v7150 = vmul.f32 %v7083, %v7137
        %v7151 = vmul.f32 %v7086, %v7137
        %v7152 = vmul.f32 %v7088, %v7137
        %v7153 = vmul.f32 %v7091, %v7137
        %v7154 = vmul.f32 %v7093, %v7137
        %v7155 = vmul.f32 %v7096, %v7137
        %v7156 = vmul.f32 %v7098, %v7137
        %v7157 = vmul.f32 %v7101, %v7137
        %v7158 = vmul.f32 %v7103, %v7137
        %v7159 = vmul.f32 %v7106, %v7137
        %v7160 = vmul.f32 %v7108, %v7137
        %v7161 = vmul.f32 %v7111, %v7137
        %v7162 = vmul.f32 %v7113, %v7137
        %v7163 = vmul.f32 %v7116, %v7137
        %v7164 = vmul.f32 %v7118, %v7137
        %v7165 = vmul.f32 %v7121, %v7137
        %v7166 = vmul.f32 %v7123, %v7137
        %v7167 = vmul.f32 %v7126, %v7137
        %v7168 = vmul.f32 %v7128, %v7137
        %v7169 = vmul.f32 %v7131, %v7137
        %v7170 = vmul.f32 %v7133, %v7137
        %v7171 = vld [vmem:[%s6] sm:$0x1]
        %v7173 = vperm.slane %v7171, 0
        %v7175 = vadd.f32 %v7139, %v7173
        %v7176 = vadd.f32 %v7140, %v7173
        %v7177 = vadd.f32 %v7141, %v7173
        %v7178 = vadd.f32 %v7142, %v7173
        %v7179 = vadd.f32 %v7143, %v7173
        %v7180 = vadd.f32 %v7144, %v7173
        %v7181 = vadd.f32 %v7145, %v7173
        %v7182 = vadd.f32 %v7146, %v7173
        %v7183 = vadd.f32 %v7147, %v7173
        %v7184 = vadd.f32 %v7148, %v7173
        %v7185 = vadd.f32 %v7149, %v7173
        %v7186 = vadd.f32 %v7150, %v7173
        %v7187 = vadd.f32 %v7151, %v7173
        %v7188 = vadd.f32 %v7152, %v7173
        %v7189 = vadd.f32 %v7153, %v7173
        %v7190 = vadd.f32 %v7154, %v7173
        %v7191 = vadd.f32 %v7155, %v7173
        %v7192 = vadd.f32 %v7156, %v7173
        %v7193 = vadd.f32 %v7157, %v7173
        %v7194 = vadd.f32 %v7158, %v7173
        %v7195 = vadd.f32 %v7159, %v7173
        %v7196 = vadd.f32 %v7160, %v7173
        %v7197 = vadd.f32 %v7161, %v7173
        %v7198 = vadd.f32 %v7162, %v7173
        %v7199 = vadd.f32 %v7163, %v7173
        %v7200 = vadd.f32 %v7164, %v7173
        %v7201 = vadd.f32 %v7165, %v7173
        %v7202 = vadd.f32 %v7166, %v7173
        %v7203 = vadd.f32 %v7167, %v7173
        %v7204 = vadd.f32 %v7168, %v7173
        %v7205 = vadd.f32 %v7169, %v7173
        %v7206 = vadd.f32 %v7170, %v7173
        %v7207 = vmax.f32 %v7175, 0.0
        %v7208 = vmax.f32 %v7176, 0.0
        %v7209 = vmax.f32 %v7177, 0.0
        %v7210 = vmax.f32 %v7178, 0.0
        %v7211 = vmax.f32 %v7179, 0.0
        %v7212 = vmax.f32 %v7180, 0.0
        %v7213 = vmax.f32 %v7181, 0.0
        %v7214 = vmax.f32 %v7182, 0.0
        %v7215 = vmax.f32 %v7183, 0.0
        %v7216 = vmax.f32 %v7184, 0.0
        %v7217 = vmax.f32 %v7185, 0.0
        %v7218 = vmax.f32 %v7186, 0.0
        %v7219 = vmax.f32 %v7187, 0.0
        %v7220 = vmax.f32 %v7188, 0.0
        %v7221 = vmax.f32 %v7189, 0.0
        %v7222 = vmax.f32 %v7190, 0.0
        %v7223 = vmax.f32 %v7191, 0.0
        %v7224 = vmax.f32 %v7192, 0.0
        %v7225 = vmax.f32 %v7193, 0.0
        %v7226 = vmax.f32 %v7194, 0.0
        %v7227 = vmax.f32 %v7195, 0.0
        %v7228 = vmax.f32 %v7196, 0.0
        %v7229 = vmax.f32 %v7197, 0.0
        %v7230 = vmax.f32 %v7198, 0.0
        %v7231 = vmax.f32 %v7199, 0.0
        %v7232 = vmax.f32 %v7200, 0.0
        %v7233 = vmax.f32 %v7201, 0.0
        %v7234 = vmax.f32 %v7202, 0.0
        %v7235 = vmax.f32 %v7203, 0.0
        %v7236 = vmax.f32 %v7204, 0.0
        %v7237 = vmax.f32 %v7205, 0.0
        %v7238 = vmax.f32 %v7206, 0.0
        %v7239 = vpack.c.bf16 %v7208, %v7207
        %v7240 = vpack.c.bf16 %v7210, %v7209
        %v7241 = vpack.c.bf16 %v7212, %v7211
        %v7242 = vpack.c.bf16 %v7214, %v7213
        %v7243 = vpack.c.bf16 %v7216, %v7215
        %v7244 = vpack.c.bf16 %v7218, %v7217
        %v7245 = vpack.c.bf16 %v7220, %v7219
        %v7246 = vpack.c.bf16 %v7222, %v7221
        %v7247 = vpack.c.bf16 %v7224, %v7223
        %v7248 = vpack.c.bf16 %v7226, %v7225
        %v7249 = vpack.c.bf16 %v7228, %v7227
        %v7250 = vpack.c.bf16 %v7230, %v7229
        %v7251 = vpack.c.bf16 %v7232, %v7231
        %v7252 = vpack.c.bf16 %v7234, %v7233
        %v7253 = vpack.c.bf16 %v7236, %v7235
        %v7254 = vpack.c.bf16 %v7238, %v7237
        %v7255 = vld [vmem:[#allocation9] sm:$0xf]
        %v7256 = vld [vmem:[#allocation9 + $0x4] sm:$0xf]
        %v7257 = vld [vmem:[#allocation9 + $0x8] sm:$0xf]
        %v7258 = vld [vmem:[#allocation9 + $0xc] sm:$0xf]
        %v7259 = vld [vmem:[#allocation9 + $0x10] sm:$0xf]
        %v7260 = vld [vmem:[#allocation9 + $0x14] sm:$0xf]
        %v7261 = vld [vmem:[#allocation9 + $0x18] sm:$0xf]
        %v7262 = vld [vmem:[#allocation9 + $0x1c] sm:$0xf]
        %v7263 = vld [vmem:[#allocation9 + $0x20] sm:$0xf]
        %v7264 = vld [vmem:[#allocation9 + $0x24] sm:$0xf]
        %v7265 = vld [vmem:[#allocation9 + $0x28] sm:$0xf]
        %v7266 = vld [vmem:[#allocation9 + $0x2c] sm:$0xf]
        %v7267 = vld [vmem:[#allocation9 + $0x30] sm:$0xf]
        %v7268 = vld [vmem:[#allocation9 + $0x34] sm:$0xf]
        %v7269 = vld [vmem:[#allocation9 + $0x38] sm:$0xf]
        %v7270 = vld [vmem:[#allocation9 + $0x3c] sm:$0xf]
        %v7287 = vunpack.c.l.b16 %v7255
        %v7288 = vunpack.c.l.b16 %v7256
        %v7289 = vunpack.c.l.b16 %v7257
        %v7290 = vunpack.c.l.b16 %v7258
        %v7291 = vunpack.c.l.b16 %v7259
        %v7292 = vunpack.c.l.b16 %v7260
        %v7293 = vunpack.c.l.b16 %v7261
        %v7294 = vunpack.c.l.b16 %v7262
        %v7295 = vunpack.c.l.b16 %v7263
        %v7296 = vunpack.c.l.b16 %v7264
        %v7297 = vunpack.c.l.b16 %v7265
        %v7298 = vunpack.c.l.b16 %v7266
        %v7299 = vunpack.c.l.b16 %v7267
        %v7300 = vunpack.c.l.b16 %v7268
        %v7301 = vunpack.c.l.b16 %v7269
        %v7302 = vunpack.c.l.b16 %v7270
        %v7303 = vpack.c.b16 %v7288, %v7287
        %v7304 = vpack.c.b16 %v7290, %v7289
        %v7305 = vpack.c.b16 %v7292, %v7291
        %v7306 = vpack.c.b16 %v7294, %v7293
        %v7307 = vpack.c.b16 %v7296, %v7295
        %v7308 = vpack.c.b16 %v7298, %v7297
        %v7309 = vpack.c.b16 %v7300, %v7299
        %v7310 = vpack.c.b16 %v7302, %v7301
        %7319 = vmatpush.bf16.msra.mxu0 %v7310
        %7320 = vmatpush.bf16.msra.mxu0 %v7309
        %7321 = vmatpush.bf16.msra.mxu0 %v7308
        %7322 = vmatpush.bf16.msra.mxu0 %v7307
        %7323 = vmatpush.bf16.msra.mxu0 %v7306
        %7324 = vmatpush.bf16.msra.mxu0 %v7305
        %7325 = vmatpush.bf16.msra.mxu0 %v7304
        %7326 = vmatpush.bf16.msra.mxu0 %v7303
        %7327 = vmatmul.bf16.gmra.mxu0 %v7239
        %v7328 = vpop.f32.mrf.mxu0
        %v7329 = vadd.f32 0.0, %v7328
        %v7330 = vpop.f32.mrf.mxu0
        %v7331 = vadd.f32 0.0, %v7330
        %7332 = vmatmul.bf16.gmra.mxu0 %v7240
        %v7333 = vpop.f32.mrf.mxu0
        %v7334 = vadd.f32 0.0, %v7333
        %v7335 = vpop.f32.mrf.mxu0
        %v7336 = vadd.f32 0.0, %v7335
        %7337 = vmatmul.bf16.gmra.mxu0 %v7241
        %v7338 = vpop.f32.mrf.mxu0
        %v7339 = vadd.f32 0.0, %v7338
        %v7340 = vpop.f32.mrf.mxu0
        %v7341 = vadd.f32 0.0, %v7340
        %7342 = vmatmul.bf16.gmra.mxu0 %v7242
        %v7343 = vpop.f32.mrf.mxu0
        %v7344 = vadd.f32 0.0, %v7343
        %v7345 = vpop.f32.mrf.mxu0
        %v7346 = vadd.f32 0.0, %v7345
        %7347 = vmatmul.bf16.gmra.mxu0 %v7243
        %v7348 = vpop.f32.mrf.mxu0
        %v7349 = vadd.f32 0.0, %v7348
        %v7350 = vpop.f32.mrf.mxu0
        %v7351 = vadd.f32 0.0, %v7350
        %7352 = vmatmul.bf16.gmra.mxu0 %v7244
        %v7353 = vpop.f32.mrf.mxu0
        %v7354 = vadd.f32 0.0, %v7353
        %v7355 = vpop.f32.mrf.mxu0
        %v7356 = vadd.f32 0.0, %v7355
        %7357 = vmatmul.bf16.gmra.mxu0 %v7245
        %v7358 = vpop.f32.mrf.mxu0
        %v7359 = vadd.f32 0.0, %v7358
        %v7360 = vpop.f32.mrf.mxu0
        %v7361 = vadd.f32 0.0, %v7360
        %7362 = vmatmul.bf16.gmra.mxu0 %v7246
        %v7363 = vpop.f32.mrf.mxu0
        %v7364 = vadd.f32 0.0, %v7363
        %v7365 = vpop.f32.mrf.mxu0
        %v7366 = vadd.f32 0.0, %v7365
        %7367 = vmatmul.bf16.gmra.mxu0 %v7247
        %v7368 = vpop.f32.mrf.mxu0
        %v7369 = vadd.f32 0.0, %v7368
        %v7370 = vpop.f32.mrf.mxu0
        %v7371 = vadd.f32 0.0, %v7370
        %7372 = vmatmul.bf16.gmra.mxu0 %v7248
        %v7373 = vpop.f32.mrf.mxu0
        %v7374 = vadd.f32 0.0, %v7373
        %v7375 = vpop.f32.mrf.mxu0
        %v7376 = vadd.f32 0.0, %v7375
        %7377 = vmatmul.bf16.gmra.mxu0 %v7249
        %v7378 = vpop.f32.mrf.mxu0
        %v7379 = vadd.f32 0.0, %v7378
        %v7380 = vpop.f32.mrf.mxu0
        %v7381 = vadd.f32 0.0, %v7380
        %7382 = vmatmul.bf16.gmra.mxu0 %v7250
        %v7383 = vpop.f32.mrf.mxu0
        %v7384 = vadd.f32 0.0, %v7383
        %v7385 = vpop.f32.mrf.mxu0
        %v7386 = vadd.f32 0.0, %v7385
        %7387 = vmatmul.bf16.gmra.mxu0 %v7251
        %v7388 = vpop.f32.mrf.mxu0
        %v7389 = vadd.f32 0.0, %v7388
        %v7390 = vpop.f32.mrf.mxu0
        %v7391 = vadd.f32 0.0, %v7390
        %7392 = vmatmul.bf16.gmra.mxu0 %v7252
        %v7393 = vpop.f32.mrf.mxu0
        %v7394 = vadd.f32 0.0, %v7393
        %v7395 = vpop.f32.mrf.mxu0
        %v7396 = vadd.f32 0.0, %v7395
        %7397 = vmatmul.bf16.gmra.mxu0 %v7253
        %v7398 = vpop.f32.mrf.mxu0
        %v7399 = vadd.f32 0.0, %v7398
        %v7400 = vpop.f32.mrf.mxu0
        %v7401 = vadd.f32 0.0, %v7400
        %7402 = vmatmul.bf16.gmra.mxu0 %v7254
        %v7403 = vpop.f32.mrf.mxu0
        %v7404 = vadd.f32 0.0, %v7403
        %v7405 = vpop.f32.mrf.mxu0
        %v7406 = vadd.f32 0.0, %v7405
        %7407 = vdwg.mxu0
        %v7408 = vld [vmem:[%s8] sm:$0x1]
        %v7410 = vperm.slane %v7408, 0
        %v7412 = vmul.f32 %v7329, %v7410
        %v7413 = vmul.f32 %v7331, %v7410
        %v7414 = vmul.f32 %v7334, %v7410
        %v7415 = vmul.f32 %v7336, %v7410
        %v7416 = vmul.f32 %v7339, %v7410
        %v7417 = vmul.f32 %v7341, %v7410
        %v7418 = vmul.f32 %v7344, %v7410
        %v7419 = vmul.f32 %v7346, %v7410
        %v7420 = vmul.f32 %v7349, %v7410
        %v7421 = vmul.f32 %v7351, %v7410
        %v7422 = vmul.f32 %v7354, %v7410
        %v7423 = vmul.f32 %v7356, %v7410
        %v7424 = vmul.f32 %v7359, %v7410
        %v7425 = vmul.f32 %v7361, %v7410
        %v7426 = vmul.f32 %v7364, %v7410
        %v7427 = vmul.f32 %v7366, %v7410
        %v7428 = vmul.f32 %v7369, %v7410
        %v7429 = vmul.f32 %v7371, %v7410
        %v7430 = vmul.f32 %v7374, %v7410
        %v7431 = vmul.f32 %v7376, %v7410
        %v7432 = vmul.f32 %v7379, %v7410
        %v7433 = vmul.f32 %v7381, %v7410
        %v7434 = vmul.f32 %v7384, %v7410
        %v7435 = vmul.f32 %v7386, %v7410
        %v7436 = vmul.f32 %v7389, %v7410
        %v7437 = vmul.f32 %v7391, %v7410
        %v7438 = vmul.f32 %v7394, %v7410
        %v7439 = vmul.f32 %v7396, %v7410
        %v7440 = vmul.f32 %v7399, %v7410
        %v7441 = vmul.f32 %v7401, %v7410
        %v7442 = vmul.f32 %v7404, %v7410
        %v7443 = vmul.f32 %v7406, %v7410
        %v7444 = vld [vmem:[%s9] sm:$0x1]
        %v7446 = vperm.slane %v7444, 0
        %v7448 = vadd.f32 %v7412, %v7446
        %v7449 = vadd.f32 %v7413, %v7446
        %v7450 = vadd.f32 %v7414, %v7446
        %v7451 = vadd.f32 %v7415, %v7446
        %v7452 = vadd.f32 %v7416, %v7446
        %v7453 = vadd.f32 %v7417, %v7446
        %v7454 = vadd.f32 %v7418, %v7446
        %v7455 = vadd.f32 %v7419, %v7446
        %v7456 = vadd.f32 %v7420, %v7446
        %v7457 = vadd.f32 %v7421, %v7446
        %v7458 = vadd.f32 %v7422, %v7446
        %v7459 = vadd.f32 %v7423, %v7446
        %v7460 = vadd.f32 %v7424, %v7446
        %v7461 = vadd.f32 %v7425, %v7446
        %v7462 = vadd.f32 %v7426, %v7446
        %v7463 = vadd.f32 %v7427, %v7446
        %v7464 = vadd.f32 %v7428, %v7446
        %v7465 = vadd.f32 %v7429, %v7446
        %v7466 = vadd.f32 %v7430, %v7446
        %v7467 = vadd.f32 %v7431, %v7446
        %v7468 = vadd.f32 %v7432, %v7446
        %v7469 = vadd.f32 %v7433, %v7446
        %v7470 = vadd.f32 %v7434, %v7446
        %v7471 = vadd.f32 %v7435, %v7446
        %v7472 = vadd.f32 %v7436, %v7446
        %v7473 = vadd.f32 %v7437, %v7446
        %v7474 = vadd.f32 %v7438, %v7446
        %v7475 = vadd.f32 %v7439, %v7446
        %v7476 = vadd.f32 %v7440, %v7446
        %v7477 = vadd.f32 %v7441, %v7446
        %v7478 = vadd.f32 %v7442, %v7446
        %v7479 = vadd.f32 %v7443, %v7446
        %v7480 = vadd.f32 %v7448, %v4071
        %v7481 = vadd.f32 %v7449, %v4072
        %v7482 = vadd.f32 %v7450, %v4073
        %v7483 = vadd.f32 %v7451, %v4074
        %v7484 = vadd.f32 %v7452, %v4075
        %v7485 = vadd.f32 %v7453, %v4076
        %v7486 = vadd.f32 %v7454, %v4077
        %v7487 = vadd.f32 %v7455, %v4078
        %v7488 = vadd.f32 %v7456, %v4079
        %v7489 = vadd.f32 %v7457, %v4080
        %v7490 = vadd.f32 %v7458, %v4081
        %v7491 = vadd.f32 %v7459, %v4082
        %v7492 = vadd.f32 %v7460, %v4083
        %v7493 = vadd.f32 %v7461, %v4084
        %v7494 = vadd.f32 %v7462, %v4085
        %v7495 = vadd.f32 %v7463, %v4086
        %v7496 = vadd.f32 %v7464, %v4087
        %v7497 = vadd.f32 %v7465, %v4088
        %v7498 = vadd.f32 %v7466, %v4089
        %v7499 = vadd.f32 %v7467, %v4090
        %v7500 = vadd.f32 %v7468, %v4091
        %v7501 = vadd.f32 %v7469, %v4092
        %v7502 = vadd.f32 %v7470, %v4093
        %v7503 = vadd.f32 %v7471, %v4094
        %v7504 = vadd.f32 %v7472, %v4095
        %v7505 = vadd.f32 %v7473, %v4096
        %v7506 = vadd.f32 %v7474, %v4097
        %v7507 = vadd.f32 %v7475, %v4098
        %v7508 = vadd.f32 %v7476, %v4099
        %v7509 = vadd.f32 %v7477, %v4100
        %v7510 = vadd.f32 %v7478, %v4101
        %v7511 = vadd.f32 %v7479, %v4102
        %v7512 = vmax.f32 %v7480, 0.0
        %v7513 = vmax.f32 %v7481, 0.0
        %v7514 = vmax.f32 %v7482, 0.0
        %v7515 = vmax.f32 %v7483, 0.0
        %v7516 = vmax.f32 %v7484, 0.0
        %v7517 = vmax.f32 %v7485, 0.0
        %v7518 = vmax.f32 %v7486, 0.0
        %v7519 = vmax.f32 %v7487, 0.0
        %v7520 = vmax.f32 %v7488, 0.0
        %v7521 = vmax.f32 %v7489, 0.0
        %v7522 = vmax.f32 %v7490, 0.0
        %v7523 = vmax.f32 %v7491, 0.0
        %v7524 = vmax.f32 %v7492, 0.0
        %v7525 = vmax.f32 %v7493, 0.0
        %v7526 = vmax.f32 %v7494, 0.0
        %v7527 = vmax.f32 %v7495, 0.0
        %v7528 = vmax.f32 %v7496, 0.0
        %v7529 = vmax.f32 %v7497, 0.0
        %v7530 = vmax.f32 %v7498, 0.0
        %v7531 = vmax.f32 %v7499, 0.0
        %v7532 = vmax.f32 %v7500, 0.0
        %v7533 = vmax.f32 %v7501, 0.0
        %v7534 = vmax.f32 %v7502, 0.0
        %v7535 = vmax.f32 %v7503, 0.0
        %v7536 = vmax.f32 %v7504, 0.0
        %v7537 = vmax.f32 %v7505, 0.0
        %v7538 = vmax.f32 %v7506, 0.0
        %v7539 = vmax.f32 %v7507, 0.0
        %v7540 = vmax.f32 %v7508, 0.0
        %v7541 = vmax.f32 %v7509, 0.0
        %v7542 = vmax.f32 %v7510, 0.0
        %v7543 = vmax.f32 %v7511, 0.0
        %s7544 = scalar_lea.vmem %s430, 256 [#allocation11]
        %7545 = vst [vmem:[%s7544] sm:$0xff] %v7512
        %7546 = vst [vmem:[%s7544 + $0x8] sm:$0xff] %v7513
        %7547 = vst [vmem:[%s7544 + $0x10] sm:$0xff] %v7514
        %7548 = vst [vmem:[%s7544 + $0x18] sm:$0xff] %v7515
        %7549 = vst [vmem:[%s7544 + $0x20] sm:$0xff] %v7516
        %7550 = vst [vmem:[%s7544 + $0x28] sm:$0xff] %v7517
        %7551 = vst [vmem:[%s7544 + $0x30] sm:$0xff] %v7518
        %7552 = vst [vmem:[%s7544 + $0x38] sm:$0xff] %v7519
        %7553 = vst [vmem:[%s7544 + $0x40] sm:$0xff] %v7520
        %7554 = vst [vmem:[%s7544 + $0x48] sm:$0xff] %v7521
        %7555 = vst [vmem:[%s7544 + $0x50] sm:$0xff] %v7522
        %7556 = vst [vmem:[%s7544 + $0x58] sm:$0xff] %v7523
        %7557 = vst [vmem:[%s7544 + $0x60] sm:$0xff] %v7524
        %7558 = vst [vmem:[%s7544 + $0x68] sm:$0xff] %v7525
        %7559 = vst [vmem:[%s7544 + $0x70] sm:$0xff] %v7526
        %7560 = vst [vmem:[%s7544 + $0x78] sm:$0xff] %v7527
        %7561 = vst [vmem:[%s7544 + $0x80] sm:$0xff] %v7528
        %7562 = vst [vmem:[%s7544 + $0x88] sm:$0xff] %v7529
        %7563 = vst [vmem:[%s7544 + $0x90] sm:$0xff] %v7530
        %7564 = vst [vmem:[%s7544 + $0x98] sm:$0xff] %v7531
        %7565 = vst [vmem:[%s7544 + $0xa0] sm:$0xff] %v7532
        %7566 = vst [vmem:[%s7544 + $0xa8] sm:$0xff] %v7533
        %7567 = vst [vmem:[%s7544 + $0xb0] sm:$0xff] %v7534
        %7568 = vst [vmem:[%s7544 + $0xb8] sm:$0xff] %v7535
        %7569 = vst [vmem:[%s7544 + $0xc0] sm:$0xff] %v7536
        %7570 = vst [vmem:[%s7544 + $0xc8] sm:$0xff] %v7537
        %7571 = vst [vmem:[%s7544 + $0xd0] sm:$0xff] %v7538
        %7572 = vst [vmem:[%s7544 + $0xd8] sm:$0xff] %v7539
        %7573 = vst [vmem:[%s7544 + $0xe0] sm:$0xff] %v7540
        %7574 = vst [vmem:[%s7544 + $0xe8] sm:$0xff] %v7541
        %7575 = vst [vmem:[%s7544 + $0xf0] sm:$0xff] %v7542
        %7576 = vst [vmem:[%s7544 + $0xf8] sm:$0xff] %v7543
        %s7577 = sand.u32 %s252, 1
        %s7578 = scalar_lea.sflag [#allocation5], %s7577
        %s7579 = sand.u32 %s252, 1
        %s7580 = smul.addr %s7579, 512
        %s7581 = scalar_lea.vmem [#allocation11], %s7580
        // Predicated region
        $region77: #{tpu_custom_call.1} parent=59 // pred_check
          %p7582 = pneg %p262
        $region78: #{tpu_custom_call.1} parent=59 // pred_check_branch
          %7584 = sbr.rel (%p7582) target = $region80
        $region79: #{tpu_custom_call.1} parent=59 // pred_region
          %s7585 = smul.u32 2, %s29
          %7587 = vsyncadd %s7578, 0
          %s7588 = smul.addr %s7585, 32
          %s7589 = smul.addr %s7588, 8
          %s7590 = scalar_lea.hbm %s10, %s7589
          %s7591 = sshll.u32 %s7581, 4
          %s7592 = int_to_ptr.vmem [resolvable:$true] %s7591
          %s7593 = sshll.u32 %s7590, 4
          %s7594 = int_to_ptr.hbm [resolvable:$true] %s7593
          %7599 = dma.vmem_to_hbm [thread:$0]  %s7592, 8192, %s7594, %s7578, 128, 128, 8
        $region80: #{tpu_custom_call.1} parent=59 // pred_fallthru
          _
      $region60: #{tpu_custom_call.1} parent=5 // pred_fallthru
        _
      %p7600 = scmp.le.s32.totalorder 2, %s24
      // Predicated region
      $region81: #{tpu_custom_call.1} parent=5 // pred_check
        %p7601 = pneg %p7600
      $region82: #{tpu_custom_call.1} parent=5 // pred_check_branch
        %7603 = sbr.rel (%p7601) target = $region84
      $region83: #{tpu_custom_call.1} parent=5 // pred_region
        %s7604 = ssub.s32 %s24, 2
        // Predicated region
        $region85: #{tpu_custom_call.1} parent=83 // pred_check
          %p7605 = pneg %p268
        $region86: #{tpu_custom_call.1} parent=83 // pred_check_branch
          %7607 = sbr.rel (%p7605) target = $region88
        $region87: #{tpu_custom_call.1} parent=83 // pred_region
          %s7608 = sand.u32 %s253, 1
          %s7609 = scalar_lea.sflag [#allocation5], %s7608
          %s7610 = sand.u32 %s253, 1
          %s7611 = smul.addr %s7610, 512
          %s7612 = scalar_lea.vmem [#allocation11], %s7611
          %7614 = dma.done %s7609, 8192
        $region88: #{tpu_custom_call.1} parent=83 // pred_fallthru
          _
      $region84: #{tpu_custom_call.1} parent=5 // pred_fallthru
        _
    $region6: #{tpu_custom_call.1} parent=1 // loop_footer
      %s28 = sadd.s32 1, %s24
    $region7: #{tpu_custom_call.1} parent=1 // loop_footer_branch
      %23 = sbr.rel target = $region3
    $region8: #{tpu_custom_call.1} parent=1 // loop_exit
      _
    %7615 = vsyncpa [#allocation4], 1
    %s7616 = scalar_lea.sflag [#allocation4], 1
    %7617 = vsyncpa %s7616, 1
    %7618 = vsyncpa [#allocation7], 1
    %7619 = vsyncpa [#allocation10], 1
    %7620 = vsyncpa [#allocation5], 1
    %s7621 = scalar_lea.sflag [#allocation5], 1
    %7622 = vsyncpa %s7621, 1

</llo_original>
